<compile_context>
chip_gen: v7x
topology: tpu7x:2x2x1
jax: 0.10.0
libtpu: 0.0.40
codegen_flags: <defaults>
</compile_context>

<pallas_src>
import jax
import jax.numpy as jnp
from jax.experimental import pallas as pl
from jax.experimental.pallas import tpu as pltpu

_EPS = 1e-5


# ---------------------------------------------------------------------------
# In-kernel building blocks
# ---------------------------------------------------------------------------

def _conv_bn_relu_block(col_bf16, w_ref, b_ref, g_ref, beta_ref):
    """One fused-K conv dot (bf16 x bf16 -> f32) + bias + train-mode BN + ReLU.

    col_bf16: (M, K) bf16 im2col operand; w_ref: (K, Cout) bf16.
    Returns an (M, Cout) float32 value.
    """
    m = col_bf16.shape[0]
    acc = jnp.dot(col_bf16, w_ref[...], preferred_element_type=jnp.float32)
    acc = acc + b_ref[...]                                          # conv bias (f32)

    # Training-mode BatchNorm2d: per-channel stats over (N, H, W), single pass.
    inv_m = 1.0 / m
    mean = jnp.sum(acc, axis=0, keepdims=True) * inv_m
    mean_sq = jnp.sum(acc * acc, axis=0, keepdims=True) * inv_m
    var = mean_sq - mean * mean                                     # biased, as torch
    scale = jax.lax.rsqrt(var + _EPS) * g_ref[...]
    y = (acc - mean) * scale + beta_ref[...]
    return jnp.maximum(y, 0.0)                                      # ReLU


def _im2col_from_padded(a_ref, *, n, h, w, col0, cin):
    """Gather the 9 shifted 3x3 taps of a zero-padded VMEM activation and fuse them
    along K: returns an (n*h*w, 9*cin) bf16 value (tap-major, then input channel)."""
    m = n * h * w
    taps = []
    for dy in range(3):
        for dx in range(3):
            t = a_ref[:, pl.ds(dy, h), pl.ds(col0 - 1 + dx, w), :]   # (n, h, w, cin)
            taps.append(t.reshape(m, cin).astype(jnp.bfloat16))
    return jnp.concatenate(taps, axis=-1)                            # (m, 9*cin)


def _maxpool2(y_ref, *, ho, wo):
    """2x2 / stride-2 max pool via stride-2 reads of a VMEM-resident ref."""
    p = None
    for a in range(2):
        for b in range(2):
            r = y_ref[:, pl.ds(a, ho, 2), pl.ds(b, wo, 2), :]
            p = r if p is None else jnp.maximum(p, r)
    return p                                                         # (n, ho, wo, c)


# ---------------------------------------------------------------------------
# The fused whole-network kernel
# ---------------------------------------------------------------------------

def _convnet_kernel(col1_ref,
                    w1_ref, b1_ref, g1_ref, be1_ref,
                    w2_ref, b2_ref, g2_ref, be2_ref,
                    w3_ref, b3_ref, g3_ref, be3_ref,
                    fcw_ref, fcb_ref,
                    out_ref,
                    y1_ref, a2_ref, y2_ref, a3_ref, y3_ref):
    n = y1_ref.shape[0]

    # Zero only the halo of the padded scratch buffers (interiors are fully
    # overwritten by the pooled stores). All slabs are sublane-aligned.
    a2_ref[:, 0:1, :, :] = jnp.zeros((n, 1, 32, 32), jnp.float32)       # top pad row
    a2_ref[:, 17:18, :, :] = jnp.zeros((n, 1, 32, 32), jnp.float32)     # bottom pad row
    a2_ref[:, 1:17, 0:8, :] = jnp.zeros((n, 16, 8, 32), jnp.float32)    # left pad cols
    a2_ref[:, 1:17, 24:32, :] = jnp.zeros((n, 16, 8, 32), jnp.float32)  # right pad cols

    a3_ref[:, 0:1, :, :] = jnp.zeros((n, 1, 24, 32), jnp.float32)
    a3_ref[:, 9:10, :, :] = jnp.zeros((n, 1, 24, 32), jnp.float32)
    a3_ref[:, 1:9, 0:8, :] = jnp.zeros((n, 8, 8, 32), jnp.float32)
    a3_ref[:, 1:9, 16:24, :] = jnp.zeros((n, 8, 8, 32), jnp.float32)

    # ---- layer 1: single K=27 dot on the host-built im2col + BN + ReLU + pool ----
    y1 = _conv_bn_relu_block(col1_ref[...], w1_ref, b1_ref, g1_ref, be1_ref)  # (n*1024, 32)
    y1_ref[...] = y1.reshape(n, 32, 32, 32)
    # Pooled 16x16 block lands at (row 1, col 8) of the zero-haloed padded scratch:
    # column offset 8 keeps the store sublane-aligned while providing the pad ring.
    a2_ref[:, 1:17, 8:24, :] = _maxpool2(y1_ref, ho=16, wo=16)

    # ---- layer 2: fused-K (288) conv + BN + ReLU + pool ----
    col2 = _im2col_from_padded(a2_ref, n=n, h=16, w=16, col0=8, cin=32)       # (512, 288)
    y2 = _conv_bn_relu_block(col2, w2_ref, b2_ref, g2_ref, be2_ref)           # (512, 32)
    y2_ref[...] = y2.reshape(n, 16, 16, 32)
    a3_ref[:, 1:9, 8:16, :] = _maxpool2(y2_ref, ho=8, wo=8)

    # ---- layer 3: fused-K (288) conv + BN + ReLU ----
    col3 = _im2col_from_padded(a3_ref, n=n, h=8, w=8, col0=8, cin=32)         # (128, 288)
    y3 = _conv_bn_relu_block(col3, w3_ref, b3_ref, g3_ref, be3_ref)           # (128, 64)
    y3_ref[...] = y3.reshape(n, 8, 8, 64)

    # ---- final 2x2 max pool + flatten + fc as ONE K=1024 dot ----
    # Feature order is (pool_y, pool_x, channel); the torch NCHW flatten order is
    # folded into the fc weight layout at init time.
    feats = []
    for i in range(4):
        for j in range(4):
            v00 = y3_ref[:, 2 * i, 2 * j, :]
            v01 = y3_ref[:, 2 * i, 2 * j + 1, :]
            v10 = y3_ref[:, 2 * i + 1, 2 * j, :]
            v11 = y3_ref[:, 2 * i + 1, 2 * j + 1, :]
            feats.append(jnp.maximum(jnp.maximum(v00, v01), jnp.maximum(v10, v11)))
    feat = jnp.concatenate(feats, axis=-1).astype(jnp.bfloat16)               # (n, 1024)
    logits = jax.lax.dot_general(
        feat, fcw_ref[...],
        dimension_numbers=(((1,), (1,)), ((), ())),   # contract K=1024, fcw is (nc, 1024)
        preferred_element_type=jnp.float32)
    out_ref[...] = logits + fcb_ref[...]


# ---------------------------------------------------------------------------
# Host-side wrapper
# ---------------------------------------------------------------------------

_VMEM_SPEC = pl.BlockSpec(memory_space=pltpu.MemorySpace.VMEM)


@jax.jit
def convnet_forward(params, x_nchw):
    n = x_nchw.shape[0]
    num_classes = params["fc_b"].shape[1]
    assert x_nchw.shape[1:] == (3, 32, 32)

    # Layer-1 im2col on the host (pure data movement, fused by XLA): NCHW -> NHWC,
    # zero-pad, gather the 9 taps, fuse along K. Feature order = (tap, cin).
    x = jnp.transpose(x_nchw, (0, 2, 3, 1)).astype(jnp.float32)               # (n,32,32,3)
    xpad = jnp.pad(x, ((0, 0), (1, 1), (1, 1), (0, 0)))                       # (n,34,34,3)
    taps = [xpad[:, dy:dy + 32, dx:dx + 32, :] for dy in range(3) for dx in range(3)]
    col1 = (jnp.concatenate(taps, axis=-1)                                    # (n,32,32,27)
            .reshape(n * 32 * 32, 27)
            .astype(jnp.bfloat16))

    kernel_args = (
        col1,
        params["w1"], params["b1"], params["g1"], params["be1"],
        params["w2"], params["b2"], params["g2"], params["be2"],
        params["w3"], params["b3"], params["g3"], params["be3"],
        params["fc_w"], params["fc_b"],
    )
    scratch_shapes = [
        pltpu.VMEM((n, 32, 32, 32), jnp.float32),   # layer1 pre-pool activation
        pltpu.VMEM((n, 18, 32, 32), jnp.float32),   # layer2 padded input (valid @ (1, 8))
        pltpu.VMEM((n, 16, 16, 32), jnp.float32),   # layer2 pre-pool activation
        pltpu.VMEM((n, 10, 24, 32), jnp.float32),   # layer3 padded input (valid @ (1, 8))
        pltpu.VMEM((n, 8, 8, 64), jnp.float32),     # layer3 pre-pool activation
    ]
    return pl.pallas_call(
        _convnet_kernel,
        out_shape=jax.ShapeDtypeStruct((n, num_classes), jnp.float32),
        in_specs=[_VMEM_SPEC] * len(kernel_args),
        out_specs=_VMEM_SPEC,
        scratch_shapes=scratch_shapes,
        compiler_params=pltpu.CompilerParams(vmem_limit_bytes=24 * 1024 * 1024),
    )(*kernel_args)


# ---------------------------------------------------------------------------
# Parameter init (torch module shapes; all kernel re-layouts hoisted here)
# ---------------------------------------------------------------------------

def init_params(key, num_classes=2):
    k1, k2, k3, k4 = jax.random.split(key, 4)

    def conv_init(k, cout, cin):
        fan_in = cin * 9
        w = jax.random.normal(k, (cout, cin, 3, 3), jnp.float32) / jnp.sqrt(fan_in)
        b = jnp.zeros((cout,), jnp.float32)
        gamma = jnp.ones((cout,), jnp.float32)    # BatchNorm2d default affine init
        beta = jnp.zeros((cout,), jnp.float32)
        return w, b, gamma, beta

    # Logical shapes follow the torch module: 3->30, 30->32, 32->64, fc 1024->classes.
    w1, b1, g1, be1 = conv_init(k1, 30, 3)
    w2, b2, g2, be2 = conv_init(k2, 32, 30)
    w3, b3, g3, be3 = conv_init(k3, 64, 32)
    fc_w = (jax.random.normal(k4, (num_classes, 4 * 4 * 64), jnp.float32)
            / jnp.sqrt(4 * 4 * 64))
    fc_b = jnp.zeros((num_classes,), jnp.float32)

    # Pad layer-1 Cout 30 -> 32 with exact zeros (numerically identical network:
    # padded channels stay 0 through BN/ReLU and hit zero layer-2 weights).
    w1p = jnp.pad(w1, ((0, 2), (0, 0), (0, 0), (0, 0)))
    b1p = jnp.pad(b1, (0, 2))
    g1p = jnp.pad(g1, (0, 2), constant_values=1.0)
    be1p = jnp.pad(be1, (0, 2))
    w2p = jnp.pad(w2, ((0, 0), (0, 2), (0, 0), (0, 0)))   # zero the 2 extra in-channels

    def conv_w_layout(w):
        # torch (Cout, Cin, 3, 3) -> fused-K (9*Cin, Cout) bf16; row = (dy*3+dx)*Cin + ci.
        cout, cin = w.shape[0], w.shape[1]
        return (jnp.transpose(w, (2, 3, 1, 0))
                .reshape(9 * cin, cout)
                .astype(jnp.bfloat16))

    def vec(v):
        return v.reshape(1, -1).astype(jnp.float32)

    # Fold the torch NCHW flatten (feature = c*16 + y*4 + x) into a 2-D, lane-dense
    # fc weight laid out for the kernel's (y, x, c) feature order.
    fc_w_k = (fc_w.reshape(num_classes, 64, 4, 4)
              .transpose(0, 2, 3, 1)                      # (nc, y, x, c)
              .reshape(num_classes, 4 * 4 * 64)
              .astype(jnp.bfloat16))

    return {
        "w1": conv_w_layout(w1p), "b1": vec(b1p), "g1": vec(g1p), "be1": vec(be1p),
        "w2": conv_w_layout(w2p), "b2": vec(b2), "g2": vec(g2), "be2": vec(be2),
        "w3": conv_w_layout(w3), "b3": vec(b3), "g3": vec(g3), "be3": vec(be3),
        "fc_w": fc_w_k, "fc_b": vec(fc_b),
    }


if __name__ == "__main__":
    key = jax.random.PRNGKey(0)
    pkey, xkey = jax.random.split(key)
    params = init_params(pkey, num_classes=2)
    # Spatial size 32 is implied by the fc layer (4*4*64 after three /2 pools).
    x = jax.random.normal(xkey, (2, 3, 32, 32), jnp.float32)   # NCHW, like torch
    out = convnet_forward(params, x)
    jax.block_until_ready(out)
    assert out.shape == (2, 2) and out.dtype == jnp.float32
    assert bool(jnp.all(jnp.isfinite(out)))
    print("KERNEL_OK")
</pallas_src>

<mosaic_0001>
module attributes {stable_mosaic.version = 11 : i64} {
  func.func @_convnet_kernel(%arg0: memref<2048x27xbf16, #tpu.memory_space<vmem>>, %arg1: memref<27x32xbf16, #tpu.memory_space<vmem>>, %arg2: memref<1x32xf32, #tpu.memory_space<vmem>>, %arg3: memref<1x32xf32, #tpu.memory_space<vmem>>, %arg4: memref<1x32xf32, #tpu.memory_space<vmem>>, %arg5: memref<288x32xbf16, #tpu.memory_space<vmem>>, %arg6: memref<1x32xf32, #tpu.memory_space<vmem>>, %arg7: memref<1x32xf32, #tpu.memory_space<vmem>>, %arg8: memref<1x32xf32, #tpu.memory_space<vmem>>, %arg9: memref<288x64xbf16, #tpu.memory_space<vmem>>, %arg10: memref<1x64xf32, #tpu.memory_space<vmem>>, %arg11: memref<1x64xf32, #tpu.memory_space<vmem>>, %arg12: memref<1x64xf32, #tpu.memory_space<vmem>>, %arg13: memref<2x1024xbf16, #tpu.memory_space<vmem>>, %arg14: memref<1x2xf32, #tpu.memory_space<vmem>>, %arg15: memref<2x2xf32, #tpu.memory_space<vmem>>, %arg16: memref<2x32x32x32xf32, #tpu.memory_space<vmem>>, %arg17: memref<2x18x32x32xf32, #tpu.memory_space<vmem>>, %arg18: memref<2x16x16x32xf32, #tpu.memory_space<vmem>>, %arg19: memref<2x10x24x32xf32, #tpu.memory_space<vmem>>, %arg20: memref<2x8x8x64xf32, #tpu.memory_space<vmem>>) attributes {dimension_semantics = [], scalar_prefetch = 0 : i64, scratch_operands = 5 : i64, tpu.core_type = #tpu.core_type<tc>} {
    %cst = arith.constant 0.000000e+00 : f32
    %0 = vector.broadcast %cst : f32 to vector<2x1x32x32xf32>
    %c0 = arith.constant 0 : index
    %c0_0 = arith.constant 0 : index
    %c0_1 = arith.constant 0 : index
    %c0_2 = arith.constant 0 : index
    %1 = vector.load %arg17[%c0, %c0_0, %c0_1, %c0_2] : memref<2x18x32x32xf32, #tpu.memory_space<vmem>>, vector<2x1x32x32xf32>
    tpu.vector_store %arg17[%c0, %c0_0, %c0_1, %c0_2], %0 {strides = array<i32>} : memref<2x18x32x32xf32, #tpu.memory_space<vmem>>, vector<2x1x32x32xf32>,
    %cst_3 = arith.constant 0.000000e+00 : f32
    %2 = vector.broadcast %cst_3 : f32 to vector<2x1x32x32xf32>
    %c0_4 = arith.constant 0 : index
    %c17 = arith.constant 17 : index
    %c0_5 = arith.constant 0 : index
    %c0_6 = arith.constant 0 : index
    %3 = vector.load %arg17[%c0_4, %c17, %c0_5, %c0_6] : memref<2x18x32x32xf32, #tpu.memory_space<vmem>>, vector<2x1x32x32xf32>
    tpu.vector_store %arg17[%c0_4, %c17, %c0_5, %c0_6], %2 {strides = array<i32>} : memref<2x18x32x32xf32, #tpu.memory_space<vmem>>, vector<2x1x32x32xf32>,
    %cst_7 = arith.constant 0.000000e+00 : f32
    %4 = vector.broadcast %cst_7 : f32 to vector<2x16x8x32xf32>
    %c0_8 = arith.constant 0 : index
    %c1 = arith.constant 1 : index
    %c0_9 = arith.constant 0 : index
    %c0_10 = arith.constant 0 : index
    %5 = vector.load %arg17[%c0_8, %c1, %c0_9, %c0_10] : memref<2x18x32x32xf32, #tpu.memory_space<vmem>>, vector<2x16x8x32xf32>
    tpu.vector_store %arg17[%c0_8, %c1, %c0_9, %c0_10], %4 {strides = array<i32>} : memref<2x18x32x32xf32, #tpu.memory_space<vmem>>, vector<2x16x8x32xf32>,
    %cst_11 = arith.constant 0.000000e+00 : f32
    %6 = vector.broadcast %cst_11 : f32 to vector<2x16x8x32xf32>
    %c0_12 = arith.constant 0 : index
    %c1_13 = arith.constant 1 : index
    %c24 = arith.constant 24 : index
    %c0_14 = arith.constant 0 : index
    %7 = vector.load %arg17[%c0_12, %c1_13, %c24, %c0_14] : memref<2x18x32x32xf32, #tpu.memory_space<vmem>>, vector<2x16x8x32xf32>
    tpu.vector_store %arg17[%c0_12, %c1_13, %c24, %c0_14], %6 {strides = array<i32>} : memref<2x18x32x32xf32, #tpu.memory_space<vmem>>, vector<2x16x8x32xf32>,
    %cst_15 = arith.constant 0.000000e+00 : f32
    %8 = vector.broadcast %cst_15 : f32 to vector<2x1x24x32xf32>
    %c0_16 = arith.constant 0 : index
    %c0_17 = arith.constant 0 : index
    %c0_18 = arith.constant 0 : index
    %c0_19 = arith.constant 0 : index
    %9 = vector.load %arg19[%c0_16, %c0_17, %c0_18, %c0_19] : memref<2x10x24x32xf32, #tpu.memory_space<vmem>>, vector<2x1x24x32xf32>
    tpu.vector_store %arg19[%c0_16, %c0_17, %c0_18, %c0_19], %8 {strides = array<i32>} : memref<2x10x24x32xf32, #tpu.memory_space<vmem>>, vector<2x1x24x32xf32>,
    %cst_20 = arith.constant 0.000000e+00 : f32
    %10 = vector.broadcast %cst_20 : f32 to vector<2x1x24x32xf32>
    %c0_21 = arith.constant 0 : index
    %c9 = arith.constant 9 : index
    %c0_22 = arith.constant 0 : index
    %c0_23 = arith.constant 0 : index
    %11 = vector.load %arg19[%c0_21, %c9, %c0_22, %c0_23] : memref<2x10x24x32xf32, #tpu.memory_space<vmem>>, vector<2x1x24x32xf32>
    tpu.vector_store %arg19[%c0_21, %c9, %c0_22, %c0_23], %10 {strides = array<i32>} : memref<2x10x24x32xf32, #tpu.memory_space<vmem>>, vector<2x1x24x32xf32>,
    %cst_24 = arith.constant 0.000000e+00 : f32
    %12 = vector.broadcast %cst_24 : f32 to vector<2x8x8x32xf32>
    %c0_25 = arith.constant 0 : index
    %c1_26 = arith.constant 1 : index
    %c0_27 = arith.constant 0 : index
    %c0_28 = arith.constant 0 : index
    %13 = vector.load %arg19[%c0_25, %c1_26, %c0_27, %c0_28] : memref<2x10x24x32xf32, #tpu.memory_space<vmem>>, vector<2x8x8x32xf32>
    tpu.vector_store %arg19[%c0_25, %c1_26, %c0_27, %c0_28], %12 {strides = array<i32>} : memref<2x10x24x32xf32, #tpu.memory_space<vmem>>, vector<2x8x8x32xf32>,
    %cst_29 = arith.constant 0.000000e+00 : f32
    %14 = vector.broadcast %cst_29 : f32 to vector<2x8x8x32xf32>
    %c0_30 = arith.constant 0 : index
    %c1_31 = arith.constant 1 : index
    %c16 = arith.constant 16 : index
    %c0_32 = arith.constant 0 : index
    %15 = vector.load %arg19[%c0_30, %c1_31, %c16, %c0_32] : memref<2x10x24x32xf32, #tpu.memory_space<vmem>>, vector<2x8x8x32xf32>
    tpu.vector_store %arg19[%c0_30, %c1_31, %c16, %c0_32], %14 {strides = array<i32>} : memref<2x10x24x32xf32, #tpu.memory_space<vmem>>, vector<2x8x8x32xf32>,
    %c0_33 = arith.constant 0 : index
    %c0_34 = arith.constant 0 : index
    %16 = vector.load %arg0[%c0_33, %c0_34] : memref<2048x27xbf16, #tpu.memory_space<vmem>>, vector<2048x27xbf16>
    %c0_35 = arith.constant 0 : index
    %c0_36 = arith.constant 0 : index
    %17 = vector.load %arg1[%c0_35, %c0_36] : memref<27x32xbf16, #tpu.memory_space<vmem>>, vector<27x32xbf16>
    %cst_37 = arith.constant dense<0.000000e+00> : vector<2048x32xf32>
    %18 = tpu.matmul %16, %17, %cst_37 {dimension_numbers = #tpu.dot_dimension_numbers<[1], [0], [0], [1], [0, 0, 1, 1], [], []>} : vector<2048x27xbf16>, vector<27x32xbf16>, vector<2048x32xf32> -> vector<2048x32xf32>
    %c0_38 = arith.constant 0 : index
    %c0_39 = arith.constant 0 : index
    %19 = vector.load %arg2[%c0_38, %c0_39] : memref<1x32xf32, #tpu.memory_space<vmem>>, vector<1x32xf32>
    %20 = vector.broadcast %19 : vector<1x32xf32> to vector<2048x32xf32>
    %21 = arith.addf %18, %20 : vector<2048x32xf32>
    %cst_40 = arith.constant dense<0.000000e+00> : vector<32xf32>
    %22 = vector.multi_reduction <add>, %21, %cst_40 [0] : vector<2048x32xf32> to vector<32xf32>
    %23 = vector.shape_cast %22 : vector<32xf32> to vector<1x32xf32>
    %cst_41 = arith.constant 4.8828125E-4 : f32
    %24 = vector.broadcast %cst_41 : f32 to vector<1x32xf32>
    %25 = arith.mulf %23, %24 : vector<1x32xf32>
    %26 = arith.mulf %21, %21 : vector<2048x32xf32>
    %cst_42 = arith.constant dense<0.000000e+00> : vector<32xf32>
    %27 = vector.multi_reduction <add>, %26, %cst_42 [0] : vector<2048x32xf32> to vector<32xf32>
    %28 = vector.shape_cast %27 : vector<32xf32> to vector<1x32xf32>
    %cst_43 = arith.constant 4.8828125E-4 : f32
    %29 = vector.broadcast %cst_43 : f32 to vector<1x32xf32>
    %30 = arith.mulf %28, %29 : vector<1x32xf32>
    %31 = arith.mulf %25, %25 : vector<1x32xf32>
    %32 = arith.subf %30, %31 : vector<1x32xf32>
    %cst_44 = arith.constant 9.99999974E-6 : f32
    %33 = vector.broadcast %cst_44 : f32 to vector<1x32xf32>
    %34 = arith.addf %32, %33 : vector<1x32xf32>
    %35 = math.rsqrt %34 : vector<1x32xf32>
    %c0_45 = arith.constant 0 : index
    %c0_46 = arith.constant 0 : index
    %36 = vector.load %arg3[%c0_45, %c0_46] : memref<1x32xf32, #tpu.memory_space<vmem>>, vector<1x32xf32>
    %37 = arith.mulf %35, %36 : vector<1x32xf32>
    %38 = vector.broadcast %25 : vector<1x32xf32> to vector<2048x32xf32>
    %39 = arith.subf %21, %38 : vector<2048x32xf32>
    %40 = vector.broadcast %37 : vector<1x32xf32> to vector<2048x32xf32>
    %41 = arith.mulf %39, %40 : vector<2048x32xf32>
    %c0_47 = arith.constant 0 : index
    %c0_48 = arith.constant 0 : index
    %42 = vector.load %arg4[%c0_47, %c0_48] : memref<1x32xf32, #tpu.memory_space<vmem>>, vector<1x32xf32>
    %43 = vector.broadcast %42 : vector<1x32xf32> to vector<2048x32xf32>
    %44 = arith.addf %41, %43 : vector<2048x32xf32>
    %cst_49 = arith.constant 0.000000e+00 : f32
    %45 = vector.broadcast %cst_49 : f32 to vector<2048x32xf32>
    %46 = arith.maximumf %44, %45 : vector<2048x32xf32>
    %47 = vector.shape_cast %46 : vector<2048x32xf32> to vector<2x32x32x32xf32>
    %c0_50 = arith.constant 0 : index
    %c0_51 = arith.constant 0 : index
    %c0_52 = arith.constant 0 : index
    %c0_53 = arith.constant 0 : index
    %48 = vector.load %arg16[%c0_50, %c0_51, %c0_52, %c0_53] : memref<2x32x32x32xf32, #tpu.memory_space<vmem>>, vector<2x32x32x32xf32>
    tpu.vector_store %arg16[%c0_50, %c0_51, %c0_52, %c0_53], %47 {strides = array<i32>} : memref<2x32x32x32xf32, #tpu.memory_space<vmem>>, vector<2x32x32x32xf32>,
    %c0_54 = arith.constant 0 : index
    %c0_55 = arith.constant 0 : index
    %c0_56 = arith.constant 0 : index
    %c0_57 = arith.constant 0 : index
    %49 = tpu.strided_load %arg16[%c0_54, %c0_55, %c0_56, %c0_57] {strides = array<i32: 1, 2, 2, 1>} : memref<2x32x32x32xf32, #tpu.memory_space<vmem>>, vector<2x16x16x32xf32>
    %c0_58 = arith.constant 0 : index
    %c0_59 = arith.constant 0 : index
    %c1_60 = arith.constant 1 : index
    %c0_61 = arith.constant 0 : index
    %50 = tpu.strided_load %arg16[%c0_58, %c0_59, %c1_60, %c0_61] {strides = array<i32: 1, 2, 2, 1>} : memref<2x32x32x32xf32, #tpu.memory_space<vmem>>, vector<2x16x16x32xf32>
    %51 = arith.maximumf %49, %50 : vector<2x16x16x32xf32>
    %c0_62 = arith.constant 0 : index
    %c1_63 = arith.constant 1 : index
    %c0_64 = arith.constant 0 : index
    %c0_65 = arith.constant 0 : index
    %52 = tpu.strided_load %arg16[%c0_62, %c1_63, %c0_64, %c0_65] {strides = array<i32: 1, 2, 2, 1>} : memref<2x32x32x32xf32, #tpu.memory_space<vmem>>, vector<2x16x16x32xf32>
    %53 = arith.maximumf %51, %52 : vector<2x16x16x32xf32>
    %c0_66 = arith.constant 0 : index
    %c1_67 = arith.constant 1 : index
    %c1_68 = arith.constant 1 : index
    %c0_69 = arith.constant 0 : index
    %54 = tpu.strided_load %arg16[%c0_66, %c1_67, %c1_68, %c0_69] {strides = array<i32: 1, 2, 2, 1>} : memref<2x32x32x32xf32, #tpu.memory_space<vmem>>, vector<2x16x16x32xf32>
    %55 = arith.maximumf %53, %54 : vector<2x16x16x32xf32>
    %c0_70 = arith.constant 0 : index
    %c1_71 = arith.constant 1 : index
    %c8 = arith.constant 8 : index
    %c0_72 = arith.constant 0 : index
    %56 = vector.load %arg17[%c0_70, %c1_71, %c8, %c0_72] : memref<2x18x32x32xf32, #tpu.memory_space<vmem>>, vector<2x16x16x32xf32>
    tpu.vector_store %arg17[%c0_70, %c1_71, %c8, %c0_72], %55 {strides = array<i32>} : memref<2x18x32x32xf32, #tpu.memory_space<vmem>>, vector<2x16x16x32xf32>,
    %c0_73 = arith.constant 0 : index
    %c0_74 = arith.constant 0 : index
    %c7 = arith.constant 7 : index
    %c0_75 = arith.constant 0 : index
    %57 = vector.load %arg17[%c0_73, %c0_74, %c7, %c0_75] : memref<2x18x32x32xf32, #tpu.memory_space<vmem>>, vector<2x16x16x32xf32>
    %58 = vector.shape_cast %57 : vector<2x16x16x32xf32> to vector<512x32xf32>
    %59 = arith.truncf %58 : vector<512x32xf32> to vector<512x32xbf16>
    %c0_76 = arith.constant 0 : index
    %c0_77 = arith.constant 0 : index
    %c8_78 = arith.constant 8 : index
    %c0_79 = arith.constant 0 : index
    %60 = vector.load %arg17[%c0_76, %c0_77, %c8_78, %c0_79] : memref<2x18x32x32xf32, #tpu.memory_space<vmem>>, vector<2x16x16x32xf32>
    %61 = vector.shape_cast %60 : vector<2x16x16x32xf32> to vector<512x32xf32>
    %62 = arith.truncf %61 : vector<512x32xf32> to vector<512x32xbf16>
    %c0_80 = arith.constant 0 : index
    %c0_81 = arith.constant 0 : index
    %c9_82 = arith.constant 9 : index
    %c0_83 = arith.constant 0 : index
    %63 = vector.load %arg17[%c0_80, %c0_81, %c9_82, %c0_83] : memref<2x18x32x32xf32, #tpu.memory_space<vmem>>, vector<2x16x16x32xf32>
    %64 = vector.shape_cast %63 : vector<2x16x16x32xf32> to vector<512x32xf32>
    %65 = arith.truncf %64 : vector<512x32xf32> to vector<512x32xbf16>
    %c0_84 = arith.constant 0 : index
    %c1_85 = arith.constant 1 : index
    %c7_86 = arith.constant 7 : index
    %c0_87 = arith.constant 0 : index
    %66 = vector.load %arg17[%c0_84, %c1_85, %c7_86, %c0_87] : memref<2x18x32x32xf32, #tpu.memory_space<vmem>>, vector<2x16x16x32xf32>
    %67 = vector.shape_cast %66 : vector<2x16x16x32xf32> to vector<512x32xf32>
    %68 = arith.truncf %67 : vector<512x32xf32> to vector<512x32xbf16>
    %c0_88 = arith.constant 0 : index
    %c1_89 = arith.constant 1 : index
    %c8_90 = arith.constant 8 : index
    %c0_91 = arith.constant 0 : index
    %69 = vector.load %arg17[%c0_88, %c1_89, %c8_90, %c0_91] : memref<2x18x32x32xf32, #tpu.memory_space<vmem>>, vector<2x16x16x32xf32>
    %70 = vector.shape_cast %69 : vector<2x16x16x32xf32> to vector<512x32xf32>
    %71 = arith.truncf %70 : vector<512x32xf32> to vector<512x32xbf16>
    %c0_92 = arith.constant 0 : index
    %c1_93 = arith.constant 1 : index
    %c9_94 = arith.constant 9 : index
    %c0_95 = arith.constant 0 : index
    %72 = vector.load %arg17[%c0_92, %c1_93, %c9_94, %c0_95] : memref<2x18x32x32xf32, #tpu.memory_space<vmem>>, vector<2x16x16x32xf32>
    %73 = vector.shape_cast %72 : vector<2x16x16x32xf32> to vector<512x32xf32>
    %74 = arith.truncf %73 : vector<512x32xf32> to vector<512x32xbf16>
    %c0_96 = arith.constant 0 : index
    %c2 = arith.constant 2 : index
    %c7_97 = arith.constant 7 : index
    %c0_98 = arith.constant 0 : index
    %75 = vector.load %arg17[%c0_96, %c2, %c7_97, %c0_98] : memref<2x18x32x32xf32, #tpu.memory_space<vmem>>, vector<2x16x16x32xf32>
    %76 = vector.shape_cast %75 : vector<2x16x16x32xf32> to vector<512x32xf32>
    %77 = arith.truncf %76 : vector<512x32xf32> to vector<512x32xbf16>
    %c0_99 = arith.constant 0 : index
    %c2_100 = arith.constant 2 : index
    %c8_101 = arith.constant 8 : index
    %c0_102 = arith.constant 0 : index
    %78 = vector.load %arg17[%c0_99, %c2_100, %c8_101, %c0_102] : memref<2x18x32x32xf32, #tpu.memory_space<vmem>>, vector<2x16x16x32xf32>
    %79 = vector.shape_cast %78 : vector<2x16x16x32xf32> to vector<512x32xf32>
    %80 = arith.truncf %79 : vector<512x32xf32> to vector<512x32xbf16>
    %c0_103 = arith.constant 0 : index
    %c2_104 = arith.constant 2 : index
    %c9_105 = arith.constant 9 : index
    %c0_106 = arith.constant 0 : index
    %81 = vector.load %arg17[%c0_103, %c2_104, %c9_105, %c0_106] : memref<2x18x32x32xf32, #tpu.memory_space<vmem>>, vector<2x16x16x32xf32>
    %82 = vector.shape_cast %81 : vector<2x16x16x32xf32> to vector<512x32xf32>
    %83 = arith.truncf %82 : vector<512x32xf32> to vector<512x32xbf16>
    %84 = tpu.concatenate %59, %62, %65, %68, %71, %74, %77, %80, %83 in 1 : vector<512x32xbf16>, vector<512x32xbf16>, vector<512x32xbf16>, vector<512x32xbf16>, vector<512x32xbf16>, vector<512x32xbf16>, vector<512x32xbf16>, vector<512x32xbf16>, vector<512x32xbf16> -> vector<512x288xbf16>
    %c0_107 = arith.constant 0 : index
    %c0_108 = arith.constant 0 : index
    %85 = vector.load %arg5[%c0_107, %c0_108] : memref<288x32xbf16, #tpu.memory_space<vmem>>, vector<288x32xbf16>
    %cst_109 = arith.constant dense<0.000000e+00> : vector<512x32xf32>
    %86 = tpu.matmul %84, %85, %cst_109 {dimension_numbers = #tpu.dot_dimension_numbers<[1], [0], [0], [1], [0, 0, 1, 1], [], []>} : vector<512x288xbf16>, vector<288x32xbf16>, vector<512x32xf32> -> vector<512x32xf32>
    %c0_110 = arith.constant 0 : index
    %c0_111 = arith.constant 0 : index
    %87 = vector.load %arg6[%c0_110, %c0_111] : memref<1x32xf32, #tpu.memory_space<vmem>>, vector<1x32xf32>
    %88 = vector.broadcast %87 : vector<1x32xf32> to vector<512x32xf32>
    %89 = arith.addf %86, %88 : vector<512x32xf32>
    %cst_112 = arith.constant dense<0.000000e+00> : vector<32xf32>
    %90 = vector.multi_reduction <add>, %89, %cst_112 [0] : vector<512x32xf32> to vector<32xf32>
    %91 = vector.shape_cast %90 : vector<32xf32> to vector<1x32xf32>
    %cst_113 = arith.constant 0.001953125 : f32
    %92 = vector.broadcast %cst_113 : f32 to vector<1x32xf32>
    %93 = arith.mulf %91, %92 : vector<1x32xf32>
    %94 = arith.mulf %89, %89 : vector<512x32xf32>
    %cst_114 = arith.constant dense<0.000000e+00> : vector<32xf32>
    %95 = vector.multi_reduction <add>, %94, %cst_114 [0] : vector<512x32xf32> to vector<32xf32>
    %96 = vector.shape_cast %95 : vector<32xf32> to vector<1x32xf32>
    %cst_115 = arith.constant 0.001953125 : f32
    %97 = vector.broadcast %cst_115 : f32 to vector<1x32xf32>
    %98 = arith.mulf %96, %97 : vector<1x32xf32>
    %99 = arith.mulf %93, %93 : vector<1x32xf32>
    %100 = arith.subf %98, %99 : vector<1x32xf32>
    %cst_116 = arith.constant 9.99999974E-6 : f32
    %101 = vector.broadcast %cst_116 : f32 to vector<1x32xf32>
    %102 = arith.addf %100, %101 : vector<1x32xf32>
    %103 = math.rsqrt %102 : vector<1x32xf32>
    %c0_117 = arith.constant 0 : index
    %c0_118 = arith.constant 0 : index
    %104 = vector.load %arg7[%c0_117, %c0_118] : memref<1x32xf32, #tpu.memory_space<vmem>>, vector<1x32xf32>
    %105 = arith.mulf %103, %104 : vector<1x32xf32>
    %106 = vector.broadcast %93 : vector<1x32xf32> to vector<512x32xf32>
    %107 = arith.subf %89, %106 : vector<512x32xf32>
    %108 = vector.broadcast %105 : vector<1x32xf32> to vector<512x32xf32>
    %109 = arith.mulf %107, %108 : vector<512x32xf32>
    %c0_119 = arith.constant 0 : index
    %c0_120 = arith.constant 0 : index
    %110 = vector.load %arg8[%c0_119, %c0_120] : memref<1x32xf32, #tpu.memory_space<vmem>>, vector<1x32xf32>
    %111 = vector.broadcast %110 : vector<1x32xf32> to vector<512x32xf32>
    %112 = arith.addf %109, %111 : vector<512x32xf32>
    %cst_121 = arith.constant 0.000000e+00 : f32
    %113 = vector.broadcast %cst_121 : f32 to vector<512x32xf32>
    %114 = arith.maximumf %112, %113 : vector<512x32xf32>
    %115 = vector.shape_cast %114 : vector<512x32xf32> to vector<2x16x16x32xf32>
    %c0_122 = arith.constant 0 : index
    %c0_123 = arith.constant 0 : index
    %c0_124 = arith.constant 0 : index
    %c0_125 = arith.constant 0 : index
    %116 = vector.load %arg18[%c0_122, %c0_123, %c0_124, %c0_125] : memref<2x16x16x32xf32, #tpu.memory_space<vmem>>, vector<2x16x16x32xf32>
    tpu.vector_store %arg18[%c0_122, %c0_123, %c0_124, %c0_125], %115 {strides = array<i32>} : memref<2x16x16x32xf32, #tpu.memory_space<vmem>>, vector<2x16x16x32xf32>,
    %c0_126 = arith.constant 0 : index
    %c0_127 = arith.constant 0 : index
    %c0_128 = arith.constant 0 : index
    %c0_129 = arith.constant 0 : index
    %117 = tpu.strided_load %arg18[%c0_126, %c0_127, %c0_128, %c0_129] {strides = array<i32: 1, 2, 2, 1>} : memref<2x16x16x32xf32, #tpu.memory_space<vmem>>, vector<2x8x8x32xf32>
    %c0_130 = arith.constant 0 : index
    %c0_131 = arith.constant 0 : index
    %c1_132 = arith.constant 1 : index
    %c0_133 = arith.constant 0 : index
    %118 = tpu.strided_load %arg18[%c0_130, %c0_131, %c1_132, %c0_133] {strides = array<i32: 1, 2, 2, 1>} : memref<2x16x16x32xf32, #tpu.memory_space<vmem>>, vector<2x8x8x32xf32>
    %119 = arith.maximumf %117, %118 : vector<2x8x8x32xf32>
    %c0_134 = arith.constant 0 : index
    %c1_135 = arith.constant 1 : index
    %c0_136 = arith.constant 0 : index
    %c0_137 = arith.constant 0 : index
    %120 = tpu.strided_load %arg18[%c0_134, %c1_135, %c0_136, %c0_137] {strides = array<i32: 1, 2, 2, 1>} : memref<2x16x16x32xf32, #tpu.memory_space<vmem>>, vector<2x8x8x32xf32>
    %121 = arith.maximumf %119, %120 : vector<2x8x8x32xf32>
    %c0_138 = arith.constant 0 : index
    %c1_139 = arith.constant 1 : index
    %c1_140 = arith.constant 1 : index
    %c0_141 = arith.constant 0 : index
    %122 = tpu.strided_load %arg18[%c0_138, %c1_139, %c1_140, %c0_141] {strides = array<i32: 1, 2, 2, 1>} : memref<2x16x16x32xf32, #tpu.memory_space<vmem>>, vector<2x8x8x32xf32>
    %123 = arith.maximumf %121, %122 : vector<2x8x8x32xf32>
    %c0_142 = arith.constant 0 : index
    %c1_143 = arith.constant 1 : index
    %c8_144 = arith.constant 8 : index
    %c0_145 = arith.constant 0 : index
    %124 = vector.load %arg19[%c0_142, %c1_143, %c8_144, %c0_145] : memref<2x10x24x32xf32, #tpu.memory_space<vmem>>, vector<2x8x8x32xf32>
    tpu.vector_store %arg19[%c0_142, %c1_143, %c8_144, %c0_145], %123 {strides = array<i32>} : memref<2x10x24x32xf32, #tpu.memory_space<vmem>>, vector<2x8x8x32xf32>,
    %c0_146 = arith.constant 0 : index
    %c0_147 = arith.constant 0 : index
    %c7_148 = arith.constant 7 : index
    %c0_149 = arith.constant 0 : index
    %125 = vector.load %arg19[%c0_146, %c0_147, %c7_148, %c0_149] : memref<2x10x24x32xf32, #tpu.memory_space<vmem>>, vector<2x8x8x32xf32>
    %126 = vector.shape_cast %125 : vector<2x8x8x32xf32> to vector<128x32xf32>
    %127 = arith.truncf %126 : vector<128x32xf32> to vector<128x32xbf16>
    %c0_150 = arith.constant 0 : index
    %c0_151 = arith.constant 0 : index
    %c8_152 = arith.constant 8 : index
    %c0_153 = arith.constant 0 : index
    %128 = vector.load %arg19[%c0_150, %c0_151, %c8_152, %c0_153] : memref<2x10x24x32xf32, #tpu.memory_space<vmem>>, vector<2x8x8x32xf32>
    %129 = vector.shape_cast %128 : vector<2x8x8x32xf32> to vector<128x32xf32>
    %130 = arith.truncf %129 : vector<128x32xf32> to vector<128x32xbf16>
    %c0_154 = arith.constant 0 : index
    %c0_155 = arith.constant 0 : index
    %c9_156 = arith.constant 9 : index
    %c0_157 = arith.constant 0 : index
    %131 = vector.load %arg19[%c0_154, %c0_155, %c9_156, %c0_157] : memref<2x10x24x32xf32, #tpu.memory_space<vmem>>, vector<2x8x8x32xf32>
    %132 = vector.shape_cast %131 : vector<2x8x8x32xf32> to vector<128x32xf32>
    %133 = arith.truncf %132 : vector<128x32xf32> to vector<128x32xbf16>
    %c0_158 = arith.constant 0 : index
    %c1_159 = arith.constant 1 : index
    %c7_160 = arith.constant 7 : index
    %c0_161 = arith.constant 0 : index
    %134 = vector.load %arg19[%c0_158, %c1_159, %c7_160, %c0_161] : memref<2x10x24x32xf32, #tpu.memory_space<vmem>>, vector<2x8x8x32xf32>
    %135 = vector.shape_cast %134 : vector<2x8x8x32xf32> to vector<128x32xf32>
    %136 = arith.truncf %135 : vector<128x32xf32> to vector<128x32xbf16>
    %c0_162 = arith.constant 0 : index
    %c1_163 = arith.constant 1 : index
    %c8_164 = arith.constant 8 : index
    %c0_165 = arith.constant 0 : index
    %137 = vector.load %arg19[%c0_162, %c1_163, %c8_164, %c0_165] : memref<2x10x24x32xf32, #tpu.memory_space<vmem>>, vector<2x8x8x32xf32>
    %138 = vector.shape_cast %137 : vector<2x8x8x32xf32> to vector<128x32xf32>
    %139 = arith.truncf %138 : vector<128x32xf32> to vector<128x32xbf16>
    %c0_166 = arith.constant 0 : index
    %c1_167 = arith.constant 1 : index
    %c9_168 = arith.constant 9 : index
    %c0_169 = arith.constant 0 : index
    %140 = vector.load %arg19[%c0_166, %c1_167, %c9_168, %c0_169] : memref<2x10x24x32xf32, #tpu.memory_space<vmem>>, vector<2x8x8x32xf32>
    %141 = vector.shape_cast %140 : vector<2x8x8x32xf32> to vector<128x32xf32>
    %142 = arith.truncf %141 : vector<128x32xf32> to vector<128x32xbf16>
    %c0_170 = arith.constant 0 : index
    %c2_171 = arith.constant 2 : index
    %c7_172 = arith.constant 7 : index
    %c0_173 = arith.constant 0 : index
    %143 = vector.load %arg19[%c0_170, %c2_171, %c7_172, %c0_173] : memref<2x10x24x32xf32, #tpu.memory_space<vmem>>, vector<2x8x8x32xf32>
    %144 = vector.shape_cast %143 : vector<2x8x8x32xf32> to vector<128x32xf32>
    %145 = arith.truncf %144 : vector<128x32xf32> to vector<128x32xbf16>
    %c0_174 = arith.constant 0 : index
    %c2_175 = arith.constant 2 : index
    %c8_176 = arith.constant 8 : index
    %c0_177 = arith.constant 0 : index
    %146 = vector.load %arg19[%c0_174, %c2_175, %c8_176, %c0_177] : memref<2x10x24x32xf32, #tpu.memory_space<vmem>>, vector<2x8x8x32xf32>
    %147 = vector.shape_cast %146 : vector<2x8x8x32xf32> to vector<128x32xf32>
    %148 = arith.truncf %147 : vector<128x32xf32> to vector<128x32xbf16>
    %c0_178 = arith.constant 0 : index
    %c2_179 = arith.constant 2 : index
    %c9_180 = arith.constant 9 : index
    %c0_181 = arith.constant 0 : index
    %149 = vector.load %arg19[%c0_178, %c2_179, %c9_180, %c0_181] : memref<2x10x24x32xf32, #tpu.memory_space<vmem>>, vector<2x8x8x32xf32>
    %150 = vector.shape_cast %149 : vector<2x8x8x32xf32> to vector<128x32xf32>
    %151 = arith.truncf %150 : vector<128x32xf32> to vector<128x32xbf16>
    %152 = tpu.concatenate %127, %130, %133, %136, %139, %142, %145, %148, %151 in 1 : vector<128x32xbf16>, vector<128x32xbf16>, vector<128x32xbf16>, vector<128x32xbf16>, vector<128x32xbf16>, vector<128x32xbf16>, vector<128x32xbf16>, vector<128x32xbf16>, vector<128x32xbf16> -> vector<128x288xbf16>
    %c0_182 = arith.constant 0 : index
    %c0_183 = arith.constant 0 : index
    %153 = vector.load %arg9[%c0_182, %c0_183] : memref<288x64xbf16, #tpu.memory_space<vmem>>, vector<288x64xbf16>
    %cst_184 = arith.constant dense<0.000000e+00> : vector<128x64xf32>
    %154 = tpu.matmul %152, %153, %cst_184 {dimension_numbers = #tpu.dot_dimension_numbers<[1], [0], [0], [1], [0, 0, 1, 1], [], []>} : vector<128x288xbf16>, vector<288x64xbf16>, vector<128x64xf32> -> vector<128x64xf32>
    %c0_185 = arith.constant 0 : index
    %c0_186 = arith.constant 0 : index
    %155 = vector.load %arg10[%c0_185, %c0_186] : memref<1x64xf32, #tpu.memory_space<vmem>>, vector<1x64xf32>
    %156 = vector.broadcast %155 : vector<1x64xf32> to vector<128x64xf32>
    %157 = arith.addf %154, %156 : vector<128x64xf32>
    %cst_187 = arith.constant dense<0.000000e+00> : vector<64xf32>
    %158 = vector.multi_reduction <add>, %157, %cst_187 [0] : vector<128x64xf32> to vector<64xf32>
    %159 = vector.shape_cast %158 : vector<64xf32> to vector<1x64xf32>
    %cst_188 = arith.constant 7.812500e-03 : f32
    %160 = vector.broadcast %cst_188 : f32 to vector<1x64xf32>
    %161 = arith.mulf %159, %160 : vector<1x64xf32>
    %162 = arith.mulf %157, %157 : vector<128x64xf32>
    %cst_189 = arith.constant dense<0.000000e+00> : vector<64xf32>
    %163 = vector.multi_reduction <add>, %162, %cst_189 [0] : vector<128x64xf32> to vector<64xf32>
    %164 = vector.shape_cast %163 : vector<64xf32> to vector<1x64xf32>
    %cst_190 = arith.constant 7.812500e-03 : f32
    %165 = vector.broadcast %cst_190 : f32 to vector<1x64xf32>
    %166 = arith.mulf %164, %165 : vector<1x64xf32>
    %167 = arith.mulf %161, %161 : vector<1x64xf32>
    %168 = arith.subf %166, %167 : vector<1x64xf32>
    %cst_191 = arith.constant 9.99999974E-6 : f32
    %169 = vector.broadcast %cst_191 : f32 to vector<1x64xf32>
    %170 = arith.addf %168, %169 : vector<1x64xf32>
    %171 = math.rsqrt %170 : vector<1x64xf32>
    %c0_192 = arith.constant 0 : index
    %c0_193 = arith.constant 0 : index
    %172 = vector.load %arg11[%c0_192, %c0_193] : memref<1x64xf32, #tpu.memory_space<vmem>>, vector<1x64xf32>
    %173 = arith.mulf %171, %172 : vector<1x64xf32>
    %174 = vector.broadcast %161 : vector<1x64xf32> to vector<128x64xf32>
    %175 = arith.subf %157, %174 : vector<128x64xf32>
    %176 = vector.broadcast %173 : vector<1x64xf32> to vector<128x64xf32>
    %177 = arith.mulf %175, %176 : vector<128x64xf32>
    %c0_194 = arith.constant 0 : index
    %c0_195 = arith.constant 0 : index
    %178 = vector.load %arg12[%c0_194, %c0_195] : memref<1x64xf32, #tpu.memory_space<vmem>>, vector<1x64xf32>
    %179 = vector.broadcast %178 : vector<1x64xf32> to vector<128x64xf32>
    %180 = arith.addf %177, %179 : vector<128x64xf32>
    %cst_196 = arith.constant 0.000000e+00 : f32
    %181 = vector.broadcast %cst_196 : f32 to vector<128x64xf32>
    %182 = arith.maximumf %180, %181 : vector<128x64xf32>
    %183 = vector.shape_cast %182 : vector<128x64xf32> to vector<2x8x8x64xf32>
    %c0_197 = arith.constant 0 : index
    %c0_198 = arith.constant 0 : index
    %c0_199 = arith.constant 0 : index
    %c0_200 = arith.constant 0 : index
    %184 = vector.load %arg20[%c0_197, %c0_198, %c0_199, %c0_200] : memref<2x8x8x64xf32, #tpu.memory_space<vmem>>, vector<2x8x8x64xf32>
    tpu.vector_store %arg20[%c0_197, %c0_198, %c0_199, %c0_200], %183 {strides = array<i32>} : memref<2x8x8x64xf32, #tpu.memory_space<vmem>>, vector<2x8x8x64xf32>,
    %c0_201 = arith.constant 0 : index
    %c0_202 = arith.constant 0 : index
    %c0_203 = arith.constant 0 : index
    %c0_204 = arith.constant 0 : index
    %185 = vector.load %arg20[%c0_201, %c0_202, %c0_203, %c0_204] : memref<2x8x8x64xf32, #tpu.memory_space<vmem>>, vector<2x1x1x64xf32>
    %186 = vector.shape_cast %185 : vector<2x1x1x64xf32> to vector<2x64xf32>
    %c0_205 = arith.constant 0 : index
    %c0_206 = arith.constant 0 : index
    %c1_207 = arith.constant 1 : index
    %c0_208 = arith.constant 0 : index
    %187 = vector.load %arg20[%c0_205, %c0_206, %c1_207, %c0_208] : memref<2x8x8x64xf32, #tpu.memory_space<vmem>>, vector<2x1x1x64xf32>
    %188 = vector.shape_cast %187 : vector<2x1x1x64xf32> to vector<2x64xf32>
    %c0_209 = arith.constant 0 : index
    %c1_210 = arith.constant 1 : index
    %c0_211 = arith.constant 0 : index
    %c0_212 = arith.constant 0 : index
    %189 = vector.load %arg20[%c0_209, %c1_210, %c0_211, %c0_212] : memref<2x8x8x64xf32, #tpu.memory_space<vmem>>, vector<2x1x1x64xf32>
    %190 = vector.shape_cast %189 : vector<2x1x1x64xf32> to vector<2x64xf32>
    %c0_213 = arith.constant 0 : index
    %c1_214 = arith.constant 1 : index
    %c1_215 = arith.constant 1 : index
    %c0_216 = arith.constant 0 : index
    %191 = vector.load %arg20[%c0_213, %c1_214, %c1_215, %c0_216] : memref<2x8x8x64xf32, #tpu.memory_space<vmem>>, vector<2x1x1x64xf32>
    %192 = vector.shape_cast %191 : vector<2x1x1x64xf32> to vector<2x64xf32>
    %193 = arith.maximumf %186, %188 : vector<2x64xf32>
    %194 = arith.maximumf %190, %192 : vector<2x64xf32>
    %195 = arith.maximumf %193, %194 : vector<2x64xf32>
    %c0_217 = arith.constant 0 : index
    %c0_218 = arith.constant 0 : index
    %c2_219 = arith.constant 2 : index
    %c0_220 = arith.constant 0 : index
    %196 = vector.load %arg20[%c0_217, %c0_218, %c2_219, %c0_220] : memref<2x8x8x64xf32, #tpu.memory_space<vmem>>, vector<2x1x1x64xf32>
    %197 = vector.shape_cast %196 : vector<2x1x1x64xf32> to vector<2x64xf32>
    %c0_221 = arith.constant 0 : index
    %c0_222 = arith.constant 0 : index
    %c3 = arith.constant 3 : index
    %c0_223 = arith.constant 0 : index
    %198 = vector.load %arg20[%c0_221, %c0_222, %c3, %c0_223] : memref<2x8x8x64xf32, #tpu.memory_space<vmem>>, vector<2x1x1x64xf32>
    %199 = vector.shape_cast %198 : vector<2x1x1x64xf32> to vector<2x64xf32>
    %c0_224 = arith.constant 0 : index
    %c1_225 = arith.constant 1 : index
    %c2_226 = arith.constant 2 : index
    %c0_227 = arith.constant 0 : index
    %200 = vector.load %arg20[%c0_224, %c1_225, %c2_226, %c0_227] : memref<2x8x8x64xf32, #tpu.memory_space<vmem>>, vector<2x1x1x64xf32>
    %201 = vector.shape_cast %200 : vector<2x1x1x64xf32> to vector<2x64xf32>
    %c0_228 = arith.constant 0 : index
    %c1_229 = arith.constant 1 : index
    %c3_230 = arith.constant 3 : index
    %c0_231 = arith.constant 0 : index
    %202 = vector.load %arg20[%c0_228, %c1_229, %c3_230, %c0_231] : memref<2x8x8x64xf32, #tpu.memory_space<vmem>>, vector<2x1x1x64xf32>
    %203 = vector.shape_cast %202 : vector<2x1x1x64xf32> to vector<2x64xf32>
    %204 = arith.maximumf %197, %199 : vector<2x64xf32>
    %205 = arith.maximumf %201, %203 : vector<2x64xf32>
    %206 = arith.maximumf %204, %205 : vector<2x64xf32>
    %c0_232 = arith.constant 0 : index
    %c0_233 = arith.constant 0 : index
    %c4 = arith.constant 4 : index
    %c0_234 = arith.constant 0 : index
    %207 = vector.load %arg20[%c0_232, %c0_233, %c4, %c0_234] : memref<2x8x8x64xf32, #tpu.memory_space<vmem>>, vector<2x1x1x64xf32>
    %208 = vector.shape_cast %207 : vector<2x1x1x64xf32> to vector<2x64xf32>
    %c0_235 = arith.constant 0 : index
    %c0_236 = arith.constant 0 : index
    %c5 = arith.constant 5 : index
    %c0_237 = arith.constant 0 : index
    %209 = vector.load %arg20[%c0_235, %c0_236, %c5, %c0_237] : memref<2x8x8x64xf32, #tpu.memory_space<vmem>>, vector<2x1x1x64xf32>
    %210 = vector.shape_cast %209 : vector<2x1x1x64xf32> to vector<2x64xf32>
    %c0_238 = arith.constant 0 : index
    %c1_239 = arith.constant 1 : index
    %c4_240 = arith.constant 4 : index
    %c0_241 = arith.constant 0 : index
    %211 = vector.load %arg20[%c0_238, %c1_239, %c4_240, %c0_241] : memref<2x8x8x64xf32, #tpu.memory_space<vmem>>, vector<2x1x1x64xf32>
    %212 = vector.shape_cast %211 : vector<2x1x1x64xf32> to vector<2x64xf32>
    %c0_242 = arith.constant 0 : index
    %c1_243 = arith.constant 1 : index
    %c5_244 = arith.constant 5 : index
    %c0_245 = arith.constant 0 : index
    %213 = vector.load %arg20[%c0_242, %c1_243, %c5_244, %c0_245] : memref<2x8x8x64xf32, #tpu.memory_space<vmem>>, vector<2x1x1x64xf32>
    %214 = vector.shape_cast %213 : vector<2x1x1x64xf32> to vector<2x64xf32>
    %215 = arith.maximumf %208, %210 : vector<2x64xf32>
    %216 = arith.maximumf %212, %214 : vector<2x64xf32>
    %217 = arith.maximumf %215, %216 : vector<2x64xf32>
    %c0_246 = arith.constant 0 : index
    %c0_247 = arith.constant 0 : index
    %c6 = arith.constant 6 : index
    %c0_248 = arith.constant 0 : index
    %218 = vector.load %arg20[%c0_246, %c0_247, %c6, %c0_248] : memref<2x8x8x64xf32, #tpu.memory_space<vmem>>, vector<2x1x1x64xf32>
    %219 = vector.shape_cast %218 : vector<2x1x1x64xf32> to vector<2x64xf32>
    %c0_249 = arith.constant 0 : index
    %c0_250 = arith.constant 0 : index
    %c7_251 = arith.constant 7 : index
    %c0_252 = arith.constant 0 : index
    %220 = vector.load %arg20[%c0_249, %c0_250, %c7_251, %c0_252] : memref<2x8x8x64xf32, #tpu.memory_space<vmem>>, vector<2x1x1x64xf32>
    %221 = vector.shape_cast %220 : vector<2x1x1x64xf32> to vector<2x64xf32>
    %c0_253 = arith.constant 0 : index
    %c1_254 = arith.constant 1 : index
    %c6_255 = arith.constant 6 : index
    %c0_256 = arith.constant 0 : index
    %222 = vector.load %arg20[%c0_253, %c1_254, %c6_255, %c0_256] : memref<2x8x8x64xf32, #tpu.memory_space<vmem>>, vector<2x1x1x64xf32>
    %223 = vector.shape_cast %222 : vector<2x1x1x64xf32> to vector<2x64xf32>
    %c0_257 = arith.constant 0 : index
    %c1_258 = arith.constant 1 : index
    %c7_259 = arith.constant 7 : index
    %c0_260 = arith.constant 0 : index
    %224 = vector.load %arg20[%c0_257, %c1_258, %c7_259, %c0_260] : memref<2x8x8x64xf32, #tpu.memory_space<vmem>>, vector<2x1x1x64xf32>
    %225 = vector.shape_cast %224 : vector<2x1x1x64xf32> to vector<2x64xf32>
    %226 = arith.maximumf %219, %221 : vector<2x64xf32>
    %227 = arith.maximumf %223, %225 : vector<2x64xf32>
    %228 = arith.maximumf %226, %227 : vector<2x64xf32>
    %c0_261 = arith.constant 0 : index
    %c2_262 = arith.constant 2 : index
    %c0_263 = arith.constant 0 : index
    %c0_264 = arith.constant 0 : index
    %229 = vector.load %arg20[%c0_261, %c2_262, %c0_263, %c0_264] : memref<2x8x8x64xf32, #tpu.memory_space<vmem>>, vector<2x1x1x64xf32>
    %230 = vector.shape_cast %229 : vector<2x1x1x64xf32> to vector<2x64xf32>
    %c0_265 = arith.constant 0 : index
    %c2_266 = arith.constant 2 : index
    %c1_267 = arith.constant 1 : index
    %c0_268 = arith.constant 0 : index
    %231 = vector.load %arg20[%c0_265, %c2_266, %c1_267, %c0_268] : memref<2x8x8x64xf32, #tpu.memory_space<vmem>>, vector<2x1x1x64xf32>
    %232 = vector.shape_cast %231 : vector<2x1x1x64xf32> to vector<2x64xf32>
    %c0_269 = arith.constant 0 : index
    %c3_270 = arith.constant 3 : index
    %c0_271 = arith.constant 0 : index
    %c0_272 = arith.constant 0 : index
    %233 = vector.load %arg20[%c0_269, %c3_270, %c0_271, %c0_272] : memref<2x8x8x64xf32, #tpu.memory_space<vmem>>, vector<2x1x1x64xf32>
    %234 = vector.shape_cast %233 : vector<2x1x1x64xf32> to vector<2x64xf32>
    %c0_273 = arith.constant 0 : index
    %c3_274 = arith.constant 3 : index
    %c1_275 = arith.constant 1 : index
    %c0_276 = arith.constant 0 : index
    %235 = vector.load %arg20[%c0_273, %c3_274, %c1_275, %c0_276] : memref<2x8x8x64xf32, #tpu.memory_space<vmem>>, vector<2x1x1x64xf32>
    %236 = vector.shape_cast %235 : vector<2x1x1x64xf32> to vector<2x64xf32>
    %237 = arith.maximumf %230, %232 : vector<2x64xf32>
    %238 = arith.maximumf %234, %236 : vector<2x64xf32>
    %239 = arith.maximumf %237, %238 : vector<2x64xf32>
    %c0_277 = arith.constant 0 : index
    %c2_278 = arith.constant 2 : index
    %c2_279 = arith.constant 2 : index
    %c0_280 = arith.constant 0 : index
    %240 = vector.load %arg20[%c0_277, %c2_278, %c2_279, %c0_280] : memref<2x8x8x64xf32, #tpu.memory_space<vmem>>, vector<2x1x1x64xf32>
    %241 = vector.shape_cast %240 : vector<2x1x1x64xf32> to vector<2x64xf32>
    %c0_281 = arith.constant 0 : index
    %c2_282 = arith.constant 2 : index
    %c3_283 = arith.constant 3 : index
    %c0_284 = arith.constant 0 : index
    %242 = vector.load %arg20[%c0_281, %c2_282, %c3_283, %c0_284] : memref<2x8x8x64xf32, #tpu.memory_space<vmem>>, vector<2x1x1x64xf32>
    %243 = vector.shape_cast %242 : vector<2x1x1x64xf32> to vector<2x64xf32>
    %c0_285 = arith.constant 0 : index
    %c3_286 = arith.constant 3 : index
    %c2_287 = arith.constant 2 : index
    %c0_288 = arith.constant 0 : index
    %244 = vector.load %arg20[%c0_285, %c3_286, %c2_287, %c0_288] : memref<2x8x8x64xf32, #tpu.memory_space<vmem>>, vector<2x1x1x64xf32>
    %245 = vector.shape_cast %244 : vector<2x1x1x64xf32> to vector<2x64xf32>
    %c0_289 = arith.constant 0 : index
    %c3_290 = arith.constant 3 : index
    %c3_291 = arith.constant 3 : index
    %c0_292 = arith.constant 0 : index
    %246 = vector.load %arg20[%c0_289, %c3_290, %c3_291, %c0_292] : memref<2x8x8x64xf32, #tpu.memory_space<vmem>>, vector<2x1x1x64xf32>
    %247 = vector.shape_cast %246 : vector<2x1x1x64xf32> to vector<2x64xf32>
    %248 = arith.maximumf %241, %243 : vector<2x64xf32>
    %249 = arith.maximumf %245, %247 : vector<2x64xf32>
    %250 = arith.maximumf %248, %249 : vector<2x64xf32>
    %c0_293 = arith.constant 0 : index
    %c2_294 = arith.constant 2 : index
    %c4_295 = arith.constant 4 : index
    %c0_296 = arith.constant 0 : index
    %251 = vector.load %arg20[%c0_293, %c2_294, %c4_295, %c0_296] : memref<2x8x8x64xf32, #tpu.memory_space<vmem>>, vector<2x1x1x64xf32>
    %252 = vector.shape_cast %251 : vector<2x1x1x64xf32> to vector<2x64xf32>
    %c0_297 = arith.constant 0 : index
    %c2_298 = arith.constant 2 : index
    %c5_299 = arith.constant 5 : index
    %c0_300 = arith.constant 0 : index
    %253 = vector.load %arg20[%c0_297, %c2_298, %c5_299, %c0_300] : memref<2x8x8x64xf32, #tpu.memory_space<vmem>>, vector<2x1x1x64xf32>
    %254 = vector.shape_cast %253 : vector<2x1x1x64xf32> to vector<2x64xf32>
    %c0_301 = arith.constant 0 : index
    %c3_302 = arith.constant 3 : index
    %c4_303 = arith.constant 4 : index
    %c0_304 = arith.constant 0 : index
    %255 = vector.load %arg20[%c0_301, %c3_302, %c4_303, %c0_304] : memref<2x8x8x64xf32, #tpu.memory_space<vmem>>, vector<2x1x1x64xf32>
    %256 = vector.shape_cast %255 : vector<2x1x1x64xf32> to vector<2x64xf32>
    %c0_305 = arith.constant 0 : index
    %c3_306 = arith.constant 3 : index
    %c5_307 = arith.constant 5 : index
    %c0_308 = arith.constant 0 : index
    %257 = vector.load %arg20[%c0_305, %c3_306, %c5_307, %c0_308] : memref<2x8x8x64xf32, #tpu.memory_space<vmem>>, vector<2x1x1x64xf32>
    %258 = vector.shape_cast %257 : vector<2x1x1x64xf32> to vector<2x64xf32>
    %259 = arith.maximumf %252, %254 : vector<2x64xf32>
    %260 = arith.maximumf %256, %258 : vector<2x64xf32>
    %261 = arith.maximumf %259, %260 : vector<2x64xf32>
    %c0_309 = arith.constant 0 : index
    %c2_310 = arith.constant 2 : index
    %c6_311 = arith.constant 6 : index
    %c0_312 = arith.constant 0 : index
    %262 = vector.load %arg20[%c0_309, %c2_310, %c6_311, %c0_312] : memref<2x8x8x64xf32, #tpu.memory_space<vmem>>, vector<2x1x1x64xf32>
    %263 = vector.shape_cast %262 : vector<2x1x1x64xf32> to vector<2x64xf32>
    %c0_313 = arith.constant 0 : index
    %c2_314 = arith.constant 2 : index
    %c7_315 = arith.constant 7 : index
    %c0_316 = arith.constant 0 : index
    %264 = vector.load %arg20[%c0_313, %c2_314, %c7_315, %c0_316] : memref<2x8x8x64xf32, #tpu.memory_space<vmem>>, vector<2x1x1x64xf32>
    %265 = vector.shape_cast %264 : vector<2x1x1x64xf32> to vector<2x64xf32>
    %c0_317 = arith.constant 0 : index
    %c3_318 = arith.constant 3 : index
    %c6_319 = arith.constant 6 : index
    %c0_320 = arith.constant 0 : index
    %266 = vector.load %arg20[%c0_317, %c3_318, %c6_319, %c0_320] : memref<2x8x8x64xf32, #tpu.memory_space<vmem>>, vector<2x1x1x64xf32>
    %267 = vector.shape_cast %266 : vector<2x1x1x64xf32> to vector<2x64xf32>
    %c0_321 = arith.constant 0 : index
    %c3_322 = arith.constant 3 : index
    %c7_323 = arith.constant 7 : index
    %c0_324 = arith.constant 0 : index
    %268 = vector.load %arg20[%c0_321, %c3_322, %c7_323, %c0_324] : memref<2x8x8x64xf32, #tpu.memory_space<vmem>>, vector<2x1x1x64xf32>
    %269 = vector.shape_cast %268 : vector<2x1x1x64xf32> to vector<2x64xf32>
    %270 = arith.maximumf %263, %265 : vector<2x64xf32>
    %271 = arith.maximumf %267, %269 : vector<2x64xf32>
    %272 = arith.maximumf %270, %271 : vector<2x64xf32>
    %c0_325 = arith.constant 0 : index
    %c4_326 = arith.constant 4 : index
    %c0_327 = arith.constant 0 : index
    %c0_328 = arith.constant 0 : index
    %273 = vector.load %arg20[%c0_325, %c4_326, %c0_327, %c0_328] : memref<2x8x8x64xf32, #tpu.memory_space<vmem>>, vector<2x1x1x64xf32>
    %274 = vector.shape_cast %273 : vector<2x1x1x64xf32> to vector<2x64xf32>
    %c0_329 = arith.constant 0 : index
    %c4_330 = arith.constant 4 : index
    %c1_331 = arith.constant 1 : index
    %c0_332 = arith.constant 0 : index
    %275 = vector.load %arg20[%c0_329, %c4_330, %c1_331, %c0_332] : memref<2x8x8x64xf32, #tpu.memory_space<vmem>>, vector<2x1x1x64xf32>
    %276 = vector.shape_cast %275 : vector<2x1x1x64xf32> to vector<2x64xf32>
    %c0_333 = arith.constant 0 : index
    %c5_334 = arith.constant 5 : index
    %c0_335 = arith.constant 0 : index
    %c0_336 = arith.constant 0 : index
    %277 = vector.load %arg20[%c0_333, %c5_334, %c0_335, %c0_336] : memref<2x8x8x64xf32, #tpu.memory_space<vmem>>, vector<2x1x1x64xf32>
    %278 = vector.shape_cast %277 : vector<2x1x1x64xf32> to vector<2x64xf32>
    %c0_337 = arith.constant 0 : index
    %c5_338 = arith.constant 5 : index
    %c1_339 = arith.constant 1 : index
    %c0_340 = arith.constant 0 : index
    %279 = vector.load %arg20[%c0_337, %c5_338, %c1_339, %c0_340] : memref<2x8x8x64xf32, #tpu.memory_space<vmem>>, vector<2x1x1x64xf32>
    %280 = vector.shape_cast %279 : vector<2x1x1x64xf32> to vector<2x64xf32>
    %281 = arith.maximumf %274, %276 : vector<2x64xf32>
    %282 = arith.maximumf %278, %280 : vector<2x64xf32>
    %283 = arith.maximumf %281, %282 : vector<2x64xf32>
    %c0_341 = arith.constant 0 : index
    %c4_342 = arith.constant 4 : index
    %c2_343 = arith.constant 2 : index
    %c0_344 = arith.constant 0 : index
    %284 = vector.load %arg20[%c0_341, %c4_342, %c2_343, %c0_344] : memref<2x8x8x64xf32, #tpu.memory_space<vmem>>, vector<2x1x1x64xf32>
    %285 = vector.shape_cast %284 : vector<2x1x1x64xf32> to vector<2x64xf32>
    %c0_345 = arith.constant 0 : index
    %c4_346 = arith.constant 4 : index
    %c3_347 = arith.constant 3 : index
    %c0_348 = arith.constant 0 : index
    %286 = vector.load %arg20[%c0_345, %c4_346, %c3_347, %c0_348] : memref<2x8x8x64xf32, #tpu.memory_space<vmem>>, vector<2x1x1x64xf32>
    %287 = vector.shape_cast %286 : vector<2x1x1x64xf32> to vector<2x64xf32>
    %c0_349 = arith.constant 0 : index
    %c5_350 = arith.constant 5 : index
    %c2_351 = arith.constant 2 : index
    %c0_352 = arith.constant 0 : index
    %288 = vector.load %arg20[%c0_349, %c5_350, %c2_351, %c0_352] : memref<2x8x8x64xf32, #tpu.memory_space<vmem>>, vector<2x1x1x64xf32>
    %289 = vector.shape_cast %288 : vector<2x1x1x64xf32> to vector<2x64xf32>
    %c0_353 = arith.constant 0 : index
    %c5_354 = arith.constant 5 : index
    %c3_355 = arith.constant 3 : index
    %c0_356 = arith.constant 0 : index
    %290 = vector.load %arg20[%c0_353, %c5_354, %c3_355, %c0_356] : memref<2x8x8x64xf32, #tpu.memory_space<vmem>>, vector<2x1x1x64xf32>
    %291 = vector.shape_cast %290 : vector<2x1x1x64xf32> to vector<2x64xf32>
    %292 = arith.maximumf %285, %287 : vector<2x64xf32>
    %293 = arith.maximumf %289, %291 : vector<2x64xf32>
    %294 = arith.maximumf %292, %293 : vector<2x64xf32>
    %c0_357 = arith.constant 0 : index
    %c4_358 = arith.constant 4 : index
    %c4_359 = arith.constant 4 : index
    %c0_360 = arith.constant 0 : index
    %295 = vector.load %arg20[%c0_357, %c4_358, %c4_359, %c0_360] : memref<2x8x8x64xf32, #tpu.memory_space<vmem>>, vector<2x1x1x64xf32>
    %296 = vector.shape_cast %295 : vector<2x1x1x64xf32> to vector<2x64xf32>
    %c0_361 = arith.constant 0 : index
    %c4_362 = arith.constant 4 : index
    %c5_363 = arith.constant 5 : index
    %c0_364 = arith.constant 0 : index
    %297 = vector.load %arg20[%c0_361, %c4_362, %c5_363, %c0_364] : memref<2x8x8x64xf32, #tpu.memory_space<vmem>>, vector<2x1x1x64xf32>
    %298 = vector.shape_cast %297 : vector<2x1x1x64xf32> to vector<2x64xf32>
    %c0_365 = arith.constant 0 : index
    %c5_366 = arith.constant 5 : index
    %c4_367 = arith.constant 4 : index
    %c0_368 = arith.constant 0 : index
    %299 = vector.load %arg20[%c0_365, %c5_366, %c4_367, %c0_368] : memref<2x8x8x64xf32, #tpu.memory_space<vmem>>, vector<2x1x1x64xf32>
    %300 = vector.shape_cast %299 : vector<2x1x1x64xf32> to vector<2x64xf32>
    %c0_369 = arith.constant 0 : index
    %c5_370 = arith.constant 5 : index
    %c5_371 = arith.constant 5 : index
    %c0_372 = arith.constant 0 : index
    %301 = vector.load %arg20[%c0_369, %c5_370, %c5_371, %c0_372] : memref<2x8x8x64xf32, #tpu.memory_space<vmem>>, vector<2x1x1x64xf32>
    %302 = vector.shape_cast %301 : vector<2x1x1x64xf32> to vector<2x64xf32>
    %303 = arith.maximumf %296, %298 : vector<2x64xf32>
    %304 = arith.maximumf %300, %302 : vector<2x64xf32>
    %305 = arith.maximumf %303, %304 : vector<2x64xf32>
    %c0_373 = arith.constant 0 : index
    %c4_374 = arith.constant 4 : index
    %c6_375 = arith.constant 6 : index
    %c0_376 = arith.constant 0 : index
    %306 = vector.load %arg20[%c0_373, %c4_374, %c6_375, %c0_376] : memref<2x8x8x64xf32, #tpu.memory_space<vmem>>, vector<2x1x1x64xf32>
    %307 = vector.shape_cast %306 : vector<2x1x1x64xf32> to vector<2x64xf32>
    %c0_377 = arith.constant 0 : index
    %c4_378 = arith.constant 4 : index
    %c7_379 = arith.constant 7 : index
    %c0_380 = arith.constant 0 : index
    %308 = vector.load %arg20[%c0_377, %c4_378, %c7_379, %c0_380] : memref<2x8x8x64xf32, #tpu.memory_space<vmem>>, vector<2x1x1x64xf32>
    %309 = vector.shape_cast %308 : vector<2x1x1x64xf32> to vector<2x64xf32>
    %c0_381 = arith.constant 0 : index
    %c5_382 = arith.constant 5 : index
    %c6_383 = arith.constant 6 : index
    %c0_384 = arith.constant 0 : index
    %310 = vector.load %arg20[%c0_381, %c5_382, %c6_383, %c0_384] : memref<2x8x8x64xf32, #tpu.memory_space<vmem>>, vector<2x1x1x64xf32>
    %311 = vector.shape_cast %310 : vector<2x1x1x64xf32> to vector<2x64xf32>
    %c0_385 = arith.constant 0 : index
    %c5_386 = arith.constant 5 : index
    %c7_387 = arith.constant 7 : index
    %c0_388 = arith.constant 0 : index
    %312 = vector.load %arg20[%c0_385, %c5_386, %c7_387, %c0_388] : memref<2x8x8x64xf32, #tpu.memory_space<vmem>>, vector<2x1x1x64xf32>
    %313 = vector.shape_cast %312 : vector<2x1x1x64xf32> to vector<2x64xf32>
    %314 = arith.maximumf %307, %309 : vector<2x64xf32>
    %315 = arith.maximumf %311, %313 : vector<2x64xf32>
    %316 = arith.maximumf %314, %315 : vector<2x64xf32>
    %c0_389 = arith.constant 0 : index
    %c6_390 = arith.constant 6 : index
    %c0_391 = arith.constant 0 : index
    %c0_392 = arith.constant 0 : index
    %317 = vector.load %arg20[%c0_389, %c6_390, %c0_391, %c0_392] : memref<2x8x8x64xf32, #tpu.memory_space<vmem>>, vector<2x1x1x64xf32>
    %318 = vector.shape_cast %317 : vector<2x1x1x64xf32> to vector<2x64xf32>
    %c0_393 = arith.constant 0 : index
    %c6_394 = arith.constant 6 : index
    %c1_395 = arith.constant 1 : index
    %c0_396 = arith.constant 0 : index
    %319 = vector.load %arg20[%c0_393, %c6_394, %c1_395, %c0_396] : memref<2x8x8x64xf32, #tpu.memory_space<vmem>>, vector<2x1x1x64xf32>
    %320 = vector.shape_cast %319 : vector<2x1x1x64xf32> to vector<2x64xf32>
    %c0_397 = arith.constant 0 : index
    %c7_398 = arith.constant 7 : index
    %c0_399 = arith.constant 0 : index
    %c0_400 = arith.constant 0 : index
    %321 = vector.load %arg20[%c0_397, %c7_398, %c0_399, %c0_400] : memref<2x8x8x64xf32, #tpu.memory_space<vmem>>, vector<2x1x1x64xf32>
    %322 = vector.shape_cast %321 : vector<2x1x1x64xf32> to vector<2x64xf32>
    %c0_401 = arith.constant 0 : index
    %c7_402 = arith.constant 7 : index
    %c1_403 = arith.constant 1 : index
    %c0_404 = arith.constant 0 : index
    %323 = vector.load %arg20[%c0_401, %c7_402, %c1_403, %c0_404] : memref<2x8x8x64xf32, #tpu.memory_space<vmem>>, vector<2x1x1x64xf32>
    %324 = vector.shape_cast %323 : vector<2x1x1x64xf32> to vector<2x64xf32>
    %325 = arith.maximumf %318, %320 : vector<2x64xf32>
    %326 = arith.maximumf %322, %324 : vector<2x64xf32>
    %327 = arith.maximumf %325, %326 : vector<2x64xf32>
    %c0_405 = arith.constant 0 : index
    %c6_406 = arith.constant 6 : index
    %c2_407 = arith.constant 2 : index
    %c0_408 = arith.constant 0 : index
    %328 = vector.load %arg20[%c0_405, %c6_406, %c2_407, %c0_408] : memref<2x8x8x64xf32, #tpu.memory_space<vmem>>, vector<2x1x1x64xf32>
    %329 = vector.shape_cast %328 : vector<2x1x1x64xf32> to vector<2x64xf32>
    %c0_409 = arith.constant 0 : index
    %c6_410 = arith.constant 6 : index
    %c3_411 = arith.constant 3 : index
    %c0_412 = arith.constant 0 : index
    %330 = vector.load %arg20[%c0_409, %c6_410, %c3_411, %c0_412] : memref<2x8x8x64xf32, #tpu.memory_space<vmem>>, vector<2x1x1x64xf32>
    %331 = vector.shape_cast %330 : vector<2x1x1x64xf32> to vector<2x64xf32>
    %c0_413 = arith.constant 0 : index
    %c7_414 = arith.constant 7 : index
    %c2_415 = arith.constant 2 : index
    %c0_416 = arith.constant 0 : index
    %332 = vector.load %arg20[%c0_413, %c7_414, %c2_415, %c0_416] : memref<2x8x8x64xf32, #tpu.memory_space<vmem>>, vector<2x1x1x64xf32>
    %333 = vector.shape_cast %332 : vector<2x1x1x64xf32> to vector<2x64xf32>
    %c0_417 = arith.constant 0 : index
    %c7_418 = arith.constant 7 : index
    %c3_419 = arith.constant 3 : index
    %c0_420 = arith.constant 0 : index
    %334 = vector.load %arg20[%c0_417, %c7_418, %c3_419, %c0_420] : memref<2x8x8x64xf32, #tpu.memory_space<vmem>>, vector<2x1x1x64xf32>
    %335 = vector.shape_cast %334 : vector<2x1x1x64xf32> to vector<2x64xf32>
    %336 = arith.maximumf %329, %331 : vector<2x64xf32>
    %337 = arith.maximumf %333, %335 : vector<2x64xf32>
    %338 = arith.maximumf %336, %337 : vector<2x64xf32>
    %c0_421 = arith.constant 0 : index
    %c6_422 = arith.constant 6 : index
    %c4_423 = arith.constant 4 : index
    %c0_424 = arith.constant 0 : index
    %339 = vector.load %arg20[%c0_421, %c6_422, %c4_423, %c0_424] : memref<2x8x8x64xf32, #tpu.memory_space<vmem>>, vector<2x1x1x64xf32>
    %340 = vector.shape_cast %339 : vector<2x1x1x64xf32> to vector<2x64xf32>
    %c0_425 = arith.constant 0 : index
    %c6_426 = arith.constant 6 : index
    %c5_427 = arith.constant 5 : index
    %c0_428 = arith.constant 0 : index
    %341 = vector.load %arg20[%c0_425, %c6_426, %c5_427, %c0_428] : memref<2x8x8x64xf32, #tpu.memory_space<vmem>>, vector<2x1x1x64xf32>
    %342 = vector.shape_cast %341 : vector<2x1x1x64xf32> to vector<2x64xf32>
    %c0_429 = arith.constant 0 : index
    %c7_430 = arith.constant 7 : index
    %c4_431 = arith.constant 4 : index
    %c0_432 = arith.constant 0 : index
    %343 = vector.load %arg20[%c0_429, %c7_430, %c4_431, %c0_432] : memref<2x8x8x64xf32, #tpu.memory_space<vmem>>, vector<2x1x1x64xf32>
    %344 = vector.shape_cast %343 : vector<2x1x1x64xf32> to vector<2x64xf32>
    %c0_433 = arith.constant 0 : index
    %c7_434 = arith.constant 7 : index
    %c5_435 = arith.constant 5 : index
    %c0_436 = arith.constant 0 : index
    %345 = vector.load %arg20[%c0_433, %c7_434, %c5_435, %c0_436] : memref<2x8x8x64xf32, #tpu.memory_space<vmem>>, vector<2x1x1x64xf32>
    %346 = vector.shape_cast %345 : vector<2x1x1x64xf32> to vector<2x64xf32>
    %347 = arith.maximumf %340, %342 : vector<2x64xf32>
    %348 = arith.maximumf %344, %346 : vector<2x64xf32>
    %349 = arith.maximumf %347, %348 : vector<2x64xf32>
    %c0_437 = arith.constant 0 : index
    %c6_438 = arith.constant 6 : index
    %c6_439 = arith.constant 6 : index
    %c0_440 = arith.constant 0 : index
    %350 = vector.load %arg20[%c0_437, %c6_438, %c6_439, %c0_440] : memref<2x8x8x64xf32, #tpu.memory_space<vmem>>, vector<2x1x1x64xf32>
    %351 = vector.shape_cast %350 : vector<2x1x1x64xf32> to vector<2x64xf32>
    %c0_441 = arith.constant 0 : index
    %c6_442 = arith.constant 6 : index
    %c7_443 = arith.constant 7 : index
    %c0_444 = arith.constant 0 : index
    %352 = vector.load %arg20[%c0_441, %c6_442, %c7_443, %c0_444] : memref<2x8x8x64xf32, #tpu.memory_space<vmem>>, vector<2x1x1x64xf32>
    %353 = vector.shape_cast %352 : vector<2x1x1x64xf32> to vector<2x64xf32>
    %c0_445 = arith.constant 0 : index
    %c7_446 = arith.constant 7 : index
    %c6_447 = arith.constant 6 : index
    %c0_448 = arith.constant 0 : index
    %354 = vector.load %arg20[%c0_445, %c7_446, %c6_447, %c0_448] : memref<2x8x8x64xf32, #tpu.memory_space<vmem>>, vector<2x1x1x64xf32>
    %355 = vector.shape_cast %354 : vector<2x1x1x64xf32> to vector<2x64xf32>
    %c0_449 = arith.constant 0 : index
    %c7_450 = arith.constant 7 : index
    %c7_451 = arith.constant 7 : index
    %c0_452 = arith.constant 0 : index
    %356 = vector.load %arg20[%c0_449, %c7_450, %c7_451, %c0_452] : memref<2x8x8x64xf32, #tpu.memory_space<vmem>>, vector<2x1x1x64xf32>
    %357 = vector.shape_cast %356 : vector<2x1x1x64xf32> to vector<2x64xf32>
    %358 = arith.maximumf %351, %353 : vector<2x64xf32>
    %359 = arith.maximumf %355, %357 : vector<2x64xf32>
    %360 = arith.maximumf %358, %359 : vector<2x64xf32>
    %361 = tpu.concatenate %195, %206, %217, %228, %239, %250, %261, %272, %283, %294, %305, %316, %327, %338, %349, %360 in 1 : vector<2x64xf32>, vector<2x64xf32>, vector<2x64xf32>, vector<2x64xf32>, vector<2x64xf32>, vector<2x64xf32>, vector<2x64xf32>, vector<2x64xf32>, vector<2x64xf32>, vector<2x64xf32>, vector<2x64xf32>, vector<2x64xf32>, vector<2x64xf32>, vector<2x64xf32>, vector<2x64xf32>, vector<2x64xf32> -> vector<2x1024xf32>
    %362 = arith.truncf %361 : vector<2x1024xf32> to vector<2x1024xbf16>
    %c0_453 = arith.constant 0 : index
    %c0_454 = arith.constant 0 : index
    %363 = vector.load %arg13[%c0_453, %c0_454] : memref<2x1024xbf16, #tpu.memory_space<vmem>>, vector<2x1024xbf16>
    %cst_455 = arith.constant dense<0.000000e+00> : vector<2x2xf32>
    %364 = tpu.matmul %362, %363, %cst_455 {dimension_numbers = #tpu.dot_dimension_numbers<[1], [1], [0], [0], [0, 0, 1, 0], [], []>} : vector<2x1024xbf16>, vector<2x1024xbf16>, vector<2x2xf32> -> vector<2x2xf32>
    %c0_456 = arith.constant 0 : index
    %c0_457 = arith.constant 0 : index
    %365 = vector.load %arg14[%c0_456, %c0_457] : memref<1x2xf32, #tpu.memory_space<vmem>>, vector<1x2xf32>
    %366 = vector.broadcast %365 : vector<1x2xf32> to vector<2x2xf32>
    %367 = arith.addf %364, %366 : vector<2x2xf32>
    %c0_458 = arith.constant 0 : index
    %c0_459 = arith.constant 0 : index
    %368 = vector.load %arg15[%c0_458, %c0_459] : memref<2x2xf32, #tpu.memory_space<vmem>>, vector<2x2xf32>
    tpu.vector_store %arg15[%c0_458, %c0_459], %367 {strides = array<i32>} : memref<2x2xf32, #tpu.memory_space<vmem>>, vector<2x2xf32>,
    return
  }
}

</mosaic_0001>

<llo_original>
// kernel: convnet_forward.1
$region0: #{convnet_forward.1}
  #allocation0 [shape = 'u32[]', space=smem, size = 0x4, offset = 0x4, fixed_abs, tag = 'smem constant byte address 0x4 - core index']
  #allocation1 [shape = 'u32[144,128]{1,0:T(1,128)}', space=vmem, size = 0x12000, scoped, tag = 'internal scratch']
  #allocation2 [shape = 'f32[2,32,32,32]{3,2,1,0:T(8,128)}', space=vmem, size = 0x100000, scoped, tag = 'scratch operand']
  #allocation3 [shape = 'f32[2,18,32,32]{3,2,1,0:T(8,128)}', space=vmem, size = 0x90000, scoped, tag = 'scratch operand']
  #allocation4 [shape = 'f32[2,16,16,32]{3,2,1,0:T(8,128)}', space=vmem, size = 0x40000, scoped, tag = 'scratch operand']
  #allocation5 [shape = 'f32[2,10,24,32]{3,2,1,0:T(8,128)}', space=vmem, size = 0x3c000, scoped, tag = 'scratch operand']
  #allocation6 [shape = 'f32[2,8,8,64]{3,2,1,0:T(8,128)}', space=vmem, size = 0x10000, scoped, tag = 'scratch operand']
  %s0 = inlined_call_operand.vmem [shape: bf16[2048,27], index: 0, kind: input, shape index: {}]
  %s1 = inlined_call_operand.vmem [shape: bf16[27,32], index: 1, kind: input, shape index: {}]
  %s2 = inlined_call_operand.vmem [shape: f32[1,32], index: 2, kind: input, shape index: {}]
  %s3 = inlined_call_operand.vmem [shape: f32[1,32], index: 3, kind: input, shape index: {}]
  %s4 = inlined_call_operand.vmem [shape: f32[1,32], index: 4, kind: input, shape index: {}]
  %s5 = inlined_call_operand.vmem [shape: bf16[288,32], index: 5, kind: input, shape index: {}]
  %s6 = inlined_call_operand.vmem [shape: f32[1,32], index: 6, kind: input, shape index: {}]
  %s7 = inlined_call_operand.vmem [shape: f32[1,32], index: 7, kind: input, shape index: {}]
  %s8 = inlined_call_operand.vmem [shape: f32[1,32], index: 8, kind: input, shape index: {}]
  %s9 = inlined_call_operand.vmem [shape: bf16[288,64], index: 9, kind: input, shape index: {}]
  %s10 = inlined_call_operand.vmem [shape: f32[1,64], index: 10, kind: input, shape index: {}]
  %s11 = inlined_call_operand.vmem [shape: f32[1,64], index: 11, kind: input, shape index: {}]
  %s12 = inlined_call_operand.vmem [shape: f32[1,64], index: 12, kind: input, shape index: {}]
  %s13 = inlined_call_operand.vmem [shape: bf16[2,1024], index: 13, kind: input, shape index: {}]
  %s14 = inlined_call_operand.vmem [shape: f32[1,2], index: 14, kind: input, shape index: {}]
  %s15 = inlined_call_operand.hbm [shape: f32[2,2], index: 15, kind: output, shape index: {}]
  %s16 = sld [smem:[#allocation0]]
  $region70: #{convnet_forward.1} parent=0
    _
  %s18 = ssub.s32 1, %s16
  %s19 = scalar_select 0, %s18, %s16
  $region1: #{convnet_forward.1} parent=0
    #allocation7 [shape = 'u8[1024]{0}', space=vmem, size = 0x400, scoped, tag = 'output window, operand 0, single buffered']
    #allocation8 [shape = 's32[1]{0}', space=sflag, size = 0x4, scoped, tag = 'scoped memory for convnet_forward.1']
    %20 = vsyncpa [#allocation8], 0
    // Predicated region
    $region2: #{convnet_forward.1} parent=1 // pred_check
      _
    $region3: #{convnet_forward.1} parent=1 // pred_check_branch
      %22 = sbr.rel (0) target = $region5
    $region4: #{convnet_forward.1} parent=1 // pred_region
      _
    $region5: #{convnet_forward.1} parent=1 // pred_fallthru
      _
    // Predicated region
    $region6: #{convnet_forward.1} parent=1 // pred_check
      _
    $region7: #{convnet_forward.1} parent=1 // pred_check_branch
      %24 = sbr.rel (0) target = $region9
    $region8: #{convnet_forward.1} parent=1 // pred_region
      _
    $region9: #{convnet_forward.1} parent=1 // pred_fallthru
      _
    // Predicated region
    $region10: #{convnet_forward.1} parent=1 // pred_check
      _
    $region11: #{convnet_forward.1} parent=1 // pred_check_branch
      %26 = sbr.rel (0) target = $region13
    $region12: #{convnet_forward.1} parent=1 // pred_region
      _
    $region13: #{convnet_forward.1} parent=1 // pred_fallthru
      _
    // Predicated region
    $region14: #{convnet_forward.1} parent=1 // pred_check
      _
    $region15: #{convnet_forward.1} parent=1 // pred_check_branch
      %28 = sbr.rel (0) target = $region17
    $region16: #{convnet_forward.1} parent=1 // pred_region
      _
    $region17: #{convnet_forward.1} parent=1 // pred_fallthru
      _
    // Predicated region
    $region18: #{convnet_forward.1} parent=1 // pred_check
      _
    $region19: #{convnet_forward.1} parent=1 // pred_check_branch
      %30 = sbr.rel (0) target = $region21
    $region20: #{convnet_forward.1} parent=1 // pred_region
      _
    $region21: #{convnet_forward.1} parent=1 // pred_fallthru
      _
    // Predicated region
    $region22: #{convnet_forward.1} parent=1 // pred_check
      _
    $region23: #{convnet_forward.1} parent=1 // pred_check_branch
      %32 = sbr.rel (0) target = $region25
    $region24: #{convnet_forward.1} parent=1 // pred_region
      _
    $region25: #{convnet_forward.1} parent=1 // pred_fallthru
      _
    // Predicated region
    $region26: #{convnet_forward.1} parent=1 // pred_check
      _
    $region27: #{convnet_forward.1} parent=1 // pred_check_branch
      %34 = sbr.rel (0) target = $region29
    $region28: #{convnet_forward.1} parent=1 // pred_region
      _
    $region29: #{convnet_forward.1} parent=1 // pred_fallthru
      _
    // Predicated region
    $region30: #{convnet_forward.1} parent=1 // pred_check
      _
    $region31: #{convnet_forward.1} parent=1 // pred_check_branch
      %36 = sbr.rel (0) target = $region33
    $region32: #{convnet_forward.1} parent=1 // pred_region
      _
    $region33: #{convnet_forward.1} parent=1 // pred_fallthru
      _
    // Predicated region
    $region34: #{convnet_forward.1} parent=1 // pred_check
      _
    $region35: #{convnet_forward.1} parent=1 // pred_check_branch
      %38 = sbr.rel (0) target = $region37
    $region36: #{convnet_forward.1} parent=1 // pred_region
      _
    $region37: #{convnet_forward.1} parent=1 // pred_fallthru
      _
    // Predicated region
    $region38: #{convnet_forward.1} parent=1 // pred_check
      _
    $region39: #{convnet_forward.1} parent=1 // pred_check_branch
      %40 = sbr.rel (0) target = $region41
    $region40: #{convnet_forward.1} parent=1 // pred_region
      _
    $region41: #{convnet_forward.1} parent=1 // pred_fallthru
      _
    // Predicated region
    $region42: #{convnet_forward.1} parent=1 // pred_check
      _
    $region43: #{convnet_forward.1} parent=1 // pred_check_branch
      %42 = sbr.rel (0) target = $region45
    $region44: #{convnet_forward.1} parent=1 // pred_region
      _
    $region45: #{convnet_forward.1} parent=1 // pred_fallthru
      _
    // Predicated region
    $region46: #{convnet_forward.1} parent=1 // pred_check
      _
    $region47: #{convnet_forward.1} parent=1 // pred_check_branch
      %44 = sbr.rel (0) target = $region49
    $region48: #{convnet_forward.1} parent=1 // pred_region
      _
    $region49: #{convnet_forward.1} parent=1 // pred_fallthru
      _
    // Predicated region
    $region50: #{convnet_forward.1} parent=1 // pred_check
      _
    $region51: #{convnet_forward.1} parent=1 // pred_check_branch
      %46 = sbr.rel (0) target = $region53
    $region52: #{convnet_forward.1} parent=1 // pred_region
      _
    $region53: #{convnet_forward.1} parent=1 // pred_fallthru
      _
    // Predicated region
    $region54: #{convnet_forward.1} parent=1 // pred_check
      _
    $region55: #{convnet_forward.1} parent=1 // pred_check_branch
      %48 = sbr.rel (0) target = $region57
    $region56: #{convnet_forward.1} parent=1 // pred_region
      _
    $region57: #{convnet_forward.1} parent=1 // pred_fallthru
      _
    // Predicated region
    $region58: #{convnet_forward.1} parent=1 // pred_check
      _
    $region59: #{convnet_forward.1} parent=1 // pred_check_branch
      %50 = sbr.rel (0) target = $region61
    $region60: #{convnet_forward.1} parent=1 // pred_region
      _
    $region61: #{convnet_forward.1} parent=1 // pred_fallthru
      _
    %vm52 = vcmask 261120
    %53 = vst.msk [vmem:[#allocation3] sm:$0xff] %vm52, 0.0
    %54 = vst.msk [vmem:[#allocation3 + $0x8] sm:$0xff] %vm52, 0.0
    %55 = vst.msk [vmem:[#allocation3 + $0x10] sm:$0xff] %vm52, 0.0
    %56 = vst.msk [vmem:[#allocation3 + $0x18] sm:$0xff] %vm52, 0.0
    %57 = vst.msk [vmem:[#allocation3 + $0x240] sm:$0xff] %vm52, 0.0
    %58 = vst.msk [vmem:[#allocation3 + $0x248] sm:$0xff] %vm52, 0.0
    %59 = vst.msk [vmem:[#allocation3 + $0x250] sm:$0xff] %vm52, 0.0
    %60 = vst.msk [vmem:[#allocation3 + $0x258] sm:$0xff] %vm52, 0.0
    %s61 = scalar_lea.vmem [#allocation3], 544
    %62 = vst.msk [vmem:[%s61] sm:$0xff] %vm52, 0.0
    %63 = vst.msk [vmem:[%s61 + $0x8] sm:$0xff] %vm52, 0.0
    %64 = vst.msk [vmem:[%s61 + $0x10] sm:$0xff] %vm52, 0.0
    %65 = vst.msk [vmem:[%s61 + $0x18] sm:$0xff] %vm52, 0.0
    %66 = vst.msk [vmem:[%s61 + $0x240] sm:$0xff] %vm52, 0.0
    %67 = vst.msk [vmem:[%s61 + $0x248] sm:$0xff] %vm52, 0.0
    %68 = vst.msk [vmem:[%s61 + $0x250] sm:$0xff] %vm52, 0.0
    %69 = vst.msk [vmem:[%s61 + $0x258] sm:$0xff] %vm52, 0.0
    %s70 = scalar_lea.vmem [#allocation3], 32
    %71 = vst.msk [vmem:[%s70] sm:$0xff] %vm52, 0.0
    %72 = vst.msk [vmem:[%s70 + $0x20] sm:$0xff] %vm52, 0.0
    %73 = vst.msk [vmem:[%s70 + $0x40] sm:$0xff] %vm52, 0.0
    %74 = vst.msk [vmem:[%s70 + $0x60] sm:$0xff] %vm52, 0.0
    %75 = vst.msk [vmem:[%s70 + $0x80] sm:$0xff] %vm52, 0.0
    %76 = vst.msk [vmem:[%s70 + $0xa0] sm:$0xff] %vm52, 0.0
    %77 = vst.msk [vmem:[%s70 + $0xc0] sm:$0xff] %vm52, 0.0
    %78 = vst.msk [vmem:[%s70 + $0xe0] sm:$0xff] %vm52, 0.0
    %79 = vst.msk [vmem:[%s70 + $0x100] sm:$0xff] %vm52, 0.0
    %80 = vst.msk [vmem:[%s70 + $0x120] sm:$0xff] %vm52, 0.0
    %81 = vst.msk [vmem:[%s70 + $0x140] sm:$0xff] %vm52, 0.0
    %82 = vst.msk [vmem:[%s70 + $0x160] sm:$0xff] %vm52, 0.0
    %83 = vst.msk [vmem:[%s70 + $0x180] sm:$0xff] %vm52, 0.0
    %84 = vst.msk [vmem:[%s70 + $0x1a0] sm:$0xff] %vm52, 0.0
    %85 = vst.msk [vmem:[%s70 + $0x1c0] sm:$0xff] %vm52, 0.0
    %86 = vst.msk [vmem:[%s70 + $0x1e0] sm:$0xff] %vm52, 0.0
    %87 = vst.msk [vmem:[%s70 + $0x240] sm:$0xff] %vm52, 0.0
    %88 = vst.msk [vmem:[%s70 + $0x260] sm:$0xff] %vm52, 0.0
    %89 = vst.msk [vmem:[%s70 + $0x280] sm:$0xff] %vm52, 0.0
    %90 = vst.msk [vmem:[%s70 + $0x2a0] sm:$0xff] %vm52, 0.0
    %91 = vst.msk [vmem:[%s70 + $0x2c0] sm:$0xff] %vm52, 0.0
    %92 = vst.msk [vmem:[%s70 + $0x2e0] sm:$0xff] %vm52, 0.0
    %93 = vst.msk [vmem:[%s70 + $0x300] sm:$0xff] %vm52, 0.0
    %94 = vst.msk [vmem:[%s70 + $0x320] sm:$0xff] %vm52, 0.0
    %95 = vst.msk [vmem:[%s70 + $0x340] sm:$0xff] %vm52, 0.0
    %96 = vst.msk [vmem:[%s70 + $0x360] sm:$0xff] %vm52, 0.0
    %97 = vst.msk [vmem:[%s70 + $0x380] sm:$0xff] %vm52, 0.0
    %98 = vst.msk [vmem:[%s70 + $0x3a0] sm:$0xff] %vm52, 0.0
    %99 = vst.msk [vmem:[%s70 + $0x3c0] sm:$0xff] %vm52, 0.0
    %100 = vst.msk [vmem:[%s70 + $0x3e0] sm:$0xff] %vm52, 0.0
    %101 = vst.msk [vmem:[%s70 + $0x400] sm:$0xff] %vm52, 0.0
    %102 = vst.msk [vmem:[%s70 + $0x420] sm:$0xff] %vm52, 0.0
    %103 = vst.msk [vmem:[%s70 + $0x18] sm:$0xff] %vm52, 0.0
    %104 = vst.msk [vmem:[%s70 + $0x38] sm:$0xff] %vm52, 0.0
    %105 = vst.msk [vmem:[%s70 + $0x58] sm:$0xff] %vm52, 0.0
    %106 = vst.msk [vmem:[%s70 + $0x78] sm:$0xff] %vm52, 0.0
    %107 = vst.msk [vmem:[%s70 + $0x98] sm:$0xff] %vm52, 0.0
    %108 = vst.msk [vmem:[%s70 + $0xb8] sm:$0xff] %vm52, 0.0
    %109 = vst.msk [vmem:[%s70 + $0xd8] sm:$0xff] %vm52, 0.0
    %110 = vst.msk [vmem:[%s70 + $0xf8] sm:$0xff] %vm52, 0.0
    %111 = vst.msk [vmem:[%s70 + $0x118] sm:$0xff] %vm52, 0.0
    %112 = vst.msk [vmem:[%s70 + $0x138] sm:$0xff] %vm52, 0.0
    %113 = vst.msk [vmem:[%s70 + $0x158] sm:$0xff] %vm52, 0.0
    %114 = vst.msk [vmem:[%s70 + $0x178] sm:$0xff] %vm52, 0.0
    %115 = vst.msk [vmem:[%s70 + $0x198] sm:$0xff] %vm52, 0.0
    %116 = vst.msk [vmem:[%s70 + $0x1b8] sm:$0xff] %vm52, 0.0
    %117 = vst.msk [vmem:[%s70 + $0x1d8] sm:$0xff] %vm52, 0.0
    %118 = vst.msk [vmem:[%s70 + $0x1f8] sm:$0xff] %vm52, 0.0
    %119 = vst.msk [vmem:[%s70 + $0x258] sm:$0xff] %vm52, 0.0
    %120 = vst.msk [vmem:[%s70 + $0x278] sm:$0xff] %vm52, 0.0
    %121 = vst.msk [vmem:[%s70 + $0x298] sm:$0xff] %vm52, 0.0
    %122 = vst.msk [vmem:[%s70 + $0x2b8] sm:$0xff] %vm52, 0.0
    %123 = vst.msk [vmem:[%s70 + $0x2d8] sm:$0xff] %vm52, 0.0
    %124 = vst.msk [vmem:[%s70 + $0x2f8] sm:$0xff] %vm52, 0.0
    %125 = vst.msk [vmem:[%s70 + $0x318] sm:$0xff] %vm52, 0.0
    %126 = vst.msk [vmem:[%s70 + $0x338] sm:$0xff] %vm52, 0.0
    %127 = vst.msk [vmem:[%s70 + $0x358] sm:$0xff] %vm52, 0.0
    %128 = vst.msk [vmem:[%s70 + $0x378] sm:$0xff] %vm52, 0.0
    %129 = vst.msk [vmem:[%s70 + $0x398] sm:$0xff] %vm52, 0.0
    %130 = vst.msk [vmem:[%s70 + $0x3b8] sm:$0xff] %vm52, 0.0
    %131 = vst.msk [vmem:[%s70 + $0x3d8] sm:$0xff] %vm52, 0.0
    %132 = vst.msk [vmem:[%s70 + $0x3f8] sm:$0xff] %vm52, 0.0
    %133 = vst.msk [vmem:[%s70 + $0x418] sm:$0xff] %vm52, 0.0
    %134 = vst.msk [vmem:[%s70 + $0x438] sm:$0xff] %vm52, 0.0
    %135 = vst.msk [vmem:[#allocation5] sm:$0xff] %vm52, 0.0
    %136 = vst.msk [vmem:[#allocation5 + $0x8] sm:$0xff] %vm52, 0.0
    %137 = vst.msk [vmem:[#allocation5 + $0x10] sm:$0xff] %vm52, 0.0
    %138 = vst.msk [vmem:[#allocation5 + $0xf0] sm:$0xff] %vm52, 0.0
    %139 = vst.msk [vmem:[#allocation5 + $0xf8] sm:$0xff] %vm52, 0.0
    %140 = vst.msk [vmem:[#allocation5 + $0x100] sm:$0xff] %vm52, 0.0
    %s141 = scalar_lea.vmem [#allocation5], 216
    %142 = vst.msk [vmem:[%s141] sm:$0xff] %vm52, 0.0
    %143 = vst.msk [vmem:[%s141 + $0x8] sm:$0xff] %vm52, 0.0
    %144 = vst.msk [vmem:[%s141 + $0x10] sm:$0xff] %vm52, 0.0
    %145 = vst.msk [vmem:[%s141 + $0xf0] sm:$0xff] %vm52, 0.0
    %146 = vst.msk [vmem:[%s141 + $0xf8] sm:$0xff] %vm52, 0.0
    %147 = vst.msk [vmem:[%s141 + $0x100] sm:$0xff] %vm52, 0.0
    %s148 = scalar_lea.vmem [#allocation5], 24
    %149 = vst.msk [vmem:[%s148] sm:$0xff] %vm52, 0.0
    %150 = vst.msk [vmem:[%s148 + $0x18] sm:$0xff] %vm52, 0.0
    %151 = vst.msk [vmem:[%s148 + $0x30] sm:$0xff] %vm52, 0.0
    %152 = vst.msk [vmem:[%s148 + $0x48] sm:$0xff] %vm52, 0.0
    %153 = vst.msk [vmem:[%s148 + $0x60] sm:$0xff] %vm52, 0.0
    %154 = vst.msk [vmem:[%s148 + $0x78] sm:$0xff] %vm52, 0.0
    %155 = vst.msk [vmem:[%s148 + $0x90] sm:$0xff] %vm52, 0.0
    %156 = vst.msk [vmem:[%s148 + $0xa8] sm:$0xff] %vm52, 0.0
    %157 = vst.msk [vmem:[%s148 + $0xf0] sm:$0xff] %vm52, 0.0
    %158 = vst.msk [vmem:[%s148 + $0x108] sm:$0xff] %vm52, 0.0
    %159 = vst.msk [vmem:[%s148 + $0x120] sm:$0xff] %vm52, 0.0
    %160 = vst.msk [vmem:[%s148 + $0x138] sm:$0xff] %vm52, 0.0
    %161 = vst.msk [vmem:[%s148 + $0x150] sm:$0xff] %vm52, 0.0
    %162 = vst.msk [vmem:[%s148 + $0x168] sm:$0xff] %vm52, 0.0
    %163 = vst.msk [vmem:[%s148 + $0x180] sm:$0xff] %vm52, 0.0
    %164 = vst.msk [vmem:[%s148 + $0x198] sm:$0xff] %vm52, 0.0
    %165 = vst.msk [vmem:[%s148 + $0x10] sm:$0xff] %vm52, 0.0
    %166 = vst.msk [vmem:[%s148 + $0x28] sm:$0xff] %vm52, 0.0
    %167 = vst.msk [vmem:[%s148 + $0x40] sm:$0xff] %vm52, 0.0
    %168 = vst.msk [vmem:[%s148 + $0x58] sm:$0xff] %vm52, 0.0
    %169 = vst.msk [vmem:[%s148 + $0x70] sm:$0xff] %vm52, 0.0
    %170 = vst.msk [vmem:[%s148 + $0x88] sm:$0xff] %vm52, 0.0
    %171 = vst.msk [vmem:[%s148 + $0xa0] sm:$0xff] %vm52, 0.0
    %172 = vst.msk [vmem:[%s148 + $0xb8] sm:$0xff] %vm52, 0.0
    %173 = vst.msk [vmem:[%s148 + $0x100] sm:$0xff] %vm52, 0.0
    %174 = vst.msk [vmem:[%s148 + $0x118] sm:$0xff] %vm52, 0.0
    %175 = vst.msk [vmem:[%s148 + $0x130] sm:$0xff] %vm52, 0.0
    %176 = vst.msk [vmem:[%s148 + $0x148] sm:$0xff] %vm52, 0.0
    %177 = vst.msk [vmem:[%s148 + $0x160] sm:$0xff] %vm52, 0.0
    %178 = vst.msk [vmem:[%s148 + $0x178] sm:$0xff] %vm52, 0.0
    %179 = vst.msk [vmem:[%s148 + $0x190] sm:$0xff] %vm52, 0.0
    %180 = vst.msk [vmem:[%s148 + $0x1a8] sm:$0xff] %vm52, 0.0
    %v181 = vld [vmem:[%s0] sm:$0xf]
    %v182 = vld [vmem:[%s0 + $0x4] sm:$0xf]
    %v183 = vld [vmem:[%s0 + $0x8] sm:$0xf]
    %v184 = vld [vmem:[%s0 + $0xc] sm:$0xf]
    %v185 = vld [vmem:[%s0 + $0x10] sm:$0xf]
    %v186 = vld [vmem:[%s0 + $0x14] sm:$0xf]
    %v187 = vld [vmem:[%s0 + $0x18] sm:$0xf]
    %v188 = vld [vmem:[%s0 + $0x1c] sm:$0xf]
    %v189 = vld [vmem:[%s0 + $0x20] sm:$0xf]
    %v190 = vld [vmem:[%s0 + $0x24] sm:$0xf]
    %v191 = vld [vmem:[%s0 + $0x28] sm:$0xf]
    %v192 = vld [vmem:[%s0 + $0x2c] sm:$0xf]
    %v193 = vld [vmem:[%s0 + $0x30] sm:$0xf]
    %v194 = vld [vmem:[%s0 + $0x34] sm:$0xf]
    %v195 = vld [vmem:[%s0 + $0x38] sm:$0xf]
    %v196 = vld [vmem:[%s0 + $0x3c] sm:$0xf]
    %v197 = vld [vmem:[%s0 + $0x40] sm:$0xf]
    %v198 = vld [vmem:[%s0 + $0x44] sm:$0xf]
    %v199 = vld [vmem:[%s0 + $0x48] sm:$0xf]
    %v200 = vld [vmem:[%s0 + $0x4c] sm:$0xf]
    %v201 = vld [vmem:[%s0 + $0x50] sm:$0xf]
    %v202 = vld [vmem:[%s0 + $0x54] sm:$0xf]
    %v203 = vld [vmem:[%s0 + $0x58] sm:$0xf]
    %v204 = vld [vmem:[%s0 + $0x5c] sm:$0xf]
    %v205 = vld [vmem:[%s0 + $0x60] sm:$0xf]
    %v206 = vld [vmem:[%s0 + $0x64] sm:$0xf]
    %v207 = vld [vmem:[%s0 + $0x68] sm:$0xf]
    %v208 = vld [vmem:[%s0 + $0x6c] sm:$0xf]
    %v209 = vld [vmem:[%s0 + $0x70] sm:$0xf]
    %v210 = vld [vmem:[%s0 + $0x74] sm:$0xf]
    %v211 = vld [vmem:[%s0 + $0x78] sm:$0xf]
    %v212 = vld [vmem:[%s0 + $0x7c] sm:$0xf]
    %v213 = vld [vmem:[%s0 + $0x80] sm:$0xf]
    %v214 = vld [vmem:[%s0 + $0x84] sm:$0xf]
    %v215 = vld [vmem:[%s0 + $0x88] sm:$0xf]
    %v216 = vld [vmem:[%s0 + $0x8c] sm:$0xf]
    %v217 = vld [vmem:[%s0 + $0x90] sm:$0xf]
    %v218 = vld [vmem:[%s0 + $0x94] sm:$0xf]
    %v219 = vld [vmem:[%s0 + $0x98] sm:$0xf]
    %v220 = vld [vmem:[%s0 + $0x9c] sm:$0xf]
    %v221 = vld [vmem:[%s0 + $0xa0] sm:$0xf]
    %v222 = vld [vmem:[%s0 + $0xa4] sm:$0xf]
    %v223 = vld [vmem:[%s0 + $0xa8] sm:$0xf]
    %v224 = vld [vmem:[%s0 + $0xac] sm:$0xf]
    %v225 = vld [vmem:[%s0 + $0xb0] sm:$0xf]
    %v226 = vld [vmem:[%s0 + $0xb4] sm:$0xf]
    %v227 = vld [vmem:[%s0 + $0xb8] sm:$0xf]
    %v228 = vld [vmem:[%s0 + $0xbc] sm:$0xf]
    %v229 = vld [vmem:[%s0 + $0xc0] sm:$0xf]
    %v230 = vld [vmem:[%s0 + $0xc4] sm:$0xf]
    %v231 = vld [vmem:[%s0 + $0xc8] sm:$0xf]
    %v232 = vld [vmem:[%s0 + $0xcc] sm:$0xf]
    %v233 = vld [vmem:[%s0 + $0xd0] sm:$0xf]
    %v234 = vld [vmem:[%s0 + $0xd4] sm:$0xf]
    %v235 = vld [vmem:[%s0 + $0xd8] sm:$0xf]
    %v236 = vld [vmem:[%s0 + $0xdc] sm:$0xf]
    %v237 = vld [vmem:[%s0 + $0xe0] sm:$0xf]
    %v238 = vld [vmem:[%s0 + $0xe4] sm:$0xf]
    %v239 = vld [vmem:[%s0 + $0xe8] sm:$0xf]
    %v240 = vld [vmem:[%s0 + $0xec] sm:$0xf]
    %v241 = vld [vmem:[%s0 + $0xf0] sm:$0xf]
    %v242 = vld [vmem:[%s0 + $0xf4] sm:$0xf]
    %v243 = vld [vmem:[%s0 + $0xf8] sm:$0xf]
    %v244 = vld [vmem:[%s0 + $0xfc] sm:$0xf]
    %v245 = vld [vmem:[%s0 + $0x100] sm:$0xf]
    %v246 = vld [vmem:[%s0 + $0x104] sm:$0xf]
    %v247 = vld [vmem:[%s0 + $0x108] sm:$0xf]
    %v248 = vld [vmem:[%s0 + $0x10c] sm:$0xf]
    %v249 = vld [vmem:[%s0 + $0x110] sm:$0xf]
    %v250 = vld [vmem:[%s0 + $0x114] sm:$0xf]
    %v251 = vld [vmem:[%s0 + $0x118] sm:$0xf]
    %v252 = vld [vmem:[%s0 + $0x11c] sm:$0xf]
    %v253 = vld [vmem:[%s0 + $0x120] sm:$0xf]
    %v254 = vld [vmem:[%s0 + $0x124] sm:$0xf]
    %v255 = vld [vmem:[%s0 + $0x128] sm:$0xf]
    %v256 = vld [vmem:[%s0 + $0x12c] sm:$0xf]
    %v257 = vld [vmem:[%s0 + $0x130] sm:$0xf]
    %v258 = vld [vmem:[%s0 + $0x134] sm:$0xf]
    %v259 = vld [vmem:[%s0 + $0x138] sm:$0xf]
    %v260 = vld [vmem:[%s0 + $0x13c] sm:$0xf]
    %v261 = vld [vmem:[%s0 + $0x140] sm:$0xf]
    %v262 = vld [vmem:[%s0 + $0x144] sm:$0xf]
    %v263 = vld [vmem:[%s0 + $0x148] sm:$0xf]
    %v264 = vld [vmem:[%s0 + $0x14c] sm:$0xf]
    %v265 = vld [vmem:[%s0 + $0x150] sm:$0xf]
    %v266 = vld [vmem:[%s0 + $0x154] sm:$0xf]
    %v267 = vld [vmem:[%s0 + $0x158] sm:$0xf]
    %v268 = vld [vmem:[%s0 + $0x15c] sm:$0xf]
    %v269 = vld [vmem:[%s0 + $0x160] sm:$0xf]
    %v270 = vld [vmem:[%s0 + $0x164] sm:$0xf]
    %v271 = vld [vmem:[%s0 + $0x168] sm:$0xf]
    %v272 = vld [vmem:[%s0 + $0x16c] sm:$0xf]
    %v273 = vld [vmem:[%s0 + $0x170] sm:$0xf]
    %v274 = vld [vmem:[%s0 + $0x174] sm:$0xf]
    %v275 = vld [vmem:[%s0 + $0x178] sm:$0xf]
    %v276 = vld [vmem:[%s0 + $0x17c] sm:$0xf]
    %v277 = vld [vmem:[%s0 + $0x180] sm:$0xf]
    %v278 = vld [vmem:[%s0 + $0x184] sm:$0xf]
    %v279 = vld [vmem:[%s0 + $0x188] sm:$0xf]
    %v280 = vld [vmem:[%s0 + $0x18c] sm:$0xf]
    %v281 = vld [vmem:[%s0 + $0x190] sm:$0xf]
    %v282 = vld [vmem:[%s0 + $0x194] sm:$0xf]
    %v283 = vld [vmem:[%s0 + $0x198] sm:$0xf]
    %v284 = vld [vmem:[%s0 + $0x19c] sm:$0xf]
    %v285 = vld [vmem:[%s0 + $0x1a0] sm:$0xf]
    %v286 = vld [vmem:[%s0 + $0x1a4] sm:$0xf]
    %v287 = vld [vmem:[%s0 + $0x1a8] sm:$0xf]
    %v288 = vld [vmem:[%s0 + $0x1ac] sm:$0xf]
    %v289 = vld [vmem:[%s0 + $0x1b0] sm:$0xf]
    %v290 = vld [vmem:[%s0 + $0x1b4] sm:$0xf]
    %v291 = vld [vmem:[%s0 + $0x1b8] sm:$0xf]
    %v292 = vld [vmem:[%s0 + $0x1bc] sm:$0xf]
    %v293 = vld [vmem:[%s0 + $0x1c0] sm:$0xf]
    %v294 = vld [vmem:[%s0 + $0x1c4] sm:$0xf]
    %v295 = vld [vmem:[%s0 + $0x1c8] sm:$0xf]
    %v296 = vld [vmem:[%s0 + $0x1cc] sm:$0xf]
    %v297 = vld [vmem:[%s0 + $0x1d0] sm:$0xf]
    %v298 = vld [vmem:[%s0 + $0x1d4] sm:$0xf]
    %v299 = vld [vmem:[%s0 + $0x1d8] sm:$0xf]
    %v300 = vld [vmem:[%s0 + $0x1dc] sm:$0xf]
    %v301 = vld [vmem:[%s0 + $0x1e0] sm:$0xf]
    %v302 = vld [vmem:[%s0 + $0x1e4] sm:$0xf]
    %v303 = vld [vmem:[%s0 + $0x1e8] sm:$0xf]
    %v304 = vld [vmem:[%s0 + $0x1ec] sm:$0xf]
    %v305 = vld [vmem:[%s0 + $0x1f0] sm:$0xf]
    %v306 = vld [vmem:[%s0 + $0x1f4] sm:$0xf]
    %v307 = vld [vmem:[%s0 + $0x1f8] sm:$0xf]
    %v308 = vld [vmem:[%s0 + $0x1fc] sm:$0xf]
    %v309 = vld [vmem:[%s0 + $0x200] sm:$0xf]
    %v310 = vld [vmem:[%s0 + $0x204] sm:$0xf]
    %v311 = vld [vmem:[%s0 + $0x208] sm:$0xf]
    %v312 = vld [vmem:[%s0 + $0x20c] sm:$0xf]
    %v313 = vld [vmem:[%s0 + $0x210] sm:$0xf]
    %v314 = vld [vmem:[%s0 + $0x214] sm:$0xf]
    %v315 = vld [vmem:[%s0 + $0x218] sm:$0xf]
    %v316 = vld [vmem:[%s0 + $0x21c] sm:$0xf]
    %v317 = vld [vmem:[%s0 + $0x220] sm:$0xf]
    %v318 = vld [vmem:[%s0 + $0x224] sm:$0xf]
    %v319 = vld [vmem:[%s0 + $0x228] sm:$0xf]
    %v320 = vld [vmem:[%s0 + $0x22c] sm:$0xf]
    %v321 = vld [vmem:[%s0 + $0x230] sm:$0xf]
    %v322 = vld [vmem:[%s0 + $0x234] sm:$0xf]
    %v323 = vld [vmem:[%s0 + $0x238] sm:$0xf]
    %v324 = vld [vmem:[%s0 + $0x23c] sm:$0xf]
    %v325 = vld [vmem:[%s0 + $0x240] sm:$0xf]
    %v326 = vld [vmem:[%s0 + $0x244] sm:$0xf]
    %v327 = vld [vmem:[%s0 + $0x248] sm:$0xf]
    %v328 = vld [vmem:[%s0 + $0x24c] sm:$0xf]
    %v329 = vld [vmem:[%s0 + $0x250] sm:$0xf]
    %v330 = vld [vmem:[%s0 + $0x254] sm:$0xf]
    %v331 = vld [vmem:[%s0 + $0x258] sm:$0xf]
    %v332 = vld [vmem:[%s0 + $0x25c] sm:$0xf]
    %v333 = vld [vmem:[%s0 + $0x260] sm:$0xf]
    %v334 = vld [vmem:[%s0 + $0x264] sm:$0xf]
    %v335 = vld [vmem:[%s0 + $0x268] sm:$0xf]
    %v336 = vld [vmem:[%s0 + $0x26c] sm:$0xf]
    %v337 = vld [vmem:[%s0 + $0x270] sm:$0xf]
    %v338 = vld [vmem:[%s0 + $0x274] sm:$0xf]
    %v339 = vld [vmem:[%s0 + $0x278] sm:$0xf]
    %v340 = vld [vmem:[%s0 + $0x27c] sm:$0xf]
    %v341 = vld [vmem:[%s0 + $0x280] sm:$0xf]
    %v342 = vld [vmem:[%s0 + $0x284] sm:$0xf]
    %v343 = vld [vmem:[%s0 + $0x288] sm:$0xf]
    %v344 = vld [vmem:[%s0 + $0x28c] sm:$0xf]
    %v345 = vld [vmem:[%s0 + $0x290] sm:$0xf]
    %v346 = vld [vmem:[%s0 + $0x294] sm:$0xf]
    %v347 = vld [vmem:[%s0 + $0x298] sm:$0xf]
    %v348 = vld [vmem:[%s0 + $0x29c] sm:$0xf]
    %v349 = vld [vmem:[%s0 + $0x2a0] sm:$0xf]
    %v350 = vld [vmem:[%s0 + $0x2a4] sm:$0xf]
    %v351 = vld [vmem:[%s0 + $0x2a8] sm:$0xf]
    %v352 = vld [vmem:[%s0 + $0x2ac] sm:$0xf]
    %v353 = vld [vmem:[%s0 + $0x2b0] sm:$0xf]
    %v354 = vld [vmem:[%s0 + $0x2b4] sm:$0xf]
    %v355 = vld [vmem:[%s0 + $0x2b8] sm:$0xf]
    %v356 = vld [vmem:[%s0 + $0x2bc] sm:$0xf]
    %v357 = vld [vmem:[%s0 + $0x2c0] sm:$0xf]
    %v358 = vld [vmem:[%s0 + $0x2c4] sm:$0xf]
    %v359 = vld [vmem:[%s0 + $0x2c8] sm:$0xf]
    %v360 = vld [vmem:[%s0 + $0x2cc] sm:$0xf]
    %v361 = vld [vmem:[%s0 + $0x2d0] sm:$0xf]
    %v362 = vld [vmem:[%s0 + $0x2d4] sm:$0xf]
    %v363 = vld [vmem:[%s0 + $0x2d8] sm:$0xf]
    %v364 = vld [vmem:[%s0 + $0x2dc] sm:$0xf]
    %v365 = vld [vmem:[%s0 + $0x2e0] sm:$0xf]
    %v366 = vld [vmem:[%s0 + $0x2e4] sm:$0xf]
    %v367 = vld [vmem:[%s0 + $0x2e8] sm:$0xf]
    %v368 = vld [vmem:[%s0 + $0x2ec] sm:$0xf]
    %v369 = vld [vmem:[%s0 + $0x2f0] sm:$0xf]
    %v370 = vld [vmem:[%s0 + $0x2f4] sm:$0xf]
    %v371 = vld [vmem:[%s0 + $0x2f8] sm:$0xf]
    %v372 = vld [vmem:[%s0 + $0x2fc] sm:$0xf]
    %v373 = vld [vmem:[%s0 + $0x300] sm:$0xf]
    %v374 = vld [vmem:[%s0 + $0x304] sm:$0xf]
    %v375 = vld [vmem:[%s0 + $0x308] sm:$0xf]
    %v376 = vld [vmem:[%s0 + $0x30c] sm:$0xf]
    %v377 = vld [vmem:[%s0 + $0x310] sm:$0xf]
    %v378 = vld [vmem:[%s0 + $0x314] sm:$0xf]
    %v379 = vld [vmem:[%s0 + $0x318] sm:$0xf]
    %v380 = vld [vmem:[%s0 + $0x31c] sm:$0xf]
    %v381 = vld [vmem:[%s0 + $0x320] sm:$0xf]
    %v382 = vld [vmem:[%s0 + $0x324] sm:$0xf]
    %v383 = vld [vmem:[%s0 + $0x328] sm:$0xf]
    %v384 = vld [vmem:[%s0 + $0x32c] sm:$0xf]
    %v385 = vld [vmem:[%s0 + $0x330] sm:$0xf]
    %v386 = vld [vmem:[%s0 + $0x334] sm:$0xf]
    %v387 = vld [vmem:[%s0 + $0x338] sm:$0xf]
    %v388 = vld [vmem:[%s0 + $0x33c] sm:$0xf]
    %v389 = vld [vmem:[%s0 + $0x340] sm:$0xf]
    %v390 = vld [vmem:[%s0 + $0x344] sm:$0xf]
    %v391 = vld [vmem:[%s0 + $0x348] sm:$0xf]
    %v392 = vld [vmem:[%s0 + $0x34c] sm:$0xf]
    %v393 = vld [vmem:[%s0 + $0x350] sm:$0xf]
    %v394 = vld [vmem:[%s0 + $0x354] sm:$0xf]
    %v395 = vld [vmem:[%s0 + $0x358] sm:$0xf]
    %v396 = vld [vmem:[%s0 + $0x35c] sm:$0xf]
    %v397 = vld [vmem:[%s0 + $0x360] sm:$0xf]
    %v398 = vld [vmem:[%s0 + $0x364] sm:$0xf]
    %v399 = vld [vmem:[%s0 + $0x368] sm:$0xf]
    %v400 = vld [vmem:[%s0 + $0x36c] sm:$0xf]
    %v401 = vld [vmem:[%s0 + $0x370] sm:$0xf]
    %v402 = vld [vmem:[%s0 + $0x374] sm:$0xf]
    %v403 = vld [vmem:[%s0 + $0x378] sm:$0xf]
    %v404 = vld [vmem:[%s0 + $0x37c] sm:$0xf]
    %v405 = vld [vmem:[%s0 + $0x380] sm:$0xf]
    %v406 = vld [vmem:[%s0 + $0x384] sm:$0xf]
    %v407 = vld [vmem:[%s0 + $0x388] sm:$0xf]
    %v408 = vld [vmem:[%s0 + $0x38c] sm:$0xf]
    %v409 = vld [vmem:[%s0 + $0x390] sm:$0xf]
    %v410 = vld [vmem:[%s0 + $0x394] sm:$0xf]
    %v411 = vld [vmem:[%s0 + $0x398] sm:$0xf]
    %v412 = vld [vmem:[%s0 + $0x39c] sm:$0xf]
    %v413 = vld [vmem:[%s0 + $0x3a0] sm:$0xf]
    %v414 = vld [vmem:[%s0 + $0x3a4] sm:$0xf]
    %v415 = vld [vmem:[%s0 + $0x3a8] sm:$0xf]
    %v416 = vld [vmem:[%s0 + $0x3ac] sm:$0xf]
    %v417 = vld [vmem:[%s0 + $0x3b0] sm:$0xf]
    %v418 = vld [vmem:[%s0 + $0x3b4] sm:$0xf]
    %v419 = vld [vmem:[%s0 + $0x3b8] sm:$0xf]
    %v420 = vld [vmem:[%s0 + $0x3bc] sm:$0xf]
    %v421 = vld [vmem:[%s0 + $0x3c0] sm:$0xf]
    %v422 = vld [vmem:[%s0 + $0x3c4] sm:$0xf]
    %v423 = vld [vmem:[%s0 + $0x3c8] sm:$0xf]
    %v424 = vld [vmem:[%s0 + $0x3cc] sm:$0xf]
    %v425 = vld [vmem:[%s0 + $0x3d0] sm:$0xf]
    %v426 = vld [vmem:[%s0 + $0x3d4] sm:$0xf]
    %v427 = vld [vmem:[%s0 + $0x3d8] sm:$0xf]
    %v428 = vld [vmem:[%s0 + $0x3dc] sm:$0xf]
    %v429 = vld [vmem:[%s0 + $0x3e0] sm:$0xf]
    %v430 = vld [vmem:[%s0 + $0x3e4] sm:$0xf]
    %v431 = vld [vmem:[%s0 + $0x3e8] sm:$0xf]
    %v432 = vld [vmem:[%s0 + $0x3ec] sm:$0xf]
    %v433 = vld [vmem:[%s0 + $0x3f0] sm:$0xf]
    %v434 = vld [vmem:[%s0 + $0x3f4] sm:$0xf]
    %v435 = vld [vmem:[%s0 + $0x3f8] sm:$0xf]
    %v436 = vld [vmem:[%s0 + $0x3fc] sm:$0xf]
    %v437 = vld [vmem:[%s1] sm:$0xf]
    %v438 = vld [vmem:[%s1 + $0x4] sm:$0xf]
    %v439 = vld [vmem:[%s1 + $0x8] sm:$0xf]
    %v440 = vld [vmem:[%s1 + $0xc] sm:$0x3]
    %v441 = vld [vmem:[%s2] sm:$0x1]
    %v443 = vlaneseq
    %v444 = vshrl.u32 %v443, 7
    %v445 = vsub.s32 0, %v444
    %v446 = vrot.slane %v441, %v445
    %v704 = vunpack.c.l.b16 %v181
    %v705 = vunpack.c.l.b16 %v182
    %v706 = vunpack.c.l.b16 %v183
    %v707 = vunpack.c.l.b16 %v184
    %v708 = vunpack.c.l.b16 %v185
    %v709 = vunpack.c.l.b16 %v186
    %v710 = vunpack.c.l.b16 %v187
    %v711 = vunpack.c.l.b16 %v188
    %v712 = vunpack.c.l.b16 %v189
    %v713 = vunpack.c.l.b16 %v190
    %v714 = vunpack.c.l.b16 %v191
    %v715 = vunpack.c.l.b16 %v192
    %v716 = vunpack.c.l.b16 %v193
    %v717 = vunpack.c.l.b16 %v194
    %v718 = vunpack.c.l.b16 %v195
    %v719 = vunpack.c.l.b16 %v196
    %v720 = vunpack.c.l.b16 %v197
    %v721 = vunpack.c.l.b16 %v198
    %v722 = vunpack.c.l.b16 %v199
    %v723 = vunpack.c.l.b16 %v200
    %v724 = vunpack.c.l.b16 %v201
    %v725 = vunpack.c.l.b16 %v202
    %v726 = vunpack.c.l.b16 %v203
    %v727 = vunpack.c.l.b16 %v204
    %v728 = vunpack.c.l.b16 %v205
    %v729 = vunpack.c.l.b16 %v206
    %v730 = vunpack.c.l.b16 %v207
    %v731 = vunpack.c.l.b16 %v208
    %v732 = vunpack.c.l.b16 %v209
    %v733 = vunpack.c.l.b16 %v210
    %v734 = vunpack.c.l.b16 %v211
    %v735 = vunpack.c.l.b16 %v212
    %v736 = vunpack.c.l.b16 %v213
    %v737 = vunpack.c.l.b16 %v214
    %v738 = vunpack.c.l.b16 %v215
    %v739 = vunpack.c.l.b16 %v216
    %v740 = vunpack.c.l.b16 %v217
    %v741 = vunpack.c.l.b16 %v218
    %v742 = vunpack.c.l.b16 %v219
    %v743 = vunpack.c.l.b16 %v220
    %v744 = vunpack.c.l.b16 %v221
    %v745 = vunpack.c.l.b16 %v222
    %v746 = vunpack.c.l.b16 %v223
    %v747 = vunpack.c.l.b16 %v224
    %v748 = vunpack.c.l.b16 %v225
    %v749 = vunpack.c.l.b16 %v226
    %v750 = vunpack.c.l.b16 %v227
    %v751 = vunpack.c.l.b16 %v228
    %v752 = vunpack.c.l.b16 %v229
    %v753 = vunpack.c.l.b16 %v230
    %v754 = vunpack.c.l.b16 %v231
    %v755 = vunpack.c.l.b16 %v232
    %v756 = vunpack.c.l.b16 %v233
    %v757 = vunpack.c.l.b16 %v234
    %v758 = vunpack.c.l.b16 %v235
    %v759 = vunpack.c.l.b16 %v236
    %v760 = vunpack.c.l.b16 %v237
    %v761 = vunpack.c.l.b16 %v238
    %v762 = vunpack.c.l.b16 %v239
    %v763 = vunpack.c.l.b16 %v240
    %v764 = vunpack.c.l.b16 %v241
    %v765 = vunpack.c.l.b16 %v242
    %v766 = vunpack.c.l.b16 %v243
    %v767 = vunpack.c.l.b16 %v244
    %v768 = vunpack.c.l.b16 %v245
    %v769 = vunpack.c.l.b16 %v246
    %v770 = vunpack.c.l.b16 %v247
    %v771 = vunpack.c.l.b16 %v248
    %v772 = vunpack.c.l.b16 %v249
    %v773 = vunpack.c.l.b16 %v250
    %v774 = vunpack.c.l.b16 %v251
    %v775 = vunpack.c.l.b16 %v252
    %v776 = vunpack.c.l.b16 %v253
    %v777 = vunpack.c.l.b16 %v254
    %v778 = vunpack.c.l.b16 %v255
    %v779 = vunpack.c.l.b16 %v256
    %v780 = vunpack.c.l.b16 %v257
    %v781 = vunpack.c.l.b16 %v258
    %v782 = vunpack.c.l.b16 %v259
    %v783 = vunpack.c.l.b16 %v260
    %v784 = vunpack.c.l.b16 %v261
    %v785 = vunpack.c.l.b16 %v262
    %v786 = vunpack.c.l.b16 %v263
    %v787 = vunpack.c.l.b16 %v264
    %v788 = vunpack.c.l.b16 %v265
    %v789 = vunpack.c.l.b16 %v266
    %v790 = vunpack.c.l.b16 %v267
    %v791 = vunpack.c.l.b16 %v268
    %v792 = vunpack.c.l.b16 %v269
    %v793 = vunpack.c.l.b16 %v270
    %v794 = vunpack.c.l.b16 %v271
    %v795 = vunpack.c.l.b16 %v272
    %v796 = vunpack.c.l.b16 %v273
    %v797 = vunpack.c.l.b16 %v274
    %v798 = vunpack.c.l.b16 %v275
    %v799 = vunpack.c.l.b16 %v276
    %v800 = vunpack.c.l.b16 %v277
    %v801 = vunpack.c.l.b16 %v278
    %v802 = vunpack.c.l.b16 %v279
    %v803 = vunpack.c.l.b16 %v280
    %v804 = vunpack.c.l.b16 %v281
    %v805 = vunpack.c.l.b16 %v282
    %v806 = vunpack.c.l.b16 %v283
    %v807 = vunpack.c.l.b16 %v284
    %v808 = vunpack.c.l.b16 %v285
    %v809 = vunpack.c.l.b16 %v286
    %v810 = vunpack.c.l.b16 %v287
    %v811 = vunpack.c.l.b16 %v288
    %v812 = vunpack.c.l.b16 %v289
    %v813 = vunpack.c.l.b16 %v290
    %v814 = vunpack.c.l.b16 %v291
    %v815 = vunpack.c.l.b16 %v292
    %v816 = vunpack.c.l.b16 %v293
    %v817 = vunpack.c.l.b16 %v294
    %v818 = vunpack.c.l.b16 %v295
    %v819 = vunpack.c.l.b16 %v296
    %v820 = vunpack.c.l.b16 %v297
    %v821 = vunpack.c.l.b16 %v298
    %v822 = vunpack.c.l.b16 %v299
    %v823 = vunpack.c.l.b16 %v300
    %v824 = vunpack.c.l.b16 %v301
    %v825 = vunpack.c.l.b16 %v302
    %v826 = vunpack.c.l.b16 %v303
    %v827 = vunpack.c.l.b16 %v304
    %v828 = vunpack.c.l.b16 %v305
    %v829 = vunpack.c.l.b16 %v306
    %v830 = vunpack.c.l.b16 %v307
    %v831 = vunpack.c.l.b16 %v308
    %v832 = vunpack.c.l.b16 %v309
    %v833 = vunpack.c.l.b16 %v310
    %v834 = vunpack.c.l.b16 %v311
    %v835 = vunpack.c.l.b16 %v312
    %v836 = vunpack.c.l.b16 %v313
    %v837 = vunpack.c.l.b16 %v314
    %v838 = vunpack.c.l.b16 %v315
    %v839 = vunpack.c.l.b16 %v316
    %v840 = vunpack.c.l.b16 %v317
    %v841 = vunpack.c.l.b16 %v318
    %v842 = vunpack.c.l.b16 %v319
    %v843 = vunpack.c.l.b16 %v320
    %v844 = vunpack.c.l.b16 %v321
    %v845 = vunpack.c.l.b16 %v322
    %v846 = vunpack.c.l.b16 %v323
    %v847 = vunpack.c.l.b16 %v324
    %v848 = vunpack.c.l.b16 %v325
    %v849 = vunpack.c.l.b16 %v326
    %v850 = vunpack.c.l.b16 %v327
    %v851 = vunpack.c.l.b16 %v328
    %v852 = vunpack.c.l.b16 %v329
    %v853 = vunpack.c.l.b16 %v330
    %v854 = vunpack.c.l.b16 %v331
    %v855 = vunpack.c.l.b16 %v332
    %v856 = vunpack.c.l.b16 %v333
    %v857 = vunpack.c.l.b16 %v334
    %v858 = vunpack.c.l.b16 %v335
    %v859 = vunpack.c.l.b16 %v336
    %v860 = vunpack.c.l.b16 %v337
    %v861 = vunpack.c.l.b16 %v338
    %v862 = vunpack.c.l.b16 %v339
    %v863 = vunpack.c.l.b16 %v340
    %v864 = vunpack.c.l.b16 %v341
    %v865 = vunpack.c.l.b16 %v342
    %v866 = vunpack.c.l.b16 %v343
    %v867 = vunpack.c.l.b16 %v344
    %v868 = vunpack.c.l.b16 %v345
    %v869 = vunpack.c.l.b16 %v346
    %v870 = vunpack.c.l.b16 %v347
    %v871 = vunpack.c.l.b16 %v348
    %v872 = vunpack.c.l.b16 %v349
    %v873 = vunpack.c.l.b16 %v350
    %v874 = vunpack.c.l.b16 %v351
    %v875 = vunpack.c.l.b16 %v352
    %v876 = vunpack.c.l.b16 %v353
    %v877 = vunpack.c.l.b16 %v354
    %v878 = vunpack.c.l.b16 %v355
    %v879 = vunpack.c.l.b16 %v356
    %v880 = vunpack.c.l.b16 %v357
    %v881 = vunpack.c.l.b16 %v358
    %v882 = vunpack.c.l.b16 %v359
    %v883 = vunpack.c.l.b16 %v360
    %v884 = vunpack.c.l.b16 %v361
    %v885 = vunpack.c.l.b16 %v362
    %v886 = vunpack.c.l.b16 %v363
    %v887 = vunpack.c.l.b16 %v364
    %v888 = vunpack.c.l.b16 %v365
    %v889 = vunpack.c.l.b16 %v366
    %v890 = vunpack.c.l.b16 %v367
    %v891 = vunpack.c.l.b16 %v368
    %v892 = vunpack.c.l.b16 %v369
    %v893 = vunpack.c.l.b16 %v370
    %v894 = vunpack.c.l.b16 %v371
    %v895 = vunpack.c.l.b16 %v372
    %v896 = vunpack.c.l.b16 %v373
    %v897 = vunpack.c.l.b16 %v374
    %v898 = vunpack.c.l.b16 %v375
    %v899 = vunpack.c.l.b16 %v376
    %v900 = vunpack.c.l.b16 %v377
    %v901 = vunpack.c.l.b16 %v378
    %v902 = vunpack.c.l.b16 %v379
    %v903 = vunpack.c.l.b16 %v380
    %v904 = vunpack.c.l.b16 %v381
    %v905 = vunpack.c.l.b16 %v382
    %v906 = vunpack.c.l.b16 %v383
    %v907 = vunpack.c.l.b16 %v384
    %v908 = vunpack.c.l.b16 %v385
    %v909 = vunpack.c.l.b16 %v386
    %v910 = vunpack.c.l.b16 %v387
    %v911 = vunpack.c.l.b16 %v388
    %v912 = vunpack.c.l.b16 %v389
    %v913 = vunpack.c.l.b16 %v390
    %v914 = vunpack.c.l.b16 %v391
    %v915 = vunpack.c.l.b16 %v392
    %v916 = vunpack.c.l.b16 %v393
    %v917 = vunpack.c.l.b16 %v394
    %v918 = vunpack.c.l.b16 %v395
    %v919 = vunpack.c.l.b16 %v396
    %v920 = vunpack.c.l.b16 %v397
    %v921 = vunpack.c.l.b16 %v398
    %v922 = vunpack.c.l.b16 %v399
    %v923 = vunpack.c.l.b16 %v400
    %v924 = vunpack.c.l.b16 %v401
    %v925 = vunpack.c.l.b16 %v402
    %v926 = vunpack.c.l.b16 %v403
    %v927 = vunpack.c.l.b16 %v404
    %v928 = vunpack.c.l.b16 %v405
    %v929 = vunpack.c.l.b16 %v406
    %v930 = vunpack.c.l.b16 %v407
    %v931 = vunpack.c.l.b16 %v408
    %v932 = vunpack.c.l.b16 %v409
    %v933 = vunpack.c.l.b16 %v410
    %v934 = vunpack.c.l.b16 %v411
    %v935 = vunpack.c.l.b16 %v412
    %v936 = vunpack.c.l.b16 %v413
    %v937 = vunpack.c.l.b16 %v414
    %v938 = vunpack.c.l.b16 %v415
    %v939 = vunpack.c.l.b16 %v416
    %v940 = vunpack.c.l.b16 %v417
    %v941 = vunpack.c.l.b16 %v418
    %v942 = vunpack.c.l.b16 %v419
    %v943 = vunpack.c.l.b16 %v420
    %v944 = vunpack.c.l.b16 %v421
    %v945 = vunpack.c.l.b16 %v422
    %v946 = vunpack.c.l.b16 %v423
    %v947 = vunpack.c.l.b16 %v424
    %v948 = vunpack.c.l.b16 %v425
    %v949 = vunpack.c.l.b16 %v426
    %v950 = vunpack.c.l.b16 %v427
    %v951 = vunpack.c.l.b16 %v428
    %v952 = vunpack.c.l.b16 %v429
    %v953 = vunpack.c.l.b16 %v430
    %v954 = vunpack.c.l.b16 %v431
    %v955 = vunpack.c.l.b16 %v432
    %v956 = vunpack.c.l.b16 %v433
    %v957 = vunpack.c.l.b16 %v434
    %v958 = vunpack.c.l.b16 %v435
    %v959 = vunpack.c.l.b16 %v436
    %v960 = vpack.c.b16 %v705, %v704
    %v961 = vpack.c.b16 %v707, %v706
    %v962 = vpack.c.b16 %v709, %v708
    %v963 = vpack.c.b16 %v711, %v710
    %v964 = vpack.c.b16 %v713, %v712
    %v965 = vpack.c.b16 %v715, %v714
    %v966 = vpack.c.b16 %v717, %v716
    %v967 = vpack.c.b16 %v719, %v718
    %v968 = vpack.c.b16 %v721, %v720
    %v969 = vpack.c.b16 %v723, %v722
    %v970 = vpack.c.b16 %v725, %v724
    %v971 = vpack.c.b16 %v727, %v726
    %v972 = vpack.c.b16 %v729, %v728
    %v973 = vpack.c.b16 %v731, %v730
    %v974 = vpack.c.b16 %v733, %v732
    %v975 = vpack.c.b16 %v735, %v734
    %v976 = vpack.c.b16 %v737, %v736
    %v977 = vpack.c.b16 %v739, %v738
    %v978 = vpack.c.b16 %v741, %v740
    %v979 = vpack.c.b16 %v743, %v742
    %v980 = vpack.c.b16 %v745, %v744
    %v981 = vpack.c.b16 %v747, %v746
    %v982 = vpack.c.b16 %v749, %v748
    %v983 = vpack.c.b16 %v751, %v750
    %v984 = vpack.c.b16 %v753, %v752
    %v985 = vpack.c.b16 %v755, %v754
    %v986 = vpack.c.b16 %v757, %v756
    %v987 = vpack.c.b16 %v759, %v758
    %v988 = vpack.c.b16 %v761, %v760
    %v989 = vpack.c.b16 %v763, %v762
    %v990 = vpack.c.b16 %v765, %v764
    %v991 = vpack.c.b16 %v767, %v766
    %v992 = vpack.c.b16 %v769, %v768
    %v993 = vpack.c.b16 %v771, %v770
    %v994 = vpack.c.b16 %v773, %v772
    %v995 = vpack.c.b16 %v775, %v774
    %v996 = vpack.c.b16 %v777, %v776
    %v997 = vpack.c.b16 %v779, %v778
    %v998 = vpack.c.b16 %v781, %v780
    %v999 = vpack.c.b16 %v783, %v782
    %v1000 = vpack.c.b16 %v785, %v784
    %v1001 = vpack.c.b16 %v787, %v786
    %v1002 = vpack.c.b16 %v789, %v788
    %v1003 = vpack.c.b16 %v791, %v790
    %v1004 = vpack.c.b16 %v793, %v792
    %v1005 = vpack.c.b16 %v795, %v794
    %v1006 = vpack.c.b16 %v797, %v796
    %v1007 = vpack.c.b16 %v799, %v798
    %v1008 = vpack.c.b16 %v801, %v800
    %v1009 = vpack.c.b16 %v803, %v802
    %v1010 = vpack.c.b16 %v805, %v804
    %v1011 = vpack.c.b16 %v807, %v806
    %v1012 = vpack.c.b16 %v809, %v808
    %v1013 = vpack.c.b16 %v811, %v810
    %v1014 = vpack.c.b16 %v813, %v812
    %v1015 = vpack.c.b16 %v815, %v814
    %v1016 = vpack.c.b16 %v817, %v816
    %v1017 = vpack.c.b16 %v819, %v818
    %v1018 = vpack.c.b16 %v821, %v820
    %v1019 = vpack.c.b16 %v823, %v822
    %v1020 = vpack.c.b16 %v825, %v824
    %v1021 = vpack.c.b16 %v827, %v826
    %v1022 = vpack.c.b16 %v829, %v828
    %v1023 = vpack.c.b16 %v831, %v830
    %v1024 = vpack.c.b16 %v833, %v832
    %v1025 = vpack.c.b16 %v835, %v834
    %v1026 = vpack.c.b16 %v837, %v836
    %v1027 = vpack.c.b16 %v839, %v838
    %v1028 = vpack.c.b16 %v841, %v840
    %v1029 = vpack.c.b16 %v843, %v842
    %v1030 = vpack.c.b16 %v845, %v844
    %v1031 = vpack.c.b16 %v847, %v846
    %v1032 = vpack.c.b16 %v849, %v848
    %v1033 = vpack.c.b16 %v851, %v850
    %v1034 = vpack.c.b16 %v853, %v852
    %v1035 = vpack.c.b16 %v855, %v854
    %v1036 = vpack.c.b16 %v857, %v856
    %v1037 = vpack.c.b16 %v859, %v858
    %v1038 = vpack.c.b16 %v861, %v860
    %v1039 = vpack.c.b16 %v863, %v862
    %v1040 = vpack.c.b16 %v865, %v864
    %v1041 = vpack.c.b16 %v867, %v866
    %v1042 = vpack.c.b16 %v869, %v868
    %v1043 = vpack.c.b16 %v871, %v870
    %v1044 = vpack.c.b16 %v873, %v872
    %v1045 = vpack.c.b16 %v875, %v874
    %v1046 = vpack.c.b16 %v877, %v876
    %v1047 = vpack.c.b16 %v879, %v878
    %v1048 = vpack.c.b16 %v881, %v880
    %v1049 = vpack.c.b16 %v883, %v882
    %v1050 = vpack.c.b16 %v885, %v884
    %v1051 = vpack.c.b16 %v887, %v886
    %v1052 = vpack.c.b16 %v889, %v888
    %v1053 = vpack.c.b16 %v891, %v890
    %v1054 = vpack.c.b16 %v893, %v892
    %v1055 = vpack.c.b16 %v895, %v894
    %v1056 = vpack.c.b16 %v897, %v896
    %v1057 = vpack.c.b16 %v899, %v898
    %v1058 = vpack.c.b16 %v901, %v900
    %v1059 = vpack.c.b16 %v903, %v902
    %v1060 = vpack.c.b16 %v905, %v904
    %v1061 = vpack.c.b16 %v907, %v906
    %v1062 = vpack.c.b16 %v909, %v908
    %v1063 = vpack.c.b16 %v911, %v910
    %v1064 = vpack.c.b16 %v913, %v912
    %v1065 = vpack.c.b16 %v915, %v914
    %v1066 = vpack.c.b16 %v917, %v916
    %v1067 = vpack.c.b16 %v919, %v918
    %v1068 = vpack.c.b16 %v921, %v920
    %v1069 = vpack.c.b16 %v923, %v922
    %v1070 = vpack.c.b16 %v925, %v924
    %v1071 = vpack.c.b16 %v927, %v926
    %v1072 = vpack.c.b16 %v929, %v928
    %v1073 = vpack.c.b16 %v931, %v930
    %v1074 = vpack.c.b16 %v933, %v932
    %v1075 = vpack.c.b16 %v935, %v934
    %v1076 = vpack.c.b16 %v937, %v936
    %v1077 = vpack.c.b16 %v939, %v938
    %v1078 = vpack.c.b16 %v941, %v940
    %v1079 = vpack.c.b16 %v943, %v942
    %v1080 = vpack.c.b16 %v945, %v944
    %v1081 = vpack.c.b16 %v947, %v946
    %v1082 = vpack.c.b16 %v949, %v948
    %v1083 = vpack.c.b16 %v951, %v950
    %v1084 = vpack.c.b16 %v953, %v952
    %v1085 = vpack.c.b16 %v955, %v954
    %v1086 = vpack.c.b16 %v957, %v956
    %v1087 = vpack.c.b16 %v959, %v958
    %v1092 = vunpack.c.l.b16 %v437
    %v1093 = vunpack.c.l.b16 %v438
    %v1094 = vunpack.c.l.b16 %v439
    %v1095 = vunpack.c.l.b16 %v440
    %v1096 = vpack.c.b16 %v1093, %v1092
    %v1097 = vpack.c.b16 %v1095, %v1094
    %vm1099 = vcmask 220160
    %v1101 = vsel %vm1099, %v960, 0
    %v1104 = vsel %vm1099, %v961, 0
    %v1107 = vsel %vm1099, %v962, 0
    %v1110 = vsel %vm1099, %v963, 0
    %v1113 = vsel %vm1099, %v964, 0
    %v1116 = vsel %vm1099, %v965, 0
    %v1119 = vsel %vm1099, %v966, 0
    %v1122 = vsel %vm1099, %v967, 0
    %v1125 = vsel %vm1099, %v968, 0
    %v1128 = vsel %vm1099, %v969, 0
    %v1131 = vsel %vm1099, %v970, 0
    %v1134 = vsel %vm1099, %v971, 0
    %v1137 = vsel %vm1099, %v972, 0
    %v1140 = vsel %vm1099, %v973, 0
    %v1143 = vsel %vm1099, %v974, 0
    %v1146 = vsel %vm1099, %v975, 0
    %v1149 = vsel %vm1099, %v976, 0
    %v1152 = vsel %vm1099, %v977, 0
    %v1155 = vsel %vm1099, %v978, 0
    %v1158 = vsel %vm1099, %v979, 0
    %v1161 = vsel %vm1099, %v980, 0
    %v1164 = vsel %vm1099, %v981, 0
    %v1167 = vsel %vm1099, %v982, 0
    %v1170 = vsel %vm1099, %v983, 0
    %v1173 = vsel %vm1099, %v984, 0
    %v1176 = vsel %vm1099, %v985, 0
    %v1179 = vsel %vm1099, %v986, 0
    %v1182 = vsel %vm1099, %v987, 0
    %v1185 = vsel %vm1099, %v988, 0
    %v1188 = vsel %vm1099, %v989, 0
    %v1191 = vsel %vm1099, %v990, 0
    %v1194 = vsel %vm1099, %v991, 0
    %v1197 = vsel %vm1099, %v992, 0
    %v1200 = vsel %vm1099, %v993, 0
    %v1203 = vsel %vm1099, %v994, 0
    %v1206 = vsel %vm1099, %v995, 0
    %v1209 = vsel %vm1099, %v996, 0
    %v1212 = vsel %vm1099, %v997, 0
    %v1215 = vsel %vm1099, %v998, 0
    %v1218 = vsel %vm1099, %v999, 0
    %v1221 = vsel %vm1099, %v1000, 0
    %v1224 = vsel %vm1099, %v1001, 0
    %v1227 = vsel %vm1099, %v1002, 0
    %v1230 = vsel %vm1099, %v1003, 0
    %v1233 = vsel %vm1099, %v1004, 0
    %v1236 = vsel %vm1099, %v1005, 0
    %v1239 = vsel %vm1099, %v1006, 0
    %v1242 = vsel %vm1099, %v1007, 0
    %v1245 = vsel %vm1099, %v1008, 0
    %v1248 = vsel %vm1099, %v1009, 0
    %v1251 = vsel %vm1099, %v1010, 0
    %v1254 = vsel %vm1099, %v1011, 0
    %v1257 = vsel %vm1099, %v1012, 0
    %v1260 = vsel %vm1099, %v1013, 0
    %v1263 = vsel %vm1099, %v1014, 0
    %v1266 = vsel %vm1099, %v1015, 0
    %v1269 = vsel %vm1099, %v1016, 0
    %v1272 = vsel %vm1099, %v1017, 0
    %v1275 = vsel %vm1099, %v1018, 0
    %v1278 = vsel %vm1099, %v1019, 0
    %v1281 = vsel %vm1099, %v1020, 0
    %v1284 = vsel %vm1099, %v1021, 0
    %v1287 = vsel %vm1099, %v1022, 0
    %v1290 = vsel %vm1099, %v1023, 0
    %v1293 = vsel %vm1099, %v1024, 0
    %v1296 = vsel %vm1099, %v1025, 0
    %v1299 = vsel %vm1099, %v1026, 0
    %v1302 = vsel %vm1099, %v1027, 0
    %v1305 = vsel %vm1099, %v1028, 0
    %v1308 = vsel %vm1099, %v1029, 0
    %v1311 = vsel %vm1099, %v1030, 0
    %v1314 = vsel %vm1099, %v1031, 0
    %v1317 = vsel %vm1099, %v1032, 0
    %v1320 = vsel %vm1099, %v1033, 0
    %v1323 = vsel %vm1099, %v1034, 0
    %v1326 = vsel %vm1099, %v1035, 0
    %v1329 = vsel %vm1099, %v1036, 0
    %v1332 = vsel %vm1099, %v1037, 0
    %v1335 = vsel %vm1099, %v1038, 0
    %v1338 = vsel %vm1099, %v1039, 0
    %v1341 = vsel %vm1099, %v1040, 0
    %v1344 = vsel %vm1099, %v1041, 0
    %v1347 = vsel %vm1099, %v1042, 0
    %v1350 = vsel %vm1099, %v1043, 0
    %v1353 = vsel %vm1099, %v1044, 0
    %v1356 = vsel %vm1099, %v1045, 0
    %v1359 = vsel %vm1099, %v1046, 0
    %v1362 = vsel %vm1099, %v1047, 0
    %v1365 = vsel %vm1099, %v1048, 0
    %v1368 = vsel %vm1099, %v1049, 0
    %v1371 = vsel %vm1099, %v1050, 0
    %v1374 = vsel %vm1099, %v1051, 0
    %v1377 = vsel %vm1099, %v1052, 0
    %v1380 = vsel %vm1099, %v1053, 0
    %v1383 = vsel %vm1099, %v1054, 0
    %v1386 = vsel %vm1099, %v1055, 0
    %v1389 = vsel %vm1099, %v1056, 0
    %v1392 = vsel %vm1099, %v1057, 0
    %v1395 = vsel %vm1099, %v1058, 0
    %v1398 = vsel %vm1099, %v1059, 0
    %v1401 = vsel %vm1099, %v1060, 0
    %v1404 = vsel %vm1099, %v1061, 0
    %v1407 = vsel %vm1099, %v1062, 0
    %v1410 = vsel %vm1099, %v1063, 0
    %v1413 = vsel %vm1099, %v1064, 0
    %v1416 = vsel %vm1099, %v1065, 0
    %v1419 = vsel %vm1099, %v1066, 0
    %v1422 = vsel %vm1099, %v1067, 0
    %v1425 = vsel %vm1099, %v1068, 0
    %v1428 = vsel %vm1099, %v1069, 0
    %v1431 = vsel %vm1099, %v1070, 0
    %v1434 = vsel %vm1099, %v1071, 0
    %v1437 = vsel %vm1099, %v1072, 0
    %v1440 = vsel %vm1099, %v1073, 0
    %v1443 = vsel %vm1099, %v1074, 0
    %v1446 = vsel %vm1099, %v1075, 0
    %v1449 = vsel %vm1099, %v1076, 0
    %v1452 = vsel %vm1099, %v1077, 0
    %v1455 = vsel %vm1099, %v1078, 0
    %v1458 = vsel %vm1099, %v1079, 0
    %v1461 = vsel %vm1099, %v1080, 0
    %v1464 = vsel %vm1099, %v1081, 0
    %v1467 = vsel %vm1099, %v1082, 0
    %v1470 = vsel %vm1099, %v1083, 0
    %v1473 = vsel %vm1099, %v1084, 0
    %v1476 = vsel %vm1099, %v1085, 0
    %v1479 = vsel %vm1099, %v1086, 0
    %v1482 = vsel %vm1099, %v1087, 0
    %vm1484 = vcmask 1044480
    %vm1485 = vcmask 1045504
    %v1486 = vsel %vm1484, 4294967295, 65535
    %v1487 = vsel %vm1485, %v1486, 0
    %v1489 = vand.u32 %v1097, %v1487
    %1491 = vmatprep.subr.bf16.mxu0 0
    %1492 = vmatpush1.bf16.msra.mxu0 %v1096
    %1493 = vmatprep.subr.bf16.mxu0 0
    %1494 = vmatpush1.bf16.msra.mxu0 %v1489
    %1495 = vmatprep.subr.bf16.mxu0 0
    %1496 = vmatpush1.bf16.msra.mxu0 0
    %1497 = vmatprep.subr.bf16.mxu0 0
    %1498 = vmatpush1.bf16.msra.mxu0 0
    %1499 = vmatprep.subr.bf16.mxu0 0
    %1500 = vmatpush1.bf16.msra.mxu0 0
    %1501 = vmatprep.subr.bf16.mxu0 0
    %1502 = vmatpush1.bf16.msra.mxu0 0
    %1503 = vmatprep.subr.bf16.mxu0 0
    %1504 = vmatpush1.bf16.msra.mxu0 0
    %1505 = vmatprep.subr.bf16.mxu0 0
    %1506 = vmatpush1.bf16.msra.mxu0 0
    %1507 = vmatprep.subr.bf16.mxu0 0
    %1508 = vmatpush1.bf16.msra.mxu0 0
    %1509 = vmatprep.subr.bf16.mxu0 0
    %1510 = vmatpush1.bf16.msra.mxu0 0
    %1511 = vmatprep.subr.bf16.mxu0 0
    %1512 = vmatpush1.bf16.msra.mxu0 0
    %1513 = vmatprep.subr.bf16.mxu0 0
    %1514 = vmatpush1.bf16.msra.mxu0 0
    %1515 = vmatprep.subr.bf16.mxu0 0
    %1516 = vmatpush1.bf16.msra.mxu0 0
    %1517 = vmatprep.subr.bf16.mxu0 0
    %1518 = vmatpush1.bf16.msra.mxu0 0
    %1519 = vmatprep.subr.bf16.mxu0 0
    %1520 = vmatpush1.bf16.msra.mxu0 0
    %1521 = vmatprep.subr.bf16.mxu0 0
    %1522 = vmatpush1.bf16.msra.mxu0 0
    %1523 = vmatprep.mubr.bf16.mxu0 0
    %1524 = vmatmul.mubr.bf16.gmra.mrb[0].mxu0 %v1101
    %v1525 = vpop.f32.mrb[0].mxu0
    %v1526 = vadd.f32 %v446, %v1525
    %v1527 = vpop.f32.mrb[0].mxu0
    %v1528 = vpop.f32.mrb[0].mxu0
    %v1529 = vadd.f32 %v446, %v1528
    %v1530 = vpop.f32.mrb[0].mxu0
    %1531 = vmatprep.mubr.bf16.mxu0 0
    %1532 = vmatmul.mubr.bf16.gmra.mrb[0].mxu0 %v1104
    %v1533 = vpop.f32.mrb[0].mxu0
    %v1534 = vadd.f32 %v446, %v1533
    %v1535 = vpop.f32.mrb[0].mxu0
    %v1536 = vpop.f32.mrb[0].mxu0
    %v1537 = vadd.f32 %v446, %v1536
    %v1538 = vpop.f32.mrb[0].mxu0
    %1539 = vmatprep.mubr.bf16.mxu0 0
    %1540 = vmatmul.mubr.bf16.gmra.mrb[0].mxu0 %v1107
    %v1541 = vpop.f32.mrb[0].mxu0
    %v1542 = vadd.f32 %v446, %v1541
    %v1543 = vpop.f32.mrb[0].mxu0
    %v1544 = vpop.f32.mrb[0].mxu0
    %v1545 = vadd.f32 %v446, %v1544
    %v1546 = vpop.f32.mrb[0].mxu0
    %1547 = vmatprep.mubr.bf16.mxu0 0
    %1548 = vmatmul.mubr.bf16.gmra.mrb[0].mxu0 %v1110
    %v1549 = vpop.f32.mrb[0].mxu0
    %v1550 = vadd.f32 %v446, %v1549
    %v1551 = vpop.f32.mrb[0].mxu0
    %v1552 = vpop.f32.mrb[0].mxu0
    %v1553 = vadd.f32 %v446, %v1552
    %v1554 = vpop.f32.mrb[0].mxu0
    %1555 = vmatprep.mubr.bf16.mxu0 0
    %1556 = vmatmul.mubr.bf16.gmra.mrb[0].mxu0 %v1113
    %v1557 = vpop.f32.mrb[0].mxu0
    %v1558 = vadd.f32 %v446, %v1557
    %v1559 = vpop.f32.mrb[0].mxu0
    %v1560 = vpop.f32.mrb[0].mxu0
    %v1561 = vadd.f32 %v446, %v1560
    %v1562 = vpop.f32.mrb[0].mxu0
    %1563 = vmatprep.mubr.bf16.mxu0 0
    %1564 = vmatmul.mubr.bf16.gmra.mrb[0].mxu0 %v1116
    %v1565 = vpop.f32.mrb[0].mxu0
    %v1566 = vadd.f32 %v446, %v1565
    %v1567 = vpop.f32.mrb[0].mxu0
    %v1568 = vpop.f32.mrb[0].mxu0
    %v1569 = vadd.f32 %v446, %v1568
    %v1570 = vpop.f32.mrb[0].mxu0
    %1571 = vmatprep.mubr.bf16.mxu0 0
    %1572 = vmatmul.mubr.bf16.gmra.mrb[0].mxu0 %v1119
    %v1573 = vpop.f32.mrb[0].mxu0
    %v1574 = vadd.f32 %v446, %v1573
    %v1575 = vpop.f32.mrb[0].mxu0
    %v1576 = vpop.f32.mrb[0].mxu0
    %v1577 = vadd.f32 %v446, %v1576
    %v1578 = vpop.f32.mrb[0].mxu0
    %1579 = vmatprep.mubr.bf16.mxu0 0
    %1580 = vmatmul.mubr.bf16.gmra.mrb[0].mxu0 %v1122
    %v1581 = vpop.f32.mrb[0].mxu0
    %v1582 = vadd.f32 %v446, %v1581
    %v1583 = vpop.f32.mrb[0].mxu0
    %v1584 = vpop.f32.mrb[0].mxu0
    %v1585 = vadd.f32 %v446, %v1584
    %v1586 = vpop.f32.mrb[0].mxu0
    %1587 = vmatprep.mubr.bf16.mxu0 0
    %1588 = vmatmul.mubr.bf16.gmra.mrb[0].mxu0 %v1125
    %v1589 = vpop.f32.mrb[0].mxu0
    %v1590 = vadd.f32 %v446, %v1589
    %v1591 = vpop.f32.mrb[0].mxu0
    %v1592 = vpop.f32.mrb[0].mxu0
    %v1593 = vadd.f32 %v446, %v1592
    %v1594 = vpop.f32.mrb[0].mxu0
    %1595 = vmatprep.mubr.bf16.mxu0 0
    %1596 = vmatmul.mubr.bf16.gmra.mrb[0].mxu0 %v1128
    %v1597 = vpop.f32.mrb[0].mxu0
    %v1598 = vadd.f32 %v446, %v1597
    %v1599 = vpop.f32.mrb[0].mxu0
    %v1600 = vpop.f32.mrb[0].mxu0
    %v1601 = vadd.f32 %v446, %v1600
    %v1602 = vpop.f32.mrb[0].mxu0
    %1603 = vmatprep.mubr.bf16.mxu0 0
    %1604 = vmatmul.mubr.bf16.gmra.mrb[0].mxu0 %v1131
    %v1605 = vpop.f32.mrb[0].mxu0
    %v1606 = vadd.f32 %v446, %v1605
    %v1607 = vpop.f32.mrb[0].mxu0
    %v1608 = vpop.f32.mrb[0].mxu0
    %v1609 = vadd.f32 %v446, %v1608
    %v1610 = vpop.f32.mrb[0].mxu0
    %1611 = vmatprep.mubr.bf16.mxu0 0
    %1612 = vmatmul.mubr.bf16.gmra.mrb[0].mxu0 %v1134
    %v1613 = vpop.f32.mrb[0].mxu0
    %v1614 = vadd.f32 %v446, %v1613
    %v1615 = vpop.f32.mrb[0].mxu0
    %v1616 = vpop.f32.mrb[0].mxu0
    %v1617 = vadd.f32 %v446, %v1616
    %v1618 = vpop.f32.mrb[0].mxu0
    %1619 = vmatprep.mubr.bf16.mxu0 0
    %1620 = vmatmul.mubr.bf16.gmra.mrb[0].mxu0 %v1137
    %v1621 = vpop.f32.mrb[0].mxu0
    %v1622 = vadd.f32 %v446, %v1621
    %v1623 = vpop.f32.mrb[0].mxu0
    %v1624 = vpop.f32.mrb[0].mxu0
    %v1625 = vadd.f32 %v446, %v1624
    %v1626 = vpop.f32.mrb[0].mxu0
    %1627 = vmatprep.mubr.bf16.mxu0 0
    %1628 = vmatmul.mubr.bf16.gmra.mrb[0].mxu0 %v1140
    %v1629 = vpop.f32.mrb[0].mxu0
    %v1630 = vadd.f32 %v446, %v1629
    %v1631 = vpop.f32.mrb[0].mxu0
    %v1632 = vpop.f32.mrb[0].mxu0
    %v1633 = vadd.f32 %v446, %v1632
    %v1634 = vpop.f32.mrb[0].mxu0
    %1635 = vmatprep.mubr.bf16.mxu0 0
    %1636 = vmatmul.mubr.bf16.gmra.mrb[0].mxu0 %v1143
    %v1637 = vpop.f32.mrb[0].mxu0
    %v1638 = vadd.f32 %v446, %v1637
    %v1639 = vpop.f32.mrb[0].mxu0
    %v1640 = vpop.f32.mrb[0].mxu0
    %v1641 = vadd.f32 %v446, %v1640
    %v1642 = vpop.f32.mrb[0].mxu0
    %1643 = vmatprep.mubr.bf16.mxu0 0
    %1644 = vmatmul.mubr.bf16.gmra.mrb[0].mxu0 %v1146
    %v1645 = vpop.f32.mrb[0].mxu0
    %v1646 = vadd.f32 %v446, %v1645
    %v1647 = vpop.f32.mrb[0].mxu0
    %v1648 = vpop.f32.mrb[0].mxu0
    %v1649 = vadd.f32 %v446, %v1648
    %v1650 = vpop.f32.mrb[0].mxu0
    %1651 = vmatprep.mubr.bf16.mxu0 0
    %1652 = vmatmul.mubr.bf16.gmra.mrb[0].mxu0 %v1149
    %v1653 = vpop.f32.mrb[0].mxu0
    %v1654 = vadd.f32 %v446, %v1653
    %v1655 = vpop.f32.mrb[0].mxu0
    %v1656 = vpop.f32.mrb[0].mxu0
    %v1657 = vadd.f32 %v446, %v1656
    %v1658 = vpop.f32.mrb[0].mxu0
    %1659 = vmatprep.mubr.bf16.mxu0 0
    %1660 = vmatmul.mubr.bf16.gmra.mrb[0].mxu0 %v1152
    %v1661 = vpop.f32.mrb[0].mxu0
    %v1662 = vadd.f32 %v446, %v1661
    %v1663 = vpop.f32.mrb[0].mxu0
    %v1664 = vpop.f32.mrb[0].mxu0
    %v1665 = vadd.f32 %v446, %v1664
    %v1666 = vpop.f32.mrb[0].mxu0
    %1667 = vmatprep.mubr.bf16.mxu0 0
    %1668 = vmatmul.mubr.bf16.gmra.mrb[0].mxu0 %v1155
    %v1669 = vpop.f32.mrb[0].mxu0
    %v1670 = vadd.f32 %v446, %v1669
    %v1671 = vpop.f32.mrb[0].mxu0
    %v1672 = vpop.f32.mrb[0].mxu0
    %v1673 = vadd.f32 %v446, %v1672
    %v1674 = vpop.f32.mrb[0].mxu0
    %1675 = vmatprep.mubr.bf16.mxu0 0
    %1676 = vmatmul.mubr.bf16.gmra.mrb[0].mxu0 %v1158
    %v1677 = vpop.f32.mrb[0].mxu0
    %v1678 = vadd.f32 %v446, %v1677
    %v1679 = vpop.f32.mrb[0].mxu0
    %v1680 = vpop.f32.mrb[0].mxu0
    %v1681 = vadd.f32 %v446, %v1680
    %v1682 = vpop.f32.mrb[0].mxu0
    %1683 = vmatprep.mubr.bf16.mxu0 0
    %1684 = vmatmul.mubr.bf16.gmra.mrb[0].mxu0 %v1161
    %v1685 = vpop.f32.mrb[0].mxu0
    %v1686 = vadd.f32 %v446, %v1685
    %v1687 = vpop.f32.mrb[0].mxu0
    %v1688 = vpop.f32.mrb[0].mxu0
    %v1689 = vadd.f32 %v446, %v1688
    %v1690 = vpop.f32.mrb[0].mxu0
    %1691 = vmatprep.mubr.bf16.mxu0 0
    %1692 = vmatmul.mubr.bf16.gmra.mrb[0].mxu0 %v1164
    %v1693 = vpop.f32.mrb[0].mxu0
    %v1694 = vadd.f32 %v446, %v1693
    %v1695 = vpop.f32.mrb[0].mxu0
    %v1696 = vpop.f32.mrb[0].mxu0
    %v1697 = vadd.f32 %v446, %v1696
    %v1698 = vpop.f32.mrb[0].mxu0
    %1699 = vmatprep.mubr.bf16.mxu0 0
    %1700 = vmatmul.mubr.bf16.gmra.mrb[0].mxu0 %v1167
    %v1701 = vpop.f32.mrb[0].mxu0
    %v1702 = vadd.f32 %v446, %v1701
    %v1703 = vpop.f32.mrb[0].mxu0
    %v1704 = vpop.f32.mrb[0].mxu0
    %v1705 = vadd.f32 %v446, %v1704
    %v1706 = vpop.f32.mrb[0].mxu0
    %1707 = vmatprep.mubr.bf16.mxu0 0
    %1708 = vmatmul.mubr.bf16.gmra.mrb[0].mxu0 %v1170
    %v1709 = vpop.f32.mrb[0].mxu0
    %v1710 = vadd.f32 %v446, %v1709
    %v1711 = vpop.f32.mrb[0].mxu0
    %v1712 = vpop.f32.mrb[0].mxu0
    %v1713 = vadd.f32 %v446, %v1712
    %v1714 = vpop.f32.mrb[0].mxu0
    %1715 = vmatprep.mubr.bf16.mxu0 0
    %1716 = vmatmul.mubr.bf16.gmra.mrb[0].mxu0 %v1173
    %v1717 = vpop.f32.mrb[0].mxu0
    %v1718 = vadd.f32 %v446, %v1717
    %v1719 = vpop.f32.mrb[0].mxu0
    %v1720 = vpop.f32.mrb[0].mxu0
    %v1721 = vadd.f32 %v446, %v1720
    %v1722 = vpop.f32.mrb[0].mxu0
    %1723 = vmatprep.mubr.bf16.mxu0 0
    %1724 = vmatmul.mubr.bf16.gmra.mrb[0].mxu0 %v1176
    %v1725 = vpop.f32.mrb[0].mxu0
    %v1726 = vadd.f32 %v446, %v1725
    %v1727 = vpop.f32.mrb[0].mxu0
    %v1728 = vpop.f32.mrb[0].mxu0
    %v1729 = vadd.f32 %v446, %v1728
    %v1730 = vpop.f32.mrb[0].mxu0
    %1731 = vmatprep.mubr.bf16.mxu0 0
    %1732 = vmatmul.mubr.bf16.gmra.mrb[0].mxu0 %v1179
    %v1733 = vpop.f32.mrb[0].mxu0
    %v1734 = vadd.f32 %v446, %v1733
    %v1735 = vpop.f32.mrb[0].mxu0
    %v1736 = vpop.f32.mrb[0].mxu0
    %v1737 = vadd.f32 %v446, %v1736
    %v1738 = vpop.f32.mrb[0].mxu0
    %1739 = vmatprep.mubr.bf16.mxu0 0
    %1740 = vmatmul.mubr.bf16.gmra.mrb[0].mxu0 %v1182
    %v1741 = vpop.f32.mrb[0].mxu0
    %v1742 = vadd.f32 %v446, %v1741
    %v1743 = vpop.f32.mrb[0].mxu0
    %v1744 = vpop.f32.mrb[0].mxu0
    %v1745 = vadd.f32 %v446, %v1744
    %v1746 = vpop.f32.mrb[0].mxu0
    %1747 = vmatprep.mubr.bf16.mxu0 0
    %1748 = vmatmul.mubr.bf16.gmra.mrb[0].mxu0 %v1185
    %v1749 = vpop.f32.mrb[0].mxu0
    %v1750 = vadd.f32 %v446, %v1749
    %v1751 = vpop.f32.mrb[0].mxu0
    %v1752 = vpop.f32.mrb[0].mxu0
    %v1753 = vadd.f32 %v446, %v1752
    %v1754 = vpop.f32.mrb[0].mxu0
    %1755 = vmatprep.mubr.bf16.mxu0 0
    %1756 = vmatmul.mubr.bf16.gmra.mrb[0].mxu0 %v1188
    %v1757 = vpop.f32.mrb[0].mxu0
    %v1758 = vadd.f32 %v446, %v1757
    %v1759 = vpop.f32.mrb[0].mxu0
    %v1760 = vpop.f32.mrb[0].mxu0
    %v1761 = vadd.f32 %v446, %v1760
    %v1762 = vpop.f32.mrb[0].mxu0
    %1763 = vmatprep.mubr.bf16.mxu0 0
    %1764 = vmatmul.mubr.bf16.gmra.mrb[0].mxu0 %v1191
    %v1765 = vpop.f32.mrb[0].mxu0
    %v1766 = vadd.f32 %v446, %v1765
    %v1767 = vpop.f32.mrb[0].mxu0
    %v1768 = vpop.f32.mrb[0].mxu0
    %v1769 = vadd.f32 %v446, %v1768
    %v1770 = vpop.f32.mrb[0].mxu0
    %1771 = vmatprep.mubr.bf16.mxu0 0
    %1772 = vmatmul.mubr.bf16.gmra.mrb[0].mxu0 %v1194
    %v1773 = vpop.f32.mrb[0].mxu0
    %v1774 = vadd.f32 %v446, %v1773
    %v1775 = vpop.f32.mrb[0].mxu0
    %v1776 = vpop.f32.mrb[0].mxu0
    %v1777 = vadd.f32 %v446, %v1776
    %v1778 = vpop.f32.mrb[0].mxu0
    %1779 = vmatprep.mubr.bf16.mxu0 0
    %1780 = vmatmul.mubr.bf16.gmra.mrb[0].mxu0 %v1197
    %v1781 = vpop.f32.mrb[0].mxu0
    %v1782 = vadd.f32 %v446, %v1781
    %v1783 = vpop.f32.mrb[0].mxu0
    %v1784 = vpop.f32.mrb[0].mxu0
    %v1785 = vadd.f32 %v446, %v1784
    %v1786 = vpop.f32.mrb[0].mxu0
    %1787 = vmatprep.mubr.bf16.mxu0 0
    %1788 = vmatmul.mubr.bf16.gmra.mrb[0].mxu0 %v1200
    %v1789 = vpop.f32.mrb[0].mxu0
    %v1790 = vadd.f32 %v446, %v1789
    %v1791 = vpop.f32.mrb[0].mxu0
    %v1792 = vpop.f32.mrb[0].mxu0
    %v1793 = vadd.f32 %v446, %v1792
    %v1794 = vpop.f32.mrb[0].mxu0
    %1795 = vmatprep.mubr.bf16.mxu0 0
    %1796 = vmatmul.mubr.bf16.gmra.mrb[0].mxu0 %v1203
    %v1797 = vpop.f32.mrb[0].mxu0
    %v1798 = vadd.f32 %v446, %v1797
    %v1799 = vpop.f32.mrb[0].mxu0
    %v1800 = vpop.f32.mrb[0].mxu0
    %v1801 = vadd.f32 %v446, %v1800
    %v1802 = vpop.f32.mrb[0].mxu0
    %1803 = vmatprep.mubr.bf16.mxu0 0
    %1804 = vmatmul.mubr.bf16.gmra.mrb[0].mxu0 %v1206
    %v1805 = vpop.f32.mrb[0].mxu0
    %v1806 = vadd.f32 %v446, %v1805
    %v1807 = vpop.f32.mrb[0].mxu0
    %v1808 = vpop.f32.mrb[0].mxu0
    %v1809 = vadd.f32 %v446, %v1808
    %v1810 = vpop.f32.mrb[0].mxu0
    %1811 = vmatprep.mubr.bf16.mxu0 0
    %1812 = vmatmul.mubr.bf16.gmra.mrb[0].mxu0 %v1209
    %v1813 = vpop.f32.mrb[0].mxu0
    %v1814 = vadd.f32 %v446, %v1813
    %v1815 = vpop.f32.mrb[0].mxu0
    %v1816 = vpop.f32.mrb[0].mxu0
    %v1817 = vadd.f32 %v446, %v1816
    %v1818 = vpop.f32.mrb[0].mxu0
    %1819 = vmatprep.mubr.bf16.mxu0 0
    %1820 = vmatmul.mubr.bf16.gmra.mrb[0].mxu0 %v1212
    %v1821 = vpop.f32.mrb[0].mxu0
    %v1822 = vadd.f32 %v446, %v1821
    %v1823 = vpop.f32.mrb[0].mxu0
    %v1824 = vpop.f32.mrb[0].mxu0
    %v1825 = vadd.f32 %v446, %v1824
    %v1826 = vpop.f32.mrb[0].mxu0
    %1827 = vmatprep.mubr.bf16.mxu0 0
    %1828 = vmatmul.mubr.bf16.gmra.mrb[0].mxu0 %v1215
    %v1829 = vpop.f32.mrb[0].mxu0
    %v1830 = vadd.f32 %v446, %v1829
    %v1831 = vpop.f32.mrb[0].mxu0
    %v1832 = vpop.f32.mrb[0].mxu0
    %v1833 = vadd.f32 %v446, %v1832
    %v1834 = vpop.f32.mrb[0].mxu0
    %1835 = vmatprep.mubr.bf16.mxu0 0
    %1836 = vmatmul.mubr.bf16.gmra.mrb[0].mxu0 %v1218
    %v1837 = vpop.f32.mrb[0].mxu0
    %v1838 = vadd.f32 %v446, %v1837
    %v1839 = vpop.f32.mrb[0].mxu0
    %v1840 = vpop.f32.mrb[0].mxu0
    %v1841 = vadd.f32 %v446, %v1840
    %v1842 = vpop.f32.mrb[0].mxu0
    %1843 = vmatprep.mubr.bf16.mxu0 0
    %1844 = vmatmul.mubr.bf16.gmra.mrb[0].mxu0 %v1221
    %v1845 = vpop.f32.mrb[0].mxu0
    %v1846 = vadd.f32 %v446, %v1845
    %v1847 = vpop.f32.mrb[0].mxu0
    %v1848 = vpop.f32.mrb[0].mxu0
    %v1849 = vadd.f32 %v446, %v1848
    %v1850 = vpop.f32.mrb[0].mxu0
    %1851 = vmatprep.mubr.bf16.mxu0 0
    %1852 = vmatmul.mubr.bf16.gmra.mrb[0].mxu0 %v1224
    %v1853 = vpop.f32.mrb[0].mxu0
    %v1854 = vadd.f32 %v446, %v1853
    %v1855 = vpop.f32.mrb[0].mxu0
    %v1856 = vpop.f32.mrb[0].mxu0
    %v1857 = vadd.f32 %v446, %v1856
    %v1858 = vpop.f32.mrb[0].mxu0
    %1859 = vmatprep.mubr.bf16.mxu0 0
    %1860 = vmatmul.mubr.bf16.gmra.mrb[0].mxu0 %v1227
    %v1861 = vpop.f32.mrb[0].mxu0
    %v1862 = vadd.f32 %v446, %v1861
    %v1863 = vpop.f32.mrb[0].mxu0
    %v1864 = vpop.f32.mrb[0].mxu0
    %v1865 = vadd.f32 %v446, %v1864
    %v1866 = vpop.f32.mrb[0].mxu0
    %1867 = vmatprep.mubr.bf16.mxu0 0
    %1868 = vmatmul.mubr.bf16.gmra.mrb[0].mxu0 %v1230
    %v1869 = vpop.f32.mrb[0].mxu0
    %v1870 = vadd.f32 %v446, %v1869
    %v1871 = vpop.f32.mrb[0].mxu0
    %v1872 = vpop.f32.mrb[0].mxu0
    %v1873 = vadd.f32 %v446, %v1872
    %v1874 = vpop.f32.mrb[0].mxu0
    %1875 = vmatprep.mubr.bf16.mxu0 0
    %1876 = vmatmul.mubr.bf16.gmra.mrb[0].mxu0 %v1233
    %v1877 = vpop.f32.mrb[0].mxu0
    %v1878 = vadd.f32 %v446, %v1877
    %v1879 = vpop.f32.mrb[0].mxu0
    %v1880 = vpop.f32.mrb[0].mxu0
    %v1881 = vadd.f32 %v446, %v1880
    %v1882 = vpop.f32.mrb[0].mxu0
    %1883 = vmatprep.mubr.bf16.mxu0 0
    %1884 = vmatmul.mubr.bf16.gmra.mrb[0].mxu0 %v1236
    %v1885 = vpop.f32.mrb[0].mxu0
    %v1886 = vadd.f32 %v446, %v1885
    %v1887 = vpop.f32.mrb[0].mxu0
    %v1888 = vpop.f32.mrb[0].mxu0
    %v1889 = vadd.f32 %v446, %v1888
    %v1890 = vpop.f32.mrb[0].mxu0
    %1891 = vmatprep.mubr.bf16.mxu0 0
    %1892 = vmatmul.mubr.bf16.gmra.mrb[0].mxu0 %v1239
    %v1893 = vpop.f32.mrb[0].mxu0
    %v1894 = vadd.f32 %v446, %v1893
    %v1895 = vpop.f32.mrb[0].mxu0
    %v1896 = vpop.f32.mrb[0].mxu0
    %v1897 = vadd.f32 %v446, %v1896
    %v1898 = vpop.f32.mrb[0].mxu0
    %1899 = vmatprep.mubr.bf16.mxu0 0
    %1900 = vmatmul.mubr.bf16.gmra.mrb[0].mxu0 %v1242
    %v1901 = vpop.f32.mrb[0].mxu0
    %v1902 = vadd.f32 %v446, %v1901
    %v1903 = vpop.f32.mrb[0].mxu0
    %v1904 = vpop.f32.mrb[0].mxu0
    %v1905 = vadd.f32 %v446, %v1904
    %v1906 = vpop.f32.mrb[0].mxu0
    %1907 = vmatprep.mubr.bf16.mxu0 0
    %1908 = vmatmul.mubr.bf16.gmra.mrb[0].mxu0 %v1245
    %v1909 = vpop.f32.mrb[0].mxu0
    %v1910 = vadd.f32 %v446, %v1909
    %v1911 = vpop.f32.mrb[0].mxu0
    %v1912 = vpop.f32.mrb[0].mxu0
    %v1913 = vadd.f32 %v446, %v1912
    %v1914 = vpop.f32.mrb[0].mxu0
    %1915 = vmatprep.mubr.bf16.mxu0 0
    %1916 = vmatmul.mubr.bf16.gmra.mrb[0].mxu0 %v1248
    %v1917 = vpop.f32.mrb[0].mxu0
    %v1918 = vadd.f32 %v446, %v1917
    %v1919 = vpop.f32.mrb[0].mxu0
    %v1920 = vpop.f32.mrb[0].mxu0
    %v1921 = vadd.f32 %v446, %v1920
    %v1922 = vpop.f32.mrb[0].mxu0
    %1923 = vmatprep.mubr.bf16.mxu0 0
    %1924 = vmatmul.mubr.bf16.gmra.mrb[0].mxu0 %v1251
    %v1925 = vpop.f32.mrb[0].mxu0
    %v1926 = vadd.f32 %v446, %v1925
    %v1927 = vpop.f32.mrb[0].mxu0
    %v1928 = vpop.f32.mrb[0].mxu0
    %v1929 = vadd.f32 %v446, %v1928
    %v1930 = vpop.f32.mrb[0].mxu0
    %1931 = vmatprep.mubr.bf16.mxu0 0
    %1932 = vmatmul.mubr.bf16.gmra.mrb[0].mxu0 %v1254
    %v1933 = vpop.f32.mrb[0].mxu0
    %v1934 = vadd.f32 %v446, %v1933
    %v1935 = vpop.f32.mrb[0].mxu0
    %v1936 = vpop.f32.mrb[0].mxu0
    %v1937 = vadd.f32 %v446, %v1936
    %v1938 = vpop.f32.mrb[0].mxu0
    %1939 = vmatprep.mubr.bf16.mxu0 0
    %1940 = vmatmul.mubr.bf16.gmra.mrb[0].mxu0 %v1257
    %v1941 = vpop.f32.mrb[0].mxu0
    %v1942 = vadd.f32 %v446, %v1941
    %v1943 = vpop.f32.mrb[0].mxu0
    %v1944 = vpop.f32.mrb[0].mxu0
    %v1945 = vadd.f32 %v446, %v1944
    %v1946 = vpop.f32.mrb[0].mxu0
    %1947 = vmatprep.mubr.bf16.mxu0 0
    %1948 = vmatmul.mubr.bf16.gmra.mrb[0].mxu0 %v1260
    %v1949 = vpop.f32.mrb[0].mxu0
    %v1950 = vadd.f32 %v446, %v1949
    %v1951 = vpop.f32.mrb[0].mxu0
    %v1952 = vpop.f32.mrb[0].mxu0
    %v1953 = vadd.f32 %v446, %v1952
    %v1954 = vpop.f32.mrb[0].mxu0
    %1955 = vmatprep.mubr.bf16.mxu0 0
    %1956 = vmatmul.mubr.bf16.gmra.mrb[0].mxu0 %v1263
    %v1957 = vpop.f32.mrb[0].mxu0
    %v1958 = vadd.f32 %v446, %v1957
    %v1959 = vpop.f32.mrb[0].mxu0
    %v1960 = vpop.f32.mrb[0].mxu0
    %v1961 = vadd.f32 %v446, %v1960
    %v1962 = vpop.f32.mrb[0].mxu0
    %1963 = vmatprep.mubr.bf16.mxu0 0
    %1964 = vmatmul.mubr.bf16.gmra.mrb[0].mxu0 %v1266
    %v1965 = vpop.f32.mrb[0].mxu0
    %v1966 = vadd.f32 %v446, %v1965
    %v1967 = vpop.f32.mrb[0].mxu0
    %v1968 = vpop.f32.mrb[0].mxu0
    %v1969 = vadd.f32 %v446, %v1968
    %v1970 = vpop.f32.mrb[0].mxu0
    %1971 = vmatprep.mubr.bf16.mxu0 0
    %1972 = vmatmul.mubr.bf16.gmra.mrb[0].mxu0 %v1269
    %v1973 = vpop.f32.mrb[0].mxu0
    %v1974 = vadd.f32 %v446, %v1973
    %v1975 = vpop.f32.mrb[0].mxu0
    %v1976 = vpop.f32.mrb[0].mxu0
    %v1977 = vadd.f32 %v446, %v1976
    %v1978 = vpop.f32.mrb[0].mxu0
    %1979 = vmatprep.mubr.bf16.mxu0 0
    %1980 = vmatmul.mubr.bf16.gmra.mrb[0].mxu0 %v1272
    %v1981 = vpop.f32.mrb[0].mxu0
    %v1982 = vadd.f32 %v446, %v1981
    %v1983 = vpop.f32.mrb[0].mxu0
    %v1984 = vpop.f32.mrb[0].mxu0
    %v1985 = vadd.f32 %v446, %v1984
    %v1986 = vpop.f32.mrb[0].mxu0
    %1987 = vmatprep.mubr.bf16.mxu0 0
    %1988 = vmatmul.mubr.bf16.gmra.mrb[0].mxu0 %v1275
    %v1989 = vpop.f32.mrb[0].mxu0
    %v1990 = vadd.f32 %v446, %v1989
    %v1991 = vpop.f32.mrb[0].mxu0
    %v1992 = vpop.f32.mrb[0].mxu0
    %v1993 = vadd.f32 %v446, %v1992
    %v1994 = vpop.f32.mrb[0].mxu0
    %1995 = vmatprep.mubr.bf16.mxu0 0
    %1996 = vmatmul.mubr.bf16.gmra.mrb[0].mxu0 %v1278
    %v1997 = vpop.f32.mrb[0].mxu0
    %v1998 = vadd.f32 %v446, %v1997
    %v1999 = vpop.f32.mrb[0].mxu0
    %v2000 = vpop.f32.mrb[0].mxu0
    %v2001 = vadd.f32 %v446, %v2000
    %v2002 = vpop.f32.mrb[0].mxu0
    %2003 = vmatprep.mubr.bf16.mxu0 0
    %2004 = vmatmul.mubr.bf16.gmra.mrb[0].mxu0 %v1281
    %v2005 = vpop.f32.mrb[0].mxu0
    %v2006 = vadd.f32 %v446, %v2005
    %v2007 = vpop.f32.mrb[0].mxu0
    %v2008 = vpop.f32.mrb[0].mxu0
    %v2009 = vadd.f32 %v446, %v2008
    %v2010 = vpop.f32.mrb[0].mxu0
    %2011 = vmatprep.mubr.bf16.mxu0 0
    %2012 = vmatmul.mubr.bf16.gmra.mrb[0].mxu0 %v1284
    %v2013 = vpop.f32.mrb[0].mxu0
    %v2014 = vadd.f32 %v446, %v2013
    %v2015 = vpop.f32.mrb[0].mxu0
    %v2016 = vpop.f32.mrb[0].mxu0
    %v2017 = vadd.f32 %v446, %v2016
    %v2018 = vpop.f32.mrb[0].mxu0
    %2019 = vmatprep.mubr.bf16.mxu0 0
    %2020 = vmatmul.mubr.bf16.gmra.mrb[0].mxu0 %v1287
    %v2021 = vpop.f32.mrb[0].mxu0
    %v2022 = vadd.f32 %v446, %v2021
    %v2023 = vpop.f32.mrb[0].mxu0
    %v2024 = vpop.f32.mrb[0].mxu0
    %v2025 = vadd.f32 %v446, %v2024
    %v2026 = vpop.f32.mrb[0].mxu0
    %2027 = vmatprep.mubr.bf16.mxu0 0
    %2028 = vmatmul.mubr.bf16.gmra.mrb[0].mxu0 %v1290
    %v2029 = vpop.f32.mrb[0].mxu0
    %v2030 = vadd.f32 %v446, %v2029
    %v2031 = vpop.f32.mrb[0].mxu0
    %v2032 = vpop.f32.mrb[0].mxu0
    %v2033 = vadd.f32 %v446, %v2032
    %v2034 = vpop.f32.mrb[0].mxu0
    %2035 = vmatprep.mubr.bf16.mxu0 0
    %2036 = vmatmul.mubr.bf16.gmra.mrb[0].mxu0 %v1293
    %v2037 = vpop.f32.mrb[0].mxu0
    %v2038 = vadd.f32 %v446, %v2037
    %v2039 = vpop.f32.mrb[0].mxu0
    %v2040 = vpop.f32.mrb[0].mxu0
    %v2041 = vadd.f32 %v446, %v2040
    %v2042 = vpop.f32.mrb[0].mxu0
    %2043 = vmatprep.mubr.bf16.mxu0 0
    %2044 = vmatmul.mubr.bf16.gmra.mrb[0].mxu0 %v1296
    %v2045 = vpop.f32.mrb[0].mxu0
    %v2046 = vadd.f32 %v446, %v2045
    %v2047 = vpop.f32.mrb[0].mxu0
    %v2048 = vpop.f32.mrb[0].mxu0
    %v2049 = vadd.f32 %v446, %v2048
    %v2050 = vpop.f32.mrb[0].mxu0
    %2051 = vmatprep.mubr.bf16.mxu0 0
    %2052 = vmatmul.mubr.bf16.gmra.mrb[0].mxu0 %v1299
    %v2053 = vpop.f32.mrb[0].mxu0
    %v2054 = vadd.f32 %v446, %v2053
    %v2055 = vpop.f32.mrb[0].mxu0
    %v2056 = vpop.f32.mrb[0].mxu0
    %v2057 = vadd.f32 %v446, %v2056
    %v2058 = vpop.f32.mrb[0].mxu0
    %2059 = vmatprep.mubr.bf16.mxu0 0
    %2060 = vmatmul.mubr.bf16.gmra.mrb[0].mxu0 %v1302
    %v2061 = vpop.f32.mrb[0].mxu0
    %v2062 = vadd.f32 %v446, %v2061
    %v2063 = vpop.f32.mrb[0].mxu0
    %v2064 = vpop.f32.mrb[0].mxu0
    %v2065 = vadd.f32 %v446, %v2064
    %v2066 = vpop.f32.mrb[0].mxu0
    %2067 = vmatprep.mubr.bf16.mxu0 0
    %2068 = vmatmul.mubr.bf16.gmra.mrb[0].mxu0 %v1305
    %v2069 = vpop.f32.mrb[0].mxu0
    %v2070 = vadd.f32 %v446, %v2069
    %v2071 = vpop.f32.mrb[0].mxu0
    %v2072 = vpop.f32.mrb[0].mxu0
    %v2073 = vadd.f32 %v446, %v2072
    %v2074 = vpop.f32.mrb[0].mxu0
    %2075 = vmatprep.mubr.bf16.mxu0 0
    %2076 = vmatmul.mubr.bf16.gmra.mrb[0].mxu0 %v1308
    %v2077 = vpop.f32.mrb[0].mxu0
    %v2078 = vadd.f32 %v446, %v2077
    %v2079 = vpop.f32.mrb[0].mxu0
    %v2080 = vpop.f32.mrb[0].mxu0
    %v2081 = vadd.f32 %v446, %v2080
    %v2082 = vpop.f32.mrb[0].mxu0
    %2083 = vmatprep.mubr.bf16.mxu0 0
    %2084 = vmatmul.mubr.bf16.gmra.mrb[0].mxu0 %v1311
    %v2085 = vpop.f32.mrb[0].mxu0
    %v2086 = vadd.f32 %v446, %v2085
    %v2087 = vpop.f32.mrb[0].mxu0
    %v2088 = vpop.f32.mrb[0].mxu0
    %v2089 = vadd.f32 %v446, %v2088
    %v2090 = vpop.f32.mrb[0].mxu0
    %2091 = vmatprep.mubr.bf16.mxu0 0
    %2092 = vmatmul.mubr.bf16.gmra.mrb[0].mxu0 %v1314
    %v2093 = vpop.f32.mrb[0].mxu0
    %v2094 = vadd.f32 %v446, %v2093
    %v2095 = vpop.f32.mrb[0].mxu0
    %v2096 = vpop.f32.mrb[0].mxu0
    %v2097 = vadd.f32 %v446, %v2096
    %v2098 = vpop.f32.mrb[0].mxu0
    %2099 = vmatprep.mubr.bf16.mxu0 0
    %2100 = vmatmul.mubr.bf16.gmra.mrb[0].mxu0 %v1317
    %v2101 = vpop.f32.mrb[0].mxu0
    %v2102 = vadd.f32 %v446, %v2101
    %v2103 = vpop.f32.mrb[0].mxu0
    %v2104 = vpop.f32.mrb[0].mxu0
    %v2105 = vadd.f32 %v446, %v2104
    %v2106 = vpop.f32.mrb[0].mxu0
    %2107 = vmatprep.mubr.bf16.mxu0 0
    %2108 = vmatmul.mubr.bf16.gmra.mrb[0].mxu0 %v1320
    %v2109 = vpop.f32.mrb[0].mxu0
    %v2110 = vadd.f32 %v446, %v2109
    %v2111 = vpop.f32.mrb[0].mxu0
    %v2112 = vpop.f32.mrb[0].mxu0
    %v2113 = vadd.f32 %v446, %v2112
    %v2114 = vpop.f32.mrb[0].mxu0
    %2115 = vmatprep.mubr.bf16.mxu0 0
    %2116 = vmatmul.mubr.bf16.gmra.mrb[0].mxu0 %v1323
    %v2117 = vpop.f32.mrb[0].mxu0
    %v2118 = vadd.f32 %v446, %v2117
    %v2119 = vpop.f32.mrb[0].mxu0
    %v2120 = vpop.f32.mrb[0].mxu0
    %v2121 = vadd.f32 %v446, %v2120
    %v2122 = vpop.f32.mrb[0].mxu0
    %2123 = vmatprep.mubr.bf16.mxu0 0
    %2124 = vmatmul.mubr.bf16.gmra.mrb[0].mxu0 %v1326
    %v2125 = vpop.f32.mrb[0].mxu0
    %v2126 = vadd.f32 %v446, %v2125
    %v2127 = vpop.f32.mrb[0].mxu0
    %v2128 = vpop.f32.mrb[0].mxu0
    %v2129 = vadd.f32 %v446, %v2128
    %v2130 = vpop.f32.mrb[0].mxu0
    %2131 = vmatprep.mubr.bf16.mxu0 0
    %2132 = vmatmul.mubr.bf16.gmra.mrb[0].mxu0 %v1329
    %v2133 = vpop.f32.mrb[0].mxu0
    %v2134 = vadd.f32 %v446, %v2133
    %v2135 = vpop.f32.mrb[0].mxu0
    %v2136 = vpop.f32.mrb[0].mxu0
    %v2137 = vadd.f32 %v446, %v2136
    %v2138 = vpop.f32.mrb[0].mxu0
    %2139 = vmatprep.mubr.bf16.mxu0 0
    %2140 = vmatmul.mubr.bf16.gmra.mrb[0].mxu0 %v1332
    %v2141 = vpop.f32.mrb[0].mxu0
    %v2142 = vadd.f32 %v446, %v2141
    %v2143 = vpop.f32.mrb[0].mxu0
    %v2144 = vpop.f32.mrb[0].mxu0
    %v2145 = vadd.f32 %v446, %v2144
    %v2146 = vpop.f32.mrb[0].mxu0
    %2147 = vmatprep.mubr.bf16.mxu0 0
    %2148 = vmatmul.mubr.bf16.gmra.mrb[0].mxu0 %v1335
    %v2149 = vpop.f32.mrb[0].mxu0
    %v2150 = vadd.f32 %v446, %v2149
    %v2151 = vpop.f32.mrb[0].mxu0
    %v2152 = vpop.f32.mrb[0].mxu0
    %v2153 = vadd.f32 %v446, %v2152
    %v2154 = vpop.f32.mrb[0].mxu0
    %2155 = vmatprep.mubr.bf16.mxu0 0
    %2156 = vmatmul.mubr.bf16.gmra.mrb[0].mxu0 %v1338
    %v2157 = vpop.f32.mrb[0].mxu0
    %v2158 = vadd.f32 %v446, %v2157
    %v2159 = vpop.f32.mrb[0].mxu0
    %v2160 = vpop.f32.mrb[0].mxu0
    %v2161 = vadd.f32 %v446, %v2160
    %v2162 = vpop.f32.mrb[0].mxu0
    %2163 = vmatprep.mubr.bf16.mxu0 0
    %2164 = vmatmul.mubr.bf16.gmra.mrb[0].mxu0 %v1341
    %v2165 = vpop.f32.mrb[0].mxu0
    %v2166 = vadd.f32 %v446, %v2165
    %v2167 = vpop.f32.mrb[0].mxu0
    %v2168 = vpop.f32.mrb[0].mxu0
    %v2169 = vadd.f32 %v446, %v2168
    %v2170 = vpop.f32.mrb[0].mxu0
    %2171 = vmatprep.mubr.bf16.mxu0 0
    %2172 = vmatmul.mubr.bf16.gmra.mrb[0].mxu0 %v1344
    %v2173 = vpop.f32.mrb[0].mxu0
    %v2174 = vadd.f32 %v446, %v2173
    %v2175 = vpop.f32.mrb[0].mxu0
    %v2176 = vpop.f32.mrb[0].mxu0
    %v2177 = vadd.f32 %v446, %v2176
    %v2178 = vpop.f32.mrb[0].mxu0
    %2179 = vmatprep.mubr.bf16.mxu0 0
    %2180 = vmatmul.mubr.bf16.gmra.mrb[0].mxu0 %v1347
    %v2181 = vpop.f32.mrb[0].mxu0
    %v2182 = vadd.f32 %v446, %v2181
    %v2183 = vpop.f32.mrb[0].mxu0
    %v2184 = vpop.f32.mrb[0].mxu0
    %v2185 = vadd.f32 %v446, %v2184
    %v2186 = vpop.f32.mrb[0].mxu0
    %2187 = vmatprep.mubr.bf16.mxu0 0
    %2188 = vmatmul.mubr.bf16.gmra.mrb[0].mxu0 %v1350
    %v2189 = vpop.f32.mrb[0].mxu0
    %v2190 = vadd.f32 %v446, %v2189
    %v2191 = vpop.f32.mrb[0].mxu0
    %v2192 = vpop.f32.mrb[0].mxu0
    %v2193 = vadd.f32 %v446, %v2192
    %v2194 = vpop.f32.mrb[0].mxu0
    %2195 = vmatprep.mubr.bf16.mxu0 0
    %2196 = vmatmul.mubr.bf16.gmra.mrb[0].mxu0 %v1353
    %v2197 = vpop.f32.mrb[0].mxu0
    %v2198 = vadd.f32 %v446, %v2197
    %v2199 = vpop.f32.mrb[0].mxu0
    %v2200 = vpop.f32.mrb[0].mxu0
    %v2201 = vadd.f32 %v446, %v2200
    %v2202 = vpop.f32.mrb[0].mxu0
    %2203 = vmatprep.mubr.bf16.mxu0 0
    %2204 = vmatmul.mubr.bf16.gmra.mrb[0].mxu0 %v1356
    %v2205 = vpop.f32.mrb[0].mxu0
    %v2206 = vadd.f32 %v446, %v2205
    %v2207 = vpop.f32.mrb[0].mxu0
    %v2208 = vpop.f32.mrb[0].mxu0
    %v2209 = vadd.f32 %v446, %v2208
    %v2210 = vpop.f32.mrb[0].mxu0
    %2211 = vmatprep.mubr.bf16.mxu0 0
    %2212 = vmatmul.mubr.bf16.gmra.mrb[0].mxu0 %v1359
    %v2213 = vpop.f32.mrb[0].mxu0
    %v2214 = vadd.f32 %v446, %v2213
    %v2215 = vpop.f32.mrb[0].mxu0
    %v2216 = vpop.f32.mrb[0].mxu0
    %v2217 = vadd.f32 %v446, %v2216
    %v2218 = vpop.f32.mrb[0].mxu0
    %2219 = vmatprep.mubr.bf16.mxu0 0
    %2220 = vmatmul.mubr.bf16.gmra.mrb[0].mxu0 %v1362
    %v2221 = vpop.f32.mrb[0].mxu0
    %v2222 = vadd.f32 %v446, %v2221
    %v2223 = vpop.f32.mrb[0].mxu0
    %v2224 = vpop.f32.mrb[0].mxu0
    %v2225 = vadd.f32 %v446, %v2224
    %v2226 = vpop.f32.mrb[0].mxu0
    %2227 = vmatprep.mubr.bf16.mxu0 0
    %2228 = vmatmul.mubr.bf16.gmra.mrb[0].mxu0 %v1365
    %v2229 = vpop.f32.mrb[0].mxu0
    %v2230 = vadd.f32 %v446, %v2229
    %v2231 = vpop.f32.mrb[0].mxu0
    %v2232 = vpop.f32.mrb[0].mxu0
    %v2233 = vadd.f32 %v446, %v2232
    %v2234 = vpop.f32.mrb[0].mxu0
    %2235 = vmatprep.mubr.bf16.mxu0 0
    %2236 = vmatmul.mubr.bf16.gmra.mrb[0].mxu0 %v1368
    %v2237 = vpop.f32.mrb[0].mxu0
    %v2238 = vadd.f32 %v446, %v2237
    %v2239 = vpop.f32.mrb[0].mxu0
    %v2240 = vpop.f32.mrb[0].mxu0
    %v2241 = vadd.f32 %v446, %v2240
    %v2242 = vpop.f32.mrb[0].mxu0
    %2243 = vmatprep.mubr.bf16.mxu0 0
    %2244 = vmatmul.mubr.bf16.gmra.mrb[0].mxu0 %v1371
    %v2245 = vpop.f32.mrb[0].mxu0
    %v2246 = vadd.f32 %v446, %v2245
    %v2247 = vpop.f32.mrb[0].mxu0
    %v2248 = vpop.f32.mrb[0].mxu0
    %v2249 = vadd.f32 %v446, %v2248
    %v2250 = vpop.f32.mrb[0].mxu0
    %2251 = vmatprep.mubr.bf16.mxu0 0
    %2252 = vmatmul.mubr.bf16.gmra.mrb[0].mxu0 %v1374
    %v2253 = vpop.f32.mrb[0].mxu0
    %v2254 = vadd.f32 %v446, %v2253
    %v2255 = vpop.f32.mrb[0].mxu0
    %v2256 = vpop.f32.mrb[0].mxu0
    %v2257 = vadd.f32 %v446, %v2256
    %v2258 = vpop.f32.mrb[0].mxu0
    %2259 = vmatprep.mubr.bf16.mxu0 0
    %2260 = vmatmul.mubr.bf16.gmra.mrb[0].mxu0 %v1377
    %v2261 = vpop.f32.mrb[0].mxu0
    %v2262 = vadd.f32 %v446, %v2261
    %v2263 = vpop.f32.mrb[0].mxu0
    %v2264 = vpop.f32.mrb[0].mxu0
    %v2265 = vadd.f32 %v446, %v2264
    %v2266 = vpop.f32.mrb[0].mxu0
    %2267 = vmatprep.mubr.bf16.mxu0 0
    %2268 = vmatmul.mubr.bf16.gmra.mrb[0].mxu0 %v1380
    %v2269 = vpop.f32.mrb[0].mxu0
    %v2270 = vadd.f32 %v446, %v2269
    %v2271 = vpop.f32.mrb[0].mxu0
    %v2272 = vpop.f32.mrb[0].mxu0
    %v2273 = vadd.f32 %v446, %v2272
    %v2274 = vpop.f32.mrb[0].mxu0
    %2275 = vmatprep.mubr.bf16.mxu0 0
    %2276 = vmatmul.mubr.bf16.gmra.mrb[0].mxu0 %v1383
    %v2277 = vpop.f32.mrb[0].mxu0
    %v2278 = vadd.f32 %v446, %v2277
    %v2279 = vpop.f32.mrb[0].mxu0
    %v2280 = vpop.f32.mrb[0].mxu0
    %v2281 = vadd.f32 %v446, %v2280
    %v2282 = vpop.f32.mrb[0].mxu0
    %2283 = vmatprep.mubr.bf16.mxu0 0
    %2284 = vmatmul.mubr.bf16.gmra.mrb[0].mxu0 %v1386
    %v2285 = vpop.f32.mrb[0].mxu0
    %v2286 = vadd.f32 %v446, %v2285
    %v2287 = vpop.f32.mrb[0].mxu0
    %v2288 = vpop.f32.mrb[0].mxu0
    %v2289 = vadd.f32 %v446, %v2288
    %v2290 = vpop.f32.mrb[0].mxu0
    %2291 = vmatprep.mubr.bf16.mxu0 0
    %2292 = vmatmul.mubr.bf16.gmra.mrb[0].mxu0 %v1389
    %v2293 = vpop.f32.mrb[0].mxu0
    %v2294 = vadd.f32 %v446, %v2293
    %v2295 = vpop.f32.mrb[0].mxu0
    %v2296 = vpop.f32.mrb[0].mxu0
    %v2297 = vadd.f32 %v446, %v2296
    %v2298 = vpop.f32.mrb[0].mxu0
    %2299 = vmatprep.mubr.bf16.mxu0 0
    %2300 = vmatmul.mubr.bf16.gmra.mrb[0].mxu0 %v1392
    %v2301 = vpop.f32.mrb[0].mxu0
    %v2302 = vadd.f32 %v446, %v2301
    %v2303 = vpop.f32.mrb[0].mxu0
    %v2304 = vpop.f32.mrb[0].mxu0
    %v2305 = vadd.f32 %v446, %v2304
    %v2306 = vpop.f32.mrb[0].mxu0
    %2307 = vmatprep.mubr.bf16.mxu0 0
    %2308 = vmatmul.mubr.bf16.gmra.mrb[0].mxu0 %v1395
    %v2309 = vpop.f32.mrb[0].mxu0
    %v2310 = vadd.f32 %v446, %v2309
    %v2311 = vpop.f32.mrb[0].mxu0
    %v2312 = vpop.f32.mrb[0].mxu0
    %v2313 = vadd.f32 %v446, %v2312
    %v2314 = vpop.f32.mrb[0].mxu0
    %2315 = vmatprep.mubr.bf16.mxu0 0
    %2316 = vmatmul.mubr.bf16.gmra.mrb[0].mxu0 %v1398
    %v2317 = vpop.f32.mrb[0].mxu0
    %v2318 = vadd.f32 %v446, %v2317
    %v2319 = vpop.f32.mrb[0].mxu0
    %v2320 = vpop.f32.mrb[0].mxu0
    %v2321 = vadd.f32 %v446, %v2320
    %v2322 = vpop.f32.mrb[0].mxu0
    %2323 = vmatprep.mubr.bf16.mxu0 0
    %2324 = vmatmul.mubr.bf16.gmra.mrb[0].mxu0 %v1401
    %v2325 = vpop.f32.mrb[0].mxu0
    %v2326 = vadd.f32 %v446, %v2325
    %v2327 = vpop.f32.mrb[0].mxu0
    %v2328 = vpop.f32.mrb[0].mxu0
    %v2329 = vadd.f32 %v446, %v2328
    %v2330 = vpop.f32.mrb[0].mxu0
    %2331 = vmatprep.mubr.bf16.mxu0 0
    %2332 = vmatmul.mubr.bf16.gmra.mrb[0].mxu0 %v1404
    %v2333 = vpop.f32.mrb[0].mxu0
    %v2334 = vadd.f32 %v446, %v2333
    %v2335 = vpop.f32.mrb[0].mxu0
    %v2336 = vpop.f32.mrb[0].mxu0
    %v2337 = vadd.f32 %v446, %v2336
    %v2338 = vpop.f32.mrb[0].mxu0
    %2339 = vmatprep.mubr.bf16.mxu0 0
    %2340 = vmatmul.mubr.bf16.gmra.mrb[0].mxu0 %v1407
    %v2341 = vpop.f32.mrb[0].mxu0
    %v2342 = vadd.f32 %v446, %v2341
    %v2343 = vpop.f32.mrb[0].mxu0
    %v2344 = vpop.f32.mrb[0].mxu0
    %v2345 = vadd.f32 %v446, %v2344
    %v2346 = vpop.f32.mrb[0].mxu0
    %2347 = vmatprep.mubr.bf16.mxu0 0
    %2348 = vmatmul.mubr.bf16.gmra.mrb[0].mxu0 %v1410
    %v2349 = vpop.f32.mrb[0].mxu0
    %v2350 = vadd.f32 %v446, %v2349
    %v2351 = vpop.f32.mrb[0].mxu0
    %v2352 = vpop.f32.mrb[0].mxu0
    %v2353 = vadd.f32 %v446, %v2352
    %v2354 = vpop.f32.mrb[0].mxu0
    %2355 = vmatprep.mubr.bf16.mxu0 0
    %2356 = vmatmul.mubr.bf16.gmra.mrb[0].mxu0 %v1413
    %v2357 = vpop.f32.mrb[0].mxu0
    %v2358 = vadd.f32 %v446, %v2357
    %v2359 = vpop.f32.mrb[0].mxu0
    %v2360 = vpop.f32.mrb[0].mxu0
    %v2361 = vadd.f32 %v446, %v2360
    %v2362 = vpop.f32.mrb[0].mxu0
    %2363 = vmatprep.mubr.bf16.mxu0 0
    %2364 = vmatmul.mubr.bf16.gmra.mrb[0].mxu0 %v1416
    %v2365 = vpop.f32.mrb[0].mxu0
    %v2366 = vadd.f32 %v446, %v2365
    %v2367 = vpop.f32.mrb[0].mxu0
    %v2368 = vpop.f32.mrb[0].mxu0
    %v2369 = vadd.f32 %v446, %v2368
    %v2370 = vpop.f32.mrb[0].mxu0
    %2371 = vmatprep.mubr.bf16.mxu0 0
    %2372 = vmatmul.mubr.bf16.gmra.mrb[0].mxu0 %v1419
    %v2373 = vpop.f32.mrb[0].mxu0
    %v2374 = vadd.f32 %v446, %v2373
    %v2375 = vpop.f32.mrb[0].mxu0
    %v2376 = vpop.f32.mrb[0].mxu0
    %v2377 = vadd.f32 %v446, %v2376
    %v2378 = vpop.f32.mrb[0].mxu0
    %2379 = vmatprep.mubr.bf16.mxu0 0
    %2380 = vmatmul.mubr.bf16.gmra.mrb[0].mxu0 %v1422
    %v2381 = vpop.f32.mrb[0].mxu0
    %v2382 = vadd.f32 %v446, %v2381
    %v2383 = vpop.f32.mrb[0].mxu0
    %v2384 = vpop.f32.mrb[0].mxu0
    %v2385 = vadd.f32 %v446, %v2384
    %v2386 = vpop.f32.mrb[0].mxu0
    %2387 = vmatprep.mubr.bf16.mxu0 0
    %2388 = vmatmul.mubr.bf16.gmra.mrb[0].mxu0 %v1425
    %v2389 = vpop.f32.mrb[0].mxu0
    %v2390 = vadd.f32 %v446, %v2389
    %v2391 = vpop.f32.mrb[0].mxu0
    %v2392 = vpop.f32.mrb[0].mxu0
    %v2393 = vadd.f32 %v446, %v2392
    %v2394 = vpop.f32.mrb[0].mxu0
    %2395 = vmatprep.mubr.bf16.mxu0 0
    %2396 = vmatmul.mubr.bf16.gmra.mrb[0].mxu0 %v1428
    %v2397 = vpop.f32.mrb[0].mxu0
    %v2398 = vadd.f32 %v446, %v2397
    %v2399 = vpop.f32.mrb[0].mxu0
    %v2400 = vpop.f32.mrb[0].mxu0
    %v2401 = vadd.f32 %v446, %v2400
    %v2402 = vpop.f32.mrb[0].mxu0
    %2403 = vmatprep.mubr.bf16.mxu0 0
    %2404 = vmatmul.mubr.bf16.gmra.mrb[0].mxu0 %v1431
    %v2405 = vpop.f32.mrb[0].mxu0
    %v2406 = vadd.f32 %v446, %v2405
    %v2407 = vpop.f32.mrb[0].mxu0
    %v2408 = vpop.f32.mrb[0].mxu0
    %v2409 = vadd.f32 %v446, %v2408
    %v2410 = vpop.f32.mrb[0].mxu0
    %2411 = vmatprep.mubr.bf16.mxu0 0
    %2412 = vmatmul.mubr.bf16.gmra.mrb[0].mxu0 %v1434
    %v2413 = vpop.f32.mrb[0].mxu0
    %v2414 = vadd.f32 %v446, %v2413
    %v2415 = vpop.f32.mrb[0].mxu0
    %v2416 = vpop.f32.mrb[0].mxu0
    %v2417 = vadd.f32 %v446, %v2416
    %v2418 = vpop.f32.mrb[0].mxu0
    %2419 = vmatprep.mubr.bf16.mxu0 0
    %2420 = vmatmul.mubr.bf16.gmra.mrb[0].mxu0 %v1437
    %v2421 = vpop.f32.mrb[0].mxu0
    %v2422 = vadd.f32 %v446, %v2421
    %v2423 = vpop.f32.mrb[0].mxu0
    %v2424 = vpop.f32.mrb[0].mxu0
    %v2425 = vadd.f32 %v446, %v2424
    %v2426 = vpop.f32.mrb[0].mxu0
    %2427 = vmatprep.mubr.bf16.mxu0 0
    %2428 = vmatmul.mubr.bf16.gmra.mrb[0].mxu0 %v1440
    %v2429 = vpop.f32.mrb[0].mxu0
    %v2430 = vadd.f32 %v446, %v2429
    %v2431 = vpop.f32.mrb[0].mxu0
    %v2432 = vpop.f32.mrb[0].mxu0
    %v2433 = vadd.f32 %v446, %v2432
    %v2434 = vpop.f32.mrb[0].mxu0
    %2435 = vmatprep.mubr.bf16.mxu0 0
    %2436 = vmatmul.mubr.bf16.gmra.mrb[0].mxu0 %v1443
    %v2437 = vpop.f32.mrb[0].mxu0
    %v2438 = vadd.f32 %v446, %v2437
    %v2439 = vpop.f32.mrb[0].mxu0
    %v2440 = vpop.f32.mrb[0].mxu0
    %v2441 = vadd.f32 %v446, %v2440
    %v2442 = vpop.f32.mrb[0].mxu0
    %2443 = vmatprep.mubr.bf16.mxu0 0
    %2444 = vmatmul.mubr.bf16.gmra.mrb[0].mxu0 %v1446
    %v2445 = vpop.f32.mrb[0].mxu0
    %v2446 = vadd.f32 %v446, %v2445
    %v2447 = vpop.f32.mrb[0].mxu0
    %v2448 = vpop.f32.mrb[0].mxu0
    %v2449 = vadd.f32 %v446, %v2448
    %v2450 = vpop.f32.mrb[0].mxu0
    %2451 = vmatprep.mubr.bf16.mxu0 0
    %2452 = vmatmul.mubr.bf16.gmra.mrb[0].mxu0 %v1449
    %v2453 = vpop.f32.mrb[0].mxu0
    %v2454 = vadd.f32 %v446, %v2453
    %v2455 = vpop.f32.mrb[0].mxu0
    %v2456 = vpop.f32.mrb[0].mxu0
    %v2457 = vadd.f32 %v446, %v2456
    %v2458 = vpop.f32.mrb[0].mxu0
    %2459 = vmatprep.mubr.bf16.mxu0 0
    %2460 = vmatmul.mubr.bf16.gmra.mrb[0].mxu0 %v1452
    %v2461 = vpop.f32.mrb[0].mxu0
    %v2462 = vadd.f32 %v446, %v2461
    %v2463 = vpop.f32.mrb[0].mxu0
    %v2464 = vpop.f32.mrb[0].mxu0
    %v2465 = vadd.f32 %v446, %v2464
    %v2466 = vpop.f32.mrb[0].mxu0
    %2467 = vmatprep.mubr.bf16.mxu0 0
    %2468 = vmatmul.mubr.bf16.gmra.mrb[0].mxu0 %v1455
    %v2469 = vpop.f32.mrb[0].mxu0
    %v2470 = vadd.f32 %v446, %v2469
    %v2471 = vpop.f32.mrb[0].mxu0
    %v2472 = vpop.f32.mrb[0].mxu0
    %v2473 = vadd.f32 %v446, %v2472
    %v2474 = vpop.f32.mrb[0].mxu0
    %2475 = vmatprep.mubr.bf16.mxu0 0
    %2476 = vmatmul.mubr.bf16.gmra.mrb[0].mxu0 %v1458
    %v2477 = vpop.f32.mrb[0].mxu0
    %v2478 = vadd.f32 %v446, %v2477
    %v2479 = vpop.f32.mrb[0].mxu0
    %v2480 = vpop.f32.mrb[0].mxu0
    %v2481 = vadd.f32 %v446, %v2480
    %v2482 = vpop.f32.mrb[0].mxu0
    %2483 = vmatprep.mubr.bf16.mxu0 0
    %2484 = vmatmul.mubr.bf16.gmra.mrb[0].mxu0 %v1461
    %v2485 = vpop.f32.mrb[0].mxu0
    %v2486 = vadd.f32 %v446, %v2485
    %v2487 = vpop.f32.mrb[0].mxu0
    %v2488 = vpop.f32.mrb[0].mxu0
    %v2489 = vadd.f32 %v446, %v2488
    %v2490 = vpop.f32.mrb[0].mxu0
    %2491 = vmatprep.mubr.bf16.mxu0 0
    %2492 = vmatmul.mubr.bf16.gmra.mrb[0].mxu0 %v1464
    %v2493 = vpop.f32.mrb[0].mxu0
    %v2494 = vadd.f32 %v446, %v2493
    %v2495 = vpop.f32.mrb[0].mxu0
    %v2496 = vpop.f32.mrb[0].mxu0
    %v2497 = vadd.f32 %v446, %v2496
    %v2498 = vpop.f32.mrb[0].mxu0
    %2499 = vmatprep.mubr.bf16.mxu0 0
    %2500 = vmatmul.mubr.bf16.gmra.mrb[0].mxu0 %v1467
    %v2501 = vpop.f32.mrb[0].mxu0
    %v2502 = vadd.f32 %v446, %v2501
    %v2503 = vpop.f32.mrb[0].mxu0
    %v2504 = vpop.f32.mrb[0].mxu0
    %v2505 = vadd.f32 %v446, %v2504
    %v2506 = vpop.f32.mrb[0].mxu0
    %2507 = vmatprep.mubr.bf16.mxu0 0
    %2508 = vmatmul.mubr.bf16.gmra.mrb[0].mxu0 %v1470
    %v2509 = vpop.f32.mrb[0].mxu0
    %v2510 = vadd.f32 %v446, %v2509
    %v2511 = vpop.f32.mrb[0].mxu0
    %v2512 = vpop.f32.mrb[0].mxu0
    %v2513 = vadd.f32 %v446, %v2512
    %v2514 = vpop.f32.mrb[0].mxu0
    %2515 = vmatprep.mubr.bf16.mxu0 0
    %2516 = vmatmul.mubr.bf16.gmra.mrb[0].mxu0 %v1473
    %v2517 = vpop.f32.mrb[0].mxu0
    %v2518 = vadd.f32 %v446, %v2517
    %v2519 = vpop.f32.mrb[0].mxu0
    %v2520 = vpop.f32.mrb[0].mxu0
    %v2521 = vadd.f32 %v446, %v2520
    %v2522 = vpop.f32.mrb[0].mxu0
    %2523 = vmatprep.mubr.bf16.mxu0 0
    %2524 = vmatmul.mubr.bf16.gmra.mrb[0].mxu0 %v1476
    %v2525 = vpop.f32.mrb[0].mxu0
    %v2526 = vadd.f32 %v446, %v2525
    %v2527 = vpop.f32.mrb[0].mxu0
    %v2528 = vpop.f32.mrb[0].mxu0
    %v2529 = vadd.f32 %v446, %v2528
    %v2530 = vpop.f32.mrb[0].mxu0
    %2531 = vmatprep.mubr.bf16.mxu0 0
    %2532 = vmatmul.mubr.bf16.gmra.mrb[0].mxu0 %v1479
    %v2533 = vpop.f32.mrb[0].mxu0
    %v2534 = vadd.f32 %v446, %v2533
    %v2535 = vpop.f32.mrb[0].mxu0
    %v2536 = vpop.f32.mrb[0].mxu0
    %v2537 = vadd.f32 %v446, %v2536
    %v2538 = vpop.f32.mrb[0].mxu0
    %2539 = vmatprep.mubr.bf16.mxu0 0
    %2540 = vmatmul.mubr.bf16.gmra.mrb[0].mxu0 %v1482
    %v2541 = vpop.f32.mrb[0].mxu0
    %v2542 = vadd.f32 %v446, %v2541
    %v2543 = vpop.f32.mrb[0].mxu0
    %v2544 = vpop.f32.mrb[0].mxu0
    %v2545 = vadd.f32 %v446, %v2544
    %v2546 = vpop.f32.mrb[0].mxu0
    %2547 = vdwg.mxu0
    %v2548 = vsel %vm52, %v1526, 0.0
    %v2549 = vsel %vm52, %v1529, 0.0
    %v2550 = vadd.f32 %v2548, %v2549
    %v2551 = vsel %vm52, %v1534, 0.0
    %v2552 = vadd.f32 %v2550, %v2551
    %v2553 = vsel %vm52, %v1537, 0.0
    %v2554 = vadd.f32 %v2552, %v2553
    %v2555 = vsel %vm52, %v1542, 0.0
    %v2556 = vadd.f32 %v2554, %v2555
    %v2557 = vsel %vm52, %v1545, 0.0
    %v2558 = vadd.f32 %v2556, %v2557
    %v2559 = vsel %vm52, %v1550, 0.0
    %v2560 = vadd.f32 %v2558, %v2559
    %v2561 = vsel %vm52, %v1553, 0.0
    %v2562 = vadd.f32 %v2560, %v2561
    %v2563 = vsel %vm52, %v1558, 0.0
    %v2564 = vadd.f32 %v2562, %v2563
    %v2565 = vsel %vm52, %v1561, 0.0
    %v2566 = vadd.f32 %v2564, %v2565
    %v2567 = vsel %vm52, %v1566, 0.0
    %v2568 = vadd.f32 %v2566, %v2567
    %v2569 = vsel %vm52, %v1569, 0.0
    %v2570 = vadd.f32 %v2568, %v2569
    %v2571 = vsel %vm52, %v1574, 0.0
    %v2572 = vadd.f32 %v2570, %v2571
    %v2573 = vsel %vm52, %v1577, 0.0
    %v2574 = vadd.f32 %v2572, %v2573
    %v2575 = vsel %vm52, %v1582, 0.0
    %v2576 = vadd.f32 %v2574, %v2575
    %v2577 = vsel %vm52, %v1585, 0.0
    %v2578 = vadd.f32 %v2576, %v2577
    %v2579 = vsel %vm52, %v1590, 0.0
    %v2580 = vadd.f32 %v2578, %v2579
    %v2581 = vsel %vm52, %v1593, 0.0
    %v2582 = vadd.f32 %v2580, %v2581
    %v2583 = vsel %vm52, %v1598, 0.0
    %v2584 = vadd.f32 %v2582, %v2583
    %v2585 = vsel %vm52, %v1601, 0.0
    %v2586 = vadd.f32 %v2584, %v2585
    %v2587 = vsel %vm52, %v1606, 0.0
    %v2588 = vadd.f32 %v2586, %v2587
    %v2589 = vsel %vm52, %v1609, 0.0
    %v2590 = vadd.f32 %v2588, %v2589
    %v2591 = vsel %vm52, %v1614, 0.0
    %v2592 = vadd.f32 %v2590, %v2591
    %v2593 = vsel %vm52, %v1617, 0.0
    %v2594 = vadd.f32 %v2592, %v2593
    %v2595 = vsel %vm52, %v1622, 0.0
    %v2596 = vadd.f32 %v2594, %v2595
    %v2597 = vsel %vm52, %v1625, 0.0
    %v2598 = vadd.f32 %v2596, %v2597
    %v2599 = vsel %vm52, %v1630, 0.0
    %v2600 = vadd.f32 %v2598, %v2599
    %v2601 = vsel %vm52, %v1633, 0.0
    %v2602 = vadd.f32 %v2600, %v2601
    %v2603 = vsel %vm52, %v1638, 0.0
    %v2604 = vadd.f32 %v2602, %v2603
    %v2605 = vsel %vm52, %v1641, 0.0
    %v2606 = vadd.f32 %v2604, %v2605
    %v2607 = vsel %vm52, %v1646, 0.0
    %v2608 = vadd.f32 %v2606, %v2607
    %v2609 = vsel %vm52, %v1649, 0.0
    %v2610 = vadd.f32 %v2608, %v2609
    %v2611 = vsel %vm52, %v1654, 0.0
    %v2612 = vadd.f32 %v2610, %v2611
    %v2613 = vsel %vm52, %v1657, 0.0
    %v2614 = vadd.f32 %v2612, %v2613
    %v2615 = vsel %vm52, %v1662, 0.0
    %v2616 = vadd.f32 %v2614, %v2615
    %v2617 = vsel %vm52, %v1665, 0.0
    %v2618 = vadd.f32 %v2616, %v2617
    %v2619 = vsel %vm52, %v1670, 0.0
    %v2620 = vadd.f32 %v2618, %v2619
    %v2621 = vsel %vm52, %v1673, 0.0
    %v2622 = vadd.f32 %v2620, %v2621
    %v2623 = vsel %vm52, %v1678, 0.0
    %v2624 = vadd.f32 %v2622, %v2623
    %v2625 = vsel %vm52, %v1681, 0.0
    %v2626 = vadd.f32 %v2624, %v2625
    %v2627 = vsel %vm52, %v1686, 0.0
    %v2628 = vadd.f32 %v2626, %v2627
    %v2629 = vsel %vm52, %v1689, 0.0
    %v2630 = vadd.f32 %v2628, %v2629
    %v2631 = vsel %vm52, %v1694, 0.0
    %v2632 = vadd.f32 %v2630, %v2631
    %v2633 = vsel %vm52, %v1697, 0.0
    %v2634 = vadd.f32 %v2632, %v2633
    %v2635 = vsel %vm52, %v1702, 0.0
    %v2636 = vadd.f32 %v2634, %v2635
    %v2637 = vsel %vm52, %v1705, 0.0
    %v2638 = vadd.f32 %v2636, %v2637
    %v2639 = vsel %vm52, %v1710, 0.0
    %v2640 = vadd.f32 %v2638, %v2639
    %v2641 = vsel %vm52, %v1713, 0.0
    %v2642 = vadd.f32 %v2640, %v2641
    %v2643 = vsel %vm52, %v1718, 0.0
    %v2644 = vadd.f32 %v2642, %v2643
    %v2645 = vsel %vm52, %v1721, 0.0
    %v2646 = vadd.f32 %v2644, %v2645
    %v2647 = vsel %vm52, %v1726, 0.0
    %v2648 = vadd.f32 %v2646, %v2647
    %v2649 = vsel %vm52, %v1729, 0.0
    %v2650 = vadd.f32 %v2648, %v2649
    %v2651 = vsel %vm52, %v1734, 0.0
    %v2652 = vadd.f32 %v2650, %v2651
    %v2653 = vsel %vm52, %v1737, 0.0
    %v2654 = vadd.f32 %v2652, %v2653
    %v2655 = vsel %vm52, %v1742, 0.0
    %v2656 = vadd.f32 %v2654, %v2655
    %v2657 = vsel %vm52, %v1745, 0.0
    %v2658 = vadd.f32 %v2656, %v2657
    %v2659 = vsel %vm52, %v1750, 0.0
    %v2660 = vadd.f32 %v2658, %v2659
    %v2661 = vsel %vm52, %v1753, 0.0
    %v2662 = vadd.f32 %v2660, %v2661
    %v2663 = vsel %vm52, %v1758, 0.0
    %v2664 = vadd.f32 %v2662, %v2663
    %v2665 = vsel %vm52, %v1761, 0.0
    %v2666 = vadd.f32 %v2664, %v2665
    %v2667 = vsel %vm52, %v1766, 0.0
    %v2668 = vadd.f32 %v2666, %v2667
    %v2669 = vsel %vm52, %v1769, 0.0
    %v2670 = vadd.f32 %v2668, %v2669
    %v2671 = vsel %vm52, %v1774, 0.0
    %v2672 = vadd.f32 %v2670, %v2671
    %v2673 = vsel %vm52, %v1777, 0.0
    %v2674 = vadd.f32 %v2672, %v2673
    %v2675 = vsel %vm52, %v1782, 0.0
    %v2676 = vadd.f32 %v2674, %v2675
    %v2677 = vsel %vm52, %v1785, 0.0
    %v2678 = vadd.f32 %v2676, %v2677
    %v2679 = vsel %vm52, %v1790, 0.0
    %v2680 = vadd.f32 %v2678, %v2679
    %v2681 = vsel %vm52, %v1793, 0.0
    %v2682 = vadd.f32 %v2680, %v2681
    %v2683 = vsel %vm52, %v1798, 0.0
    %v2684 = vadd.f32 %v2682, %v2683
    %v2685 = vsel %vm52, %v1801, 0.0
    %v2686 = vadd.f32 %v2684, %v2685
    %v2687 = vsel %vm52, %v1806, 0.0
    %v2688 = vadd.f32 %v2686, %v2687
    %v2689 = vsel %vm52, %v1809, 0.0
    %v2690 = vadd.f32 %v2688, %v2689
    %v2691 = vsel %vm52, %v1814, 0.0
    %v2692 = vadd.f32 %v2690, %v2691
    %v2693 = vsel %vm52, %v1817, 0.0
    %v2694 = vadd.f32 %v2692, %v2693
    %v2695 = vsel %vm52, %v1822, 0.0
    %v2696 = vadd.f32 %v2694, %v2695
    %v2697 = vsel %vm52, %v1825, 0.0
    %v2698 = vadd.f32 %v2696, %v2697
    %v2699 = vsel %vm52, %v1830, 0.0
    %v2700 = vadd.f32 %v2698, %v2699
    %v2701 = vsel %vm52, %v1833, 0.0
    %v2702 = vadd.f32 %v2700, %v2701
    %v2703 = vsel %vm52, %v1838, 0.0
    %v2704 = vadd.f32 %v2702, %v2703
    %v2705 = vsel %vm52, %v1841, 0.0
    %v2706 = vadd.f32 %v2704, %v2705
    %v2707 = vsel %vm52, %v1846, 0.0
    %v2708 = vadd.f32 %v2706, %v2707
    %v2709 = vsel %vm52, %v1849, 0.0
    %v2710 = vadd.f32 %v2708, %v2709
    %v2711 = vsel %vm52, %v1854, 0.0
    %v2712 = vadd.f32 %v2710, %v2711
    %v2713 = vsel %vm52, %v1857, 0.0
    %v2714 = vadd.f32 %v2712, %v2713
    %v2715 = vsel %vm52, %v1862, 0.0
    %v2716 = vadd.f32 %v2714, %v2715
    %v2717 = vsel %vm52, %v1865, 0.0
    %v2718 = vadd.f32 %v2716, %v2717
    %v2719 = vsel %vm52, %v1870, 0.0
    %v2720 = vadd.f32 %v2718, %v2719
    %v2721 = vsel %vm52, %v1873, 0.0
    %v2722 = vadd.f32 %v2720, %v2721
    %v2723 = vsel %vm52, %v1878, 0.0
    %v2724 = vadd.f32 %v2722, %v2723
    %v2725 = vsel %vm52, %v1881, 0.0
    %v2726 = vadd.f32 %v2724, %v2725
    %v2727 = vsel %vm52, %v1886, 0.0
    %v2728 = vadd.f32 %v2726, %v2727
    %v2729 = vsel %vm52, %v1889, 0.0
    %v2730 = vadd.f32 %v2728, %v2729
    %v2731 = vsel %vm52, %v1894, 0.0
    %v2732 = vadd.f32 %v2730, %v2731
    %v2733 = vsel %vm52, %v1897, 0.0
    %v2734 = vadd.f32 %v2732, %v2733
    %v2735 = vsel %vm52, %v1902, 0.0
    %v2736 = vadd.f32 %v2734, %v2735
    %v2737 = vsel %vm52, %v1905, 0.0
    %v2738 = vadd.f32 %v2736, %v2737
    %v2739 = vsel %vm52, %v1910, 0.0
    %v2740 = vadd.f32 %v2738, %v2739
    %v2741 = vsel %vm52, %v1913, 0.0
    %v2742 = vadd.f32 %v2740, %v2741
    %v2743 = vsel %vm52, %v1918, 0.0
    %v2744 = vadd.f32 %v2742, %v2743
    %v2745 = vsel %vm52, %v1921, 0.0
    %v2746 = vadd.f32 %v2744, %v2745
    %v2747 = vsel %vm52, %v1926, 0.0
    %v2748 = vadd.f32 %v2746, %v2747
    %v2749 = vsel %vm52, %v1929, 0.0
    %v2750 = vadd.f32 %v2748, %v2749
    %v2751 = vsel %vm52, %v1934, 0.0
    %v2752 = vadd.f32 %v2750, %v2751
    %v2753 = vsel %vm52, %v1937, 0.0
    %v2754 = vadd.f32 %v2752, %v2753
    %v2755 = vsel %vm52, %v1942, 0.0
    %v2756 = vadd.f32 %v2754, %v2755
    %v2757 = vsel %vm52, %v1945, 0.0
    %v2758 = vadd.f32 %v2756, %v2757
    %v2759 = vsel %vm52, %v1950, 0.0
    %v2760 = vadd.f32 %v2758, %v2759
    %v2761 = vsel %vm52, %v1953, 0.0
    %v2762 = vadd.f32 %v2760, %v2761
    %v2763 = vsel %vm52, %v1958, 0.0
    %v2764 = vadd.f32 %v2762, %v2763
    %v2765 = vsel %vm52, %v1961, 0.0
    %v2766 = vadd.f32 %v2764, %v2765
    %v2767 = vsel %vm52, %v1966, 0.0
    %v2768 = vadd.f32 %v2766, %v2767
    %v2769 = vsel %vm52, %v1969, 0.0
    %v2770 = vadd.f32 %v2768, %v2769
    %v2771 = vsel %vm52, %v1974, 0.0
    %v2772 = vadd.f32 %v2770, %v2771
    %v2773 = vsel %vm52, %v1977, 0.0
    %v2774 = vadd.f32 %v2772, %v2773
    %v2775 = vsel %vm52, %v1982, 0.0
    %v2776 = vadd.f32 %v2774, %v2775
    %v2777 = vsel %vm52, %v1985, 0.0
    %v2778 = vadd.f32 %v2776, %v2777
    %v2779 = vsel %vm52, %v1990, 0.0
    %v2780 = vadd.f32 %v2778, %v2779
    %v2781 = vsel %vm52, %v1993, 0.0
    %v2782 = vadd.f32 %v2780, %v2781
    %v2783 = vsel %vm52, %v1998, 0.0
    %v2784 = vadd.f32 %v2782, %v2783
    %v2785 = vsel %vm52, %v2001, 0.0
    %v2786 = vadd.f32 %v2784, %v2785
    %v2787 = vsel %vm52, %v2006, 0.0
    %v2788 = vadd.f32 %v2786, %v2787
    %v2789 = vsel %vm52, %v2009, 0.0
    %v2790 = vadd.f32 %v2788, %v2789
    %v2791 = vsel %vm52, %v2014, 0.0
    %v2792 = vadd.f32 %v2790, %v2791
    %v2793 = vsel %vm52, %v2017, 0.0
    %v2794 = vadd.f32 %v2792, %v2793
    %v2795 = vsel %vm52, %v2022, 0.0
    %v2796 = vadd.f32 %v2794, %v2795
    %v2797 = vsel %vm52, %v2025, 0.0
    %v2798 = vadd.f32 %v2796, %v2797
    %v2799 = vsel %vm52, %v2030, 0.0
    %v2800 = vadd.f32 %v2798, %v2799
    %v2801 = vsel %vm52, %v2033, 0.0
    %v2802 = vadd.f32 %v2800, %v2801
    %v2803 = vsel %vm52, %v2038, 0.0
    %v2804 = vadd.f32 %v2802, %v2803
    %v2805 = vsel %vm52, %v2041, 0.0
    %v2806 = vadd.f32 %v2804, %v2805
    %v2807 = vsel %vm52, %v2046, 0.0
    %v2808 = vadd.f32 %v2806, %v2807
    %v2809 = vsel %vm52, %v2049, 0.0
    %v2810 = vadd.f32 %v2808, %v2809
    %v2811 = vsel %vm52, %v2054, 0.0
    %v2812 = vadd.f32 %v2810, %v2811
    %v2813 = vsel %vm52, %v2057, 0.0
    %v2814 = vadd.f32 %v2812, %v2813
    %v2815 = vsel %vm52, %v2062, 0.0
    %v2816 = vadd.f32 %v2814, %v2815
    %v2817 = vsel %vm52, %v2065, 0.0
    %v2818 = vadd.f32 %v2816, %v2817
    %v2819 = vsel %vm52, %v2070, 0.0
    %v2820 = vadd.f32 %v2818, %v2819
    %v2821 = vsel %vm52, %v2073, 0.0
    %v2822 = vadd.f32 %v2820, %v2821
    %v2823 = vsel %vm52, %v2078, 0.0
    %v2824 = vadd.f32 %v2822, %v2823
    %v2825 = vsel %vm52, %v2081, 0.0
    %v2826 = vadd.f32 %v2824, %v2825
    %v2827 = vsel %vm52, %v2086, 0.0
    %v2828 = vadd.f32 %v2826, %v2827
    %v2829 = vsel %vm52, %v2089, 0.0
    %v2830 = vadd.f32 %v2828, %v2829
    %v2831 = vsel %vm52, %v2094, 0.0
    %v2832 = vadd.f32 %v2830, %v2831
    %v2833 = vsel %vm52, %v2097, 0.0
    %v2834 = vadd.f32 %v2832, %v2833
    %v2835 = vsel %vm52, %v2102, 0.0
    %v2836 = vadd.f32 %v2834, %v2835
    %v2837 = vsel %vm52, %v2105, 0.0
    %v2838 = vadd.f32 %v2836, %v2837
    %v2839 = vsel %vm52, %v2110, 0.0
    %v2840 = vadd.f32 %v2838, %v2839
    %v2841 = vsel %vm52, %v2113, 0.0
    %v2842 = vadd.f32 %v2840, %v2841
    %v2843 = vsel %vm52, %v2118, 0.0
    %v2844 = vadd.f32 %v2842, %v2843
    %v2845 = vsel %vm52, %v2121, 0.0
    %v2846 = vadd.f32 %v2844, %v2845
    %v2847 = vsel %vm52, %v2126, 0.0
    %v2848 = vadd.f32 %v2846, %v2847
    %v2849 = vsel %vm52, %v2129, 0.0
    %v2850 = vadd.f32 %v2848, %v2849
    %v2851 = vsel %vm52, %v2134, 0.0
    %v2852 = vadd.f32 %v2850, %v2851
    %v2853 = vsel %vm52, %v2137, 0.0
    %v2854 = vadd.f32 %v2852, %v2853
    %v2855 = vsel %vm52, %v2142, 0.0
    %v2856 = vadd.f32 %v2854, %v2855
    %v2857 = vsel %vm52, %v2145, 0.0
    %v2858 = vadd.f32 %v2856, %v2857
    %v2859 = vsel %vm52, %v2150, 0.0
    %v2860 = vadd.f32 %v2858, %v2859
    %v2861 = vsel %vm52, %v2153, 0.0
    %v2862 = vadd.f32 %v2860, %v2861
    %v2863 = vsel %vm52, %v2158, 0.0
    %v2864 = vadd.f32 %v2862, %v2863
    %v2865 = vsel %vm52, %v2161, 0.0
    %v2866 = vadd.f32 %v2864, %v2865
    %v2867 = vsel %vm52, %v2166, 0.0
    %v2868 = vadd.f32 %v2866, %v2867
    %v2869 = vsel %vm52, %v2169, 0.0
    %v2870 = vadd.f32 %v2868, %v2869
    %v2871 = vsel %vm52, %v2174, 0.0
    %v2872 = vadd.f32 %v2870, %v2871
    %v2873 = vsel %vm52, %v2177, 0.0
    %v2874 = vadd.f32 %v2872, %v2873
    %v2875 = vsel %vm52, %v2182, 0.0
    %v2876 = vadd.f32 %v2874, %v2875
    %v2877 = vsel %vm52, %v2185, 0.0
    %v2878 = vadd.f32 %v2876, %v2877
    %v2879 = vsel %vm52, %v2190, 0.0
    %v2880 = vadd.f32 %v2878, %v2879
    %v2881 = vsel %vm52, %v2193, 0.0
    %v2882 = vadd.f32 %v2880, %v2881
    %v2883 = vsel %vm52, %v2198, 0.0
    %v2884 = vadd.f32 %v2882, %v2883
    %v2885 = vsel %vm52, %v2201, 0.0
    %v2886 = vadd.f32 %v2884, %v2885
    %v2887 = vsel %vm52, %v2206, 0.0
    %v2888 = vadd.f32 %v2886, %v2887
    %v2889 = vsel %vm52, %v2209, 0.0
    %v2890 = vadd.f32 %v2888, %v2889
    %v2891 = vsel %vm52, %v2214, 0.0
    %v2892 = vadd.f32 %v2890, %v2891
    %v2893 = vsel %vm52, %v2217, 0.0
    %v2894 = vadd.f32 %v2892, %v2893
    %v2895 = vsel %vm52, %v2222, 0.0
    %v2896 = vadd.f32 %v2894, %v2895
    %v2897 = vsel %vm52, %v2225, 0.0
    %v2898 = vadd.f32 %v2896, %v2897
    %v2899 = vsel %vm52, %v2230, 0.0
    %v2900 = vadd.f32 %v2898, %v2899
    %v2901 = vsel %vm52, %v2233, 0.0
    %v2902 = vadd.f32 %v2900, %v2901
    %v2903 = vsel %vm52, %v2238, 0.0
    %v2904 = vadd.f32 %v2902, %v2903
    %v2905 = vsel %vm52, %v2241, 0.0
    %v2906 = vadd.f32 %v2904, %v2905
    %v2907 = vsel %vm52, %v2246, 0.0
    %v2908 = vadd.f32 %v2906, %v2907
    %v2909 = vsel %vm52, %v2249, 0.0
    %v2910 = vadd.f32 %v2908, %v2909
    %v2911 = vsel %vm52, %v2254, 0.0
    %v2912 = vadd.f32 %v2910, %v2911
    %v2913 = vsel %vm52, %v2257, 0.0
    %v2914 = vadd.f32 %v2912, %v2913
    %v2915 = vsel %vm52, %v2262, 0.0
    %v2916 = vadd.f32 %v2914, %v2915
    %v2917 = vsel %vm52, %v2265, 0.0
    %v2918 = vadd.f32 %v2916, %v2917
    %v2919 = vsel %vm52, %v2270, 0.0
    %v2920 = vadd.f32 %v2918, %v2919
    %v2921 = vsel %vm52, %v2273, 0.0
    %v2922 = vadd.f32 %v2920, %v2921
    %v2923 = vsel %vm52, %v2278, 0.0
    %v2924 = vadd.f32 %v2922, %v2923
    %v2925 = vsel %vm52, %v2281, 0.0
    %v2926 = vadd.f32 %v2924, %v2925
    %v2927 = vsel %vm52, %v2286, 0.0
    %v2928 = vadd.f32 %v2926, %v2927
    %v2929 = vsel %vm52, %v2289, 0.0
    %v2930 = vadd.f32 %v2928, %v2929
    %v2931 = vsel %vm52, %v2294, 0.0
    %v2932 = vadd.f32 %v2930, %v2931
    %v2933 = vsel %vm52, %v2297, 0.0
    %v2934 = vadd.f32 %v2932, %v2933
    %v2935 = vsel %vm52, %v2302, 0.0
    %v2936 = vadd.f32 %v2934, %v2935
    %v2937 = vsel %vm52, %v2305, 0.0
    %v2938 = vadd.f32 %v2936, %v2937
    %v2939 = vsel %vm52, %v2310, 0.0
    %v2940 = vadd.f32 %v2938, %v2939
    %v2941 = vsel %vm52, %v2313, 0.0
    %v2942 = vadd.f32 %v2940, %v2941
    %v2943 = vsel %vm52, %v2318, 0.0
    %v2944 = vadd.f32 %v2942, %v2943
    %v2945 = vsel %vm52, %v2321, 0.0
    %v2946 = vadd.f32 %v2944, %v2945
    %v2947 = vsel %vm52, %v2326, 0.0
    %v2948 = vadd.f32 %v2946, %v2947
    %v2949 = vsel %vm52, %v2329, 0.0
    %v2950 = vadd.f32 %v2948, %v2949
    %v2951 = vsel %vm52, %v2334, 0.0
    %v2952 = vadd.f32 %v2950, %v2951
    %v2953 = vsel %vm52, %v2337, 0.0
    %v2954 = vadd.f32 %v2952, %v2953
    %v2955 = vsel %vm52, %v2342, 0.0
    %v2956 = vadd.f32 %v2954, %v2955
    %v2957 = vsel %vm52, %v2345, 0.0
    %v2958 = vadd.f32 %v2956, %v2957
    %v2959 = vsel %vm52, %v2350, 0.0
    %v2960 = vadd.f32 %v2958, %v2959
    %v2961 = vsel %vm52, %v2353, 0.0
    %v2962 = vadd.f32 %v2960, %v2961
    %v2963 = vsel %vm52, %v2358, 0.0
    %v2964 = vadd.f32 %v2962, %v2963
    %v2965 = vsel %vm52, %v2361, 0.0
    %v2966 = vadd.f32 %v2964, %v2965
    %v2967 = vsel %vm52, %v2366, 0.0
    %v2968 = vadd.f32 %v2966, %v2967
    %v2969 = vsel %vm52, %v2369, 0.0
    %v2970 = vadd.f32 %v2968, %v2969
    %v2971 = vsel %vm52, %v2374, 0.0
    %v2972 = vadd.f32 %v2970, %v2971
    %v2973 = vsel %vm52, %v2377, 0.0
    %v2974 = vadd.f32 %v2972, %v2973
    %v2975 = vsel %vm52, %v2382, 0.0
    %v2976 = vadd.f32 %v2974, %v2975
    %v2977 = vsel %vm52, %v2385, 0.0
    %v2978 = vadd.f32 %v2976, %v2977
    %v2979 = vsel %vm52, %v2390, 0.0
    %v2980 = vadd.f32 %v2978, %v2979
    %v2981 = vsel %vm52, %v2393, 0.0
    %v2982 = vadd.f32 %v2980, %v2981
    %v2983 = vsel %vm52, %v2398, 0.0
    %v2984 = vadd.f32 %v2982, %v2983
    %v2985 = vsel %vm52, %v2401, 0.0
    %v2986 = vadd.f32 %v2984, %v2985
    %v2987 = vsel %vm52, %v2406, 0.0
    %v2988 = vadd.f32 %v2986, %v2987
    %v2989 = vsel %vm52, %v2409, 0.0
    %v2990 = vadd.f32 %v2988, %v2989
    %v2991 = vsel %vm52, %v2414, 0.0
    %v2992 = vadd.f32 %v2990, %v2991
    %v2993 = vsel %vm52, %v2417, 0.0
    %v2994 = vadd.f32 %v2992, %v2993
    %v2995 = vsel %vm52, %v2422, 0.0
    %v2996 = vadd.f32 %v2994, %v2995
    %v2997 = vsel %vm52, %v2425, 0.0
    %v2998 = vadd.f32 %v2996, %v2997
    %v2999 = vsel %vm52, %v2430, 0.0
    %v3000 = vadd.f32 %v2998, %v2999
    %v3001 = vsel %vm52, %v2433, 0.0
    %v3002 = vadd.f32 %v3000, %v3001
    %v3003 = vsel %vm52, %v2438, 0.0
    %v3004 = vadd.f32 %v3002, %v3003
    %v3005 = vsel %vm52, %v2441, 0.0
    %v3006 = vadd.f32 %v3004, %v3005
    %v3007 = vsel %vm52, %v2446, 0.0
    %v3008 = vadd.f32 %v3006, %v3007
    %v3009 = vsel %vm52, %v2449, 0.0
    %v3010 = vadd.f32 %v3008, %v3009
    %v3011 = vsel %vm52, %v2454, 0.0
    %v3012 = vadd.f32 %v3010, %v3011
    %v3013 = vsel %vm52, %v2457, 0.0
    %v3014 = vadd.f32 %v3012, %v3013
    %v3015 = vsel %vm52, %v2462, 0.0
    %v3016 = vadd.f32 %v3014, %v3015
    %v3017 = vsel %vm52, %v2465, 0.0
    %v3018 = vadd.f32 %v3016, %v3017
    %v3019 = vsel %vm52, %v2470, 0.0
    %v3020 = vadd.f32 %v3018, %v3019
    %v3021 = vsel %vm52, %v2473, 0.0
    %v3022 = vadd.f32 %v3020, %v3021
    %v3023 = vsel %vm52, %v2478, 0.0
    %v3024 = vadd.f32 %v3022, %v3023
    %v3025 = vsel %vm52, %v2481, 0.0
    %v3026 = vadd.f32 %v3024, %v3025
    %v3027 = vsel %vm52, %v2486, 0.0
    %v3028 = vadd.f32 %v3026, %v3027
    %v3029 = vsel %vm52, %v2489, 0.0
    %v3030 = vadd.f32 %v3028, %v3029
    %v3031 = vsel %vm52, %v2494, 0.0
    %v3032 = vadd.f32 %v3030, %v3031
    %v3033 = vsel %vm52, %v2497, 0.0
    %v3034 = vadd.f32 %v3032, %v3033
    %v3035 = vsel %vm52, %v2502, 0.0
    %v3036 = vadd.f32 %v3034, %v3035
    %v3037 = vsel %vm52, %v2505, 0.0
    %v3038 = vadd.f32 %v3036, %v3037
    %v3039 = vsel %vm52, %v2510, 0.0
    %v3040 = vadd.f32 %v3038, %v3039
    %v3041 = vsel %vm52, %v2513, 0.0
    %v3042 = vadd.f32 %v3040, %v3041
    %v3043 = vsel %vm52, %v2518, 0.0
    %v3044 = vadd.f32 %v3042, %v3043
    %v3045 = vsel %vm52, %v2521, 0.0
    %v3046 = vadd.f32 %v3044, %v3045
    %v3047 = vsel %vm52, %v2526, 0.0
    %v3048 = vadd.f32 %v3046, %v3047
    %v3049 = vsel %vm52, %v2529, 0.0
    %v3050 = vadd.f32 %v3048, %v3049
    %v3051 = vsel %vm52, %v2534, 0.0
    %v3052 = vadd.f32 %v3050, %v3051
    %v3053 = vsel %vm52, %v2537, 0.0
    %v3054 = vadd.f32 %v3052, %v3053
    %v3055 = vsel %vm52, %v2542, 0.0
    %v3056 = vadd.f32 %v3054, %v3055
    %v3057 = vsel %vm52, %v2545, 0.0
    %v3058 = vadd.f32 %v3056, %v3057
    %v3059 = vrot.slane %v3058, 4
    %v3060 = vadd.f32 %v3058, %v3059
    %v3061 = vrot.slane %v3060, 2
    %v3062 = vadd.f32 %v3060, %v3061
    %v3063 = vrot.slane %v3062, 1
    %v3064 = vadd.f32 %v3062, %v3063
    %v3065 = vmul.f32 %v3064, 0.00048828125
    %v3066 = vmul.f32 %v1526, %v1526
    %v3067 = vmul.f32 %v1529, %v1529
    %v3068 = vmul.f32 %v1534, %v1534
    %v3069 = vmul.f32 %v1537, %v1537
    %v3070 = vmul.f32 %v1542, %v1542
    %v3071 = vmul.f32 %v1545, %v1545
    %v3072 = vmul.f32 %v1550, %v1550
    %v3073 = vmul.f32 %v1553, %v1553
    %v3074 = vmul.f32 %v1558, %v1558
    %v3075 = vmul.f32 %v1561, %v1561
    %v3076 = vmul.f32 %v1566, %v1566
    %v3077 = vmul.f32 %v1569, %v1569
    %v3078 = vmul.f32 %v1574, %v1574
    %v3079 = vmul.f32 %v1577, %v1577
    %v3080 = vmul.f32 %v1582, %v1582
    %v3081 = vmul.f32 %v1585, %v1585
    %v3082 = vmul.f32 %v1590, %v1590
    %v3083 = vmul.f32 %v1593, %v1593
    %v3084 = vmul.f32 %v1598, %v1598
    %v3085 = vmul.f32 %v1601, %v1601
    %v3086 = vmul.f32 %v1606, %v1606
    %v3087 = vmul.f32 %v1609, %v1609
    %v3088 = vmul.f32 %v1614, %v1614
    %v3089 = vmul.f32 %v1617, %v1617
    %v3090 = vmul.f32 %v1622, %v1622
    %v3091 = vmul.f32 %v1625, %v1625
    %v3092 = vmul.f32 %v1630, %v1630
    %v3093 = vmul.f32 %v1633, %v1633
    %v3094 = vmul.f32 %v1638, %v1638
    %v3095 = vmul.f32 %v1641, %v1641
    %v3096 = vmul.f32 %v1646, %v1646
    %v3097 = vmul.f32 %v1649, %v1649
    %v3098 = vmul.f32 %v1654, %v1654
    %v3099 = vmul.f32 %v1657, %v1657
    %v3100 = vmul.f32 %v1662, %v1662
    %v3101 = vmul.f32 %v1665, %v1665
    %v3102 = vmul.f32 %v1670, %v1670
    %v3103 = vmul.f32 %v1673, %v1673
    %v3104 = vmul.f32 %v1678, %v1678
    %v3105 = vmul.f32 %v1681, %v1681
    %v3106 = vmul.f32 %v1686, %v1686
    %v3107 = vmul.f32 %v1689, %v1689
    %v3108 = vmul.f32 %v1694, %v1694
    %v3109 = vmul.f32 %v1697, %v1697
    %v3110 = vmul.f32 %v1702, %v1702
    %v3111 = vmul.f32 %v1705, %v1705
    %v3112 = vmul.f32 %v1710, %v1710
    %v3113 = vmul.f32 %v1713, %v1713
    %v3114 = vmul.f32 %v1718, %v1718
    %v3115 = vmul.f32 %v1721, %v1721
    %v3116 = vmul.f32 %v1726, %v1726
    %v3117 = vmul.f32 %v1729, %v1729
    %v3118 = vmul.f32 %v1734, %v1734
    %v3119 = vmul.f32 %v1737, %v1737
    %v3120 = vmul.f32 %v1742, %v1742
    %v3121 = vmul.f32 %v1745, %v1745
    %v3122 = vmul.f32 %v1750, %v1750
    %v3123 = vmul.f32 %v1753, %v1753
    %v3124 = vmul.f32 %v1758, %v1758
    %v3125 = vmul.f32 %v1761, %v1761
    %v3126 = vmul.f32 %v1766, %v1766
    %v3127 = vmul.f32 %v1769, %v1769
    %v3128 = vmul.f32 %v1774, %v1774
    %v3129 = vmul.f32 %v1777, %v1777
    %v3130 = vmul.f32 %v1782, %v1782
    %v3131 = vmul.f32 %v1785, %v1785
    %v3132 = vmul.f32 %v1790, %v1790
    %v3133 = vmul.f32 %v1793, %v1793
    %v3134 = vmul.f32 %v1798, %v1798
    %v3135 = vmul.f32 %v1801, %v1801
    %v3136 = vmul.f32 %v1806, %v1806
    %v3137 = vmul.f32 %v1809, %v1809
    %v3138 = vmul.f32 %v1814, %v1814
    %v3139 = vmul.f32 %v1817, %v1817
    %v3140 = vmul.f32 %v1822, %v1822
    %v3141 = vmul.f32 %v1825, %v1825
    %v3142 = vmul.f32 %v1830, %v1830
    %v3143 = vmul.f32 %v1833, %v1833
    %v3144 = vmul.f32 %v1838, %v1838
    %v3145 = vmul.f32 %v1841, %v1841
    %v3146 = vmul.f32 %v1846, %v1846
    %v3147 = vmul.f32 %v1849, %v1849
    %v3148 = vmul.f32 %v1854, %v1854
    %v3149 = vmul.f32 %v1857, %v1857
    %v3150 = vmul.f32 %v1862, %v1862
    %v3151 = vmul.f32 %v1865, %v1865
    %v3152 = vmul.f32 %v1870, %v1870
    %v3153 = vmul.f32 %v1873, %v1873
    %v3154 = vmul.f32 %v1878, %v1878
    %v3155 = vmul.f32 %v1881, %v1881
    %v3156 = vmul.f32 %v1886, %v1886
    %v3157 = vmul.f32 %v1889, %v1889
    %v3158 = vmul.f32 %v1894, %v1894
    %v3159 = vmul.f32 %v1897, %v1897
    %v3160 = vmul.f32 %v1902, %v1902
    %v3161 = vmul.f32 %v1905, %v1905
    %v3162 = vmul.f32 %v1910, %v1910
    %v3163 = vmul.f32 %v1913, %v1913
    %v3164 = vmul.f32 %v1918, %v1918
    %v3165 = vmul.f32 %v1921, %v1921
    %v3166 = vmul.f32 %v1926, %v1926
    %v3167 = vmul.f32 %v1929, %v1929
    %v3168 = vmul.f32 %v1934, %v1934
    %v3169 = vmul.f32 %v1937, %v1937
    %v3170 = vmul.f32 %v1942, %v1942
    %v3171 = vmul.f32 %v1945, %v1945
    %v3172 = vmul.f32 %v1950, %v1950
    %v3173 = vmul.f32 %v1953, %v1953
    %v3174 = vmul.f32 %v1958, %v1958
    %v3175 = vmul.f32 %v1961, %v1961
    %v3176 = vmul.f32 %v1966, %v1966
    %v3177 = vmul.f32 %v1969, %v1969
    %v3178 = vmul.f32 %v1974, %v1974
    %v3179 = vmul.f32 %v1977, %v1977
    %v3180 = vmul.f32 %v1982, %v1982
    %v3181 = vmul.f32 %v1985, %v1985
    %v3182 = vmul.f32 %v1990, %v1990
    %v3183 = vmul.f32 %v1993, %v1993
    %v3184 = vmul.f32 %v1998, %v1998
    %v3185 = vmul.f32 %v2001, %v2001
    %v3186 = vmul.f32 %v2006, %v2006
    %v3187 = vmul.f32 %v2009, %v2009
    %v3188 = vmul.f32 %v2014, %v2014
    %v3189 = vmul.f32 %v2017, %v2017
    %v3190 = vmul.f32 %v2022, %v2022
    %v3191 = vmul.f32 %v2025, %v2025
    %v3192 = vmul.f32 %v2030, %v2030
    %v3193 = vmul.f32 %v2033, %v2033
    %v3194 = vmul.f32 %v2038, %v2038
    %v3195 = vmul.f32 %v2041, %v2041
    %v3196 = vmul.f32 %v2046, %v2046
    %v3197 = vmul.f32 %v2049, %v2049
    %v3198 = vmul.f32 %v2054, %v2054
    %v3199 = vmul.f32 %v2057, %v2057
    %v3200 = vmul.f32 %v2062, %v2062
    %v3201 = vmul.f32 %v2065, %v2065
    %v3202 = vmul.f32 %v2070, %v2070
    %v3203 = vmul.f32 %v2073, %v2073
    %v3204 = vmul.f32 %v2078, %v2078
    %v3205 = vmul.f32 %v2081, %v2081
    %v3206 = vmul.f32 %v2086, %v2086
    %v3207 = vmul.f32 %v2089, %v2089
    %v3208 = vmul.f32 %v2094, %v2094
    %v3209 = vmul.f32 %v2097, %v2097
    %v3210 = vmul.f32 %v2102, %v2102
    %v3211 = vmul.f32 %v2105, %v2105
    %v3212 = vmul.f32 %v2110, %v2110
    %v3213 = vmul.f32 %v2113, %v2113
    %v3214 = vmul.f32 %v2118, %v2118
    %v3215 = vmul.f32 %v2121, %v2121
    %v3216 = vmul.f32 %v2126, %v2126
    %v3217 = vmul.f32 %v2129, %v2129
    %v3218 = vmul.f32 %v2134, %v2134
    %v3219 = vmul.f32 %v2137, %v2137
    %v3220 = vmul.f32 %v2142, %v2142
    %v3221 = vmul.f32 %v2145, %v2145
    %v3222 = vmul.f32 %v2150, %v2150
    %v3223 = vmul.f32 %v2153, %v2153
    %v3224 = vmul.f32 %v2158, %v2158
    %v3225 = vmul.f32 %v2161, %v2161
    %v3226 = vmul.f32 %v2166, %v2166
    %v3227 = vmul.f32 %v2169, %v2169
    %v3228 = vmul.f32 %v2174, %v2174
    %v3229 = vmul.f32 %v2177, %v2177
    %v3230 = vmul.f32 %v2182, %v2182
    %v3231 = vmul.f32 %v2185, %v2185
    %v3232 = vmul.f32 %v2190, %v2190
    %v3233 = vmul.f32 %v2193, %v2193
    %v3234 = vmul.f32 %v2198, %v2198
    %v3235 = vmul.f32 %v2201, %v2201
    %v3236 = vmul.f32 %v2206, %v2206
    %v3237 = vmul.f32 %v2209, %v2209
    %v3238 = vmul.f32 %v2214, %v2214
    %v3239 = vmul.f32 %v2217, %v2217
    %v3240 = vmul.f32 %v2222, %v2222
    %v3241 = vmul.f32 %v2225, %v2225
    %v3242 = vmul.f32 %v2230, %v2230
    %v3243 = vmul.f32 %v2233, %v2233
    %v3244 = vmul.f32 %v2238, %v2238
    %v3245 = vmul.f32 %v2241, %v2241
    %v3246 = vmul.f32 %v2246, %v2246
    %v3247 = vmul.f32 %v2249, %v2249
    %v3248 = vmul.f32 %v2254, %v2254
    %v3249 = vmul.f32 %v2257, %v2257
    %v3250 = vmul.f32 %v2262, %v2262
    %v3251 = vmul.f32 %v2265, %v2265
    %v3252 = vmul.f32 %v2270, %v2270
    %v3253 = vmul.f32 %v2273, %v2273
    %v3254 = vmul.f32 %v2278, %v2278
    %v3255 = vmul.f32 %v2281, %v2281
    %v3256 = vmul.f32 %v2286, %v2286
    %v3257 = vmul.f32 %v2289, %v2289
    %v3258 = vmul.f32 %v2294, %v2294
    %v3259 = vmul.f32 %v2297, %v2297
    %v3260 = vmul.f32 %v2302, %v2302
    %v3261 = vmul.f32 %v2305, %v2305
    %v3262 = vmul.f32 %v2310, %v2310
    %v3263 = vmul.f32 %v2313, %v2313
    %v3264 = vmul.f32 %v2318, %v2318
    %v3265 = vmul.f32 %v2321, %v2321
    %v3266 = vmul.f32 %v2326, %v2326
    %v3267 = vmul.f32 %v2329, %v2329
    %v3268 = vmul.f32 %v2334, %v2334
    %v3269 = vmul.f32 %v2337, %v2337
    %v3270 = vmul.f32 %v2342, %v2342
    %v3271 = vmul.f32 %v2345, %v2345
    %v3272 = vmul.f32 %v2350, %v2350
    %v3273 = vmul.f32 %v2353, %v2353
    %v3274 = vmul.f32 %v2358, %v2358
    %v3275 = vmul.f32 %v2361, %v2361
    %v3276 = vmul.f32 %v2366, %v2366
    %v3277 = vmul.f32 %v2369, %v2369
    %v3278 = vmul.f32 %v2374, %v2374
    %v3279 = vmul.f32 %v2377, %v2377
    %v3280 = vmul.f32 %v2382, %v2382
    %v3281 = vmul.f32 %v2385, %v2385
    %v3282 = vmul.f32 %v2390, %v2390
    %v3283 = vmul.f32 %v2393, %v2393
    %v3284 = vmul.f32 %v2398, %v2398
    %v3285 = vmul.f32 %v2401, %v2401
    %v3286 = vmul.f32 %v2406, %v2406
    %v3287 = vmul.f32 %v2409, %v2409
    %v3288 = vmul.f32 %v2414, %v2414
    %v3289 = vmul.f32 %v2417, %v2417
    %v3290 = vmul.f32 %v2422, %v2422
    %v3291 = vmul.f32 %v2425, %v2425
    %v3292 = vmul.f32 %v2430, %v2430
    %v3293 = vmul.f32 %v2433, %v2433
    %v3294 = vmul.f32 %v2438, %v2438
    %v3295 = vmul.f32 %v2441, %v2441
    %v3296 = vmul.f32 %v2446, %v2446
    %v3297 = vmul.f32 %v2449, %v2449
    %v3298 = vmul.f32 %v2454, %v2454
    %v3299 = vmul.f32 %v2457, %v2457
    %v3300 = vmul.f32 %v2462, %v2462
    %v3301 = vmul.f32 %v2465, %v2465
    %v3302 = vmul.f32 %v2470, %v2470
    %v3303 = vmul.f32 %v2473, %v2473
    %v3304 = vmul.f32 %v2478, %v2478
    %v3305 = vmul.f32 %v2481, %v2481
    %v3306 = vmul.f32 %v2486, %v2486
    %v3307 = vmul.f32 %v2489, %v2489
    %v3308 = vmul.f32 %v2494, %v2494
    %v3309 = vmul.f32 %v2497, %v2497
    %v3310 = vmul.f32 %v2502, %v2502
    %v3311 = vmul.f32 %v2505, %v2505
    %v3312 = vmul.f32 %v2510, %v2510
    %v3313 = vmul.f32 %v2513, %v2513
    %v3314 = vmul.f32 %v2518, %v2518
    %v3315 = vmul.f32 %v2521, %v2521
    %v3316 = vmul.f32 %v2526, %v2526
    %v3317 = vmul.f32 %v2529, %v2529
    %v3318 = vmul.f32 %v2534, %v2534
    %v3319 = vmul.f32 %v2537, %v2537
    %v3320 = vmul.f32 %v2542, %v2542
    %v3321 = vmul.f32 %v2545, %v2545
    %v3322 = vsel %vm52, %v3066, 0.0
    %v3323 = vsel %vm52, %v3067, 0.0
    %v3324 = vadd.f32 %v3322, %v3323
    %v3325 = vsel %vm52, %v3068, 0.0
    %v3326 = vadd.f32 %v3324, %v3325
    %v3327 = vsel %vm52, %v3069, 0.0
    %v3328 = vadd.f32 %v3326, %v3327
    %v3329 = vsel %vm52, %v3070, 0.0
    %v3330 = vadd.f32 %v3328, %v3329
    %v3331 = vsel %vm52, %v3071, 0.0
    %v3332 = vadd.f32 %v3330, %v3331
    %v3333 = vsel %vm52, %v3072, 0.0
    %v3334 = vadd.f32 %v3332, %v3333
    %v3335 = vsel %vm52, %v3073, 0.0
    %v3336 = vadd.f32 %v3334, %v3335
    %v3337 = vsel %vm52, %v3074, 0.0
    %v3338 = vadd.f32 %v3336, %v3337
    %v3339 = vsel %vm52, %v3075, 0.0
    %v3340 = vadd.f32 %v3338, %v3339
    %v3341 = vsel %vm52, %v3076, 0.0
    %v3342 = vadd.f32 %v3340, %v3341
    %v3343 = vsel %vm52, %v3077, 0.0
    %v3344 = vadd.f32 %v3342, %v3343
    %v3345 = vsel %vm52, %v3078, 0.0
    %v3346 = vadd.f32 %v3344, %v3345
    %v3347 = vsel %vm52, %v3079, 0.0
    %v3348 = vadd.f32 %v3346, %v3347
    %v3349 = vsel %vm52, %v3080, 0.0
    %v3350 = vadd.f32 %v3348, %v3349
    %v3351 = vsel %vm52, %v3081, 0.0
    %v3352 = vadd.f32 %v3350, %v3351
    %v3353 = vsel %vm52, %v3082, 0.0
    %v3354 = vadd.f32 %v3352, %v3353
    %v3355 = vsel %vm52, %v3083, 0.0
    %v3356 = vadd.f32 %v3354, %v3355
    %v3357 = vsel %vm52, %v3084, 0.0
    %v3358 = vadd.f32 %v3356, %v3357
    %v3359 = vsel %vm52, %v3085, 0.0
    %v3360 = vadd.f32 %v3358, %v3359
    %v3361 = vsel %vm52, %v3086, 0.0
    %v3362 = vadd.f32 %v3360, %v3361
    %v3363 = vsel %vm52, %v3087, 0.0
    %v3364 = vadd.f32 %v3362, %v3363
    %v3365 = vsel %vm52, %v3088, 0.0
    %v3366 = vadd.f32 %v3364, %v3365
    %v3367 = vsel %vm52, %v3089, 0.0
    %v3368 = vadd.f32 %v3366, %v3367
    %v3369 = vsel %vm52, %v3090, 0.0
    %v3370 = vadd.f32 %v3368, %v3369
    %v3371 = vsel %vm52, %v3091, 0.0
    %v3372 = vadd.f32 %v3370, %v3371
    %v3373 = vsel %vm52, %v3092, 0.0
    %v3374 = vadd.f32 %v3372, %v3373
    %v3375 = vsel %vm52, %v3093, 0.0
    %v3376 = vadd.f32 %v3374, %v3375
    %v3377 = vsel %vm52, %v3094, 0.0
    %v3378 = vadd.f32 %v3376, %v3377
    %v3379 = vsel %vm52, %v3095, 0.0
    %v3380 = vadd.f32 %v3378, %v3379
    %v3381 = vsel %vm52, %v3096, 0.0
    %v3382 = vadd.f32 %v3380, %v3381
    %v3383 = vsel %vm52, %v3097, 0.0
    %v3384 = vadd.f32 %v3382, %v3383
    %v3385 = vsel %vm52, %v3098, 0.0
    %v3386 = vadd.f32 %v3384, %v3385
    %v3387 = vsel %vm52, %v3099, 0.0
    %v3388 = vadd.f32 %v3386, %v3387
    %v3389 = vsel %vm52, %v3100, 0.0
    %v3390 = vadd.f32 %v3388, %v3389
    %v3391 = vsel %vm52, %v3101, 0.0
    %v3392 = vadd.f32 %v3390, %v3391
    %v3393 = vsel %vm52, %v3102, 0.0
    %v3394 = vadd.f32 %v3392, %v3393
    %v3395 = vsel %vm52, %v3103, 0.0
    %v3396 = vadd.f32 %v3394, %v3395
    %v3397 = vsel %vm52, %v3104, 0.0
    %v3398 = vadd.f32 %v3396, %v3397
    %v3399 = vsel %vm52, %v3105, 0.0
    %v3400 = vadd.f32 %v3398, %v3399
    %v3401 = vsel %vm52, %v3106, 0.0
    %v3402 = vadd.f32 %v3400, %v3401
    %v3403 = vsel %vm52, %v3107, 0.0
    %v3404 = vadd.f32 %v3402, %v3403
    %v3405 = vsel %vm52, %v3108, 0.0
    %v3406 = vadd.f32 %v3404, %v3405
    %v3407 = vsel %vm52, %v3109, 0.0
    %v3408 = vadd.f32 %v3406, %v3407
    %v3409 = vsel %vm52, %v3110, 0.0
    %v3410 = vadd.f32 %v3408, %v3409
    %v3411 = vsel %vm52, %v3111, 0.0
    %v3412 = vadd.f32 %v3410, %v3411
    %v3413 = vsel %vm52, %v3112, 0.0
    %v3414 = vadd.f32 %v3412, %v3413
    %v3415 = vsel %vm52, %v3113, 0.0
    %v3416 = vadd.f32 %v3414, %v3415
    %v3417 = vsel %vm52, %v3114, 0.0
    %v3418 = vadd.f32 %v3416, %v3417
    %v3419 = vsel %vm52, %v3115, 0.0
    %v3420 = vadd.f32 %v3418, %v3419
    %v3421 = vsel %vm52, %v3116, 0.0
    %v3422 = vadd.f32 %v3420, %v3421
    %v3423 = vsel %vm52, %v3117, 0.0
    %v3424 = vadd.f32 %v3422, %v3423
    %v3425 = vsel %vm52, %v3118, 0.0
    %v3426 = vadd.f32 %v3424, %v3425
    %v3427 = vsel %vm52, %v3119, 0.0
    %v3428 = vadd.f32 %v3426, %v3427
    %v3429 = vsel %vm52, %v3120, 0.0
    %v3430 = vadd.f32 %v3428, %v3429
    %v3431 = vsel %vm52, %v3121, 0.0
    %v3432 = vadd.f32 %v3430, %v3431
    %v3433 = vsel %vm52, %v3122, 0.0
    %v3434 = vadd.f32 %v3432, %v3433
    %v3435 = vsel %vm52, %v3123, 0.0
    %v3436 = vadd.f32 %v3434, %v3435
    %v3437 = vsel %vm52, %v3124, 0.0
    %v3438 = vadd.f32 %v3436, %v3437
    %v3439 = vsel %vm52, %v3125, 0.0
    %v3440 = vadd.f32 %v3438, %v3439
    %v3441 = vsel %vm52, %v3126, 0.0
    %v3442 = vadd.f32 %v3440, %v3441
    %v3443 = vsel %vm52, %v3127, 0.0
    %v3444 = vadd.f32 %v3442, %v3443
    %v3445 = vsel %vm52, %v3128, 0.0
    %v3446 = vadd.f32 %v3444, %v3445
    %v3447 = vsel %vm52, %v3129, 0.0
    %v3448 = vadd.f32 %v3446, %v3447
    %v3449 = vsel %vm52, %v3130, 0.0
    %v3450 = vadd.f32 %v3448, %v3449
    %v3451 = vsel %vm52, %v3131, 0.0
    %v3452 = vadd.f32 %v3450, %v3451
    %v3453 = vsel %vm52, %v3132, 0.0
    %v3454 = vadd.f32 %v3452, %v3453
    %v3455 = vsel %vm52, %v3133, 0.0
    %v3456 = vadd.f32 %v3454, %v3455
    %v3457 = vsel %vm52, %v3134, 0.0
    %v3458 = vadd.f32 %v3456, %v3457
    %v3459 = vsel %vm52, %v3135, 0.0
    %v3460 = vadd.f32 %v3458, %v3459
    %v3461 = vsel %vm52, %v3136, 0.0
    %v3462 = vadd.f32 %v3460, %v3461
    %v3463 = vsel %vm52, %v3137, 0.0
    %v3464 = vadd.f32 %v3462, %v3463
    %v3465 = vsel %vm52, %v3138, 0.0
    %v3466 = vadd.f32 %v3464, %v3465
    %v3467 = vsel %vm52, %v3139, 0.0
    %v3468 = vadd.f32 %v3466, %v3467
    %v3469 = vsel %vm52, %v3140, 0.0
    %v3470 = vadd.f32 %v3468, %v3469
    %v3471 = vsel %vm52, %v3141, 0.0
    %v3472 = vadd.f32 %v3470, %v3471
    %v3473 = vsel %vm52, %v3142, 0.0
    %v3474 = vadd.f32 %v3472, %v3473
    %v3475 = vsel %vm52, %v3143, 0.0
    %v3476 = vadd.f32 %v3474, %v3475
    %v3477 = vsel %vm52, %v3144, 0.0
    %v3478 = vadd.f32 %v3476, %v3477
    %v3479 = vsel %vm52, %v3145, 0.0
    %v3480 = vadd.f32 %v3478, %v3479
    %v3481 = vsel %vm52, %v3146, 0.0
    %v3482 = vadd.f32 %v3480, %v3481
    %v3483 = vsel %vm52, %v3147, 0.0
    %v3484 = vadd.f32 %v3482, %v3483
    %v3485 = vsel %vm52, %v3148, 0.0
    %v3486 = vadd.f32 %v3484, %v3485
    %v3487 = vsel %vm52, %v3149, 0.0
    %v3488 = vadd.f32 %v3486, %v3487
    %v3489 = vsel %vm52, %v3150, 0.0
    %v3490 = vadd.f32 %v3488, %v3489
    %v3491 = vsel %vm52, %v3151, 0.0
    %v3492 = vadd.f32 %v3490, %v3491
    %v3493 = vsel %vm52, %v3152, 0.0
    %v3494 = vadd.f32 %v3492, %v3493
    %v3495 = vsel %vm52, %v3153, 0.0
    %v3496 = vadd.f32 %v3494, %v3495
    %v3497 = vsel %vm52, %v3154, 0.0
    %v3498 = vadd.f32 %v3496, %v3497
    %v3499 = vsel %vm52, %v3155, 0.0
    %v3500 = vadd.f32 %v3498, %v3499
    %v3501 = vsel %vm52, %v3156, 0.0
    %v3502 = vadd.f32 %v3500, %v3501
    %v3503 = vsel %vm52, %v3157, 0.0
    %v3504 = vadd.f32 %v3502, %v3503
    %v3505 = vsel %vm52, %v3158, 0.0
    %v3506 = vadd.f32 %v3504, %v3505
    %v3507 = vsel %vm52, %v3159, 0.0
    %v3508 = vadd.f32 %v3506, %v3507
    %v3509 = vsel %vm52, %v3160, 0.0
    %v3510 = vadd.f32 %v3508, %v3509
    %v3511 = vsel %vm52, %v3161, 0.0
    %v3512 = vadd.f32 %v3510, %v3511
    %v3513 = vsel %vm52, %v3162, 0.0
    %v3514 = vadd.f32 %v3512, %v3513
    %v3515 = vsel %vm52, %v3163, 0.0
    %v3516 = vadd.f32 %v3514, %v3515
    %v3517 = vsel %vm52, %v3164, 0.0
    %v3518 = vadd.f32 %v3516, %v3517
    %v3519 = vsel %vm52, %v3165, 0.0
    %v3520 = vadd.f32 %v3518, %v3519
    %v3521 = vsel %vm52, %v3166, 0.0
    %v3522 = vadd.f32 %v3520, %v3521
    %v3523 = vsel %vm52, %v3167, 0.0
    %v3524 = vadd.f32 %v3522, %v3523
    %v3525 = vsel %vm52, %v3168, 0.0
    %v3526 = vadd.f32 %v3524, %v3525
    %v3527 = vsel %vm52, %v3169, 0.0
    %v3528 = vadd.f32 %v3526, %v3527
    %v3529 = vsel %vm52, %v3170, 0.0
    %v3530 = vadd.f32 %v3528, %v3529
    %v3531 = vsel %vm52, %v3171, 0.0
    %v3532 = vadd.f32 %v3530, %v3531
    %v3533 = vsel %vm52, %v3172, 0.0
    %v3534 = vadd.f32 %v3532, %v3533
    %v3535 = vsel %vm52, %v3173, 0.0
    %v3536 = vadd.f32 %v3534, %v3535
    %v3537 = vsel %vm52, %v3174, 0.0
    %v3538 = vadd.f32 %v3536, %v3537
    %v3539 = vsel %vm52, %v3175, 0.0
    %v3540 = vadd.f32 %v3538, %v3539
    %v3541 = vsel %vm52, %v3176, 0.0
    %v3542 = vadd.f32 %v3540, %v3541
    %v3543 = vsel %vm52, %v3177, 0.0
    %v3544 = vadd.f32 %v3542, %v3543
    %v3545 = vsel %vm52, %v3178, 0.0
    %v3546 = vadd.f32 %v3544, %v3545
    %v3547 = vsel %vm52, %v3179, 0.0
    %v3548 = vadd.f32 %v3546, %v3547
    %v3549 = vsel %vm52, %v3180, 0.0
    %v3550 = vadd.f32 %v3548, %v3549
    %v3551 = vsel %vm52, %v3181, 0.0
    %v3552 = vadd.f32 %v3550, %v3551
    %v3553 = vsel %vm52, %v3182, 0.0
    %v3554 = vadd.f32 %v3552, %v3553
    %v3555 = vsel %vm52, %v3183, 0.0
    %v3556 = vadd.f32 %v3554, %v3555
    %v3557 = vsel %vm52, %v3184, 0.0
    %v3558 = vadd.f32 %v3556, %v3557
    %v3559 = vsel %vm52, %v3185, 0.0
    %v3560 = vadd.f32 %v3558, %v3559
    %v3561 = vsel %vm52, %v3186, 0.0
    %v3562 = vadd.f32 %v3560, %v3561
    %v3563 = vsel %vm52, %v3187, 0.0
    %v3564 = vadd.f32 %v3562, %v3563
    %v3565 = vsel %vm52, %v3188, 0.0
    %v3566 = vadd.f32 %v3564, %v3565
    %v3567 = vsel %vm52, %v3189, 0.0
    %v3568 = vadd.f32 %v3566, %v3567
    %v3569 = vsel %vm52, %v3190, 0.0
    %v3570 = vadd.f32 %v3568, %v3569
    %v3571 = vsel %vm52, %v3191, 0.0
    %v3572 = vadd.f32 %v3570, %v3571
    %v3573 = vsel %vm52, %v3192, 0.0
    %v3574 = vadd.f32 %v3572, %v3573
    %v3575 = vsel %vm52, %v3193, 0.0
    %v3576 = vadd.f32 %v3574, %v3575
    %v3577 = vsel %vm52, %v3194, 0.0
    %v3578 = vadd.f32 %v3576, %v3577
    %v3579 = vsel %vm52, %v3195, 0.0
    %v3580 = vadd.f32 %v3578, %v3579
    %v3581 = vsel %vm52, %v3196, 0.0
    %v3582 = vadd.f32 %v3580, %v3581
    %v3583 = vsel %vm52, %v3197, 0.0
    %v3584 = vadd.f32 %v3582, %v3583
    %v3585 = vsel %vm52, %v3198, 0.0
    %v3586 = vadd.f32 %v3584, %v3585
    %v3587 = vsel %vm52, %v3199, 0.0
    %v3588 = vadd.f32 %v3586, %v3587
    %v3589 = vsel %vm52, %v3200, 0.0
    %v3590 = vadd.f32 %v3588, %v3589
    %v3591 = vsel %vm52, %v3201, 0.0
    %v3592 = vadd.f32 %v3590, %v3591
    %v3593 = vsel %vm52, %v3202, 0.0
    %v3594 = vadd.f32 %v3592, %v3593
    %v3595 = vsel %vm52, %v3203, 0.0
    %v3596 = vadd.f32 %v3594, %v3595
    %v3597 = vsel %vm52, %v3204, 0.0
    %v3598 = vadd.f32 %v3596, %v3597
    %v3599 = vsel %vm52, %v3205, 0.0
    %v3600 = vadd.f32 %v3598, %v3599
    %v3601 = vsel %vm52, %v3206, 0.0
    %v3602 = vadd.f32 %v3600, %v3601
    %v3603 = vsel %vm52, %v3207, 0.0
    %v3604 = vadd.f32 %v3602, %v3603
    %v3605 = vsel %vm52, %v3208, 0.0
    %v3606 = vadd.f32 %v3604, %v3605
    %v3607 = vsel %vm52, %v3209, 0.0
    %v3608 = vadd.f32 %v3606, %v3607
    %v3609 = vsel %vm52, %v3210, 0.0
    %v3610 = vadd.f32 %v3608, %v3609
    %v3611 = vsel %vm52, %v3211, 0.0
    %v3612 = vadd.f32 %v3610, %v3611
    %v3613 = vsel %vm52, %v3212, 0.0
    %v3614 = vadd.f32 %v3612, %v3613
    %v3615 = vsel %vm52, %v3213, 0.0
    %v3616 = vadd.f32 %v3614, %v3615
    %v3617 = vsel %vm52, %v3214, 0.0
    %v3618 = vadd.f32 %v3616, %v3617
    %v3619 = vsel %vm52, %v3215, 0.0
    %v3620 = vadd.f32 %v3618, %v3619
    %v3621 = vsel %vm52, %v3216, 0.0
    %v3622 = vadd.f32 %v3620, %v3621
    %v3623 = vsel %vm52, %v3217, 0.0
    %v3624 = vadd.f32 %v3622, %v3623
    %v3625 = vsel %vm52, %v3218, 0.0
    %v3626 = vadd.f32 %v3624, %v3625
    %v3627 = vsel %vm52, %v3219, 0.0
    %v3628 = vadd.f32 %v3626, %v3627
    %v3629 = vsel %vm52, %v3220, 0.0
    %v3630 = vadd.f32 %v3628, %v3629
    %v3631 = vsel %vm52, %v3221, 0.0
    %v3632 = vadd.f32 %v3630, %v3631
    %v3633 = vsel %vm52, %v3222, 0.0
    %v3634 = vadd.f32 %v3632, %v3633
    %v3635 = vsel %vm52, %v3223, 0.0
    %v3636 = vadd.f32 %v3634, %v3635
    %v3637 = vsel %vm52, %v3224, 0.0
    %v3638 = vadd.f32 %v3636, %v3637
    %v3639 = vsel %vm52, %v3225, 0.0
    %v3640 = vadd.f32 %v3638, %v3639
    %v3641 = vsel %vm52, %v3226, 0.0
    %v3642 = vadd.f32 %v3640, %v3641
    %v3643 = vsel %vm52, %v3227, 0.0
    %v3644 = vadd.f32 %v3642, %v3643
    %v3645 = vsel %vm52, %v3228, 0.0
    %v3646 = vadd.f32 %v3644, %v3645
    %v3647 = vsel %vm52, %v3229, 0.0
    %v3648 = vadd.f32 %v3646, %v3647
    %v3649 = vsel %vm52, %v3230, 0.0
    %v3650 = vadd.f32 %v3648, %v3649
    %v3651 = vsel %vm52, %v3231, 0.0
    %v3652 = vadd.f32 %v3650, %v3651
    %v3653 = vsel %vm52, %v3232, 0.0
    %v3654 = vadd.f32 %v3652, %v3653
    %v3655 = vsel %vm52, %v3233, 0.0
    %v3656 = vadd.f32 %v3654, %v3655
    %v3657 = vsel %vm52, %v3234, 0.0
    %v3658 = vadd.f32 %v3656, %v3657
    %v3659 = vsel %vm52, %v3235, 0.0
    %v3660 = vadd.f32 %v3658, %v3659
    %v3661 = vsel %vm52, %v3236, 0.0
    %v3662 = vadd.f32 %v3660, %v3661
    %v3663 = vsel %vm52, %v3237, 0.0
    %v3664 = vadd.f32 %v3662, %v3663
    %v3665 = vsel %vm52, %v3238, 0.0
    %v3666 = vadd.f32 %v3664, %v3665
    %v3667 = vsel %vm52, %v3239, 0.0
    %v3668 = vadd.f32 %v3666, %v3667
    %v3669 = vsel %vm52, %v3240, 0.0
    %v3670 = vadd.f32 %v3668, %v3669
    %v3671 = vsel %vm52, %v3241, 0.0
    %v3672 = vadd.f32 %v3670, %v3671
    %v3673 = vsel %vm52, %v3242, 0.0
    %v3674 = vadd.f32 %v3672, %v3673
    %v3675 = vsel %vm52, %v3243, 0.0
    %v3676 = vadd.f32 %v3674, %v3675
    %v3677 = vsel %vm52, %v3244, 0.0
    %v3678 = vadd.f32 %v3676, %v3677
    %v3679 = vsel %vm52, %v3245, 0.0
    %v3680 = vadd.f32 %v3678, %v3679
    %v3681 = vsel %vm52, %v3246, 0.0
    %v3682 = vadd.f32 %v3680, %v3681
    %v3683 = vsel %vm52, %v3247, 0.0
    %v3684 = vadd.f32 %v3682, %v3683
    %v3685 = vsel %vm52, %v3248, 0.0
    %v3686 = vadd.f32 %v3684, %v3685
    %v3687 = vsel %vm52, %v3249, 0.0
    %v3688 = vadd.f32 %v3686, %v3687
    %v3689 = vsel %vm52, %v3250, 0.0
    %v3690 = vadd.f32 %v3688, %v3689
    %v3691 = vsel %vm52, %v3251, 0.0
    %v3692 = vadd.f32 %v3690, %v3691
    %v3693 = vsel %vm52, %v3252, 0.0
    %v3694 = vadd.f32 %v3692, %v3693
    %v3695 = vsel %vm52, %v3253, 0.0
    %v3696 = vadd.f32 %v3694, %v3695
    %v3697 = vsel %vm52, %v3254, 0.0
    %v3698 = vadd.f32 %v3696, %v3697
    %v3699 = vsel %vm52, %v3255, 0.0
    %v3700 = vadd.f32 %v3698, %v3699
    %v3701 = vsel %vm52, %v3256, 0.0
    %v3702 = vadd.f32 %v3700, %v3701
    %v3703 = vsel %vm52, %v3257, 0.0
    %v3704 = vadd.f32 %v3702, %v3703
    %v3705 = vsel %vm52, %v3258, 0.0
    %v3706 = vadd.f32 %v3704, %v3705
    %v3707 = vsel %vm52, %v3259, 0.0
    %v3708 = vadd.f32 %v3706, %v3707
    %v3709 = vsel %vm52, %v3260, 0.0
    %v3710 = vadd.f32 %v3708, %v3709
    %v3711 = vsel %vm52, %v3261, 0.0
    %v3712 = vadd.f32 %v3710, %v3711
    %v3713 = vsel %vm52, %v3262, 0.0
    %v3714 = vadd.f32 %v3712, %v3713
    %v3715 = vsel %vm52, %v3263, 0.0
    %v3716 = vadd.f32 %v3714, %v3715
    %v3717 = vsel %vm52, %v3264, 0.0
    %v3718 = vadd.f32 %v3716, %v3717
    %v3719 = vsel %vm52, %v3265, 0.0
    %v3720 = vadd.f32 %v3718, %v3719
    %v3721 = vsel %vm52, %v3266, 0.0
    %v3722 = vadd.f32 %v3720, %v3721
    %v3723 = vsel %vm52, %v3267, 0.0
    %v3724 = vadd.f32 %v3722, %v3723
    %v3725 = vsel %vm52, %v3268, 0.0
    %v3726 = vadd.f32 %v3724, %v3725
    %v3727 = vsel %vm52, %v3269, 0.0
    %v3728 = vadd.f32 %v3726, %v3727
    %v3729 = vsel %vm52, %v3270, 0.0
    %v3730 = vadd.f32 %v3728, %v3729
    %v3731 = vsel %vm52, %v3271, 0.0
    %v3732 = vadd.f32 %v3730, %v3731
    %v3733 = vsel %vm52, %v3272, 0.0
    %v3734 = vadd.f32 %v3732, %v3733
    %v3735 = vsel %vm52, %v3273, 0.0
    %v3736 = vadd.f32 %v3734, %v3735
    %v3737 = vsel %vm52, %v3274, 0.0
    %v3738 = vadd.f32 %v3736, %v3737
    %v3739 = vsel %vm52, %v3275, 0.0
    %v3740 = vadd.f32 %v3738, %v3739
    %v3741 = vsel %vm52, %v3276, 0.0
    %v3742 = vadd.f32 %v3740, %v3741
    %v3743 = vsel %vm52, %v3277, 0.0
    %v3744 = vadd.f32 %v3742, %v3743
    %v3745 = vsel %vm52, %v3278, 0.0
    %v3746 = vadd.f32 %v3744, %v3745
    %v3747 = vsel %vm52, %v3279, 0.0
    %v3748 = vadd.f32 %v3746, %v3747
    %v3749 = vsel %vm52, %v3280, 0.0
    %v3750 = vadd.f32 %v3748, %v3749
    %v3751 = vsel %vm52, %v3281, 0.0
    %v3752 = vadd.f32 %v3750, %v3751
    %v3753 = vsel %vm52, %v3282, 0.0
    %v3754 = vadd.f32 %v3752, %v3753
    %v3755 = vsel %vm52, %v3283, 0.0
    %v3756 = vadd.f32 %v3754, %v3755
    %v3757 = vsel %vm52, %v3284, 0.0
    %v3758 = vadd.f32 %v3756, %v3757
    %v3759 = vsel %vm52, %v3285, 0.0
    %v3760 = vadd.f32 %v3758, %v3759
    %v3761 = vsel %vm52, %v3286, 0.0
    %v3762 = vadd.f32 %v3760, %v3761
    %v3763 = vsel %vm52, %v3287, 0.0
    %v3764 = vadd.f32 %v3762, %v3763
    %v3765 = vsel %vm52, %v3288, 0.0
    %v3766 = vadd.f32 %v3764, %v3765
    %v3767 = vsel %vm52, %v3289, 0.0
    %v3768 = vadd.f32 %v3766, %v3767
    %v3769 = vsel %vm52, %v3290, 0.0
    %v3770 = vadd.f32 %v3768, %v3769
    %v3771 = vsel %vm52, %v3291, 0.0
    %v3772 = vadd.f32 %v3770, %v3771
    %v3773 = vsel %vm52, %v3292, 0.0
    %v3774 = vadd.f32 %v3772, %v3773
    %v3775 = vsel %vm52, %v3293, 0.0
    %v3776 = vadd.f32 %v3774, %v3775
    %v3777 = vsel %vm52, %v3294, 0.0
    %v3778 = vadd.f32 %v3776, %v3777
    %v3779 = vsel %vm52, %v3295, 0.0
    %v3780 = vadd.f32 %v3778, %v3779
    %v3781 = vsel %vm52, %v3296, 0.0
    %v3782 = vadd.f32 %v3780, %v3781
    %v3783 = vsel %vm52, %v3297, 0.0
    %v3784 = vadd.f32 %v3782, %v3783
    %v3785 = vsel %vm52, %v3298, 0.0
    %v3786 = vadd.f32 %v3784, %v3785
    %v3787 = vsel %vm52, %v3299, 0.0
    %v3788 = vadd.f32 %v3786, %v3787
    %v3789 = vsel %vm52, %v3300, 0.0
    %v3790 = vadd.f32 %v3788, %v3789
    %v3791 = vsel %vm52, %v3301, 0.0
    %v3792 = vadd.f32 %v3790, %v3791
    %v3793 = vsel %vm52, %v3302, 0.0
    %v3794 = vadd.f32 %v3792, %v3793
    %v3795 = vsel %vm52, %v3303, 0.0
    %v3796 = vadd.f32 %v3794, %v3795
    %v3797 = vsel %vm52, %v3304, 0.0
    %v3798 = vadd.f32 %v3796, %v3797
    %v3799 = vsel %vm52, %v3305, 0.0
    %v3800 = vadd.f32 %v3798, %v3799
    %v3801 = vsel %vm52, %v3306, 0.0
    %v3802 = vadd.f32 %v3800, %v3801
    %v3803 = vsel %vm52, %v3307, 0.0
    %v3804 = vadd.f32 %v3802, %v3803
    %v3805 = vsel %vm52, %v3308, 0.0
    %v3806 = vadd.f32 %v3804, %v3805
    %v3807 = vsel %vm52, %v3309, 0.0
    %v3808 = vadd.f32 %v3806, %v3807
    %v3809 = vsel %vm52, %v3310, 0.0
    %v3810 = vadd.f32 %v3808, %v3809
    %v3811 = vsel %vm52, %v3311, 0.0
    %v3812 = vadd.f32 %v3810, %v3811
    %v3813 = vsel %vm52, %v3312, 0.0
    %v3814 = vadd.f32 %v3812, %v3813
    %v3815 = vsel %vm52, %v3313, 0.0
    %v3816 = vadd.f32 %v3814, %v3815
    %v3817 = vsel %vm52, %v3314, 0.0
    %v3818 = vadd.f32 %v3816, %v3817
    %v3819 = vsel %vm52, %v3315, 0.0
    %v3820 = vadd.f32 %v3818, %v3819
    %v3821 = vsel %vm52, %v3316, 0.0
    %v3822 = vadd.f32 %v3820, %v3821
    %v3823 = vsel %vm52, %v3317, 0.0
    %v3824 = vadd.f32 %v3822, %v3823
    %v3825 = vsel %vm52, %v3318, 0.0
    %v3826 = vadd.f32 %v3824, %v3825
    %v3827 = vsel %vm52, %v3319, 0.0
    %v3828 = vadd.f32 %v3826, %v3827
    %v3829 = vsel %vm52, %v3320, 0.0
    %v3830 = vadd.f32 %v3828, %v3829
    %v3831 = vsel %vm52, %v3321, 0.0
    %v3832 = vadd.f32 %v3830, %v3831
    %v3833 = vrot.slane %v3832, 4
    %v3834 = vadd.f32 %v3832, %v3833
    %v3835 = vrot.slane %v3834, 2
    %v3836 = vadd.f32 %v3834, %v3835
    %v3837 = vrot.slane %v3836, 1
    %v3838 = vadd.f32 %v3836, %v3837
    %v3839 = vmul.f32 %v3838, 0.00048828125
    %v3840 = vmul.f32 %v3065, %v3065
    %v3841 = vsub.f32 %v3839, %v3840
    %v3842 = vadd.f32 %v3841, 1e-05
    %v3843 = vrsqrt.pop %v3842
    %v3844 = vld [vmem:[%s3] sm:$0x1]
    %v3845 = vmul.f32 %v3843, %v3844
    %v3846 = vsub.f32 %v1526, %v3065
    %v3847 = vsub.f32 %v1529, %v3065
    %v3848 = vsub.f32 %v1534, %v3065
    %v3849 = vsub.f32 %v1537, %v3065
    %v3850 = vsub.f32 %v1542, %v3065
    %v3851 = vsub.f32 %v1545, %v3065
    %v3852 = vsub.f32 %v1550, %v3065
    %v3853 = vsub.f32 %v1553, %v3065
    %v3854 = vsub.f32 %v1558, %v3065
    %v3855 = vsub.f32 %v1561, %v3065
    %v3856 = vsub.f32 %v1566, %v3065
    %v3857 = vsub.f32 %v1569, %v3065
    %v3858 = vsub.f32 %v1574, %v3065
    %v3859 = vsub.f32 %v1577, %v3065
    %v3860 = vsub.f32 %v1582, %v3065
    %v3861 = vsub.f32 %v1585, %v3065
    %v3862 = vsub.f32 %v1590, %v3065
    %v3863 = vsub.f32 %v1593, %v3065
    %v3864 = vsub.f32 %v1598, %v3065
    %v3865 = vsub.f32 %v1601, %v3065
    %v3866 = vsub.f32 %v1606, %v3065
    %v3867 = vsub.f32 %v1609, %v3065
    %v3868 = vsub.f32 %v1614, %v3065
    %v3869 = vsub.f32 %v1617, %v3065
    %v3870 = vsub.f32 %v1622, %v3065
    %v3871 = vsub.f32 %v1625, %v3065
    %v3872 = vsub.f32 %v1630, %v3065
    %v3873 = vsub.f32 %v1633, %v3065
    %v3874 = vsub.f32 %v1638, %v3065
    %v3875 = vsub.f32 %v1641, %v3065
    %v3876 = vsub.f32 %v1646, %v3065
    %v3877 = vsub.f32 %v1649, %v3065
    %v3878 = vsub.f32 %v1654, %v3065
    %v3879 = vsub.f32 %v1657, %v3065
    %v3880 = vsub.f32 %v1662, %v3065
    %v3881 = vsub.f32 %v1665, %v3065
    %v3882 = vsub.f32 %v1670, %v3065
    %v3883 = vsub.f32 %v1673, %v3065
    %v3884 = vsub.f32 %v1678, %v3065
    %v3885 = vsub.f32 %v1681, %v3065
    %v3886 = vsub.f32 %v1686, %v3065
    %v3887 = vsub.f32 %v1689, %v3065
    %v3888 = vsub.f32 %v1694, %v3065
    %v3889 = vsub.f32 %v1697, %v3065
    %v3890 = vsub.f32 %v1702, %v3065
    %v3891 = vsub.f32 %v1705, %v3065
    %v3892 = vsub.f32 %v1710, %v3065
    %v3893 = vsub.f32 %v1713, %v3065
    %v3894 = vsub.f32 %v1718, %v3065
    %v3895 = vsub.f32 %v1721, %v3065
    %v3896 = vsub.f32 %v1726, %v3065
    %v3897 = vsub.f32 %v1729, %v3065
    %v3898 = vsub.f32 %v1734, %v3065
    %v3899 = vsub.f32 %v1737, %v3065
    %v3900 = vsub.f32 %v1742, %v3065
    %v3901 = vsub.f32 %v1745, %v3065
    %v3902 = vsub.f32 %v1750, %v3065
    %v3903 = vsub.f32 %v1753, %v3065
    %v3904 = vsub.f32 %v1758, %v3065
    %v3905 = vsub.f32 %v1761, %v3065
    %v3906 = vsub.f32 %v1766, %v3065
    %v3907 = vsub.f32 %v1769, %v3065
    %v3908 = vsub.f32 %v1774, %v3065
    %v3909 = vsub.f32 %v1777, %v3065
    %v3910 = vsub.f32 %v1782, %v3065
    %v3911 = vsub.f32 %v1785, %v3065
    %v3912 = vsub.f32 %v1790, %v3065
    %v3913 = vsub.f32 %v1793, %v3065
    %v3914 = vsub.f32 %v1798, %v3065
    %v3915 = vsub.f32 %v1801, %v3065
    %v3916 = vsub.f32 %v1806, %v3065
    %v3917 = vsub.f32 %v1809, %v3065
    %v3918 = vsub.f32 %v1814, %v3065
    %v3919 = vsub.f32 %v1817, %v3065
    %v3920 = vsub.f32 %v1822, %v3065
    %v3921 = vsub.f32 %v1825, %v3065
    %v3922 = vsub.f32 %v1830, %v3065
    %v3923 = vsub.f32 %v1833, %v3065
    %v3924 = vsub.f32 %v1838, %v3065
    %v3925 = vsub.f32 %v1841, %v3065
    %v3926 = vsub.f32 %v1846, %v3065
    %v3927 = vsub.f32 %v1849, %v3065
    %v3928 = vsub.f32 %v1854, %v3065
    %v3929 = vsub.f32 %v1857, %v3065
    %v3930 = vsub.f32 %v1862, %v3065
    %v3931 = vsub.f32 %v1865, %v3065
    %v3932 = vsub.f32 %v1870, %v3065
    %v3933 = vsub.f32 %v1873, %v3065
    %v3934 = vsub.f32 %v1878, %v3065
    %v3935 = vsub.f32 %v1881, %v3065
    %v3936 = vsub.f32 %v1886, %v3065
    %v3937 = vsub.f32 %v1889, %v3065
    %v3938 = vsub.f32 %v1894, %v3065
    %v3939 = vsub.f32 %v1897, %v3065
    %v3940 = vsub.f32 %v1902, %v3065
    %v3941 = vsub.f32 %v1905, %v3065
    %v3942 = vsub.f32 %v1910, %v3065
    %v3943 = vsub.f32 %v1913, %v3065
    %v3944 = vsub.f32 %v1918, %v3065
    %v3945 = vsub.f32 %v1921, %v3065
    %v3946 = vsub.f32 %v1926, %v3065
    %v3947 = vsub.f32 %v1929, %v3065
    %v3948 = vsub.f32 %v1934, %v3065
    %v3949 = vsub.f32 %v1937, %v3065
    %v3950 = vsub.f32 %v1942, %v3065
    %v3951 = vsub.f32 %v1945, %v3065
    %v3952 = vsub.f32 %v1950, %v3065
    %v3953 = vsub.f32 %v1953, %v3065
    %v3954 = vsub.f32 %v1958, %v3065
    %v3955 = vsub.f32 %v1961, %v3065
    %v3956 = vsub.f32 %v1966, %v3065
    %v3957 = vsub.f32 %v1969, %v3065
    %v3958 = vsub.f32 %v1974, %v3065
    %v3959 = vsub.f32 %v1977, %v3065
    %v3960 = vsub.f32 %v1982, %v3065
    %v3961 = vsub.f32 %v1985, %v3065
    %v3962 = vsub.f32 %v1990, %v3065
    %v3963 = vsub.f32 %v1993, %v3065
    %v3964 = vsub.f32 %v1998, %v3065
    %v3965 = vsub.f32 %v2001, %v3065
    %v3966 = vsub.f32 %v2006, %v3065
    %v3967 = vsub.f32 %v2009, %v3065
    %v3968 = vsub.f32 %v2014, %v3065
    %v3969 = vsub.f32 %v2017, %v3065
    %v3970 = vsub.f32 %v2022, %v3065
    %v3971 = vsub.f32 %v2025, %v3065
    %v3972 = vsub.f32 %v2030, %v3065
    %v3973 = vsub.f32 %v2033, %v3065
    %v3974 = vsub.f32 %v2038, %v3065
    %v3975 = vsub.f32 %v2041, %v3065
    %v3976 = vsub.f32 %v2046, %v3065
    %v3977 = vsub.f32 %v2049, %v3065
    %v3978 = vsub.f32 %v2054, %v3065
    %v3979 = vsub.f32 %v2057, %v3065
    %v3980 = vsub.f32 %v2062, %v3065
    %v3981 = vsub.f32 %v2065, %v3065
    %v3982 = vsub.f32 %v2070, %v3065
    %v3983 = vsub.f32 %v2073, %v3065
    %v3984 = vsub.f32 %v2078, %v3065
    %v3985 = vsub.f32 %v2081, %v3065
    %v3986 = vsub.f32 %v2086, %v3065
    %v3987 = vsub.f32 %v2089, %v3065
    %v3988 = vsub.f32 %v2094, %v3065
    %v3989 = vsub.f32 %v2097, %v3065
    %v3990 = vsub.f32 %v2102, %v3065
    %v3991 = vsub.f32 %v2105, %v3065
    %v3992 = vsub.f32 %v2110, %v3065
    %v3993 = vsub.f32 %v2113, %v3065
    %v3994 = vsub.f32 %v2118, %v3065
    %v3995 = vsub.f32 %v2121, %v3065
    %v3996 = vsub.f32 %v2126, %v3065
    %v3997 = vsub.f32 %v2129, %v3065
    %v3998 = vsub.f32 %v2134, %v3065
    %v3999 = vsub.f32 %v2137, %v3065
    %v4000 = vsub.f32 %v2142, %v3065
    %v4001 = vsub.f32 %v2145, %v3065
    %v4002 = vsub.f32 %v2150, %v3065
    %v4003 = vsub.f32 %v2153, %v3065
    %v4004 = vsub.f32 %v2158, %v3065
    %v4005 = vsub.f32 %v2161, %v3065
    %v4006 = vsub.f32 %v2166, %v3065
    %v4007 = vsub.f32 %v2169, %v3065
    %v4008 = vsub.f32 %v2174, %v3065
    %v4009 = vsub.f32 %v2177, %v3065
    %v4010 = vsub.f32 %v2182, %v3065
    %v4011 = vsub.f32 %v2185, %v3065
    %v4012 = vsub.f32 %v2190, %v3065
    %v4013 = vsub.f32 %v2193, %v3065
    %v4014 = vsub.f32 %v2198, %v3065
    %v4015 = vsub.f32 %v2201, %v3065
    %v4016 = vsub.f32 %v2206, %v3065
    %v4017 = vsub.f32 %v2209, %v3065
    %v4018 = vsub.f32 %v2214, %v3065
    %v4019 = vsub.f32 %v2217, %v3065
    %v4020 = vsub.f32 %v2222, %v3065
    %v4021 = vsub.f32 %v2225, %v3065
    %v4022 = vsub.f32 %v2230, %v3065
    %v4023 = vsub.f32 %v2233, %v3065
    %v4024 = vsub.f32 %v2238, %v3065
    %v4025 = vsub.f32 %v2241, %v3065
    %v4026 = vsub.f32 %v2246, %v3065
    %v4027 = vsub.f32 %v2249, %v3065
    %v4028 = vsub.f32 %v2254, %v3065
    %v4029 = vsub.f32 %v2257, %v3065
    %v4030 = vsub.f32 %v2262, %v3065
    %v4031 = vsub.f32 %v2265, %v3065
    %v4032 = vsub.f32 %v2270, %v3065
    %v4033 = vsub.f32 %v2273, %v3065
    %v4034 = vsub.f32 %v2278, %v3065
    %v4035 = vsub.f32 %v2281, %v3065
    %v4036 = vsub.f32 %v2286, %v3065
    %v4037 = vsub.f32 %v2289, %v3065
    %v4038 = vsub.f32 %v2294, %v3065
    %v4039 = vsub.f32 %v2297, %v3065
    %v4040 = vsub.f32 %v2302, %v3065
    %v4041 = vsub.f32 %v2305, %v3065
    %v4042 = vsub.f32 %v2310, %v3065
    %v4043 = vsub.f32 %v2313, %v3065
    %v4044 = vsub.f32 %v2318, %v3065
    %v4045 = vsub.f32 %v2321, %v3065
    %v4046 = vsub.f32 %v2326, %v3065
    %v4047 = vsub.f32 %v2329, %v3065
    %v4048 = vsub.f32 %v2334, %v3065
    %v4049 = vsub.f32 %v2337, %v3065
    %v4050 = vsub.f32 %v2342, %v3065
    %v4051 = vsub.f32 %v2345, %v3065
    %v4052 = vsub.f32 %v2350, %v3065
    %v4053 = vsub.f32 %v2353, %v3065
    %v4054 = vsub.f32 %v2358, %v3065
    %v4055 = vsub.f32 %v2361, %v3065
    %v4056 = vsub.f32 %v2366, %v3065
    %v4057 = vsub.f32 %v2369, %v3065
    %v4058 = vsub.f32 %v2374, %v3065
    %v4059 = vsub.f32 %v2377, %v3065
    %v4060 = vsub.f32 %v2382, %v3065
    %v4061 = vsub.f32 %v2385, %v3065
    %v4062 = vsub.f32 %v2390, %v3065
    %v4063 = vsub.f32 %v2393, %v3065
    %v4064 = vsub.f32 %v2398, %v3065
    %v4065 = vsub.f32 %v2401, %v3065
    %v4066 = vsub.f32 %v2406, %v3065
    %v4067 = vsub.f32 %v2409, %v3065
    %v4068 = vsub.f32 %v2414, %v3065
    %v4069 = vsub.f32 %v2417, %v3065
    %v4070 = vsub.f32 %v2422, %v3065
    %v4071 = vsub.f32 %v2425, %v3065
    %v4072 = vsub.f32 %v2430, %v3065
    %v4073 = vsub.f32 %v2433, %v3065
    %v4074 = vsub.f32 %v2438, %v3065
    %v4075 = vsub.f32 %v2441, %v3065
    %v4076 = vsub.f32 %v2446, %v3065
    %v4077 = vsub.f32 %v2449, %v3065
    %v4078 = vsub.f32 %v2454, %v3065
    %v4079 = vsub.f32 %v2457, %v3065
    %v4080 = vsub.f32 %v2462, %v3065
    %v4081 = vsub.f32 %v2465, %v3065
    %v4082 = vsub.f32 %v2470, %v3065
    %v4083 = vsub.f32 %v2473, %v3065
    %v4084 = vsub.f32 %v2478, %v3065
    %v4085 = vsub.f32 %v2481, %v3065
    %v4086 = vsub.f32 %v2486, %v3065
    %v4087 = vsub.f32 %v2489, %v3065
    %v4088 = vsub.f32 %v2494, %v3065
    %v4089 = vsub.f32 %v2497, %v3065
    %v4090 = vsub.f32 %v2502, %v3065
    %v4091 = vsub.f32 %v2505, %v3065
    %v4092 = vsub.f32 %v2510, %v3065
    %v4093 = vsub.f32 %v2513, %v3065
    %v4094 = vsub.f32 %v2518, %v3065
    %v4095 = vsub.f32 %v2521, %v3065
    %v4096 = vsub.f32 %v2526, %v3065
    %v4097 = vsub.f32 %v2529, %v3065
    %v4098 = vsub.f32 %v2534, %v3065
    %v4099 = vsub.f32 %v2537, %v3065
    %v4100 = vsub.f32 %v2542, %v3065
    %v4101 = vsub.f32 %v2545, %v3065
    %v4102 = vlaneseq
    %v4103 = vshrl.u32 %v4102, 7
    %v4104 = vsub.s32 0, %v4103
    %v4105 = vrot.slane %v3845, %v4104
    %v4106 = vmul.f32 %v3846, %v4105
    %v4107 = vmul.f32 %v3847, %v4105
    %v4108 = vmul.f32 %v3848, %v4105
    %v4109 = vmul.f32 %v3849, %v4105
    %v4110 = vmul.f32 %v3850, %v4105
    %v4111 = vmul.f32 %v3851, %v4105
    %v4112 = vmul.f32 %v3852, %v4105
    %v4113 = vmul.f32 %v3853, %v4105
    %v4114 = vmul.f32 %v3854, %v4105
    %v4115 = vmul.f32 %v3855, %v4105
    %v4116 = vmul.f32 %v3856, %v4105
    %v4117 = vmul.f32 %v3857, %v4105
    %v4118 = vmul.f32 %v3858, %v4105
    %v4119 = vmul.f32 %v3859, %v4105
    %v4120 = vmul.f32 %v3860, %v4105
    %v4121 = vmul.f32 %v3861, %v4105
    %v4122 = vmul.f32 %v3862, %v4105
    %v4123 = vmul.f32 %v3863, %v4105
    %v4124 = vmul.f32 %v3864, %v4105
    %v4125 = vmul.f32 %v3865, %v4105
    %v4126 = vmul.f32 %v3866, %v4105
    %v4127 = vmul.f32 %v3867, %v4105
    %v4128 = vmul.f32 %v3868, %v4105
    %v4129 = vmul.f32 %v3869, %v4105
    %v4130 = vmul.f32 %v3870, %v4105
    %v4131 = vmul.f32 %v3871, %v4105
    %v4132 = vmul.f32 %v3872, %v4105
    %v4133 = vmul.f32 %v3873, %v4105
    %v4134 = vmul.f32 %v3874, %v4105
    %v4135 = vmul.f32 %v3875, %v4105
    %v4136 = vmul.f32 %v3876, %v4105
    %v4137 = vmul.f32 %v3877, %v4105
    %v4138 = vmul.f32 %v3878, %v4105
    %v4139 = vmul.f32 %v3879, %v4105
    %v4140 = vmul.f32 %v3880, %v4105
    %v4141 = vmul.f32 %v3881, %v4105
    %v4142 = vmul.f32 %v3882, %v4105
    %v4143 = vmul.f32 %v3883, %v4105
    %v4144 = vmul.f32 %v3884, %v4105
    %v4145 = vmul.f32 %v3885, %v4105
    %v4146 = vmul.f32 %v3886, %v4105
    %v4147 = vmul.f32 %v3887, %v4105
    %v4148 = vmul.f32 %v3888, %v4105
    %v4149 = vmul.f32 %v3889, %v4105
    %v4150 = vmul.f32 %v3890, %v4105
    %v4151 = vmul.f32 %v3891, %v4105
    %v4152 = vmul.f32 %v3892, %v4105
    %v4153 = vmul.f32 %v3893, %v4105
    %v4154 = vmul.f32 %v3894, %v4105
    %v4155 = vmul.f32 %v3895, %v4105
    %v4156 = vmul.f32 %v3896, %v4105
    %v4157 = vmul.f32 %v3897, %v4105
    %v4158 = vmul.f32 %v3898, %v4105
    %v4159 = vmul.f32 %v3899, %v4105
    %v4160 = vmul.f32 %v3900, %v4105
    %v4161 = vmul.f32 %v3901, %v4105
    %v4162 = vmul.f32 %v3902, %v4105
    %v4163 = vmul.f32 %v3903, %v4105
    %v4164 = vmul.f32 %v3904, %v4105
    %v4165 = vmul.f32 %v3905, %v4105
    %v4166 = vmul.f32 %v3906, %v4105
    %v4167 = vmul.f32 %v3907, %v4105
    %v4168 = vmul.f32 %v3908, %v4105
    %v4169 = vmul.f32 %v3909, %v4105
    %v4170 = vmul.f32 %v3910, %v4105
    %v4171 = vmul.f32 %v3911, %v4105
    %v4172 = vmul.f32 %v3912, %v4105
    %v4173 = vmul.f32 %v3913, %v4105
    %v4174 = vmul.f32 %v3914, %v4105
    %v4175 = vmul.f32 %v3915, %v4105
    %v4176 = vmul.f32 %v3916, %v4105
    %v4177 = vmul.f32 %v3917, %v4105
    %v4178 = vmul.f32 %v3918, %v4105
    %v4179 = vmul.f32 %v3919, %v4105
    %v4180 = vmul.f32 %v3920, %v4105
    %v4181 = vmul.f32 %v3921, %v4105
    %v4182 = vmul.f32 %v3922, %v4105
    %v4183 = vmul.f32 %v3923, %v4105
    %v4184 = vmul.f32 %v3924, %v4105
    %v4185 = vmul.f32 %v3925, %v4105
    %v4186 = vmul.f32 %v3926, %v4105
    %v4187 = vmul.f32 %v3927, %v4105
    %v4188 = vmul.f32 %v3928, %v4105
    %v4189 = vmul.f32 %v3929, %v4105
    %v4190 = vmul.f32 %v3930, %v4105
    %v4191 = vmul.f32 %v3931, %v4105
    %v4192 = vmul.f32 %v3932, %v4105
    %v4193 = vmul.f32 %v3933, %v4105
    %v4194 = vmul.f32 %v3934, %v4105
    %v4195 = vmul.f32 %v3935, %v4105
    %v4196 = vmul.f32 %v3936, %v4105
    %v4197 = vmul.f32 %v3937, %v4105
    %v4198 = vmul.f32 %v3938, %v4105
    %v4199 = vmul.f32 %v3939, %v4105
    %v4200 = vmul.f32 %v3940, %v4105
    %v4201 = vmul.f32 %v3941, %v4105
    %v4202 = vmul.f32 %v3942, %v4105
    %v4203 = vmul.f32 %v3943, %v4105
    %v4204 = vmul.f32 %v3944, %v4105
    %v4205 = vmul.f32 %v3945, %v4105
    %v4206 = vmul.f32 %v3946, %v4105
    %v4207 = vmul.f32 %v3947, %v4105
    %v4208 = vmul.f32 %v3948, %v4105
    %v4209 = vmul.f32 %v3949, %v4105
    %v4210 = vmul.f32 %v3950, %v4105
    %v4211 = vmul.f32 %v3951, %v4105
    %v4212 = vmul.f32 %v3952, %v4105
    %v4213 = vmul.f32 %v3953, %v4105
    %v4214 = vmul.f32 %v3954, %v4105
    %v4215 = vmul.f32 %v3955, %v4105
    %v4216 = vmul.f32 %v3956, %v4105
    %v4217 = vmul.f32 %v3957, %v4105
    %v4218 = vmul.f32 %v3958, %v4105
    %v4219 = vmul.f32 %v3959, %v4105
    %v4220 = vmul.f32 %v3960, %v4105
    %v4221 = vmul.f32 %v3961, %v4105
    %v4222 = vmul.f32 %v3962, %v4105
    %v4223 = vmul.f32 %v3963, %v4105
    %v4224 = vmul.f32 %v3964, %v4105
    %v4225 = vmul.f32 %v3965, %v4105
    %v4226 = vmul.f32 %v3966, %v4105
    %v4227 = vmul.f32 %v3967, %v4105
    %v4228 = vmul.f32 %v3968, %v4105
    %v4229 = vmul.f32 %v3969, %v4105
    %v4230 = vmul.f32 %v3970, %v4105
    %v4231 = vmul.f32 %v3971, %v4105
    %v4232 = vmul.f32 %v3972, %v4105
    %v4233 = vmul.f32 %v3973, %v4105
    %v4234 = vmul.f32 %v3974, %v4105
    %v4235 = vmul.f32 %v3975, %v4105
    %v4236 = vmul.f32 %v3976, %v4105
    %v4237 = vmul.f32 %v3977, %v4105
    %v4238 = vmul.f32 %v3978, %v4105
    %v4239 = vmul.f32 %v3979, %v4105
    %v4240 = vmul.f32 %v3980, %v4105
    %v4241 = vmul.f32 %v3981, %v4105
    %v4242 = vmul.f32 %v3982, %v4105
    %v4243 = vmul.f32 %v3983, %v4105
    %v4244 = vmul.f32 %v3984, %v4105
    %v4245 = vmul.f32 %v3985, %v4105
    %v4246 = vmul.f32 %v3986, %v4105
    %v4247 = vmul.f32 %v3987, %v4105
    %v4248 = vmul.f32 %v3988, %v4105
    %v4249 = vmul.f32 %v3989, %v4105
    %v4250 = vmul.f32 %v3990, %v4105
    %v4251 = vmul.f32 %v3991, %v4105
    %v4252 = vmul.f32 %v3992, %v4105
    %v4253 = vmul.f32 %v3993, %v4105
    %v4254 = vmul.f32 %v3994, %v4105
    %v4255 = vmul.f32 %v3995, %v4105
    %v4256 = vmul.f32 %v3996, %v4105
    %v4257 = vmul.f32 %v3997, %v4105
    %v4258 = vmul.f32 %v3998, %v4105
    %v4259 = vmul.f32 %v3999, %v4105
    %v4260 = vmul.f32 %v4000, %v4105
    %v4261 = vmul.f32 %v4001, %v4105
    %v4262 = vmul.f32 %v4002, %v4105
    %v4263 = vmul.f32 %v4003, %v4105
    %v4264 = vmul.f32 %v4004, %v4105
    %v4265 = vmul.f32 %v4005, %v4105
    %v4266 = vmul.f32 %v4006, %v4105
    %v4267 = vmul.f32 %v4007, %v4105
    %v4268 = vmul.f32 %v4008, %v4105
    %v4269 = vmul.f32 %v4009, %v4105
    %v4270 = vmul.f32 %v4010, %v4105
    %v4271 = vmul.f32 %v4011, %v4105
    %v4272 = vmul.f32 %v4012, %v4105
    %v4273 = vmul.f32 %v4013, %v4105
    %v4274 = vmul.f32 %v4014, %v4105
    %v4275 = vmul.f32 %v4015, %v4105
    %v4276 = vmul.f32 %v4016, %v4105
    %v4277 = vmul.f32 %v4017, %v4105
    %v4278 = vmul.f32 %v4018, %v4105
    %v4279 = vmul.f32 %v4019, %v4105
    %v4280 = vmul.f32 %v4020, %v4105
    %v4281 = vmul.f32 %v4021, %v4105
    %v4282 = vmul.f32 %v4022, %v4105
    %v4283 = vmul.f32 %v4023, %v4105
    %v4284 = vmul.f32 %v4024, %v4105
    %v4285 = vmul.f32 %v4025, %v4105
    %v4286 = vmul.f32 %v4026, %v4105
    %v4287 = vmul.f32 %v4027, %v4105
    %v4288 = vmul.f32 %v4028, %v4105
    %v4289 = vmul.f32 %v4029, %v4105
    %v4290 = vmul.f32 %v4030, %v4105
    %v4291 = vmul.f32 %v4031, %v4105
    %v4292 = vmul.f32 %v4032, %v4105
    %v4293 = vmul.f32 %v4033, %v4105
    %v4294 = vmul.f32 %v4034, %v4105
    %v4295 = vmul.f32 %v4035, %v4105
    %v4296 = vmul.f32 %v4036, %v4105
    %v4297 = vmul.f32 %v4037, %v4105
    %v4298 = vmul.f32 %v4038, %v4105
    %v4299 = vmul.f32 %v4039, %v4105
    %v4300 = vmul.f32 %v4040, %v4105
    %v4301 = vmul.f32 %v4041, %v4105
    %v4302 = vmul.f32 %v4042, %v4105
    %v4303 = vmul.f32 %v4043, %v4105
    %v4304 = vmul.f32 %v4044, %v4105
    %v4305 = vmul.f32 %v4045, %v4105
    %v4306 = vmul.f32 %v4046, %v4105
    %v4307 = vmul.f32 %v4047, %v4105
    %v4308 = vmul.f32 %v4048, %v4105
    %v4309 = vmul.f32 %v4049, %v4105
    %v4310 = vmul.f32 %v4050, %v4105
    %v4311 = vmul.f32 %v4051, %v4105
    %v4312 = vmul.f32 %v4052, %v4105
    %v4313 = vmul.f32 %v4053, %v4105
    %v4314 = vmul.f32 %v4054, %v4105
    %v4315 = vmul.f32 %v4055, %v4105
    %v4316 = vmul.f32 %v4056, %v4105
    %v4317 = vmul.f32 %v4057, %v4105
    %v4318 = vmul.f32 %v4058, %v4105
    %v4319 = vmul.f32 %v4059, %v4105
    %v4320 = vmul.f32 %v4060, %v4105
    %v4321 = vmul.f32 %v4061, %v4105
    %v4322 = vmul.f32 %v4062, %v4105
    %v4323 = vmul.f32 %v4063, %v4105
    %v4324 = vmul.f32 %v4064, %v4105
    %v4325 = vmul.f32 %v4065, %v4105
    %v4326 = vmul.f32 %v4066, %v4105
    %v4327 = vmul.f32 %v4067, %v4105
    %v4328 = vmul.f32 %v4068, %v4105
    %v4329 = vmul.f32 %v4069, %v4105
    %v4330 = vmul.f32 %v4070, %v4105
    %v4331 = vmul.f32 %v4071, %v4105
    %v4332 = vmul.f32 %v4072, %v4105
    %v4333 = vmul.f32 %v4073, %v4105
    %v4334 = vmul.f32 %v4074, %v4105
    %v4335 = vmul.f32 %v4075, %v4105
    %v4336 = vmul.f32 %v4076, %v4105
    %v4337 = vmul.f32 %v4077, %v4105
    %v4338 = vmul.f32 %v4078, %v4105
    %v4339 = vmul.f32 %v4079, %v4105
    %v4340 = vmul.f32 %v4080, %v4105
    %v4341 = vmul.f32 %v4081, %v4105
    %v4342 = vmul.f32 %v4082, %v4105
    %v4343 = vmul.f32 %v4083, %v4105
    %v4344 = vmul.f32 %v4084, %v4105
    %v4345 = vmul.f32 %v4085, %v4105
    %v4346 = vmul.f32 %v4086, %v4105
    %v4347 = vmul.f32 %v4087, %v4105
    %v4348 = vmul.f32 %v4088, %v4105
    %v4349 = vmul.f32 %v4089, %v4105
    %v4350 = vmul.f32 %v4090, %v4105
    %v4351 = vmul.f32 %v4091, %v4105
    %v4352 = vmul.f32 %v4092, %v4105
    %v4353 = vmul.f32 %v4093, %v4105
    %v4354 = vmul.f32 %v4094, %v4105
    %v4355 = vmul.f32 %v4095, %v4105
    %v4356 = vmul.f32 %v4096, %v4105
    %v4357 = vmul.f32 %v4097, %v4105
    %v4358 = vmul.f32 %v4098, %v4105
    %v4359 = vmul.f32 %v4099, %v4105
    %v4360 = vmul.f32 %v4100, %v4105
    %v4361 = vmul.f32 %v4101, %v4105
    %v4362 = vld [vmem:[%s4] sm:$0x1]
    %v4364 = vlaneseq
    %v4365 = vshrl.u32 %v4364, 7
    %v4366 = vsub.s32 0, %v4365
    %v4367 = vrot.slane %v4362, %v4366
    %v4369 = vadd.f32 %v4106, %v4367
    %v4370 = vadd.f32 %v4107, %v4367
    %v4371 = vadd.f32 %v4108, %v4367
    %v4372 = vadd.f32 %v4109, %v4367
    %v4373 = vadd.f32 %v4110, %v4367
    %v4374 = vadd.f32 %v4111, %v4367
    %v4375 = vadd.f32 %v4112, %v4367
    %v4376 = vadd.f32 %v4113, %v4367
    %v4377 = vadd.f32 %v4114, %v4367
    %v4378 = vadd.f32 %v4115, %v4367
    %v4379 = vadd.f32 %v4116, %v4367
    %v4380 = vadd.f32 %v4117, %v4367
    %v4381 = vadd.f32 %v4118, %v4367
    %v4382 = vadd.f32 %v4119, %v4367
    %v4383 = vadd.f32 %v4120, %v4367
    %v4384 = vadd.f32 %v4121, %v4367
    %v4385 = vadd.f32 %v4122, %v4367
    %v4386 = vadd.f32 %v4123, %v4367
    %v4387 = vadd.f32 %v4124, %v4367
    %v4388 = vadd.f32 %v4125, %v4367
    %v4389 = vadd.f32 %v4126, %v4367
    %v4390 = vadd.f32 %v4127, %v4367
    %v4391 = vadd.f32 %v4128, %v4367
    %v4392 = vadd.f32 %v4129, %v4367
    %v4393 = vadd.f32 %v4130, %v4367
    %v4394 = vadd.f32 %v4131, %v4367
    %v4395 = vadd.f32 %v4132, %v4367
    %v4396 = vadd.f32 %v4133, %v4367
    %v4397 = vadd.f32 %v4134, %v4367
    %v4398 = vadd.f32 %v4135, %v4367
    %v4399 = vadd.f32 %v4136, %v4367
    %v4400 = vadd.f32 %v4137, %v4367
    %v4401 = vadd.f32 %v4138, %v4367
    %v4402 = vadd.f32 %v4139, %v4367
    %v4403 = vadd.f32 %v4140, %v4367
    %v4404 = vadd.f32 %v4141, %v4367
    %v4405 = vadd.f32 %v4142, %v4367
    %v4406 = vadd.f32 %v4143, %v4367
    %v4407 = vadd.f32 %v4144, %v4367
    %v4408 = vadd.f32 %v4145, %v4367
    %v4409 = vadd.f32 %v4146, %v4367
    %v4410 = vadd.f32 %v4147, %v4367
    %v4411 = vadd.f32 %v4148, %v4367
    %v4412 = vadd.f32 %v4149, %v4367
    %v4413 = vadd.f32 %v4150, %v4367
    %v4414 = vadd.f32 %v4151, %v4367
    %v4415 = vadd.f32 %v4152, %v4367
    %v4416 = vadd.f32 %v4153, %v4367
    %v4417 = vadd.f32 %v4154, %v4367
    %v4418 = vadd.f32 %v4155, %v4367
    %v4419 = vadd.f32 %v4156, %v4367
    %v4420 = vadd.f32 %v4157, %v4367
    %v4421 = vadd.f32 %v4158, %v4367
    %v4422 = vadd.f32 %v4159, %v4367
    %v4423 = vadd.f32 %v4160, %v4367
    %v4424 = vadd.f32 %v4161, %v4367
    %v4425 = vadd.f32 %v4162, %v4367
    %v4426 = vadd.f32 %v4163, %v4367
    %v4427 = vadd.f32 %v4164, %v4367
    %v4428 = vadd.f32 %v4165, %v4367
    %v4429 = vadd.f32 %v4166, %v4367
    %v4430 = vadd.f32 %v4167, %v4367
    %v4431 = vadd.f32 %v4168, %v4367
    %v4432 = vadd.f32 %v4169, %v4367
    %v4433 = vadd.f32 %v4170, %v4367
    %v4434 = vadd.f32 %v4171, %v4367
    %v4435 = vadd.f32 %v4172, %v4367
    %v4436 = vadd.f32 %v4173, %v4367
    %v4437 = vadd.f32 %v4174, %v4367
    %v4438 = vadd.f32 %v4175, %v4367
    %v4439 = vadd.f32 %v4176, %v4367
    %v4440 = vadd.f32 %v4177, %v4367
    %v4441 = vadd.f32 %v4178, %v4367
    %v4442 = vadd.f32 %v4179, %v4367
    %v4443 = vadd.f32 %v4180, %v4367
    %v4444 = vadd.f32 %v4181, %v4367
    %v4445 = vadd.f32 %v4182, %v4367
    %v4446 = vadd.f32 %v4183, %v4367
    %v4447 = vadd.f32 %v4184, %v4367
    %v4448 = vadd.f32 %v4185, %v4367
    %v4449 = vadd.f32 %v4186, %v4367
    %v4450 = vadd.f32 %v4187, %v4367
    %v4451 = vadd.f32 %v4188, %v4367
    %v4452 = vadd.f32 %v4189, %v4367
    %v4453 = vadd.f32 %v4190, %v4367
    %v4454 = vadd.f32 %v4191, %v4367
    %v4455 = vadd.f32 %v4192, %v4367
    %v4456 = vadd.f32 %v4193, %v4367
    %v4457 = vadd.f32 %v4194, %v4367
    %v4458 = vadd.f32 %v4195, %v4367
    %v4459 = vadd.f32 %v4196, %v4367
    %v4460 = vadd.f32 %v4197, %v4367
    %v4461 = vadd.f32 %v4198, %v4367
    %v4462 = vadd.f32 %v4199, %v4367
    %v4463 = vadd.f32 %v4200, %v4367
    %v4464 = vadd.f32 %v4201, %v4367
    %v4465 = vadd.f32 %v4202, %v4367
    %v4466 = vadd.f32 %v4203, %v4367
    %v4467 = vadd.f32 %v4204, %v4367
    %v4468 = vadd.f32 %v4205, %v4367
    %v4469 = vadd.f32 %v4206, %v4367
    %v4470 = vadd.f32 %v4207, %v4367
    %v4471 = vadd.f32 %v4208, %v4367
    %v4472 = vadd.f32 %v4209, %v4367
    %v4473 = vadd.f32 %v4210, %v4367
    %v4474 = vadd.f32 %v4211, %v4367
    %v4475 = vadd.f32 %v4212, %v4367
    %v4476 = vadd.f32 %v4213, %v4367
    %v4477 = vadd.f32 %v4214, %v4367
    %v4478 = vadd.f32 %v4215, %v4367
    %v4479 = vadd.f32 %v4216, %v4367
    %v4480 = vadd.f32 %v4217, %v4367
    %v4481 = vadd.f32 %v4218, %v4367
    %v4482 = vadd.f32 %v4219, %v4367
    %v4483 = vadd.f32 %v4220, %v4367
    %v4484 = vadd.f32 %v4221, %v4367
    %v4485 = vadd.f32 %v4222, %v4367
    %v4486 = vadd.f32 %v4223, %v4367
    %v4487 = vadd.f32 %v4224, %v4367
    %v4488 = vadd.f32 %v4225, %v4367
    %v4489 = vadd.f32 %v4226, %v4367
    %v4490 = vadd.f32 %v4227, %v4367
    %v4491 = vadd.f32 %v4228, %v4367
    %v4492 = vadd.f32 %v4229, %v4367
    %v4493 = vadd.f32 %v4230, %v4367
    %v4494 = vadd.f32 %v4231, %v4367
    %v4495 = vadd.f32 %v4232, %v4367
    %v4496 = vadd.f32 %v4233, %v4367
    %v4497 = vadd.f32 %v4234, %v4367
    %v4498 = vadd.f32 %v4235, %v4367
    %v4499 = vadd.f32 %v4236, %v4367
    %v4500 = vadd.f32 %v4237, %v4367
    %v4501 = vadd.f32 %v4238, %v4367
    %v4502 = vadd.f32 %v4239, %v4367
    %v4503 = vadd.f32 %v4240, %v4367
    %v4504 = vadd.f32 %v4241, %v4367
    %v4505 = vadd.f32 %v4242, %v4367
    %v4506 = vadd.f32 %v4243, %v4367
    %v4507 = vadd.f32 %v4244, %v4367
    %v4508 = vadd.f32 %v4245, %v4367
    %v4509 = vadd.f32 %v4246, %v4367
    %v4510 = vadd.f32 %v4247, %v4367
    %v4511 = vadd.f32 %v4248, %v4367
    %v4512 = vadd.f32 %v4249, %v4367
    %v4513 = vadd.f32 %v4250, %v4367
    %v4514 = vadd.f32 %v4251, %v4367
    %v4515 = vadd.f32 %v4252, %v4367
    %v4516 = vadd.f32 %v4253, %v4367
    %v4517 = vadd.f32 %v4254, %v4367
    %v4518 = vadd.f32 %v4255, %v4367
    %v4519 = vadd.f32 %v4256, %v4367
    %v4520 = vadd.f32 %v4257, %v4367
    %v4521 = vadd.f32 %v4258, %v4367
    %v4522 = vadd.f32 %v4259, %v4367
    %v4523 = vadd.f32 %v4260, %v4367
    %v4524 = vadd.f32 %v4261, %v4367
    %v4525 = vadd.f32 %v4262, %v4367
    %v4526 = vadd.f32 %v4263, %v4367
    %v4527 = vadd.f32 %v4264, %v4367
    %v4528 = vadd.f32 %v4265, %v4367
    %v4529 = vadd.f32 %v4266, %v4367
    %v4530 = vadd.f32 %v4267, %v4367
    %v4531 = vadd.f32 %v4268, %v4367
    %v4532 = vadd.f32 %v4269, %v4367
    %v4533 = vadd.f32 %v4270, %v4367
    %v4534 = vadd.f32 %v4271, %v4367
    %v4535 = vadd.f32 %v4272, %v4367
    %v4536 = vadd.f32 %v4273, %v4367
    %v4537 = vadd.f32 %v4274, %v4367
    %v4538 = vadd.f32 %v4275, %v4367
    %v4539 = vadd.f32 %v4276, %v4367
    %v4540 = vadd.f32 %v4277, %v4367
    %v4541 = vadd.f32 %v4278, %v4367
    %v4542 = vadd.f32 %v4279, %v4367
    %v4543 = vadd.f32 %v4280, %v4367
    %v4544 = vadd.f32 %v4281, %v4367
    %v4545 = vadd.f32 %v4282, %v4367
    %v4546 = vadd.f32 %v4283, %v4367
    %v4547 = vadd.f32 %v4284, %v4367
    %v4548 = vadd.f32 %v4285, %v4367
    %v4549 = vadd.f32 %v4286, %v4367
    %v4550 = vadd.f32 %v4287, %v4367
    %v4551 = vadd.f32 %v4288, %v4367
    %v4552 = vadd.f32 %v4289, %v4367
    %v4553 = vadd.f32 %v4290, %v4367
    %v4554 = vadd.f32 %v4291, %v4367
    %v4555 = vadd.f32 %v4292, %v4367
    %v4556 = vadd.f32 %v4293, %v4367
    %v4557 = vadd.f32 %v4294, %v4367
    %v4558 = vadd.f32 %v4295, %v4367
    %v4559 = vadd.f32 %v4296, %v4367
    %v4560 = vadd.f32 %v4297, %v4367
    %v4561 = vadd.f32 %v4298, %v4367
    %v4562 = vadd.f32 %v4299, %v4367
    %v4563 = vadd.f32 %v4300, %v4367
    %v4564 = vadd.f32 %v4301, %v4367
    %v4565 = vadd.f32 %v4302, %v4367
    %v4566 = vadd.f32 %v4303, %v4367
    %v4567 = vadd.f32 %v4304, %v4367
    %v4568 = vadd.f32 %v4305, %v4367
    %v4569 = vadd.f32 %v4306, %v4367
    %v4570 = vadd.f32 %v4307, %v4367
    %v4571 = vadd.f32 %v4308, %v4367
    %v4572 = vadd.f32 %v4309, %v4367
    %v4573 = vadd.f32 %v4310, %v4367
    %v4574 = vadd.f32 %v4311, %v4367
    %v4575 = vadd.f32 %v4312, %v4367
    %v4576 = vadd.f32 %v4313, %v4367
    %v4577 = vadd.f32 %v4314, %v4367
    %v4578 = vadd.f32 %v4315, %v4367
    %v4579 = vadd.f32 %v4316, %v4367
    %v4580 = vadd.f32 %v4317, %v4367
    %v4581 = vadd.f32 %v4318, %v4367
    %v4582 = vadd.f32 %v4319, %v4367
    %v4583 = vadd.f32 %v4320, %v4367
    %v4584 = vadd.f32 %v4321, %v4367
    %v4585 = vadd.f32 %v4322, %v4367
    %v4586 = vadd.f32 %v4323, %v4367
    %v4587 = vadd.f32 %v4324, %v4367
    %v4588 = vadd.f32 %v4325, %v4367
    %v4589 = vadd.f32 %v4326, %v4367
    %v4590 = vadd.f32 %v4327, %v4367
    %v4591 = vadd.f32 %v4328, %v4367
    %v4592 = vadd.f32 %v4329, %v4367
    %v4593 = vadd.f32 %v4330, %v4367
    %v4594 = vadd.f32 %v4331, %v4367
    %v4595 = vadd.f32 %v4332, %v4367
    %v4596 = vadd.f32 %v4333, %v4367
    %v4597 = vadd.f32 %v4334, %v4367
    %v4598 = vadd.f32 %v4335, %v4367
    %v4599 = vadd.f32 %v4336, %v4367
    %v4600 = vadd.f32 %v4337, %v4367
    %v4601 = vadd.f32 %v4338, %v4367
    %v4602 = vadd.f32 %v4339, %v4367
    %v4603 = vadd.f32 %v4340, %v4367
    %v4604 = vadd.f32 %v4341, %v4367
    %v4605 = vadd.f32 %v4342, %v4367
    %v4606 = vadd.f32 %v4343, %v4367
    %v4607 = vadd.f32 %v4344, %v4367
    %v4608 = vadd.f32 %v4345, %v4367
    %v4609 = vadd.f32 %v4346, %v4367
    %v4610 = vadd.f32 %v4347, %v4367
    %v4611 = vadd.f32 %v4348, %v4367
    %v4612 = vadd.f32 %v4349, %v4367
    %v4613 = vadd.f32 %v4350, %v4367
    %v4614 = vadd.f32 %v4351, %v4367
    %v4615 = vadd.f32 %v4352, %v4367
    %v4616 = vadd.f32 %v4353, %v4367
    %v4617 = vadd.f32 %v4354, %v4367
    %v4618 = vadd.f32 %v4355, %v4367
    %v4619 = vadd.f32 %v4356, %v4367
    %v4620 = vadd.f32 %v4357, %v4367
    %v4621 = vadd.f32 %v4358, %v4367
    %v4622 = vadd.f32 %v4359, %v4367
    %v4623 = vadd.f32 %v4360, %v4367
    %v4624 = vadd.f32 %v4361, %v4367
    %v4625 = vmax.f32 %v4369, 0.0
    %v4626 = vmax.f32 %v4370, 0.0
    %v4627 = vmax.f32 %v4371, 0.0
    %v4628 = vmax.f32 %v4372, 0.0
    %v4629 = vmax.f32 %v4373, 0.0
    %v4630 = vmax.f32 %v4374, 0.0
    %v4631 = vmax.f32 %v4375, 0.0
    %v4632 = vmax.f32 %v4376, 0.0
    %v4633 = vmax.f32 %v4377, 0.0
    %v4634 = vmax.f32 %v4378, 0.0
    %v4635 = vmax.f32 %v4379, 0.0
    %v4636 = vmax.f32 %v4380, 0.0
    %v4637 = vmax.f32 %v4381, 0.0
    %v4638 = vmax.f32 %v4382, 0.0
    %v4639 = vmax.f32 %v4383, 0.0
    %v4640 = vmax.f32 %v4384, 0.0
    %v4641 = vmax.f32 %v4385, 0.0
    %v4642 = vmax.f32 %v4386, 0.0
    %v4643 = vmax.f32 %v4387, 0.0
    %v4644 = vmax.f32 %v4388, 0.0
    %v4645 = vmax.f32 %v4389, 0.0
    %v4646 = vmax.f32 %v4390, 0.0
    %v4647 = vmax.f32 %v4391, 0.0
    %v4648 = vmax.f32 %v4392, 0.0
    %v4649 = vmax.f32 %v4393, 0.0
    %v4650 = vmax.f32 %v4394, 0.0
    %v4651 = vmax.f32 %v4395, 0.0
    %v4652 = vmax.f32 %v4396, 0.0
    %v4653 = vmax.f32 %v4397, 0.0
    %v4654 = vmax.f32 %v4398, 0.0
    %v4655 = vmax.f32 %v4399, 0.0
    %v4656 = vmax.f32 %v4400, 0.0
    %v4657 = vmax.f32 %v4401, 0.0
    %v4658 = vmax.f32 %v4402, 0.0
    %v4659 = vmax.f32 %v4403, 0.0
    %v4660 = vmax.f32 %v4404, 0.0
    %v4661 = vmax.f32 %v4405, 0.0
    %v4662 = vmax.f32 %v4406, 0.0
    %v4663 = vmax.f32 %v4407, 0.0
    %v4664 = vmax.f32 %v4408, 0.0
    %v4665 = vmax.f32 %v4409, 0.0
    %v4666 = vmax.f32 %v4410, 0.0
    %v4667 = vmax.f32 %v4411, 0.0
    %v4668 = vmax.f32 %v4412, 0.0
    %v4669 = vmax.f32 %v4413, 0.0
    %v4670 = vmax.f32 %v4414, 0.0
    %v4671 = vmax.f32 %v4415, 0.0
    %v4672 = vmax.f32 %v4416, 0.0
    %v4673 = vmax.f32 %v4417, 0.0
    %v4674 = vmax.f32 %v4418, 0.0
    %v4675 = vmax.f32 %v4419, 0.0
    %v4676 = vmax.f32 %v4420, 0.0
    %v4677 = vmax.f32 %v4421, 0.0
    %v4678 = vmax.f32 %v4422, 0.0
    %v4679 = vmax.f32 %v4423, 0.0
    %v4680 = vmax.f32 %v4424, 0.0
    %v4681 = vmax.f32 %v4425, 0.0
    %v4682 = vmax.f32 %v4426, 0.0
    %v4683 = vmax.f32 %v4427, 0.0
    %v4684 = vmax.f32 %v4428, 0.0
    %v4685 = vmax.f32 %v4429, 0.0
    %v4686 = vmax.f32 %v4430, 0.0
    %v4687 = vmax.f32 %v4431, 0.0
    %v4688 = vmax.f32 %v4432, 0.0
    %v4689 = vmax.f32 %v4433, 0.0
    %v4690 = vmax.f32 %v4434, 0.0
    %v4691 = vmax.f32 %v4435, 0.0
    %v4692 = vmax.f32 %v4436, 0.0
    %v4693 = vmax.f32 %v4437, 0.0
    %v4694 = vmax.f32 %v4438, 0.0
    %v4695 = vmax.f32 %v4439, 0.0
    %v4696 = vmax.f32 %v4440, 0.0
    %v4697 = vmax.f32 %v4441, 0.0
    %v4698 = vmax.f32 %v4442, 0.0
    %v4699 = vmax.f32 %v4443, 0.0
    %v4700 = vmax.f32 %v4444, 0.0
    %v4701 = vmax.f32 %v4445, 0.0
    %v4702 = vmax.f32 %v4446, 0.0
    %v4703 = vmax.f32 %v4447, 0.0
    %v4704 = vmax.f32 %v4448, 0.0
    %v4705 = vmax.f32 %v4449, 0.0
    %v4706 = vmax.f32 %v4450, 0.0
    %v4707 = vmax.f32 %v4451, 0.0
    %v4708 = vmax.f32 %v4452, 0.0
    %v4709 = vmax.f32 %v4453, 0.0
    %v4710 = vmax.f32 %v4454, 0.0
    %v4711 = vmax.f32 %v4455, 0.0
    %v4712 = vmax.f32 %v4456, 0.0
    %v4713 = vmax.f32 %v4457, 0.0
    %v4714 = vmax.f32 %v4458, 0.0
    %v4715 = vmax.f32 %v4459, 0.0
    %v4716 = vmax.f32 %v4460, 0.0
    %v4717 = vmax.f32 %v4461, 0.0
    %v4718 = vmax.f32 %v4462, 0.0
    %v4719 = vmax.f32 %v4463, 0.0
    %v4720 = vmax.f32 %v4464, 0.0
    %v4721 = vmax.f32 %v4465, 0.0
    %v4722 = vmax.f32 %v4466, 0.0
    %v4723 = vmax.f32 %v4467, 0.0
    %v4724 = vmax.f32 %v4468, 0.0
    %v4725 = vmax.f32 %v4469, 0.0
    %v4726 = vmax.f32 %v4470, 0.0
    %v4727 = vmax.f32 %v4471, 0.0
    %v4728 = vmax.f32 %v4472, 0.0
    %v4729 = vmax.f32 %v4473, 0.0
    %v4730 = vmax.f32 %v4474, 0.0
    %v4731 = vmax.f32 %v4475, 0.0
    %v4732 = vmax.f32 %v4476, 0.0
    %v4733 = vmax.f32 %v4477, 0.0
    %v4734 = vmax.f32 %v4478, 0.0
    %v4735 = vmax.f32 %v4479, 0.0
    %v4736 = vmax.f32 %v4480, 0.0
    %v4737 = vmax.f32 %v4481, 0.0
    %v4738 = vmax.f32 %v4482, 0.0
    %v4739 = vmax.f32 %v4483, 0.0
    %v4740 = vmax.f32 %v4484, 0.0
    %v4741 = vmax.f32 %v4485, 0.0
    %v4742 = vmax.f32 %v4486, 0.0
    %v4743 = vmax.f32 %v4487, 0.0
    %v4744 = vmax.f32 %v4488, 0.0
    %v4745 = vmax.f32 %v4489, 0.0
    %v4746 = vmax.f32 %v4490, 0.0
    %v4747 = vmax.f32 %v4491, 0.0
    %v4748 = vmax.f32 %v4492, 0.0
    %v4749 = vmax.f32 %v4493, 0.0
    %v4750 = vmax.f32 %v4494, 0.0
    %v4751 = vmax.f32 %v4495, 0.0
    %v4752 = vmax.f32 %v4496, 0.0
    %v4753 = vmax.f32 %v4497, 0.0
    %v4754 = vmax.f32 %v4498, 0.0
    %v4755 = vmax.f32 %v4499, 0.0
    %v4756 = vmax.f32 %v4500, 0.0
    %v4757 = vmax.f32 %v4501, 0.0
    %v4758 = vmax.f32 %v4502, 0.0
    %v4759 = vmax.f32 %v4503, 0.0
    %v4760 = vmax.f32 %v4504, 0.0
    %v4761 = vmax.f32 %v4505, 0.0
    %v4762 = vmax.f32 %v4506, 0.0
    %v4763 = vmax.f32 %v4507, 0.0
    %v4764 = vmax.f32 %v4508, 0.0
    %v4765 = vmax.f32 %v4509, 0.0
    %v4766 = vmax.f32 %v4510, 0.0
    %v4767 = vmax.f32 %v4511, 0.0
    %v4768 = vmax.f32 %v4512, 0.0
    %v4769 = vmax.f32 %v4513, 0.0
    %v4770 = vmax.f32 %v4514, 0.0
    %v4771 = vmax.f32 %v4515, 0.0
    %v4772 = vmax.f32 %v4516, 0.0
    %v4773 = vmax.f32 %v4517, 0.0
    %v4774 = vmax.f32 %v4518, 0.0
    %v4775 = vmax.f32 %v4519, 0.0
    %v4776 = vmax.f32 %v4520, 0.0
    %v4777 = vmax.f32 %v4521, 0.0
    %v4778 = vmax.f32 %v4522, 0.0
    %v4779 = vmax.f32 %v4523, 0.0
    %v4780 = vmax.f32 %v4524, 0.0
    %v4781 = vmax.f32 %v4525, 0.0
    %v4782 = vmax.f32 %v4526, 0.0
    %v4783 = vmax.f32 %v4527, 0.0
    %v4784 = vmax.f32 %v4528, 0.0
    %v4785 = vmax.f32 %v4529, 0.0
    %v4786 = vmax.f32 %v4530, 0.0
    %v4787 = vmax.f32 %v4531, 0.0
    %v4788 = vmax.f32 %v4532, 0.0
    %v4789 = vmax.f32 %v4533, 0.0
    %v4790 = vmax.f32 %v4534, 0.0
    %v4791 = vmax.f32 %v4535, 0.0
    %v4792 = vmax.f32 %v4536, 0.0
    %v4793 = vmax.f32 %v4537, 0.0
    %v4794 = vmax.f32 %v4538, 0.0
    %v4795 = vmax.f32 %v4539, 0.0
    %v4796 = vmax.f32 %v4540, 0.0
    %v4797 = vmax.f32 %v4541, 0.0
    %v4798 = vmax.f32 %v4542, 0.0
    %v4799 = vmax.f32 %v4543, 0.0
    %v4800 = vmax.f32 %v4544, 0.0
    %v4801 = vmax.f32 %v4545, 0.0
    %v4802 = vmax.f32 %v4546, 0.0
    %v4803 = vmax.f32 %v4547, 0.0
    %v4804 = vmax.f32 %v4548, 0.0
    %v4805 = vmax.f32 %v4549, 0.0
    %v4806 = vmax.f32 %v4550, 0.0
    %v4807 = vmax.f32 %v4551, 0.0
    %v4808 = vmax.f32 %v4552, 0.0
    %v4809 = vmax.f32 %v4553, 0.0
    %v4810 = vmax.f32 %v4554, 0.0
    %v4811 = vmax.f32 %v4555, 0.0
    %v4812 = vmax.f32 %v4556, 0.0
    %v4813 = vmax.f32 %v4557, 0.0
    %v4814 = vmax.f32 %v4558, 0.0
    %v4815 = vmax.f32 %v4559, 0.0
    %v4816 = vmax.f32 %v4560, 0.0
    %v4817 = vmax.f32 %v4561, 0.0
    %v4818 = vmax.f32 %v4562, 0.0
    %v4819 = vmax.f32 %v4563, 0.0
    %v4820 = vmax.f32 %v4564, 0.0
    %v4821 = vmax.f32 %v4565, 0.0
    %v4822 = vmax.f32 %v4566, 0.0
    %v4823 = vmax.f32 %v4567, 0.0
    %v4824 = vmax.f32 %v4568, 0.0
    %v4825 = vmax.f32 %v4569, 0.0
    %v4826 = vmax.f32 %v4570, 0.0
    %v4827 = vmax.f32 %v4571, 0.0
    %v4828 = vmax.f32 %v4572, 0.0
    %v4829 = vmax.f32 %v4573, 0.0
    %v4830 = vmax.f32 %v4574, 0.0
    %v4831 = vmax.f32 %v4575, 0.0
    %v4832 = vmax.f32 %v4576, 0.0
    %v4833 = vmax.f32 %v4577, 0.0
    %v4834 = vmax.f32 %v4578, 0.0
    %v4835 = vmax.f32 %v4579, 0.0
    %v4836 = vmax.f32 %v4580, 0.0
    %v4837 = vmax.f32 %v4581, 0.0
    %v4838 = vmax.f32 %v4582, 0.0
    %v4839 = vmax.f32 %v4583, 0.0
    %v4840 = vmax.f32 %v4584, 0.0
    %v4841 = vmax.f32 %v4585, 0.0
    %v4842 = vmax.f32 %v4586, 0.0
    %v4843 = vmax.f32 %v4587, 0.0
    %v4844 = vmax.f32 %v4588, 0.0
    %v4845 = vmax.f32 %v4589, 0.0
    %v4846 = vmax.f32 %v4590, 0.0
    %v4847 = vmax.f32 %v4591, 0.0
    %v4848 = vmax.f32 %v4592, 0.0
    %v4849 = vmax.f32 %v4593, 0.0
    %v4850 = vmax.f32 %v4594, 0.0
    %v4851 = vmax.f32 %v4595, 0.0
    %v4852 = vmax.f32 %v4596, 0.0
    %v4853 = vmax.f32 %v4597, 0.0
    %v4854 = vmax.f32 %v4598, 0.0
    %v4855 = vmax.f32 %v4599, 0.0
    %v4856 = vmax.f32 %v4600, 0.0
    %v4857 = vmax.f32 %v4601, 0.0
    %v4858 = vmax.f32 %v4602, 0.0
    %v4859 = vmax.f32 %v4603, 0.0
    %v4860 = vmax.f32 %v4604, 0.0
    %v4861 = vmax.f32 %v4605, 0.0
    %v4862 = vmax.f32 %v4606, 0.0
    %v4863 = vmax.f32 %v4607, 0.0
    %v4864 = vmax.f32 %v4608, 0.0
    %v4865 = vmax.f32 %v4609, 0.0
    %v4866 = vmax.f32 %v4610, 0.0
    %v4867 = vmax.f32 %v4611, 0.0
    %v4868 = vmax.f32 %v4612, 0.0
    %v4869 = vmax.f32 %v4613, 0.0
    %v4870 = vmax.f32 %v4614, 0.0
    %v4871 = vmax.f32 %v4615, 0.0
    %v4872 = vmax.f32 %v4616, 0.0
    %v4873 = vmax.f32 %v4617, 0.0
    %v4874 = vmax.f32 %v4618, 0.0
    %v4875 = vmax.f32 %v4619, 0.0
    %v4876 = vmax.f32 %v4620, 0.0
    %v4877 = vmax.f32 %v4621, 0.0
    %v4878 = vmax.f32 %v4622, 0.0
    %v4879 = vmax.f32 %v4623, 0.0
    %v4880 = vmax.f32 %v4624, 0.0
    %4881 = vst.msk [vmem:[#allocation2] sm:$0xff] %vm52, %v4625
    %4882 = vst.msk [vmem:[#allocation2 + $0x8] sm:$0xff] %vm52, %v4626
    %4883 = vst.msk [vmem:[#allocation2 + $0x10] sm:$0xff] %vm52, %v4627
    %4884 = vst.msk [vmem:[#allocation2 + $0x18] sm:$0xff] %vm52, %v4628
    %4885 = vst.msk [vmem:[#allocation2 + $0x20] sm:$0xff] %vm52, %v4629
    %4886 = vst.msk [vmem:[#allocation2 + $0x28] sm:$0xff] %vm52, %v4630
    %4887 = vst.msk [vmem:[#allocation2 + $0x30] sm:$0xff] %vm52, %v4631
    %4888 = vst.msk [vmem:[#allocation2 + $0x38] sm:$0xff] %vm52, %v4632
    %4889 = vst.msk [vmem:[#allocation2 + $0x40] sm:$0xff] %vm52, %v4633
    %4890 = vst.msk [vmem:[#allocation2 + $0x48] sm:$0xff] %vm52, %v4634
    %4891 = vst.msk [vmem:[#allocation2 + $0x50] sm:$0xff] %vm52, %v4635
    %4892 = vst.msk [vmem:[#allocation2 + $0x58] sm:$0xff] %vm52, %v4636
    %4893 = vst.msk [vmem:[#allocation2 + $0x60] sm:$0xff] %vm52, %v4637
    %4894 = vst.msk [vmem:[#allocation2 + $0x68] sm:$0xff] %vm52, %v4638
    %4895 = vst.msk [vmem:[#allocation2 + $0x70] sm:$0xff] %vm52, %v4639
    %4896 = vst.msk [vmem:[#allocation2 + $0x78] sm:$0xff] %vm52, %v4640
    %4897 = vst.msk [vmem:[#allocation2 + $0x80] sm:$0xff] %vm52, %v4641
    %4898 = vst.msk [vmem:[#allocation2 + $0x88] sm:$0xff] %vm52, %v4642
    %4899 = vst.msk [vmem:[#allocation2 + $0x90] sm:$0xff] %vm52, %v4643
    %4900 = vst.msk [vmem:[#allocation2 + $0x98] sm:$0xff] %vm52, %v4644
    %4901 = vst.msk [vmem:[#allocation2 + $0xa0] sm:$0xff] %vm52, %v4645
    %4902 = vst.msk [vmem:[#allocation2 + $0xa8] sm:$0xff] %vm52, %v4646
    %4903 = vst.msk [vmem:[#allocation2 + $0xb0] sm:$0xff] %vm52, %v4647
    %4904 = vst.msk [vmem:[#allocation2 + $0xb8] sm:$0xff] %vm52, %v4648
    %4905 = vst.msk [vmem:[#allocation2 + $0xc0] sm:$0xff] %vm52, %v4649
    %4906 = vst.msk [vmem:[#allocation2 + $0xc8] sm:$0xff] %vm52, %v4650
    %4907 = vst.msk [vmem:[#allocation2 + $0xd0] sm:$0xff] %vm52, %v4651
    %4908 = vst.msk [vmem:[#allocation2 + $0xd8] sm:$0xff] %vm52, %v4652
    %4909 = vst.msk [vmem:[#allocation2 + $0xe0] sm:$0xff] %vm52, %v4653
    %4910 = vst.msk [vmem:[#allocation2 + $0xe8] sm:$0xff] %vm52, %v4654
    %4911 = vst.msk [vmem:[#allocation2 + $0xf0] sm:$0xff] %vm52, %v4655
    %4912 = vst.msk [vmem:[#allocation2 + $0xf8] sm:$0xff] %vm52, %v4656
    %4913 = vst.msk [vmem:[#allocation2 + $0x100] sm:$0xff] %vm52, %v4657
    %4914 = vst.msk [vmem:[#allocation2 + $0x108] sm:$0xff] %vm52, %v4658
    %4915 = vst.msk [vmem:[#allocation2 + $0x110] sm:$0xff] %vm52, %v4659
    %4916 = vst.msk [vmem:[#allocation2 + $0x118] sm:$0xff] %vm52, %v4660
    %4917 = vst.msk [vmem:[#allocation2 + $0x120] sm:$0xff] %vm52, %v4661
    %4918 = vst.msk [vmem:[#allocation2 + $0x128] sm:$0xff] %vm52, %v4662
    %4919 = vst.msk [vmem:[#allocation2 + $0x130] sm:$0xff] %vm52, %v4663
    %4920 = vst.msk [vmem:[#allocation2 + $0x138] sm:$0xff] %vm52, %v4664
    %4921 = vst.msk [vmem:[#allocation2 + $0x140] sm:$0xff] %vm52, %v4665
    %4922 = vst.msk [vmem:[#allocation2 + $0x148] sm:$0xff] %vm52, %v4666
    %4923 = vst.msk [vmem:[#allocation2 + $0x150] sm:$0xff] %vm52, %v4667
    %4924 = vst.msk [vmem:[#allocation2 + $0x158] sm:$0xff] %vm52, %v4668
    %4925 = vst.msk [vmem:[#allocation2 + $0x160] sm:$0xff] %vm52, %v4669
    %4926 = vst.msk [vmem:[#allocation2 + $0x168] sm:$0xff] %vm52, %v4670
    %4927 = vst.msk [vmem:[#allocation2 + $0x170] sm:$0xff] %vm52, %v4671
    %4928 = vst.msk [vmem:[#allocation2 + $0x178] sm:$0xff] %vm52, %v4672
    %4929 = vst.msk [vmem:[#allocation2 + $0x180] sm:$0xff] %vm52, %v4673
    %4930 = vst.msk [vmem:[#allocation2 + $0x188] sm:$0xff] %vm52, %v4674
    %4931 = vst.msk [vmem:[#allocation2 + $0x190] sm:$0xff] %vm52, %v4675
    %4932 = vst.msk [vmem:[#allocation2 + $0x198] sm:$0xff] %vm52, %v4676
    %4933 = vst.msk [vmem:[#allocation2 + $0x1a0] sm:$0xff] %vm52, %v4677
    %4934 = vst.msk [vmem:[#allocation2 + $0x1a8] sm:$0xff] %vm52, %v4678
    %4935 = vst.msk [vmem:[#allocation2 + $0x1b0] sm:$0xff] %vm52, %v4679
    %4936 = vst.msk [vmem:[#allocation2 + $0x1b8] sm:$0xff] %vm52, %v4680
    %4937 = vst.msk [vmem:[#allocation2 + $0x1c0] sm:$0xff] %vm52, %v4681
    %4938 = vst.msk [vmem:[#allocation2 + $0x1c8] sm:$0xff] %vm52, %v4682
    %4939 = vst.msk [vmem:[#allocation2 + $0x1d0] sm:$0xff] %vm52, %v4683
    %4940 = vst.msk [vmem:[#allocation2 + $0x1d8] sm:$0xff] %vm52, %v4684
    %4941 = vst.msk [vmem:[#allocation2 + $0x1e0] sm:$0xff] %vm52, %v4685
    %4942 = vst.msk [vmem:[#allocation2 + $0x1e8] sm:$0xff] %vm52, %v4686
    %4943 = vst.msk [vmem:[#allocation2 + $0x1f0] sm:$0xff] %vm52, %v4687
    %4944 = vst.msk [vmem:[#allocation2 + $0x1f8] sm:$0xff] %vm52, %v4688
    %4945 = vst.msk [vmem:[#allocation2 + $0x200] sm:$0xff] %vm52, %v4689
    %4946 = vst.msk [vmem:[#allocation2 + $0x208] sm:$0xff] %vm52, %v4690
    %4947 = vst.msk [vmem:[#allocation2 + $0x210] sm:$0xff] %vm52, %v4691
    %4948 = vst.msk [vmem:[#allocation2 + $0x218] sm:$0xff] %vm52, %v4692
    %4949 = vst.msk [vmem:[#allocation2 + $0x220] sm:$0xff] %vm52, %v4693
    %4950 = vst.msk [vmem:[#allocation2 + $0x228] sm:$0xff] %vm52, %v4694
    %4951 = vst.msk [vmem:[#allocation2 + $0x230] sm:$0xff] %vm52, %v4695
    %4952 = vst.msk [vmem:[#allocation2 + $0x238] sm:$0xff] %vm52, %v4696
    %4953 = vst.msk [vmem:[#allocation2 + $0x240] sm:$0xff] %vm52, %v4697
    %4954 = vst.msk [vmem:[#allocation2 + $0x248] sm:$0xff] %vm52, %v4698
    %4955 = vst.msk [vmem:[#allocation2 + $0x250] sm:$0xff] %vm52, %v4699
    %4956 = vst.msk [vmem:[#allocation2 + $0x258] sm:$0xff] %vm52, %v4700
    %4957 = vst.msk [vmem:[#allocation2 + $0x260] sm:$0xff] %vm52, %v4701
    %4958 = vst.msk [vmem:[#allocation2 + $0x268] sm:$0xff] %vm52, %v4702
    %4959 = vst.msk [vmem:[#allocation2 + $0x270] sm:$0xff] %vm52, %v4703
    %4960 = vst.msk [vmem:[#allocation2 + $0x278] sm:$0xff] %vm52, %v4704
    %4961 = vst.msk [vmem:[#allocation2 + $0x280] sm:$0xff] %vm52, %v4705
    %4962 = vst.msk [vmem:[#allocation2 + $0x288] sm:$0xff] %vm52, %v4706
    %4963 = vst.msk [vmem:[#allocation2 + $0x290] sm:$0xff] %vm52, %v4707
    %4964 = vst.msk [vmem:[#allocation2 + $0x298] sm:$0xff] %vm52, %v4708
    %4965 = vst.msk [vmem:[#allocation2 + $0x2a0] sm:$0xff] %vm52, %v4709
    %4966 = vst.msk [vmem:[#allocation2 + $0x2a8] sm:$0xff] %vm52, %v4710
    %4967 = vst.msk [vmem:[#allocation2 + $0x2b0] sm:$0xff] %vm52, %v4711
    %4968 = vst.msk [vmem:[#allocation2 + $0x2b8] sm:$0xff] %vm52, %v4712
    %4969 = vst.msk [vmem:[#allocation2 + $0x2c0] sm:$0xff] %vm52, %v4713
    %4970 = vst.msk [vmem:[#allocation2 + $0x2c8] sm:$0xff] %vm52, %v4714
    %4971 = vst.msk [vmem:[#allocation2 + $0x2d0] sm:$0xff] %vm52, %v4715
    %4972 = vst.msk [vmem:[#allocation2 + $0x2d8] sm:$0xff] %vm52, %v4716
    %4973 = vst.msk [vmem:[#allocation2 + $0x2e0] sm:$0xff] %vm52, %v4717
    %4974 = vst.msk [vmem:[#allocation2 + $0x2e8] sm:$0xff] %vm52, %v4718
    %4975 = vst.msk [vmem:[#allocation2 + $0x2f0] sm:$0xff] %vm52, %v4719
    %4976 = vst.msk [vmem:[#allocation2 + $0x2f8] sm:$0xff] %vm52, %v4720
    %4977 = vst.msk [vmem:[#allocation2 + $0x300] sm:$0xff] %vm52, %v4721
    %4978 = vst.msk [vmem:[#allocation2 + $0x308] sm:$0xff] %vm52, %v4722
    %4979 = vst.msk [vmem:[#allocation2 + $0x310] sm:$0xff] %vm52, %v4723
    %4980 = vst.msk [vmem:[#allocation2 + $0x318] sm:$0xff] %vm52, %v4724
    %4981 = vst.msk [vmem:[#allocation2 + $0x320] sm:$0xff] %vm52, %v4725
    %4982 = vst.msk [vmem:[#allocation2 + $0x328] sm:$0xff] %vm52, %v4726
    %4983 = vst.msk [vmem:[#allocation2 + $0x330] sm:$0xff] %vm52, %v4727
    %4984 = vst.msk [vmem:[#allocation2 + $0x338] sm:$0xff] %vm52, %v4728
    %4985 = vst.msk [vmem:[#allocation2 + $0x340] sm:$0xff] %vm52, %v4729
    %4986 = vst.msk [vmem:[#allocation2 + $0x348] sm:$0xff] %vm52, %v4730
    %4987 = vst.msk [vmem:[#allocation2 + $0x350] sm:$0xff] %vm52, %v4731
    %4988 = vst.msk [vmem:[#allocation2 + $0x358] sm:$0xff] %vm52, %v4732
    %4989 = vst.msk [vmem:[#allocation2 + $0x360] sm:$0xff] %vm52, %v4733
    %4990 = vst.msk [vmem:[#allocation2 + $0x368] sm:$0xff] %vm52, %v4734
    %4991 = vst.msk [vmem:[#allocation2 + $0x370] sm:$0xff] %vm52, %v4735
    %4992 = vst.msk [vmem:[#allocation2 + $0x378] sm:$0xff] %vm52, %v4736
    %4993 = vst.msk [vmem:[#allocation2 + $0x380] sm:$0xff] %vm52, %v4737
    %4994 = vst.msk [vmem:[#allocation2 + $0x388] sm:$0xff] %vm52, %v4738
    %4995 = vst.msk [vmem:[#allocation2 + $0x390] sm:$0xff] %vm52, %v4739
    %4996 = vst.msk [vmem:[#allocation2 + $0x398] sm:$0xff] %vm52, %v4740
    %4997 = vst.msk [vmem:[#allocation2 + $0x3a0] sm:$0xff] %vm52, %v4741
    %4998 = vst.msk [vmem:[#allocation2 + $0x3a8] sm:$0xff] %vm52, %v4742
    %4999 = vst.msk [vmem:[#allocation2 + $0x3b0] sm:$0xff] %vm52, %v4743
    %5000 = vst.msk [vmem:[#allocation2 + $0x3b8] sm:$0xff] %vm52, %v4744
    %5001 = vst.msk [vmem:[#allocation2 + $0x3c0] sm:$0xff] %vm52, %v4745
    %5002 = vst.msk [vmem:[#allocation2 + $0x3c8] sm:$0xff] %vm52, %v4746
    %5003 = vst.msk [vmem:[#allocation2 + $0x3d0] sm:$0xff] %vm52, %v4747
    %5004 = vst.msk [vmem:[#allocation2 + $0x3d8] sm:$0xff] %vm52, %v4748
    %5005 = vst.msk [vmem:[#allocation2 + $0x3e0] sm:$0xff] %vm52, %v4749
    %5006 = vst.msk [vmem:[#allocation2 + $0x3e8] sm:$0xff] %vm52, %v4750
    %5007 = vst.msk [vmem:[#allocation2 + $0x3f0] sm:$0xff] %vm52, %v4751
    %5008 = vst.msk [vmem:[#allocation2 + $0x3f8] sm:$0xff] %vm52, %v4752
    %5009 = vst.msk [vmem:[#allocation2 + $0x400] sm:$0xff] %vm52, %v4753
    %5010 = vst.msk [vmem:[#allocation2 + $0x408] sm:$0xff] %vm52, %v4754
    %5011 = vst.msk [vmem:[#allocation2 + $0x410] sm:$0xff] %vm52, %v4755
    %5012 = vst.msk [vmem:[#allocation2 + $0x418] sm:$0xff] %vm52, %v4756
    %5013 = vst.msk [vmem:[#allocation2 + $0x420] sm:$0xff] %vm52, %v4757
    %5014 = vst.msk [vmem:[#allocation2 + $0x428] sm:$0xff] %vm52, %v4758
    %5015 = vst.msk [vmem:[#allocation2 + $0x430] sm:$0xff] %vm52, %v4759
    %5016 = vst.msk [vmem:[#allocation2 + $0x438] sm:$0xff] %vm52, %v4760
    %5017 = vst.msk [vmem:[#allocation2 + $0x440] sm:$0xff] %vm52, %v4761
    %5018 = vst.msk [vmem:[#allocation2 + $0x448] sm:$0xff] %vm52, %v4762
    %5019 = vst.msk [vmem:[#allocation2 + $0x450] sm:$0xff] %vm52, %v4763
    %5020 = vst.msk [vmem:[#allocation2 + $0x458] sm:$0xff] %vm52, %v4764
    %5021 = vst.msk [vmem:[#allocation2 + $0x460] sm:$0xff] %vm52, %v4765
    %5022 = vst.msk [vmem:[#allocation2 + $0x468] sm:$0xff] %vm52, %v4766
    %5023 = vst.msk [vmem:[#allocation2 + $0x470] sm:$0xff] %vm52, %v4767
    %5024 = vst.msk [vmem:[#allocation2 + $0x478] sm:$0xff] %vm52, %v4768
    %5025 = vst.msk [vmem:[#allocation2 + $0x480] sm:$0xff] %vm52, %v4769
    %5026 = vst.msk [vmem:[#allocation2 + $0x488] sm:$0xff] %vm52, %v4770
    %5027 = vst.msk [vmem:[#allocation2 + $0x490] sm:$0xff] %vm52, %v4771
    %5028 = vst.msk [vmem:[#allocation2 + $0x498] sm:$0xff] %vm52, %v4772
    %5029 = vst.msk [vmem:[#allocation2 + $0x4a0] sm:$0xff] %vm52, %v4773
    %5030 = vst.msk [vmem:[#allocation2 + $0x4a8] sm:$0xff] %vm52, %v4774
    %5031 = vst.msk [vmem:[#allocation2 + $0x4b0] sm:$0xff] %vm52, %v4775
    %5032 = vst.msk [vmem:[#allocation2 + $0x4b8] sm:$0xff] %vm52, %v4776
    %5033 = vst.msk [vmem:[#allocation2 + $0x4c0] sm:$0xff] %vm52, %v4777
    %5034 = vst.msk [vmem:[#allocation2 + $0x4c8] sm:$0xff] %vm52, %v4778
    %5035 = vst.msk [vmem:[#allocation2 + $0x4d0] sm:$0xff] %vm52, %v4779
    %5036 = vst.msk [vmem:[#allocation2 + $0x4d8] sm:$0xff] %vm52, %v4780
    %5037 = vst.msk [vmem:[#allocation2 + $0x4e0] sm:$0xff] %vm52, %v4781
    %5038 = vst.msk [vmem:[#allocation2 + $0x4e8] sm:$0xff] %vm52, %v4782
    %5039 = vst.msk [vmem:[#allocation2 + $0x4f0] sm:$0xff] %vm52, %v4783
    %5040 = vst.msk [vmem:[#allocation2 + $0x4f8] sm:$0xff] %vm52, %v4784
    %5041 = vst.msk [vmem:[#allocation2 + $0x500] sm:$0xff] %vm52, %v4785
    %5042 = vst.msk [vmem:[#allocation2 + $0x508] sm:$0xff] %vm52, %v4786
    %5043 = vst.msk [vmem:[#allocation2 + $0x510] sm:$0xff] %vm52, %v4787
    %5044 = vst.msk [vmem:[#allocation2 + $0x518] sm:$0xff] %vm52, %v4788
    %5045 = vst.msk [vmem:[#allocation2 + $0x520] sm:$0xff] %vm52, %v4789
    %5046 = vst.msk [vmem:[#allocation2 + $0x528] sm:$0xff] %vm52, %v4790
    %5047 = vst.msk [vmem:[#allocation2 + $0x530] sm:$0xff] %vm52, %v4791
    %5048 = vst.msk [vmem:[#allocation2 + $0x538] sm:$0xff] %vm52, %v4792
    %5049 = vst.msk [vmem:[#allocation2 + $0x540] sm:$0xff] %vm52, %v4793
    %5050 = vst.msk [vmem:[#allocation2 + $0x548] sm:$0xff] %vm52, %v4794
    %5051 = vst.msk [vmem:[#allocation2 + $0x550] sm:$0xff] %vm52, %v4795
    %5052 = vst.msk [vmem:[#allocation2 + $0x558] sm:$0xff] %vm52, %v4796
    %5053 = vst.msk [vmem:[#allocation2 + $0x560] sm:$0xff] %vm52, %v4797
    %5054 = vst.msk [vmem:[#allocation2 + $0x568] sm:$0xff] %vm52, %v4798
    %5055 = vst.msk [vmem:[#allocation2 + $0x570] sm:$0xff] %vm52, %v4799
    %5056 = vst.msk [vmem:[#allocation2 + $0x578] sm:$0xff] %vm52, %v4800
    %5057 = vst.msk [vmem:[#allocation2 + $0x580] sm:$0xff] %vm52, %v4801
    %5058 = vst.msk [vmem:[#allocation2 + $0x588] sm:$0xff] %vm52, %v4802
    %5059 = vst.msk [vmem:[#allocation2 + $0x590] sm:$0xff] %vm52, %v4803
    %5060 = vst.msk [vmem:[#allocation2 + $0x598] sm:$0xff] %vm52, %v4804
    %5061 = vst.msk [vmem:[#allocation2 + $0x5a0] sm:$0xff] %vm52, %v4805
    %5062 = vst.msk [vmem:[#allocation2 + $0x5a8] sm:$0xff] %vm52, %v4806
    %5063 = vst.msk [vmem:[#allocation2 + $0x5b0] sm:$0xff] %vm52, %v4807
    %5064 = vst.msk [vmem:[#allocation2 + $0x5b8] sm:$0xff] %vm52, %v4808
    %5065 = vst.msk [vmem:[#allocation2 + $0x5c0] sm:$0xff] %vm52, %v4809
    %5066 = vst.msk [vmem:[#allocation2 + $0x5c8] sm:$0xff] %vm52, %v4810
    %5067 = vst.msk [vmem:[#allocation2 + $0x5d0] sm:$0xff] %vm52, %v4811
    %5068 = vst.msk [vmem:[#allocation2 + $0x5d8] sm:$0xff] %vm52, %v4812
    %5069 = vst.msk [vmem:[#allocation2 + $0x5e0] sm:$0xff] %vm52, %v4813
    %5070 = vst.msk [vmem:[#allocation2 + $0x5e8] sm:$0xff] %vm52, %v4814
    %5071 = vst.msk [vmem:[#allocation2 + $0x5f0] sm:$0xff] %vm52, %v4815
    %5072 = vst.msk [vmem:[#allocation2 + $0x5f8] sm:$0xff] %vm52, %v4816
    %5073 = vst.msk [vmem:[#allocation2 + $0x600] sm:$0xff] %vm52, %v4817
    %5074 = vst.msk [vmem:[#allocation2 + $0x608] sm:$0xff] %vm52, %v4818
    %5075 = vst.msk [vmem:[#allocation2 + $0x610] sm:$0xff] %vm52, %v4819
    %5076 = vst.msk [vmem:[#allocation2 + $0x618] sm:$0xff] %vm52, %v4820
    %5077 = vst.msk [vmem:[#allocation2 + $0x620] sm:$0xff] %vm52, %v4821
    %5078 = vst.msk [vmem:[#allocation2 + $0x628] sm:$0xff] %vm52, %v4822
    %5079 = vst.msk [vmem:[#allocation2 + $0x630] sm:$0xff] %vm52, %v4823
    %5080 = vst.msk [vmem:[#allocation2 + $0x638] sm:$0xff] %vm52, %v4824
    %5081 = vst.msk [vmem:[#allocation2 + $0x640] sm:$0xff] %vm52, %v4825
    %5082 = vst.msk [vmem:[#allocation2 + $0x648] sm:$0xff] %vm52, %v4826
    %5083 = vst.msk [vmem:[#allocation2 + $0x650] sm:$0xff] %vm52, %v4827
    %5084 = vst.msk [vmem:[#allocation2 + $0x658] sm:$0xff] %vm52, %v4828
    %5085 = vst.msk [vmem:[#allocation2 + $0x660] sm:$0xff] %vm52, %v4829
    %5086 = vst.msk [vmem:[#allocation2 + $0x668] sm:$0xff] %vm52, %v4830
    %5087 = vst.msk [vmem:[#allocation2 + $0x670] sm:$0xff] %vm52, %v4831
    %5088 = vst.msk [vmem:[#allocation2 + $0x678] sm:$0xff] %vm52, %v4832
    %5089 = vst.msk [vmem:[#allocation2 + $0x680] sm:$0xff] %vm52, %v4833
    %5090 = vst.msk [vmem:[#allocation2 + $0x688] sm:$0xff] %vm52, %v4834
    %5091 = vst.msk [vmem:[#allocation2 + $0x690] sm:$0xff] %vm52, %v4835
    %5092 = vst.msk [vmem:[#allocation2 + $0x698] sm:$0xff] %vm52, %v4836
    %5093 = vst.msk [vmem:[#allocation2 + $0x6a0] sm:$0xff] %vm52, %v4837
    %5094 = vst.msk [vmem:[#allocation2 + $0x6a8] sm:$0xff] %vm52, %v4838
    %5095 = vst.msk [vmem:[#allocation2 + $0x6b0] sm:$0xff] %vm52, %v4839
    %5096 = vst.msk [vmem:[#allocation2 + $0x6b8] sm:$0xff] %vm52, %v4840
    %5097 = vst.msk [vmem:[#allocation2 + $0x6c0] sm:$0xff] %vm52, %v4841
    %5098 = vst.msk [vmem:[#allocation2 + $0x6c8] sm:$0xff] %vm52, %v4842
    %5099 = vst.msk [vmem:[#allocation2 + $0x6d0] sm:$0xff] %vm52, %v4843
    %5100 = vst.msk [vmem:[#allocation2 + $0x6d8] sm:$0xff] %vm52, %v4844
    %5101 = vst.msk [vmem:[#allocation2 + $0x6e0] sm:$0xff] %vm52, %v4845
    %5102 = vst.msk [vmem:[#allocation2 + $0x6e8] sm:$0xff] %vm52, %v4846
    %5103 = vst.msk [vmem:[#allocation2 + $0x6f0] sm:$0xff] %vm52, %v4847
    %5104 = vst.msk [vmem:[#allocation2 + $0x6f8] sm:$0xff] %vm52, %v4848
    %5105 = vst.msk [vmem:[#allocation2 + $0x700] sm:$0xff] %vm52, %v4849
    %5106 = vst.msk [vmem:[#allocation2 + $0x708] sm:$0xff] %vm52, %v4850
    %5107 = vst.msk [vmem:[#allocation2 + $0x710] sm:$0xff] %vm52, %v4851
    %5108 = vst.msk [vmem:[#allocation2 + $0x718] sm:$0xff] %vm52, %v4852
    %5109 = vst.msk [vmem:[#allocation2 + $0x720] sm:$0xff] %vm52, %v4853
    %5110 = vst.msk [vmem:[#allocation2 + $0x728] sm:$0xff] %vm52, %v4854
    %5111 = vst.msk [vmem:[#allocation2 + $0x730] sm:$0xff] %vm52, %v4855
    %5112 = vst.msk [vmem:[#allocation2 + $0x738] sm:$0xff] %vm52, %v4856
    %5113 = vst.msk [vmem:[#allocation2 + $0x740] sm:$0xff] %vm52, %v4857
    %5114 = vst.msk [vmem:[#allocation2 + $0x748] sm:$0xff] %vm52, %v4858
    %5115 = vst.msk [vmem:[#allocation2 + $0x750] sm:$0xff] %vm52, %v4859
    %5116 = vst.msk [vmem:[#allocation2 + $0x758] sm:$0xff] %vm52, %v4860
    %5117 = vst.msk [vmem:[#allocation2 + $0x760] sm:$0xff] %vm52, %v4861
    %5118 = vst.msk [vmem:[#allocation2 + $0x768] sm:$0xff] %vm52, %v4862
    %5119 = vst.msk [vmem:[#allocation2 + $0x770] sm:$0xff] %vm52, %v4863
    %5120 = vst.msk [vmem:[#allocation2 + $0x778] sm:$0xff] %vm52, %v4864
    %5121 = vst.msk [vmem:[#allocation2 + $0x780] sm:$0xff] %vm52, %v4865
    %5122 = vst.msk [vmem:[#allocation2 + $0x788] sm:$0xff] %vm52, %v4866
    %5123 = vst.msk [vmem:[#allocation2 + $0x790] sm:$0xff] %vm52, %v4867
    %5124 = vst.msk [vmem:[#allocation2 + $0x798] sm:$0xff] %vm52, %v4868
    %5125 = vst.msk [vmem:[#allocation2 + $0x7a0] sm:$0xff] %vm52, %v4869
    %5126 = vst.msk [vmem:[#allocation2 + $0x7a8] sm:$0xff] %vm52, %v4870
    %5127 = vst.msk [vmem:[#allocation2 + $0x7b0] sm:$0xff] %vm52, %v4871
    %5128 = vst.msk [vmem:[#allocation2 + $0x7b8] sm:$0xff] %vm52, %v4872
    %5129 = vst.msk [vmem:[#allocation2 + $0x7c0] sm:$0xff] %vm52, %v4873
    %5130 = vst.msk [vmem:[#allocation2 + $0x7c8] sm:$0xff] %vm52, %v4874
    %5131 = vst.msk [vmem:[#allocation2 + $0x7d0] sm:$0xff] %vm52, %v4875
    %5132 = vst.msk [vmem:[#allocation2 + $0x7d8] sm:$0xff] %vm52, %v4876
    %5133 = vst.msk [vmem:[#allocation2 + $0x7e0] sm:$0xff] %vm52, %v4877
    %5134 = vst.msk [vmem:[#allocation2 + $0x7e8] sm:$0xff] %vm52, %v4878
    %5135 = vst.msk [vmem:[#allocation2 + $0x7f0] sm:$0xff] %vm52, %v4879
    %5136 = vst.msk [vmem:[#allocation2 + $0x7f8] sm:$0xff] %vm52, %v4880
    %v5137 = vld [vmem:[#allocation2] ss:$2 sm:$0xff]
    %s5138 = scalar_lea.vmem [#allocation2], 16
    %v5139 = vld [vmem:[%s5138] ss:$2 sm:$0xff]
    %s5140 = scalar_lea.vmem [#allocation2], 64
    %v5141 = vld [vmem:[%s5140] ss:$2 sm:$0xff]
    %s5142 = scalar_lea.vmem [#allocation2], 80
    %v5143 = vld [vmem:[%s5142] ss:$2 sm:$0xff]
    %s5144 = scalar_lea.vmem [#allocation2], 128
    %v5145 = vld [vmem:[%s5144] ss:$2 sm:$0xff]
    %s5146 = scalar_lea.vmem [#allocation2], 144
    %v5147 = vld [vmem:[%s5146] ss:$2 sm:$0xff]
    %s5148 = scalar_lea.vmem [#allocation2], 192
    %v5149 = vld [vmem:[%s5148] ss:$2 sm:$0xff]
    %s5150 = scalar_lea.vmem [#allocation2], 208
    %v5151 = vld [vmem:[%s5150] ss:$2 sm:$0xff]
    %s5152 = scalar_lea.vmem [#allocation2], 256
    %v5153 = vld [vmem:[%s5152] ss:$2 sm:$0xff]
    %s5154 = scalar_lea.vmem [#allocation2], 272
    %v5155 = vld [vmem:[%s5154] ss:$2 sm:$0xff]
    %s5156 = scalar_lea.vmem [#allocation2], 320
    %v5157 = vld [vmem:[%s5156] ss:$2 sm:$0xff]
    %s5158 = scalar_lea.vmem [#allocation2], 336
    %v5159 = vld [vmem:[%s5158] ss:$2 sm:$0xff]
    %s5160 = scalar_lea.vmem [#allocation2], 384
    %v5161 = vld [vmem:[%s5160] ss:$2 sm:$0xff]
    %s5162 = scalar_lea.vmem [#allocation2], 400
    %v5163 = vld [vmem:[%s5162] ss:$2 sm:$0xff]
    %s5164 = scalar_lea.vmem [#allocation2], 448
    %v5165 = vld [vmem:[%s5164] ss:$2 sm:$0xff]
    %s5166 = scalar_lea.vmem [#allocation2], 464
    %v5167 = vld [vmem:[%s5166] ss:$2 sm:$0xff]
    %s5168 = scalar_lea.vmem [#allocation2], 512
    %v5169 = vld [vmem:[%s5168] ss:$2 sm:$0xff]
    %s5170 = scalar_lea.vmem [#allocation2], 528
    %v5171 = vld [vmem:[%s5170] ss:$2 sm:$0xff]
    %s5172 = scalar_lea.vmem [#allocation2], 576
    %v5173 = vld [vmem:[%s5172] ss:$2 sm:$0xff]
    %s5174 = scalar_lea.vmem [#allocation2], 592
    %v5175 = vld [vmem:[%s5174] ss:$2 sm:$0xff]
    %s5176 = scalar_lea.vmem [#allocation2], 640
    %v5177 = vld [vmem:[%s5176] ss:$2 sm:$0xff]
    %s5178 = scalar_lea.vmem [#allocation2], 656
    %v5179 = vld [vmem:[%s5178] ss:$2 sm:$0xff]
    %s5180 = scalar_lea.vmem [#allocation2], 704
    %v5181 = vld [vmem:[%s5180] ss:$2 sm:$0xff]
    %s5182 = scalar_lea.vmem [#allocation2], 720
    %v5183 = vld [vmem:[%s5182] ss:$2 sm:$0xff]
    %s5184 = scalar_lea.vmem [#allocation2], 768
    %v5185 = vld [vmem:[%s5184] ss:$2 sm:$0xff]
    %s5186 = scalar_lea.vmem [#allocation2], 784
    %v5187 = vld [vmem:[%s5186] ss:$2 sm:$0xff]
    %s5188 = scalar_lea.vmem [#allocation2], 832
    %v5189 = vld [vmem:[%s5188] ss:$2 sm:$0xff]
    %s5190 = scalar_lea.vmem [#allocation2], 848
    %v5191 = vld [vmem:[%s5190] ss:$2 sm:$0xff]
    %s5192 = scalar_lea.vmem [#allocation2], 896
    %v5193 = vld [vmem:[%s5192] ss:$2 sm:$0xff]
    %s5194 = scalar_lea.vmem [#allocation2], 912
    %v5195 = vld [vmem:[%s5194] ss:$2 sm:$0xff]
    %s5196 = scalar_lea.vmem [#allocation2], 960
    %v5197 = vld [vmem:[%s5196] ss:$2 sm:$0xff]
    %s5198 = scalar_lea.vmem [#allocation2], 976
    %v5199 = vld [vmem:[%s5198] ss:$2 sm:$0xff]
    %s5200 = scalar_lea.vmem [#allocation2], 1024
    %v5201 = vld [vmem:[%s5200] ss:$2 sm:$0xff]
    %s5202 = scalar_lea.vmem [#allocation2], 1040
    %v5203 = vld [vmem:[%s5202] ss:$2 sm:$0xff]
    %s5204 = scalar_lea.vmem [#allocation2], 1088
    %v5205 = vld [vmem:[%s5204] ss:$2 sm:$0xff]
    %s5206 = scalar_lea.vmem [#allocation2], 1104
    %v5207 = vld [vmem:[%s5206] ss:$2 sm:$0xff]
    %s5208 = scalar_lea.vmem [#allocation2], 1152
    %v5209 = vld [vmem:[%s5208] ss:$2 sm:$0xff]
    %s5210 = scalar_lea.vmem [#allocation2], 1168
    %v5211 = vld [vmem:[%s5210] ss:$2 sm:$0xff]
    %s5212 = scalar_lea.vmem [#allocation2], 1216
    %v5213 = vld [vmem:[%s5212] ss:$2 sm:$0xff]
    %s5214 = scalar_lea.vmem [#allocation2], 1232
    %v5215 = vld [vmem:[%s5214] ss:$2 sm:$0xff]
    %s5216 = scalar_lea.vmem [#allocation2], 1280
    %v5217 = vld [vmem:[%s5216] ss:$2 sm:$0xff]
    %s5218 = scalar_lea.vmem [#allocation2], 1296
    %v5219 = vld [vmem:[%s5218] ss:$2 sm:$0xff]
    %s5220 = scalar_lea.vmem [#allocation2], 1344
    %v5221 = vld [vmem:[%s5220] ss:$2 sm:$0xff]
    %s5222 = scalar_lea.vmem [#allocation2], 1360
    %v5223 = vld [vmem:[%s5222] ss:$2 sm:$0xff]
    %s5224 = scalar_lea.vmem [#allocation2], 1408
    %v5225 = vld [vmem:[%s5224] ss:$2 sm:$0xff]
    %s5226 = scalar_lea.vmem [#allocation2], 1424
    %v5227 = vld [vmem:[%s5226] ss:$2 sm:$0xff]
    %s5228 = scalar_lea.vmem [#allocation2], 1472
    %v5229 = vld [vmem:[%s5228] ss:$2 sm:$0xff]
    %s5230 = scalar_lea.vmem [#allocation2], 1488
    %v5231 = vld [vmem:[%s5230] ss:$2 sm:$0xff]
    %s5232 = scalar_lea.vmem [#allocation2], 1536
    %v5233 = vld [vmem:[%s5232] ss:$2 sm:$0xff]
    %s5234 = scalar_lea.vmem [#allocation2], 1552
    %v5235 = vld [vmem:[%s5234] ss:$2 sm:$0xff]
    %s5236 = scalar_lea.vmem [#allocation2], 1600
    %v5237 = vld [vmem:[%s5236] ss:$2 sm:$0xff]
    %s5238 = scalar_lea.vmem [#allocation2], 1616
    %v5239 = vld [vmem:[%s5238] ss:$2 sm:$0xff]
    %s5240 = scalar_lea.vmem [#allocation2], 1664
    %v5241 = vld [vmem:[%s5240] ss:$2 sm:$0xff]
    %s5242 = scalar_lea.vmem [#allocation2], 1680
    %v5243 = vld [vmem:[%s5242] ss:$2 sm:$0xff]
    %s5244 = scalar_lea.vmem [#allocation2], 1728
    %v5245 = vld [vmem:[%s5244] ss:$2 sm:$0xff]
    %s5246 = scalar_lea.vmem [#allocation2], 1744
    %v5247 = vld [vmem:[%s5246] ss:$2 sm:$0xff]
    %s5248 = scalar_lea.vmem [#allocation2], 1792
    %v5249 = vld [vmem:[%s5248] ss:$2 sm:$0xff]
    %s5250 = scalar_lea.vmem [#allocation2], 1808
    %v5251 = vld [vmem:[%s5250] ss:$2 sm:$0xff]
    %s5252 = scalar_lea.vmem [#allocation2], 1856
    %v5253 = vld [vmem:[%s5252] ss:$2 sm:$0xff]
    %s5254 = scalar_lea.vmem [#allocation2], 1872
    %v5255 = vld [vmem:[%s5254] ss:$2 sm:$0xff]
    %s5256 = scalar_lea.vmem [#allocation2], 1920
    %v5257 = vld [vmem:[%s5256] ss:$2 sm:$0xff]
    %s5258 = scalar_lea.vmem [#allocation2], 1936
    %v5259 = vld [vmem:[%s5258] ss:$2 sm:$0xff]
    %s5260 = scalar_lea.vmem [#allocation2], 1984
    %v5261 = vld [vmem:[%s5260] ss:$2 sm:$0xff]
    %s5262 = scalar_lea.vmem [#allocation2], 2000
    %v5263 = vld [vmem:[%s5262] ss:$2 sm:$0xff]
    %s5264 = scalar_lea.vmem [#allocation2], 1
    %v5265 = vld [vmem:[%s5264] ss:$2 sm:$0xff]
    %s5266 = scalar_lea.vmem [#allocation2], 17
    %v5267 = vld [vmem:[%s5266] ss:$2 sm:$0xff]
    %s5268 = scalar_lea.vmem [#allocation2], 65
    %v5269 = vld [vmem:[%s5268] ss:$2 sm:$0xff]
    %s5270 = scalar_lea.vmem [#allocation2], 81
    %v5271 = vld [vmem:[%s5270] ss:$2 sm:$0xff]
    %s5272 = scalar_lea.vmem [#allocation2], 129
    %v5273 = vld [vmem:[%s5272] ss:$2 sm:$0xff]
    %s5274 = scalar_lea.vmem [#allocation2], 145
    %v5275 = vld [vmem:[%s5274] ss:$2 sm:$0xff]
    %s5276 = scalar_lea.vmem [#allocation2], 193
    %v5277 = vld [vmem:[%s5276] ss:$2 sm:$0xff]
    %s5278 = scalar_lea.vmem [#allocation2], 209
    %v5279 = vld [vmem:[%s5278] ss:$2 sm:$0xff]
    %s5280 = scalar_lea.vmem [#allocation2], 257
    %v5281 = vld [vmem:[%s5280] ss:$2 sm:$0xff]
    %s5282 = scalar_lea.vmem [#allocation2], 273
    %v5283 = vld [vmem:[%s5282] ss:$2 sm:$0xff]
    %s5284 = scalar_lea.vmem [#allocation2], 321
    %v5285 = vld [vmem:[%s5284] ss:$2 sm:$0xff]
    %s5286 = scalar_lea.vmem [#allocation2], 337
    %v5287 = vld [vmem:[%s5286] ss:$2 sm:$0xff]
    %s5288 = scalar_lea.vmem [#allocation2], 385
    %v5289 = vld [vmem:[%s5288] ss:$2 sm:$0xff]
    %s5290 = scalar_lea.vmem [#allocation2], 401
    %v5291 = vld [vmem:[%s5290] ss:$2 sm:$0xff]
    %s5292 = scalar_lea.vmem [#allocation2], 449
    %v5293 = vld [vmem:[%s5292] ss:$2 sm:$0xff]
    %s5294 = scalar_lea.vmem [#allocation2], 465
    %v5295 = vld [vmem:[%s5294] ss:$2 sm:$0xff]
    %s5296 = scalar_lea.vmem [#allocation2], 513
    %v5297 = vld [vmem:[%s5296] ss:$2 sm:$0xff]
    %s5298 = scalar_lea.vmem [#allocation2], 529
    %v5299 = vld [vmem:[%s5298] ss:$2 sm:$0xff]
    %s5300 = scalar_lea.vmem [#allocation2], 577
    %v5301 = vld [vmem:[%s5300] ss:$2 sm:$0xff]
    %s5302 = scalar_lea.vmem [#allocation2], 593
    %v5303 = vld [vmem:[%s5302] ss:$2 sm:$0xff]
    %s5304 = scalar_lea.vmem [#allocation2], 641
    %v5305 = vld [vmem:[%s5304] ss:$2 sm:$0xff]
    %s5306 = scalar_lea.vmem [#allocation2], 657
    %v5307 = vld [vmem:[%s5306] ss:$2 sm:$0xff]
    %s5308 = scalar_lea.vmem [#allocation2], 705
    %v5309 = vld [vmem:[%s5308] ss:$2 sm:$0xff]
    %s5310 = scalar_lea.vmem [#allocation2], 721
    %v5311 = vld [vmem:[%s5310] ss:$2 sm:$0xff]
    %s5312 = scalar_lea.vmem [#allocation2], 769
    %v5313 = vld [vmem:[%s5312] ss:$2 sm:$0xff]
    %s5314 = scalar_lea.vmem [#allocation2], 785
    %v5315 = vld [vmem:[%s5314] ss:$2 sm:$0xff]
    %s5316 = scalar_lea.vmem [#allocation2], 833
    %v5317 = vld [vmem:[%s5316] ss:$2 sm:$0xff]
    %s5318 = scalar_lea.vmem [#allocation2], 849
    %v5319 = vld [vmem:[%s5318] ss:$2 sm:$0xff]
    %s5320 = scalar_lea.vmem [#allocation2], 897
    %v5321 = vld [vmem:[%s5320] ss:$2 sm:$0xff]
    %s5322 = scalar_lea.vmem [#allocation2], 913
    %v5323 = vld [vmem:[%s5322] ss:$2 sm:$0xff]
    %s5324 = scalar_lea.vmem [#allocation2], 961
    %v5325 = vld [vmem:[%s5324] ss:$2 sm:$0xff]
    %s5326 = scalar_lea.vmem [#allocation2], 977
    %v5327 = vld [vmem:[%s5326] ss:$2 sm:$0xff]
    %s5328 = scalar_lea.vmem [#allocation2], 1025
    %v5329 = vld [vmem:[%s5328] ss:$2 sm:$0xff]
    %s5330 = scalar_lea.vmem [#allocation2], 1041
    %v5331 = vld [vmem:[%s5330] ss:$2 sm:$0xff]
    %s5332 = scalar_lea.vmem [#allocation2], 1089
    %v5333 = vld [vmem:[%s5332] ss:$2 sm:$0xff]
    %s5334 = scalar_lea.vmem [#allocation2], 1105
    %v5335 = vld [vmem:[%s5334] ss:$2 sm:$0xff]
    %s5336 = scalar_lea.vmem [#allocation2], 1153
    %v5337 = vld [vmem:[%s5336] ss:$2 sm:$0xff]
    %s5338 = scalar_lea.vmem [#allocation2], 1169
    %v5339 = vld [vmem:[%s5338] ss:$2 sm:$0xff]
    %s5340 = scalar_lea.vmem [#allocation2], 1217
    %v5341 = vld [vmem:[%s5340] ss:$2 sm:$0xff]
    %s5342 = scalar_lea.vmem [#allocation2], 1233
    %v5343 = vld [vmem:[%s5342] ss:$2 sm:$0xff]
    %s5344 = scalar_lea.vmem [#allocation2], 1281
    %v5345 = vld [vmem:[%s5344] ss:$2 sm:$0xff]
    %s5346 = scalar_lea.vmem [#allocation2], 1297
    %v5347 = vld [vmem:[%s5346] ss:$2 sm:$0xff]
    %s5348 = scalar_lea.vmem [#allocation2], 1345
    %v5349 = vld [vmem:[%s5348] ss:$2 sm:$0xff]
    %s5350 = scalar_lea.vmem [#allocation2], 1361
    %v5351 = vld [vmem:[%s5350] ss:$2 sm:$0xff]
    %s5352 = scalar_lea.vmem [#allocation2], 1409
    %v5353 = vld [vmem:[%s5352] ss:$2 sm:$0xff]
    %s5354 = scalar_lea.vmem [#allocation2], 1425
    %v5355 = vld [vmem:[%s5354] ss:$2 sm:$0xff]
    %s5356 = scalar_lea.vmem [#allocation2], 1473
    %v5357 = vld [vmem:[%s5356] ss:$2 sm:$0xff]
    %s5358 = scalar_lea.vmem [#allocation2], 1489
    %v5359 = vld [vmem:[%s5358] ss:$2 sm:$0xff]
    %s5360 = scalar_lea.vmem [#allocation2], 1537
    %v5361 = vld [vmem:[%s5360] ss:$2 sm:$0xff]
    %s5362 = scalar_lea.vmem [#allocation2], 1553
    %v5363 = vld [vmem:[%s5362] ss:$2 sm:$0xff]
    %s5364 = scalar_lea.vmem [#allocation2], 1601
    %v5365 = vld [vmem:[%s5364] ss:$2 sm:$0xff]
    %s5366 = scalar_lea.vmem [#allocation2], 1617
    %v5367 = vld [vmem:[%s5366] ss:$2 sm:$0xff]
    %s5368 = scalar_lea.vmem [#allocation2], 1665
    %v5369 = vld [vmem:[%s5368] ss:$2 sm:$0xff]
    %s5370 = scalar_lea.vmem [#allocation2], 1681
    %v5371 = vld [vmem:[%s5370] ss:$2 sm:$0xff]
    %s5372 = scalar_lea.vmem [#allocation2], 1729
    %v5373 = vld [vmem:[%s5372] ss:$2 sm:$0xff]
    %s5374 = scalar_lea.vmem [#allocation2], 1745
    %v5375 = vld [vmem:[%s5374] ss:$2 sm:$0xff]
    %s5376 = scalar_lea.vmem [#allocation2], 1793
    %v5377 = vld [vmem:[%s5376] ss:$2 sm:$0xff]
    %s5378 = scalar_lea.vmem [#allocation2], 1809
    %v5379 = vld [vmem:[%s5378] ss:$2 sm:$0xff]
    %s5380 = scalar_lea.vmem [#allocation2], 1857
    %v5381 = vld [vmem:[%s5380] ss:$2 sm:$0xff]
    %s5382 = scalar_lea.vmem [#allocation2], 1873
    %v5383 = vld [vmem:[%s5382] ss:$2 sm:$0xff]
    %s5384 = scalar_lea.vmem [#allocation2], 1921
    %v5385 = vld [vmem:[%s5384] ss:$2 sm:$0xff]
    %s5386 = scalar_lea.vmem [#allocation2], 1937
    %v5387 = vld [vmem:[%s5386] ss:$2 sm:$0xff]
    %s5388 = scalar_lea.vmem [#allocation2], 1985
    %v5389 = vld [vmem:[%s5388] ss:$2 sm:$0xff]
    %s5390 = scalar_lea.vmem [#allocation2], 2001
    %v5391 = vld [vmem:[%s5390] ss:$2 sm:$0xff]
    %v5392 = vmax.f32 %v5137, %v5265
    %v5393 = vmax.f32 %v5139, %v5267
    %v5394 = vmax.f32 %v5141, %v5269
    %v5395 = vmax.f32 %v5143, %v5271
    %v5396 = vmax.f32 %v5145, %v5273
    %v5397 = vmax.f32 %v5147, %v5275
    %v5398 = vmax.f32 %v5149, %v5277
    %v5399 = vmax.f32 %v5151, %v5279
    %v5400 = vmax.f32 %v5153, %v5281
    %v5401 = vmax.f32 %v5155, %v5283
    %v5402 = vmax.f32 %v5157, %v5285
    %v5403 = vmax.f32 %v5159, %v5287
    %v5404 = vmax.f32 %v5161, %v5289
    %v5405 = vmax.f32 %v5163, %v5291
    %v5406 = vmax.f32 %v5165, %v5293
    %v5407 = vmax.f32 %v5167, %v5295
    %v5408 = vmax.f32 %v5169, %v5297
    %v5409 = vmax.f32 %v5171, %v5299
    %v5410 = vmax.f32 %v5173, %v5301
    %v5411 = vmax.f32 %v5175, %v5303
    %v5412 = vmax.f32 %v5177, %v5305
    %v5413 = vmax.f32 %v5179, %v5307
    %v5414 = vmax.f32 %v5181, %v5309
    %v5415 = vmax.f32 %v5183, %v5311
    %v5416 = vmax.f32 %v5185, %v5313
    %v5417 = vmax.f32 %v5187, %v5315
    %v5418 = vmax.f32 %v5189, %v5317
    %v5419 = vmax.f32 %v5191, %v5319
    %v5420 = vmax.f32 %v5193, %v5321
    %v5421 = vmax.f32 %v5195, %v5323
    %v5422 = vmax.f32 %v5197, %v5325
    %v5423 = vmax.f32 %v5199, %v5327
    %v5424 = vmax.f32 %v5201, %v5329
    %v5425 = vmax.f32 %v5203, %v5331
    %v5426 = vmax.f32 %v5205, %v5333
    %v5427 = vmax.f32 %v5207, %v5335
    %v5428 = vmax.f32 %v5209, %v5337
    %v5429 = vmax.f32 %v5211, %v5339
    %v5430 = vmax.f32 %v5213, %v5341
    %v5431 = vmax.f32 %v5215, %v5343
    %v5432 = vmax.f32 %v5217, %v5345
    %v5433 = vmax.f32 %v5219, %v5347
    %v5434 = vmax.f32 %v5221, %v5349
    %v5435 = vmax.f32 %v5223, %v5351
    %v5436 = vmax.f32 %v5225, %v5353
    %v5437 = vmax.f32 %v5227, %v5355
    %v5438 = vmax.f32 %v5229, %v5357
    %v5439 = vmax.f32 %v5231, %v5359
    %v5440 = vmax.f32 %v5233, %v5361
    %v5441 = vmax.f32 %v5235, %v5363
    %v5442 = vmax.f32 %v5237, %v5365
    %v5443 = vmax.f32 %v5239, %v5367
    %v5444 = vmax.f32 %v5241, %v5369
    %v5445 = vmax.f32 %v5243, %v5371
    %v5446 = vmax.f32 %v5245, %v5373
    %v5447 = vmax.f32 %v5247, %v5375
    %v5448 = vmax.f32 %v5249, %v5377
    %v5449 = vmax.f32 %v5251, %v5379
    %v5450 = vmax.f32 %v5253, %v5381
    %v5451 = vmax.f32 %v5255, %v5383
    %v5452 = vmax.f32 %v5257, %v5385
    %v5453 = vmax.f32 %v5259, %v5387
    %v5454 = vmax.f32 %v5261, %v5389
    %v5455 = vmax.f32 %v5263, %v5391
    %s5456 = scalar_lea.vmem [#allocation2], 32
    %v5457 = vld [vmem:[%s5456] ss:$2 sm:$0xff]
    %s5458 = scalar_lea.vmem %s5456, 16 [#allocation2]
    %v5459 = vld [vmem:[%s5458] ss:$2 sm:$0xff]
    %s5460 = scalar_lea.vmem %s5456, 64 [#allocation2]
    %v5461 = vld [vmem:[%s5460] ss:$2 sm:$0xff]
    %s5462 = scalar_lea.vmem %s5456, 80 [#allocation2]
    %v5463 = vld [vmem:[%s5462] ss:$2 sm:$0xff]
    %s5464 = scalar_lea.vmem %s5456, 128 [#allocation2]
    %v5465 = vld [vmem:[%s5464] ss:$2 sm:$0xff]
    %s5466 = scalar_lea.vmem %s5456, 144 [#allocation2]
    %v5467 = vld [vmem:[%s5466] ss:$2 sm:$0xff]
    %s5468 = scalar_lea.vmem %s5456, 192 [#allocation2]
    %v5469 = vld [vmem:[%s5468] ss:$2 sm:$0xff]
    %s5470 = scalar_lea.vmem %s5456, 208 [#allocation2]
    %v5471 = vld [vmem:[%s5470] ss:$2 sm:$0xff]
    %s5472 = scalar_lea.vmem %s5456, 256 [#allocation2]
    %v5473 = vld [vmem:[%s5472] ss:$2 sm:$0xff]
    %s5474 = scalar_lea.vmem %s5456, 272 [#allocation2]
    %v5475 = vld [vmem:[%s5474] ss:$2 sm:$0xff]
    %s5476 = scalar_lea.vmem %s5456, 320 [#allocation2]
    %v5477 = vld [vmem:[%s5476] ss:$2 sm:$0xff]
    %s5478 = scalar_lea.vmem %s5456, 336 [#allocation2]
    %v5479 = vld [vmem:[%s5478] ss:$2 sm:$0xff]
    %s5480 = scalar_lea.vmem %s5456, 384 [#allocation2]
    %v5481 = vld [vmem:[%s5480] ss:$2 sm:$0xff]
    %s5482 = scalar_lea.vmem %s5456, 400 [#allocation2]
    %v5483 = vld [vmem:[%s5482] ss:$2 sm:$0xff]
    %s5484 = scalar_lea.vmem %s5456, 448 [#allocation2]
    %v5485 = vld [vmem:[%s5484] ss:$2 sm:$0xff]
    %s5486 = scalar_lea.vmem %s5456, 464 [#allocation2]
    %v5487 = vld [vmem:[%s5486] ss:$2 sm:$0xff]
    %s5488 = scalar_lea.vmem %s5456, 512 [#allocation2]
    %v5489 = vld [vmem:[%s5488] ss:$2 sm:$0xff]
    %s5490 = scalar_lea.vmem %s5456, 528 [#allocation2]
    %v5491 = vld [vmem:[%s5490] ss:$2 sm:$0xff]
    %s5492 = scalar_lea.vmem %s5456, 576 [#allocation2]
    %v5493 = vld [vmem:[%s5492] ss:$2 sm:$0xff]
    %s5494 = scalar_lea.vmem %s5456, 592 [#allocation2]
    %v5495 = vld [vmem:[%s5494] ss:$2 sm:$0xff]
    %s5496 = scalar_lea.vmem %s5456, 640 [#allocation2]
    %v5497 = vld [vmem:[%s5496] ss:$2 sm:$0xff]
    %s5498 = scalar_lea.vmem %s5456, 656 [#allocation2]
    %v5499 = vld [vmem:[%s5498] ss:$2 sm:$0xff]
    %s5500 = scalar_lea.vmem %s5456, 704 [#allocation2]
    %v5501 = vld [vmem:[%s5500] ss:$2 sm:$0xff]
    %s5502 = scalar_lea.vmem %s5456, 720 [#allocation2]
    %v5503 = vld [vmem:[%s5502] ss:$2 sm:$0xff]
    %s5504 = scalar_lea.vmem %s5456, 768 [#allocation2]
    %v5505 = vld [vmem:[%s5504] ss:$2 sm:$0xff]
    %s5506 = scalar_lea.vmem %s5456, 784 [#allocation2]
    %v5507 = vld [vmem:[%s5506] ss:$2 sm:$0xff]
    %s5508 = scalar_lea.vmem %s5456, 832 [#allocation2]
    %v5509 = vld [vmem:[%s5508] ss:$2 sm:$0xff]
    %s5510 = scalar_lea.vmem %s5456, 848 [#allocation2]
    %v5511 = vld [vmem:[%s5510] ss:$2 sm:$0xff]
    %s5512 = scalar_lea.vmem %s5456, 896 [#allocation2]
    %v5513 = vld [vmem:[%s5512] ss:$2 sm:$0xff]
    %s5514 = scalar_lea.vmem %s5456, 912 [#allocation2]
    %v5515 = vld [vmem:[%s5514] ss:$2 sm:$0xff]
    %s5516 = scalar_lea.vmem %s5456, 960 [#allocation2]
    %v5517 = vld [vmem:[%s5516] ss:$2 sm:$0xff]
    %s5518 = scalar_lea.vmem %s5456, 976 [#allocation2]
    %v5519 = vld [vmem:[%s5518] ss:$2 sm:$0xff]
    %s5520 = scalar_lea.vmem %s5456, 1024 [#allocation2]
    %v5521 = vld [vmem:[%s5520] ss:$2 sm:$0xff]
    %s5522 = scalar_lea.vmem %s5456, 1040 [#allocation2]
    %v5523 = vld [vmem:[%s5522] ss:$2 sm:$0xff]
    %s5524 = scalar_lea.vmem %s5456, 1088 [#allocation2]
    %v5525 = vld [vmem:[%s5524] ss:$2 sm:$0xff]
    %s5526 = scalar_lea.vmem %s5456, 1104 [#allocation2]
    %v5527 = vld [vmem:[%s5526] ss:$2 sm:$0xff]
    %s5528 = scalar_lea.vmem %s5456, 1152 [#allocation2]
    %v5529 = vld [vmem:[%s5528] ss:$2 sm:$0xff]
    %s5530 = scalar_lea.vmem %s5456, 1168 [#allocation2]
    %v5531 = vld [vmem:[%s5530] ss:$2 sm:$0xff]
    %s5532 = scalar_lea.vmem %s5456, 1216 [#allocation2]
    %v5533 = vld [vmem:[%s5532] ss:$2 sm:$0xff]
    %s5534 = scalar_lea.vmem %s5456, 1232 [#allocation2]
    %v5535 = vld [vmem:[%s5534] ss:$2 sm:$0xff]
    %s5536 = scalar_lea.vmem %s5456, 1280 [#allocation2]
    %v5537 = vld [vmem:[%s5536] ss:$2 sm:$0xff]
    %s5538 = scalar_lea.vmem %s5456, 1296 [#allocation2]
    %v5539 = vld [vmem:[%s5538] ss:$2 sm:$0xff]
    %s5540 = scalar_lea.vmem %s5456, 1344 [#allocation2]
    %v5541 = vld [vmem:[%s5540] ss:$2 sm:$0xff]
    %s5542 = scalar_lea.vmem %s5456, 1360 [#allocation2]
    %v5543 = vld [vmem:[%s5542] ss:$2 sm:$0xff]
    %s5544 = scalar_lea.vmem %s5456, 1408 [#allocation2]
    %v5545 = vld [vmem:[%s5544] ss:$2 sm:$0xff]
    %s5546 = scalar_lea.vmem %s5456, 1424 [#allocation2]
    %v5547 = vld [vmem:[%s5546] ss:$2 sm:$0xff]
    %s5548 = scalar_lea.vmem %s5456, 1472 [#allocation2]
    %v5549 = vld [vmem:[%s5548] ss:$2 sm:$0xff]
    %s5550 = scalar_lea.vmem %s5456, 1488 [#allocation2]
    %v5551 = vld [vmem:[%s5550] ss:$2 sm:$0xff]
    %s5552 = scalar_lea.vmem %s5456, 1536 [#allocation2]
    %v5553 = vld [vmem:[%s5552] ss:$2 sm:$0xff]
    %s5554 = scalar_lea.vmem %s5456, 1552 [#allocation2]
    %v5555 = vld [vmem:[%s5554] ss:$2 sm:$0xff]
    %s5556 = scalar_lea.vmem %s5456, 1600 [#allocation2]
    %v5557 = vld [vmem:[%s5556] ss:$2 sm:$0xff]
    %s5558 = scalar_lea.vmem %s5456, 1616 [#allocation2]
    %v5559 = vld [vmem:[%s5558] ss:$2 sm:$0xff]
    %s5560 = scalar_lea.vmem %s5456, 1664 [#allocation2]
    %v5561 = vld [vmem:[%s5560] ss:$2 sm:$0xff]
    %s5562 = scalar_lea.vmem %s5456, 1680 [#allocation2]
    %v5563 = vld [vmem:[%s5562] ss:$2 sm:$0xff]
    %s5564 = scalar_lea.vmem %s5456, 1728 [#allocation2]
    %v5565 = vld [vmem:[%s5564] ss:$2 sm:$0xff]
    %s5566 = scalar_lea.vmem %s5456, 1744 [#allocation2]
    %v5567 = vld [vmem:[%s5566] ss:$2 sm:$0xff]
    %s5568 = scalar_lea.vmem %s5456, 1792 [#allocation2]
    %v5569 = vld [vmem:[%s5568] ss:$2 sm:$0xff]
    %s5570 = scalar_lea.vmem %s5456, 1808 [#allocation2]
    %v5571 = vld [vmem:[%s5570] ss:$2 sm:$0xff]
    %s5572 = scalar_lea.vmem %s5456, 1856 [#allocation2]
    %v5573 = vld [vmem:[%s5572] ss:$2 sm:$0xff]
    %s5574 = scalar_lea.vmem %s5456, 1872 [#allocation2]
    %v5575 = vld [vmem:[%s5574] ss:$2 sm:$0xff]
    %s5576 = scalar_lea.vmem %s5456, 1920 [#allocation2]
    %v5577 = vld [vmem:[%s5576] ss:$2 sm:$0xff]
    %s5578 = scalar_lea.vmem %s5456, 1936 [#allocation2]
    %v5579 = vld [vmem:[%s5578] ss:$2 sm:$0xff]
    %s5580 = scalar_lea.vmem %s5456, 1984 [#allocation2]
    %v5581 = vld [vmem:[%s5580] ss:$2 sm:$0xff]
    %s5582 = scalar_lea.vmem %s5456, 2000 [#allocation2]
    %v5583 = vld [vmem:[%s5582] ss:$2 sm:$0xff]
    %v5584 = vmax.f32 %v5392, %v5457
    %v5585 = vmax.f32 %v5393, %v5459
    %v5586 = vmax.f32 %v5394, %v5461
    %v5587 = vmax.f32 %v5395, %v5463
    %v5588 = vmax.f32 %v5396, %v5465
    %v5589 = vmax.f32 %v5397, %v5467
    %v5590 = vmax.f32 %v5398, %v5469
    %v5591 = vmax.f32 %v5399, %v5471
    %v5592 = vmax.f32 %v5400, %v5473
    %v5593 = vmax.f32 %v5401, %v5475
    %v5594 = vmax.f32 %v5402, %v5477
    %v5595 = vmax.f32 %v5403, %v5479
    %v5596 = vmax.f32 %v5404, %v5481
    %v5597 = vmax.f32 %v5405, %v5483
    %v5598 = vmax.f32 %v5406, %v5485
    %v5599 = vmax.f32 %v5407, %v5487
    %v5600 = vmax.f32 %v5408, %v5489
    %v5601 = vmax.f32 %v5409, %v5491
    %v5602 = vmax.f32 %v5410, %v5493
    %v5603 = vmax.f32 %v5411, %v5495
    %v5604 = vmax.f32 %v5412, %v5497
    %v5605 = vmax.f32 %v5413, %v5499
    %v5606 = vmax.f32 %v5414, %v5501
    %v5607 = vmax.f32 %v5415, %v5503
    %v5608 = vmax.f32 %v5416, %v5505
    %v5609 = vmax.f32 %v5417, %v5507
    %v5610 = vmax.f32 %v5418, %v5509
    %v5611 = vmax.f32 %v5419, %v5511
    %v5612 = vmax.f32 %v5420, %v5513
    %v5613 = vmax.f32 %v5421, %v5515
    %v5614 = vmax.f32 %v5422, %v5517
    %v5615 = vmax.f32 %v5423, %v5519
    %v5616 = vmax.f32 %v5424, %v5521
    %v5617 = vmax.f32 %v5425, %v5523
    %v5618 = vmax.f32 %v5426, %v5525
    %v5619 = vmax.f32 %v5427, %v5527
    %v5620 = vmax.f32 %v5428, %v5529
    %v5621 = vmax.f32 %v5429, %v5531
    %v5622 = vmax.f32 %v5430, %v5533
    %v5623 = vmax.f32 %v5431, %v5535
    %v5624 = vmax.f32 %v5432, %v5537
    %v5625 = vmax.f32 %v5433, %v5539
    %v5626 = vmax.f32 %v5434, %v5541
    %v5627 = vmax.f32 %v5435, %v5543
    %v5628 = vmax.f32 %v5436, %v5545
    %v5629 = vmax.f32 %v5437, %v5547
    %v5630 = vmax.f32 %v5438, %v5549
    %v5631 = vmax.f32 %v5439, %v5551
    %v5632 = vmax.f32 %v5440, %v5553
    %v5633 = vmax.f32 %v5441, %v5555
    %v5634 = vmax.f32 %v5442, %v5557
    %v5635 = vmax.f32 %v5443, %v5559
    %v5636 = vmax.f32 %v5444, %v5561
    %v5637 = vmax.f32 %v5445, %v5563
    %v5638 = vmax.f32 %v5446, %v5565
    %v5639 = vmax.f32 %v5447, %v5567
    %v5640 = vmax.f32 %v5448, %v5569
    %v5641 = vmax.f32 %v5449, %v5571
    %v5642 = vmax.f32 %v5450, %v5573
    %v5643 = vmax.f32 %v5451, %v5575
    %v5644 = vmax.f32 %v5452, %v5577
    %v5645 = vmax.f32 %v5453, %v5579
    %v5646 = vmax.f32 %v5454, %v5581
    %v5647 = vmax.f32 %v5455, %v5583
    %s5648 = scalar_lea.vmem %s5456, 1 [#allocation2]
    %v5649 = vld [vmem:[%s5648] ss:$2 sm:$0xff]
    %s5650 = scalar_lea.vmem %s5456, 17 [#allocation2]
    %v5651 = vld [vmem:[%s5650] ss:$2 sm:$0xff]
    %s5652 = scalar_lea.vmem %s5456, 65 [#allocation2]
    %v5653 = vld [vmem:[%s5652] ss:$2 sm:$0xff]
    %s5654 = scalar_lea.vmem %s5456, 81 [#allocation2]
    %v5655 = vld [vmem:[%s5654] ss:$2 sm:$0xff]
    %s5656 = scalar_lea.vmem %s5456, 129 [#allocation2]
    %v5657 = vld [vmem:[%s5656] ss:$2 sm:$0xff]
    %s5658 = scalar_lea.vmem %s5456, 145 [#allocation2]
    %v5659 = vld [vmem:[%s5658] ss:$2 sm:$0xff]
    %s5660 = scalar_lea.vmem %s5456, 193 [#allocation2]
    %v5661 = vld [vmem:[%s5660] ss:$2 sm:$0xff]
    %s5662 = scalar_lea.vmem %s5456, 209 [#allocation2]
    %v5663 = vld [vmem:[%s5662] ss:$2 sm:$0xff]
    %s5664 = scalar_lea.vmem %s5456, 257 [#allocation2]
    %v5665 = vld [vmem:[%s5664] ss:$2 sm:$0xff]
    %s5666 = scalar_lea.vmem %s5456, 273 [#allocation2]
    %v5667 = vld [vmem:[%s5666] ss:$2 sm:$0xff]
    %s5668 = scalar_lea.vmem %s5456, 321 [#allocation2]
    %v5669 = vld [vmem:[%s5668] ss:$2 sm:$0xff]
    %s5670 = scalar_lea.vmem %s5456, 337 [#allocation2]
    %v5671 = vld [vmem:[%s5670] ss:$2 sm:$0xff]
    %s5672 = scalar_lea.vmem %s5456, 385 [#allocation2]
    %v5673 = vld [vmem:[%s5672] ss:$2 sm:$0xff]
    %s5674 = scalar_lea.vmem %s5456, 401 [#allocation2]
    %v5675 = vld [vmem:[%s5674] ss:$2 sm:$0xff]
    %s5676 = scalar_lea.vmem %s5456, 449 [#allocation2]
    %v5677 = vld [vmem:[%s5676] ss:$2 sm:$0xff]
    %s5678 = scalar_lea.vmem %s5456, 465 [#allocation2]
    %v5679 = vld [vmem:[%s5678] ss:$2 sm:$0xff]
    %s5680 = scalar_lea.vmem %s5456, 513 [#allocation2]
    %v5681 = vld [vmem:[%s5680] ss:$2 sm:$0xff]
    %s5682 = scalar_lea.vmem %s5456, 529 [#allocation2]
    %v5683 = vld [vmem:[%s5682] ss:$2 sm:$0xff]
    %s5684 = scalar_lea.vmem %s5456, 577 [#allocation2]
    %v5685 = vld [vmem:[%s5684] ss:$2 sm:$0xff]
    %s5686 = scalar_lea.vmem %s5456, 593 [#allocation2]
    %v5687 = vld [vmem:[%s5686] ss:$2 sm:$0xff]
    %s5688 = scalar_lea.vmem %s5456, 641 [#allocation2]
    %v5689 = vld [vmem:[%s5688] ss:$2 sm:$0xff]
    %s5690 = scalar_lea.vmem %s5456, 657 [#allocation2]
    %v5691 = vld [vmem:[%s5690] ss:$2 sm:$0xff]
    %s5692 = scalar_lea.vmem %s5456, 705 [#allocation2]
    %v5693 = vld [vmem:[%s5692] ss:$2 sm:$0xff]
    %s5694 = scalar_lea.vmem %s5456, 721 [#allocation2]
    %v5695 = vld [vmem:[%s5694] ss:$2 sm:$0xff]
    %s5696 = scalar_lea.vmem %s5456, 769 [#allocation2]
    %v5697 = vld [vmem:[%s5696] ss:$2 sm:$0xff]
    %s5698 = scalar_lea.vmem %s5456, 785 [#allocation2]
    %v5699 = vld [vmem:[%s5698] ss:$2 sm:$0xff]
    %s5700 = scalar_lea.vmem %s5456, 833 [#allocation2]
    %v5701 = vld [vmem:[%s5700] ss:$2 sm:$0xff]
    %s5702 = scalar_lea.vmem %s5456, 849 [#allocation2]
    %v5703 = vld [vmem:[%s5702] ss:$2 sm:$0xff]
    %s5704 = scalar_lea.vmem %s5456, 897 [#allocation2]
    %v5705 = vld [vmem:[%s5704] ss:$2 sm:$0xff]
    %s5706 = scalar_lea.vmem %s5456, 913 [#allocation2]
    %v5707 = vld [vmem:[%s5706] ss:$2 sm:$0xff]
    %s5708 = scalar_lea.vmem %s5456, 961 [#allocation2]
    %v5709 = vld [vmem:[%s5708] ss:$2 sm:$0xff]
    %s5710 = scalar_lea.vmem %s5456, 977 [#allocation2]
    %v5711 = vld [vmem:[%s5710] ss:$2 sm:$0xff]
    %s5712 = scalar_lea.vmem %s5456, 1025 [#allocation2]
    %v5713 = vld [vmem:[%s5712] ss:$2 sm:$0xff]
    %s5714 = scalar_lea.vmem %s5456, 1041 [#allocation2]
    %v5715 = vld [vmem:[%s5714] ss:$2 sm:$0xff]
    %s5716 = scalar_lea.vmem %s5456, 1089 [#allocation2]
    %v5717 = vld [vmem:[%s5716] ss:$2 sm:$0xff]
    %s5718 = scalar_lea.vmem %s5456, 1105 [#allocation2]
    %v5719 = vld [vmem:[%s5718] ss:$2 sm:$0xff]
    %s5720 = scalar_lea.vmem %s5456, 1153 [#allocation2]
    %v5721 = vld [vmem:[%s5720] ss:$2 sm:$0xff]
    %s5722 = scalar_lea.vmem %s5456, 1169 [#allocation2]
    %v5723 = vld [vmem:[%s5722] ss:$2 sm:$0xff]
    %s5724 = scalar_lea.vmem %s5456, 1217 [#allocation2]
    %v5725 = vld [vmem:[%s5724] ss:$2 sm:$0xff]
    %s5726 = scalar_lea.vmem %s5456, 1233 [#allocation2]
    %v5727 = vld [vmem:[%s5726] ss:$2 sm:$0xff]
    %s5728 = scalar_lea.vmem %s5456, 1281 [#allocation2]
    %v5729 = vld [vmem:[%s5728] ss:$2 sm:$0xff]
    %s5730 = scalar_lea.vmem %s5456, 1297 [#allocation2]
    %v5731 = vld [vmem:[%s5730] ss:$2 sm:$0xff]
    %s5732 = scalar_lea.vmem %s5456, 1345 [#allocation2]
    %v5733 = vld [vmem:[%s5732] ss:$2 sm:$0xff]
    %s5734 = scalar_lea.vmem %s5456, 1361 [#allocation2]
    %v5735 = vld [vmem:[%s5734] ss:$2 sm:$0xff]
    %s5736 = scalar_lea.vmem %s5456, 1409 [#allocation2]
    %v5737 = vld [vmem:[%s5736] ss:$2 sm:$0xff]
    %s5738 = scalar_lea.vmem %s5456, 1425 [#allocation2]
    %v5739 = vld [vmem:[%s5738] ss:$2 sm:$0xff]
    %s5740 = scalar_lea.vmem %s5456, 1473 [#allocation2]
    %v5741 = vld [vmem:[%s5740] ss:$2 sm:$0xff]
    %s5742 = scalar_lea.vmem %s5456, 1489 [#allocation2]
    %v5743 = vld [vmem:[%s5742] ss:$2 sm:$0xff]
    %s5744 = scalar_lea.vmem %s5456, 1537 [#allocation2]
    %v5745 = vld [vmem:[%s5744] ss:$2 sm:$0xff]
    %s5746 = scalar_lea.vmem %s5456, 1553 [#allocation2]
    %v5747 = vld [vmem:[%s5746] ss:$2 sm:$0xff]
    %s5748 = scalar_lea.vmem %s5456, 1601 [#allocation2]
    %v5749 = vld [vmem:[%s5748] ss:$2 sm:$0xff]
    %s5750 = scalar_lea.vmem %s5456, 1617 [#allocation2]
    %v5751 = vld [vmem:[%s5750] ss:$2 sm:$0xff]
    %s5752 = scalar_lea.vmem %s5456, 1665 [#allocation2]
    %v5753 = vld [vmem:[%s5752] ss:$2 sm:$0xff]
    %s5754 = scalar_lea.vmem %s5456, 1681 [#allocation2]
    %v5755 = vld [vmem:[%s5754] ss:$2 sm:$0xff]
    %s5756 = scalar_lea.vmem %s5456, 1729 [#allocation2]
    %v5757 = vld [vmem:[%s5756] ss:$2 sm:$0xff]
    %s5758 = scalar_lea.vmem %s5456, 1745 [#allocation2]
    %v5759 = vld [vmem:[%s5758] ss:$2 sm:$0xff]
    %s5760 = scalar_lea.vmem %s5456, 1793 [#allocation2]
    %v5761 = vld [vmem:[%s5760] ss:$2 sm:$0xff]
    %s5762 = scalar_lea.vmem %s5456, 1809 [#allocation2]
    %v5763 = vld [vmem:[%s5762] ss:$2 sm:$0xff]
    %s5764 = scalar_lea.vmem %s5456, 1857 [#allocation2]
    %v5765 = vld [vmem:[%s5764] ss:$2 sm:$0xff]
    %s5766 = scalar_lea.vmem %s5456, 1873 [#allocation2]
    %v5767 = vld [vmem:[%s5766] ss:$2 sm:$0xff]
    %s5768 = scalar_lea.vmem %s5456, 1921 [#allocation2]
    %v5769 = vld [vmem:[%s5768] ss:$2 sm:$0xff]
    %s5770 = scalar_lea.vmem %s5456, 1937 [#allocation2]
    %v5771 = vld [vmem:[%s5770] ss:$2 sm:$0xff]
    %s5772 = scalar_lea.vmem %s5456, 1985 [#allocation2]
    %v5773 = vld [vmem:[%s5772] ss:$2 sm:$0xff]
    %s5774 = scalar_lea.vmem %s5456, 2001 [#allocation2]
    %v5775 = vld [vmem:[%s5774] ss:$2 sm:$0xff]
    %v5776 = vmax.f32 %v5584, %v5649
    %v5777 = vmax.f32 %v5585, %v5651
    %v5778 = vmax.f32 %v5586, %v5653
    %v5779 = vmax.f32 %v5587, %v5655
    %v5780 = vmax.f32 %v5588, %v5657
    %v5781 = vmax.f32 %v5589, %v5659
    %v5782 = vmax.f32 %v5590, %v5661
    %v5783 = vmax.f32 %v5591, %v5663
    %v5784 = vmax.f32 %v5592, %v5665
    %v5785 = vmax.f32 %v5593, %v5667
    %v5786 = vmax.f32 %v5594, %v5669
    %v5787 = vmax.f32 %v5595, %v5671
    %v5788 = vmax.f32 %v5596, %v5673
    %v5789 = vmax.f32 %v5597, %v5675
    %v5790 = vmax.f32 %v5598, %v5677
    %v5791 = vmax.f32 %v5599, %v5679
    %v5792 = vmax.f32 %v5600, %v5681
    %v5793 = vmax.f32 %v5601, %v5683
    %v5794 = vmax.f32 %v5602, %v5685
    %v5795 = vmax.f32 %v5603, %v5687
    %v5796 = vmax.f32 %v5604, %v5689
    %v5797 = vmax.f32 %v5605, %v5691
    %v5798 = vmax.f32 %v5606, %v5693
    %v5799 = vmax.f32 %v5607, %v5695
    %v5800 = vmax.f32 %v5608, %v5697
    %v5801 = vmax.f32 %v5609, %v5699
    %v5802 = vmax.f32 %v5610, %v5701
    %v5803 = vmax.f32 %v5611, %v5703
    %v5804 = vmax.f32 %v5612, %v5705
    %v5805 = vmax.f32 %v5613, %v5707
    %v5806 = vmax.f32 %v5614, %v5709
    %v5807 = vmax.f32 %v5615, %v5711
    %v5808 = vmax.f32 %v5616, %v5713
    %v5809 = vmax.f32 %v5617, %v5715
    %v5810 = vmax.f32 %v5618, %v5717
    %v5811 = vmax.f32 %v5619, %v5719
    %v5812 = vmax.f32 %v5620, %v5721
    %v5813 = vmax.f32 %v5621, %v5723
    %v5814 = vmax.f32 %v5622, %v5725
    %v5815 = vmax.f32 %v5623, %v5727
    %v5816 = vmax.f32 %v5624, %v5729
    %v5817 = vmax.f32 %v5625, %v5731
    %v5818 = vmax.f32 %v5626, %v5733
    %v5819 = vmax.f32 %v5627, %v5735
    %v5820 = vmax.f32 %v5628, %v5737
    %v5821 = vmax.f32 %v5629, %v5739
    %v5822 = vmax.f32 %v5630, %v5741
    %v5823 = vmax.f32 %v5631, %v5743
    %v5824 = vmax.f32 %v5632, %v5745
    %v5825 = vmax.f32 %v5633, %v5747
    %v5826 = vmax.f32 %v5634, %v5749
    %v5827 = vmax.f32 %v5635, %v5751
    %v5828 = vmax.f32 %v5636, %v5753
    %v5829 = vmax.f32 %v5637, %v5755
    %v5830 = vmax.f32 %v5638, %v5757
    %v5831 = vmax.f32 %v5639, %v5759
    %v5832 = vmax.f32 %v5640, %v5761
    %v5833 = vmax.f32 %v5641, %v5763
    %v5834 = vmax.f32 %v5642, %v5765
    %v5835 = vmax.f32 %v5643, %v5767
    %v5836 = vmax.f32 %v5644, %v5769
    %v5837 = vmax.f32 %v5645, %v5771
    %v5838 = vmax.f32 %v5646, %v5773
    %v5839 = vmax.f32 %v5647, %v5775
    %5840 = vst.msk [vmem:[%s70 + $0x8] sm:$0xff] %vm52, %v5776
    %5841 = vst.msk [vmem:[%s70 + $0x10] sm:$0xff] %vm52, %v5777
    %5842 = vst.msk [vmem:[%s70 + $0x28] sm:$0xff] %vm52, %v5778
    %5843 = vst.msk [vmem:[%s70 + $0x30] sm:$0xff] %vm52, %v5779
    %5844 = vst.msk [vmem:[%s70 + $0x48] sm:$0xff] %vm52, %v5780
    %5845 = vst.msk [vmem:[%s70 + $0x50] sm:$0xff] %vm52, %v5781
    %5846 = vst.msk [vmem:[%s70 + $0x68] sm:$0xff] %vm52, %v5782
    %5847 = vst.msk [vmem:[%s70 + $0x70] sm:$0xff] %vm52, %v5783
    %5848 = vst.msk [vmem:[%s70 + $0x88] sm:$0xff] %vm52, %v5784
    %5849 = vst.msk [vmem:[%s70 + $0x90] sm:$0xff] %vm52, %v5785
    %5850 = vst.msk [vmem:[%s70 + $0xa8] sm:$0xff] %vm52, %v5786
    %5851 = vst.msk [vmem:[%s70 + $0xb0] sm:$0xff] %vm52, %v5787
    %5852 = vst.msk [vmem:[%s70 + $0xc8] sm:$0xff] %vm52, %v5788
    %5853 = vst.msk [vmem:[%s70 + $0xd0] sm:$0xff] %vm52, %v5789
    %5854 = vst.msk [vmem:[%s70 + $0xe8] sm:$0xff] %vm52, %v5790
    %5855 = vst.msk [vmem:[%s70 + $0xf0] sm:$0xff] %vm52, %v5791
    %5856 = vst.msk [vmem:[%s70 + $0x108] sm:$0xff] %vm52, %v5792
    %5857 = vst.msk [vmem:[%s70 + $0x110] sm:$0xff] %vm52, %v5793
    %5858 = vst.msk [vmem:[%s70 + $0x128] sm:$0xff] %vm52, %v5794
    %5859 = vst.msk [vmem:[%s70 + $0x130] sm:$0xff] %vm52, %v5795
    %5860 = vst.msk [vmem:[%s70 + $0x148] sm:$0xff] %vm52, %v5796
    %5861 = vst.msk [vmem:[%s70 + $0x150] sm:$0xff] %vm52, %v5797
    %5862 = vst.msk [vmem:[%s70 + $0x168] sm:$0xff] %vm52, %v5798
    %5863 = vst.msk [vmem:[%s70 + $0x170] sm:$0xff] %vm52, %v5799
    %5864 = vst.msk [vmem:[%s70 + $0x188] sm:$0xff] %vm52, %v5800
    %5865 = vst.msk [vmem:[%s70 + $0x190] sm:$0xff] %vm52, %v5801
    %5866 = vst.msk [vmem:[%s70 + $0x1a8] sm:$0xff] %vm52, %v5802
    %5867 = vst.msk [vmem:[%s70 + $0x1b0] sm:$0xff] %vm52, %v5803
    %5868 = vst.msk [vmem:[%s70 + $0x1c8] sm:$0xff] %vm52, %v5804
    %5869 = vst.msk [vmem:[%s70 + $0x1d0] sm:$0xff] %vm52, %v5805
    %5870 = vst.msk [vmem:[%s70 + $0x1e8] sm:$0xff] %vm52, %v5806
    %5871 = vst.msk [vmem:[%s70 + $0x1f0] sm:$0xff] %vm52, %v5807
    %5872 = vst.msk [vmem:[%s70 + $0x248] sm:$0xff] %vm52, %v5808
    %5873 = vst.msk [vmem:[%s70 + $0x250] sm:$0xff] %vm52, %v5809
    %5874 = vst.msk [vmem:[%s70 + $0x268] sm:$0xff] %vm52, %v5810
    %5875 = vst.msk [vmem:[%s70 + $0x270] sm:$0xff] %vm52, %v5811
    %5876 = vst.msk [vmem:[%s70 + $0x288] sm:$0xff] %vm52, %v5812
    %5877 = vst.msk [vmem:[%s70 + $0x290] sm:$0xff] %vm52, %v5813
    %5878 = vst.msk [vmem:[%s70 + $0x2a8] sm:$0xff] %vm52, %v5814
    %5879 = vst.msk [vmem:[%s70 + $0x2b0] sm:$0xff] %vm52, %v5815
    %5880 = vst.msk [vmem:[%s70 + $0x2c8] sm:$0xff] %vm52, %v5816
    %5881 = vst.msk [vmem:[%s70 + $0x2d0] sm:$0xff] %vm52, %v5817
    %5882 = vst.msk [vmem:[%s70 + $0x2e8] sm:$0xff] %vm52, %v5818
    %5883 = vst.msk [vmem:[%s70 + $0x2f0] sm:$0xff] %vm52, %v5819
    %5884 = vst.msk [vmem:[%s70 + $0x308] sm:$0xff] %vm52, %v5820
    %5885 = vst.msk [vmem:[%s70 + $0x310] sm:$0xff] %vm52, %v5821
    %5886 = vst.msk [vmem:[%s70 + $0x328] sm:$0xff] %vm52, %v5822
    %5887 = vst.msk [vmem:[%s70 + $0x330] sm:$0xff] %vm52, %v5823
    %5888 = vst.msk [vmem:[%s70 + $0x348] sm:$0xff] %vm52, %v5824
    %5889 = vst.msk [vmem:[%s70 + $0x350] sm:$0xff] %vm52, %v5825
    %5890 = vst.msk [vmem:[%s70 + $0x368] sm:$0xff] %vm52, %v5826
    %5891 = vst.msk [vmem:[%s70 + $0x370] sm:$0xff] %vm52, %v5827
    %5892 = vst.msk [vmem:[%s70 + $0x388] sm:$0xff] %vm52, %v5828
    %5893 = vst.msk [vmem:[%s70 + $0x390] sm:$0xff] %vm52, %v5829
    %5894 = vst.msk [vmem:[%s70 + $0x3a8] sm:$0xff] %vm52, %v5830
    %5895 = vst.msk [vmem:[%s70 + $0x3b0] sm:$0xff] %vm52, %v5831
    %5896 = vst.msk [vmem:[%s70 + $0x3c8] sm:$0xff] %vm52, %v5832
    %5897 = vst.msk [vmem:[%s70 + $0x3d0] sm:$0xff] %vm52, %v5833
    %5898 = vst.msk [vmem:[%s70 + $0x3e8] sm:$0xff] %vm52, %v5834
    %5899 = vst.msk [vmem:[%s70 + $0x3f0] sm:$0xff] %vm52, %v5835
    %5900 = vst.msk [vmem:[%s70 + $0x408] sm:$0xff] %vm52, %v5836
    %5901 = vst.msk [vmem:[%s70 + $0x410] sm:$0xff] %vm52, %v5837
    %5902 = vst.msk [vmem:[%s70 + $0x428] sm:$0xff] %vm52, %v5838
    %5903 = vst.msk [vmem:[%s70 + $0x430] sm:$0xff] %vm52, %v5839
    %v5904 = vld [vmem:[#allocation3 + $0x7] sm:$0xff]
    %v5905 = vld [vmem:[#allocation3 + $0xf] sm:$0xff]
    %v5906 = vld [vmem:[#allocation3 + $0x27] sm:$0xff]
    %v5907 = vld [vmem:[#allocation3 + $0x2f] sm:$0xff]
    %v5908 = vld [vmem:[#allocation3 + $0x47] sm:$0xff]
    %v5909 = vld [vmem:[#allocation3 + $0x4f] sm:$0xff]
    %v5910 = vld [vmem:[#allocation3 + $0x67] sm:$0xff]
    %v5911 = vld [vmem:[#allocation3 + $0x6f] sm:$0xff]
    %v5912 = vld [vmem:[#allocation3 + $0x87] sm:$0xff]
    %v5913 = vld [vmem:[#allocation3 + $0x8f] sm:$0xff]
    %v5914 = vld [vmem:[#allocation3 + $0xa7] sm:$0xff]
    %v5915 = vld [vmem:[#allocation3 + $0xaf] sm:$0xff]
    %v5916 = vld [vmem:[#allocation3 + $0xc7] sm:$0xff]
    %v5917 = vld [vmem:[#allocation3 + $0xcf] sm:$0xff]
    %v5918 = vld [vmem:[#allocation3 + $0xe7] sm:$0xff]
    %v5919 = vld [vmem:[#allocation3 + $0xef] sm:$0xff]
    %v5920 = vld [vmem:[#allocation3 + $0x107] sm:$0xff]
    %v5921 = vld [vmem:[#allocation3 + $0x10f] sm:$0xff]
    %v5922 = vld [vmem:[#allocation3 + $0x127] sm:$0xff]
    %v5923 = vld [vmem:[#allocation3 + $0x12f] sm:$0xff]
    %v5924 = vld [vmem:[#allocation3 + $0x147] sm:$0xff]
    %v5925 = vld [vmem:[#allocation3 + $0x14f] sm:$0xff]
    %v5926 = vld [vmem:[#allocation3 + $0x167] sm:$0xff]
    %v5927 = vld [vmem:[#allocation3 + $0x16f] sm:$0xff]
    %v5928 = vld [vmem:[#allocation3 + $0x187] sm:$0xff]
    %v5929 = vld [vmem:[#allocation3 + $0x18f] sm:$0xff]
    %v5930 = vld [vmem:[#allocation3 + $0x1a7] sm:$0xff]
    %v5931 = vld [vmem:[#allocation3 + $0x1af] sm:$0xff]
    %v5932 = vld [vmem:[#allocation3 + $0x1c7] sm:$0xff]
    %v5933 = vld [vmem:[#allocation3 + $0x1cf] sm:$0xff]
    %v5934 = vld [vmem:[#allocation3 + $0x1e7] sm:$0xff]
    %v5935 = vld [vmem:[#allocation3 + $0x1ef] sm:$0xff]
    %v5936 = vld [vmem:[#allocation3 + $0x247] sm:$0xff]
    %v5937 = vld [vmem:[#allocation3 + $0x24f] sm:$0xff]
    %v5938 = vld [vmem:[#allocation3 + $0x267] sm:$0xff]
    %v5939 = vld [vmem:[#allocation3 + $0x26f] sm:$0xff]
    %v5940 = vld [vmem:[#allocation3 + $0x287] sm:$0xff]
    %v5941 = vld [vmem:[#allocation3 + $0x28f] sm:$0xff]
    %v5942 = vld [vmem:[#allocation3 + $0x2a7] sm:$0xff]
    %v5943 = vld [vmem:[#allocation3 + $0x2af] sm:$0xff]
    %v5944 = vld [vmem:[#allocation3 + $0x2c7] sm:$0xff]
    %v5945 = vld [vmem:[#allocation3 + $0x2cf] sm:$0xff]
    %v5946 = vld [vmem:[#allocation3 + $0x2e7] sm:$0xff]
    %v5947 = vld [vmem:[#allocation3 + $0x2ef] sm:$0xff]
    %v5948 = vld [vmem:[#allocation3 + $0x307] sm:$0xff]
    %v5949 = vld [vmem:[#allocation3 + $0x30f] sm:$0xff]
    %v5950 = vld [vmem:[#allocation3 + $0x327] sm:$0xff]
    %v5951 = vld [vmem:[#allocation3 + $0x32f] sm:$0xff]
    %v5952 = vld [vmem:[#allocation3 + $0x347] sm:$0xff]
    %v5953 = vld [vmem:[#allocation3 + $0x34f] sm:$0xff]
    %v5954 = vld [vmem:[#allocation3 + $0x367] sm:$0xff]
    %v5955 = vld [vmem:[#allocation3 + $0x36f] sm:$0xff]
    %v5956 = vld [vmem:[#allocation3 + $0x387] sm:$0xff]
    %v5957 = vld [vmem:[#allocation3 + $0x38f] sm:$0xff]
    %v5958 = vld [vmem:[#allocation3 + $0x3a7] sm:$0xff]
    %v5959 = vld [vmem:[#allocation3 + $0x3af] sm:$0xff]
    %v5960 = vld [vmem:[#allocation3 + $0x3c7] sm:$0xff]
    %v5961 = vld [vmem:[#allocation3 + $0x3cf] sm:$0xff]
    %v5962 = vld [vmem:[#allocation3 + $0x3e7] sm:$0xff]
    %v5963 = vld [vmem:[#allocation3 + $0x3ef] sm:$0xff]
    %v5964 = vld [vmem:[#allocation3 + $0x407] sm:$0xff]
    %v5965 = vld [vmem:[#allocation3 + $0x40f] sm:$0xff]
    %v5966 = vld [vmem:[#allocation3 + $0x427] sm:$0xff]
    %v5967 = vld [vmem:[#allocation3 + $0x42f] sm:$0xff]
    %v5968 = vpack.c.bf16 %v5905, %v5904
    %v5969 = vpack.c.bf16 %v5907, %v5906
    %v5970 = vpack.c.bf16 %v5909, %v5908
    %v5971 = vpack.c.bf16 %v5911, %v5910
    %v5972 = vpack.c.bf16 %v5913, %v5912
    %v5973 = vpack.c.bf16 %v5915, %v5914
    %v5974 = vpack.c.bf16 %v5917, %v5916
    %v5975 = vpack.c.bf16 %v5919, %v5918
    %v5976 = vpack.c.bf16 %v5921, %v5920
    %v5977 = vpack.c.bf16 %v5923, %v5922
    %v5978 = vpack.c.bf16 %v5925, %v5924
    %v5979 = vpack.c.bf16 %v5927, %v5926
    %v5980 = vpack.c.bf16 %v5929, %v5928
    %v5981 = vpack.c.bf16 %v5931, %v5930
    %v5982 = vpack.c.bf16 %v5933, %v5932
    %v5983 = vpack.c.bf16 %v5935, %v5934
    %v5984 = vpack.c.bf16 %v5937, %v5936
    %v5985 = vpack.c.bf16 %v5939, %v5938
    %v5986 = vpack.c.bf16 %v5941, %v5940
    %v5987 = vpack.c.bf16 %v5943, %v5942
    %v5988 = vpack.c.bf16 %v5945, %v5944
    %v5989 = vpack.c.bf16 %v5947, %v5946
    %v5990 = vpack.c.bf16 %v5949, %v5948
    %v5991 = vpack.c.bf16 %v5951, %v5950
    %v5992 = vpack.c.bf16 %v5953, %v5952
    %v5993 = vpack.c.bf16 %v5955, %v5954
    %v5994 = vpack.c.bf16 %v5957, %v5956
    %v5995 = vpack.c.bf16 %v5959, %v5958
    %v5996 = vpack.c.bf16 %v5961, %v5960
    %v5997 = vpack.c.bf16 %v5963, %v5962
    %v5998 = vpack.c.bf16 %v5965, %v5964
    %v5999 = vpack.c.bf16 %v5967, %v5966
    %v6000 = vld [vmem:[#allocation3 + $0x8] sm:$0xff]
    %v6001 = vld [vmem:[#allocation3 + $0x10] sm:$0xff]
    %v6002 = vld [vmem:[#allocation3 + $0x28] sm:$0xff]
    %v6003 = vld [vmem:[#allocation3 + $0x30] sm:$0xff]
    %v6004 = vld [vmem:[#allocation3 + $0x48] sm:$0xff]
    %v6005 = vld [vmem:[#allocation3 + $0x50] sm:$0xff]
    %v6006 = vld [vmem:[#allocation3 + $0x68] sm:$0xff]
    %v6007 = vld [vmem:[#allocation3 + $0x70] sm:$0xff]
    %v6008 = vld [vmem:[#allocation3 + $0x88] sm:$0xff]
    %v6009 = vld [vmem:[#allocation3 + $0x90] sm:$0xff]
    %v6010 = vld [vmem:[#allocation3 + $0xa8] sm:$0xff]
    %v6011 = vld [vmem:[#allocation3 + $0xb0] sm:$0xff]
    %v6012 = vld [vmem:[#allocation3 + $0xc8] sm:$0xff]
    %v6013 = vld [vmem:[#allocation3 + $0xd0] sm:$0xff]
    %v6014 = vld [vmem:[#allocation3 + $0xe8] sm:$0xff]
    %v6015 = vld [vmem:[#allocation3 + $0xf0] sm:$0xff]
    %v6016 = vld [vmem:[#allocation3 + $0x108] sm:$0xff]
    %v6017 = vld [vmem:[#allocation3 + $0x110] sm:$0xff]
    %v6018 = vld [vmem:[#allocation3 + $0x128] sm:$0xff]
    %v6019 = vld [vmem:[#allocation3 + $0x130] sm:$0xff]
    %v6020 = vld [vmem:[#allocation3 + $0x148] sm:$0xff]
    %v6021 = vld [vmem:[#allocation3 + $0x150] sm:$0xff]
    %v6022 = vld [vmem:[#allocation3 + $0x168] sm:$0xff]
    %v6023 = vld [vmem:[#allocation3 + $0x170] sm:$0xff]
    %v6024 = vld [vmem:[#allocation3 + $0x188] sm:$0xff]
    %v6025 = vld [vmem:[#allocation3 + $0x190] sm:$0xff]
    %v6026 = vld [vmem:[#allocation3 + $0x1a8] sm:$0xff]
    %v6027 = vld [vmem:[#allocation3 + $0x1b0] sm:$0xff]
    %v6028 = vld [vmem:[#allocation3 + $0x1c8] sm:$0xff]
    %v6029 = vld [vmem:[#allocation3 + $0x1d0] sm:$0xff]
    %v6030 = vld [vmem:[#allocation3 + $0x1e8] sm:$0xff]
    %v6031 = vld [vmem:[#allocation3 + $0x1f0] sm:$0xff]
    %v6032 = vld [vmem:[#allocation3 + $0x248] sm:$0xff]
    %v6033 = vld [vmem:[#allocation3 + $0x250] sm:$0xff]
    %v6034 = vld [vmem:[#allocation3 + $0x268] sm:$0xff]
    %v6035 = vld [vmem:[#allocation3 + $0x270] sm:$0xff]
    %v6036 = vld [vmem:[#allocation3 + $0x288] sm:$0xff]
    %v6037 = vld [vmem:[#allocation3 + $0x290] sm:$0xff]
    %v6038 = vld [vmem:[#allocation3 + $0x2a8] sm:$0xff]
    %v6039 = vld [vmem:[#allocation3 + $0x2b0] sm:$0xff]
    %v6040 = vld [vmem:[#allocation3 + $0x2c8] sm:$0xff]
    %v6041 = vld [vmem:[#allocation3 + $0x2d0] sm:$0xff]
    %v6042 = vld [vmem:[#allocation3 + $0x2e8] sm:$0xff]
    %v6043 = vld [vmem:[#allocation3 + $0x2f0] sm:$0xff]
    %v6044 = vld [vmem:[#allocation3 + $0x308] sm:$0xff]
    %v6045 = vld [vmem:[#allocation3 + $0x310] sm:$0xff]
    %v6046 = vld [vmem:[#allocation3 + $0x328] sm:$0xff]
    %v6047 = vld [vmem:[#allocation3 + $0x330] sm:$0xff]
    %v6048 = vld [vmem:[#allocation3 + $0x348] sm:$0xff]
    %v6049 = vld [vmem:[#allocation3 + $0x350] sm:$0xff]
    %v6050 = vld [vmem:[#allocation3 + $0x368] sm:$0xff]
    %v6051 = vld [vmem:[#allocation3 + $0x370] sm:$0xff]
    %v6052 = vld [vmem:[#allocation3 + $0x388] sm:$0xff]
    %v6053 = vld [vmem:[#allocation3 + $0x390] sm:$0xff]
    %v6054 = vld [vmem:[#allocation3 + $0x3a8] sm:$0xff]
    %v6055 = vld [vmem:[#allocation3 + $0x3b0] sm:$0xff]
    %v6056 = vld [vmem:[#allocation3 + $0x3c8] sm:$0xff]
    %v6057 = vld [vmem:[#allocation3 + $0x3d0] sm:$0xff]
    %v6058 = vld [vmem:[#allocation3 + $0x3e8] sm:$0xff]
    %v6059 = vld [vmem:[#allocation3 + $0x3f0] sm:$0xff]
    %v6060 = vld [vmem:[#allocation3 + $0x408] sm:$0xff]
    %v6061 = vld [vmem:[#allocation3 + $0x410] sm:$0xff]
    %v6062 = vld [vmem:[#allocation3 + $0x428] sm:$0xff]
    %v6063 = vld [vmem:[#allocation3 + $0x430] sm:$0xff]
    %v6064 = vpack.c.bf16 %v6001, %v6000
    %v6065 = vpack.c.bf16 %v6003, %v6002
    %v6066 = vpack.c.bf16 %v6005, %v6004
    %v6067 = vpack.c.bf16 %v6007, %v6006
    %v6068 = vpack.c.bf16 %v6009, %v6008
    %v6069 = vpack.c.bf16 %v6011, %v6010
    %v6070 = vpack.c.bf16 %v6013, %v6012
    %v6071 = vpack.c.bf16 %v6015, %v6014
    %v6072 = vpack.c.bf16 %v6017, %v6016
    %v6073 = vpack.c.bf16 %v6019, %v6018
    %v6074 = vpack.c.bf16 %v6021, %v6020
    %v6075 = vpack.c.bf16 %v6023, %v6022
    %v6076 = vpack.c.bf16 %v6025, %v6024
    %v6077 = vpack.c.bf16 %v6027, %v6026
    %v6078 = vpack.c.bf16 %v6029, %v6028
    %v6079 = vpack.c.bf16 %v6031, %v6030
    %v6080 = vpack.c.bf16 %v6033, %v6032
    %v6081 = vpack.c.bf16 %v6035, %v6034
    %v6082 = vpack.c.bf16 %v6037, %v6036
    %v6083 = vpack.c.bf16 %v6039, %v6038
    %v6084 = vpack.c.bf16 %v6041, %v6040
    %v6085 = vpack.c.bf16 %v6043, %v6042
    %v6086 = vpack.c.bf16 %v6045, %v6044
    %v6087 = vpack.c.bf16 %v6047, %v6046
    %v6088 = vpack.c.bf16 %v6049, %v6048
    %v6089 = vpack.c.bf16 %v6051, %v6050
    %v6090 = vpack.c.bf16 %v6053, %v6052
    %v6091 = vpack.c.bf16 %v6055, %v6054
    %v6092 = vpack.c.bf16 %v6057, %v6056
    %v6093 = vpack.c.bf16 %v6059, %v6058
    %v6094 = vpack.c.bf16 %v6061, %v6060
    %v6095 = vpack.c.bf16 %v6063, %v6062
    %v6096 = vld [vmem:[#allocation3 + $0x9] sm:$0xff]
    %v6097 = vld [vmem:[#allocation3 + $0x11] sm:$0xff]
    %v6098 = vld [vmem:[#allocation3 + $0x29] sm:$0xff]
    %v6099 = vld [vmem:[#allocation3 + $0x31] sm:$0xff]
    %v6100 = vld [vmem:[#allocation3 + $0x49] sm:$0xff]
    %v6101 = vld [vmem:[#allocation3 + $0x51] sm:$0xff]
    %v6102 = vld [vmem:[#allocation3 + $0x69] sm:$0xff]
    %v6103 = vld [vmem:[#allocation3 + $0x71] sm:$0xff]
    %v6104 = vld [vmem:[#allocation3 + $0x89] sm:$0xff]
    %v6105 = vld [vmem:[#allocation3 + $0x91] sm:$0xff]
    %v6106 = vld [vmem:[#allocation3 + $0xa9] sm:$0xff]
    %v6107 = vld [vmem:[#allocation3 + $0xb1] sm:$0xff]
    %v6108 = vld [vmem:[#allocation3 + $0xc9] sm:$0xff]
    %v6109 = vld [vmem:[#allocation3 + $0xd1] sm:$0xff]
    %v6110 = vld [vmem:[#allocation3 + $0xe9] sm:$0xff]
    %v6111 = vld [vmem:[#allocation3 + $0xf1] sm:$0xff]
    %v6112 = vld [vmem:[#allocation3 + $0x109] sm:$0xff]
    %v6113 = vld [vmem:[#allocation3 + $0x111] sm:$0xff]
    %v6114 = vld [vmem:[#allocation3 + $0x129] sm:$0xff]
    %v6115 = vld [vmem:[#allocation3 + $0x131] sm:$0xff]
    %v6116 = vld [vmem:[#allocation3 + $0x149] sm:$0xff]
    %v6117 = vld [vmem:[#allocation3 + $0x151] sm:$0xff]
    %v6118 = vld [vmem:[#allocation3 + $0x169] sm:$0xff]
    %v6119 = vld [vmem:[#allocation3 + $0x171] sm:$0xff]
    %v6120 = vld [vmem:[#allocation3 + $0x189] sm:$0xff]
    %v6121 = vld [vmem:[#allocation3 + $0x191] sm:$0xff]
    %v6122 = vld [vmem:[#allocation3 + $0x1a9] sm:$0xff]
    %v6123 = vld [vmem:[#allocation3 + $0x1b1] sm:$0xff]
    %v6124 = vld [vmem:[#allocation3 + $0x1c9] sm:$0xff]
    %v6125 = vld [vmem:[#allocation3 + $0x1d1] sm:$0xff]
    %v6126 = vld [vmem:[#allocation3 + $0x1e9] sm:$0xff]
    %v6127 = vld [vmem:[#allocation3 + $0x1f1] sm:$0xff]
    %v6128 = vld [vmem:[#allocation3 + $0x249] sm:$0xff]
    %v6129 = vld [vmem:[#allocation3 + $0x251] sm:$0xff]
    %v6130 = vld [vmem:[#allocation3 + $0x269] sm:$0xff]
    %v6131 = vld [vmem:[#allocation3 + $0x271] sm:$0xff]
    %v6132 = vld [vmem:[#allocation3 + $0x289] sm:$0xff]
    %v6133 = vld [vmem:[#allocation3 + $0x291] sm:$0xff]
    %v6134 = vld [vmem:[#allocation3 + $0x2a9] sm:$0xff]
    %v6135 = vld [vmem:[#allocation3 + $0x2b1] sm:$0xff]
    %v6136 = vld [vmem:[#allocation3 + $0x2c9] sm:$0xff]
    %v6137 = vld [vmem:[#allocation3 + $0x2d1] sm:$0xff]
    %v6138 = vld [vmem:[#allocation3 + $0x2e9] sm:$0xff]
    %v6139 = vld [vmem:[#allocation3 + $0x2f1] sm:$0xff]
    %v6140 = vld [vmem:[#allocation3 + $0x309] sm:$0xff]
    %v6141 = vld [vmem:[#allocation3 + $0x311] sm:$0xff]
    %v6142 = vld [vmem:[#allocation3 + $0x329] sm:$0xff]
    %v6143 = vld [vmem:[#allocation3 + $0x331] sm:$0xff]
    %v6144 = vld [vmem:[#allocation3 + $0x349] sm:$0xff]
    %v6145 = vld [vmem:[#allocation3 + $0x351] sm:$0xff]
    %v6146 = vld [vmem:[#allocation3 + $0x369] sm:$0xff]
    %v6147 = vld [vmem:[#allocation3 + $0x371] sm:$0xff]
    %v6148 = vld [vmem:[#allocation3 + $0x389] sm:$0xff]
    %v6149 = vld [vmem:[#allocation3 + $0x391] sm:$0xff]
    %v6150 = vld [vmem:[#allocation3 + $0x3a9] sm:$0xff]
    %v6151 = vld [vmem:[#allocation3 + $0x3b1] sm:$0xff]
    %v6152 = vld [vmem:[#allocation3 + $0x3c9] sm:$0xff]
    %v6153 = vld [vmem:[#allocation3 + $0x3d1] sm:$0xff]
    %v6154 = vld [vmem:[#allocation3 + $0x3e9] sm:$0xff]
    %v6155 = vld [vmem:[#allocation3 + $0x3f1] sm:$0xff]
    %v6156 = vld [vmem:[#allocation3 + $0x409] sm:$0xff]
    %v6157 = vld [vmem:[#allocation3 + $0x411] sm:$0xff]
    %v6158 = vld [vmem:[#allocation3 + $0x429] sm:$0xff]
    %v6159 = vld [vmem:[#allocation3 + $0x431] sm:$0xff]
    %v6160 = vpack.c.bf16 %v6097, %v6096
    %v6161 = vpack.c.bf16 %v6099, %v6098
    %v6162 = vpack.c.bf16 %v6101, %v6100
    %v6163 = vpack.c.bf16 %v6103, %v6102
    %v6164 = vpack.c.bf16 %v6105, %v6104
    %v6165 = vpack.c.bf16 %v6107, %v6106
    %v6166 = vpack.c.bf16 %v6109, %v6108
    %v6167 = vpack.c.bf16 %v6111, %v6110
    %v6168 = vpack.c.bf16 %v6113, %v6112
    %v6169 = vpack.c.bf16 %v6115, %v6114
    %v6170 = vpack.c.bf16 %v6117, %v6116
    %v6171 = vpack.c.bf16 %v6119, %v6118
    %v6172 = vpack.c.bf16 %v6121, %v6120
    %v6173 = vpack.c.bf16 %v6123, %v6122
    %v6174 = vpack.c.bf16 %v6125, %v6124
    %v6175 = vpack.c.bf16 %v6127, %v6126
    %v6176 = vpack.c.bf16 %v6129, %v6128
    %v6177 = vpack.c.bf16 %v6131, %v6130
    %v6178 = vpack.c.bf16 %v6133, %v6132
    %v6179 = vpack.c.bf16 %v6135, %v6134
    %v6180 = vpack.c.bf16 %v6137, %v6136
    %v6181 = vpack.c.bf16 %v6139, %v6138
    %v6182 = vpack.c.bf16 %v6141, %v6140
    %v6183 = vpack.c.bf16 %v6143, %v6142
    %v6184 = vpack.c.bf16 %v6145, %v6144
    %v6185 = vpack.c.bf16 %v6147, %v6146
    %v6186 = vpack.c.bf16 %v6149, %v6148
    %v6187 = vpack.c.bf16 %v6151, %v6150
    %v6188 = vpack.c.bf16 %v6153, %v6152
    %v6189 = vpack.c.bf16 %v6155, %v6154
    %v6190 = vpack.c.bf16 %v6157, %v6156
    %v6191 = vpack.c.bf16 %v6159, %v6158
    %v6192 = vld [vmem:[%s70 + $0x7] sm:$0xff]
    %v6193 = vld [vmem:[%s70 + $0xf] sm:$0xff]
    %v6194 = vld [vmem:[%s70 + $0x27] sm:$0xff]
    %v6195 = vld [vmem:[%s70 + $0x2f] sm:$0xff]
    %v6196 = vld [vmem:[%s70 + $0x47] sm:$0xff]
    %v6197 = vld [vmem:[%s70 + $0x4f] sm:$0xff]
    %v6198 = vld [vmem:[%s70 + $0x67] sm:$0xff]
    %v6199 = vld [vmem:[%s70 + $0x6f] sm:$0xff]
    %v6200 = vld [vmem:[%s70 + $0x87] sm:$0xff]
    %v6201 = vld [vmem:[%s70 + $0x8f] sm:$0xff]
    %v6202 = vld [vmem:[%s70 + $0xa7] sm:$0xff]
    %v6203 = vld [vmem:[%s70 + $0xaf] sm:$0xff]
    %v6204 = vld [vmem:[%s70 + $0xc7] sm:$0xff]
    %v6205 = vld [vmem:[%s70 + $0xcf] sm:$0xff]
    %v6206 = vld [vmem:[%s70 + $0xe7] sm:$0xff]
    %v6207 = vld [vmem:[%s70 + $0xef] sm:$0xff]
    %v6208 = vld [vmem:[%s70 + $0x107] sm:$0xff]
    %v6209 = vld [vmem:[%s70 + $0x10f] sm:$0xff]
    %v6210 = vld [vmem:[%s70 + $0x127] sm:$0xff]
    %v6211 = vld [vmem:[%s70 + $0x12f] sm:$0xff]
    %v6212 = vld [vmem:[%s70 + $0x147] sm:$0xff]
    %v6213 = vld [vmem:[%s70 + $0x14f] sm:$0xff]
    %v6214 = vld [vmem:[%s70 + $0x167] sm:$0xff]
    %v6215 = vld [vmem:[%s70 + $0x16f] sm:$0xff]
    %v6216 = vld [vmem:[%s70 + $0x187] sm:$0xff]
    %v6217 = vld [vmem:[%s70 + $0x18f] sm:$0xff]
    %v6218 = vld [vmem:[%s70 + $0x1a7] sm:$0xff]
    %v6219 = vld [vmem:[%s70 + $0x1af] sm:$0xff]
    %v6220 = vld [vmem:[%s70 + $0x1c7] sm:$0xff]
    %v6221 = vld [vmem:[%s70 + $0x1cf] sm:$0xff]
    %v6222 = vld [vmem:[%s70 + $0x1e7] sm:$0xff]
    %v6223 = vld [vmem:[%s70 + $0x1ef] sm:$0xff]
    %v6224 = vld [vmem:[%s70 + $0x247] sm:$0xff]
    %v6225 = vld [vmem:[%s70 + $0x24f] sm:$0xff]
    %v6226 = vld [vmem:[%s70 + $0x267] sm:$0xff]
    %v6227 = vld [vmem:[%s70 + $0x26f] sm:$0xff]
    %v6228 = vld [vmem:[%s70 + $0x287] sm:$0xff]
    %v6229 = vld [vmem:[%s70 + $0x28f] sm:$0xff]
    %v6230 = vld [vmem:[%s70 + $0x2a7] sm:$0xff]
    %v6231 = vld [vmem:[%s70 + $0x2af] sm:$0xff]
    %v6232 = vld [vmem:[%s70 + $0x2c7] sm:$0xff]
    %v6233 = vld [vmem:[%s70 + $0x2cf] sm:$0xff]
    %v6234 = vld [vmem:[%s70 + $0x2e7] sm:$0xff]
    %v6235 = vld [vmem:[%s70 + $0x2ef] sm:$0xff]
    %v6236 = vld [vmem:[%s70 + $0x307] sm:$0xff]
    %v6237 = vld [vmem:[%s70 + $0x30f] sm:$0xff]
    %v6238 = vld [vmem:[%s70 + $0x327] sm:$0xff]
    %v6239 = vld [vmem:[%s70 + $0x32f] sm:$0xff]
    %v6240 = vld [vmem:[%s70 + $0x347] sm:$0xff]
    %v6241 = vld [vmem:[%s70 + $0x34f] sm:$0xff]
    %v6242 = vld [vmem:[%s70 + $0x367] sm:$0xff]
    %v6243 = vld [vmem:[%s70 + $0x36f] sm:$0xff]
    %v6244 = vld [vmem:[%s70 + $0x387] sm:$0xff]
    %v6245 = vld [vmem:[%s70 + $0x38f] sm:$0xff]
    %v6246 = vld [vmem:[%s70 + $0x3a7] sm:$0xff]
    %v6247 = vld [vmem:[%s70 + $0x3af] sm:$0xff]
    %v6248 = vld [vmem:[%s70 + $0x3c7] sm:$0xff]
    %v6249 = vld [vmem:[%s70 + $0x3cf] sm:$0xff]
    %v6250 = vld [vmem:[%s70 + $0x3e7] sm:$0xff]
    %v6251 = vld [vmem:[%s70 + $0x3ef] sm:$0xff]
    %v6252 = vld [vmem:[%s70 + $0x407] sm:$0xff]
    %v6253 = vld [vmem:[%s70 + $0x40f] sm:$0xff]
    %v6254 = vld [vmem:[%s70 + $0x427] sm:$0xff]
    %v6255 = vld [vmem:[%s70 + $0x42f] sm:$0xff]
    %v6256 = vpack.c.bf16 %v6193, %v6192
    %v6257 = vpack.c.bf16 %v6195, %v6194
    %v6258 = vpack.c.bf16 %v6197, %v6196
    %v6259 = vpack.c.bf16 %v6199, %v6198
    %v6260 = vpack.c.bf16 %v6201, %v6200
    %v6261 = vpack.c.bf16 %v6203, %v6202
    %v6262 = vpack.c.bf16 %v6205, %v6204
    %v6263 = vpack.c.bf16 %v6207, %v6206
    %v6264 = vpack.c.bf16 %v6209, %v6208
    %v6265 = vpack.c.bf16 %v6211, %v6210
    %v6266 = vpack.c.bf16 %v6213, %v6212
    %v6267 = vpack.c.bf16 %v6215, %v6214
    %v6268 = vpack.c.bf16 %v6217, %v6216
    %v6269 = vpack.c.bf16 %v6219, %v6218
    %v6270 = vpack.c.bf16 %v6221, %v6220
    %v6271 = vpack.c.bf16 %v6223, %v6222
    %v6272 = vpack.c.bf16 %v6225, %v6224
    %v6273 = vpack.c.bf16 %v6227, %v6226
    %v6274 = vpack.c.bf16 %v6229, %v6228
    %v6275 = vpack.c.bf16 %v6231, %v6230
    %v6276 = vpack.c.bf16 %v6233, %v6232
    %v6277 = vpack.c.bf16 %v6235, %v6234
    %v6278 = vpack.c.bf16 %v6237, %v6236
    %v6279 = vpack.c.bf16 %v6239, %v6238
    %v6280 = vpack.c.bf16 %v6241, %v6240
    %v6281 = vpack.c.bf16 %v6243, %v6242
    %v6282 = vpack.c.bf16 %v6245, %v6244
    %v6283 = vpack.c.bf16 %v6247, %v6246
    %v6284 = vpack.c.bf16 %v6249, %v6248
    %v6285 = vpack.c.bf16 %v6251, %v6250
    %v6286 = vpack.c.bf16 %v6253, %v6252
    %v6287 = vpack.c.bf16 %v6255, %v6254
    %v6288 = vld [vmem:[%s70 + $0x8] sm:$0xff]
    %v6289 = vld [vmem:[%s70 + $0x10] sm:$0xff]
    %v6290 = vld [vmem:[%s70 + $0x28] sm:$0xff]
    %v6291 = vld [vmem:[%s70 + $0x30] sm:$0xff]
    %v6292 = vld [vmem:[%s70 + $0x48] sm:$0xff]
    %v6293 = vld [vmem:[%s70 + $0x50] sm:$0xff]
    %v6294 = vld [vmem:[%s70 + $0x68] sm:$0xff]
    %v6295 = vld [vmem:[%s70 + $0x70] sm:$0xff]
    %v6296 = vld [vmem:[%s70 + $0x88] sm:$0xff]
    %v6297 = vld [vmem:[%s70 + $0x90] sm:$0xff]
    %v6298 = vld [vmem:[%s70 + $0xa8] sm:$0xff]
    %v6299 = vld [vmem:[%s70 + $0xb0] sm:$0xff]
    %v6300 = vld [vmem:[%s70 + $0xc8] sm:$0xff]
    %v6301 = vld [vmem:[%s70 + $0xd0] sm:$0xff]
    %v6302 = vld [vmem:[%s70 + $0xe8] sm:$0xff]
    %v6303 = vld [vmem:[%s70 + $0xf0] sm:$0xff]
    %v6304 = vld [vmem:[%s70 + $0x108] sm:$0xff]
    %v6305 = vld [vmem:[%s70 + $0x110] sm:$0xff]
    %v6306 = vld [vmem:[%s70 + $0x128] sm:$0xff]
    %v6307 = vld [vmem:[%s70 + $0x130] sm:$0xff]
    %v6308 = vld [vmem:[%s70 + $0x148] sm:$0xff]
    %v6309 = vld [vmem:[%s70 + $0x150] sm:$0xff]
    %v6310 = vld [vmem:[%s70 + $0x168] sm:$0xff]
    %v6311 = vld [vmem:[%s70 + $0x170] sm:$0xff]
    %v6312 = vld [vmem:[%s70 + $0x188] sm:$0xff]
    %v6313 = vld [vmem:[%s70 + $0x190] sm:$0xff]
    %v6314 = vld [vmem:[%s70 + $0x1a8] sm:$0xff]
    %v6315 = vld [vmem:[%s70 + $0x1b0] sm:$0xff]
    %v6316 = vld [vmem:[%s70 + $0x1c8] sm:$0xff]
    %v6317 = vld [vmem:[%s70 + $0x1d0] sm:$0xff]
    %v6318 = vld [vmem:[%s70 + $0x1e8] sm:$0xff]
    %v6319 = vld [vmem:[%s70 + $0x1f0] sm:$0xff]
    %v6320 = vld [vmem:[%s70 + $0x248] sm:$0xff]
    %v6321 = vld [vmem:[%s70 + $0x250] sm:$0xff]
    %v6322 = vld [vmem:[%s70 + $0x268] sm:$0xff]
    %v6323 = vld [vmem:[%s70 + $0x270] sm:$0xff]
    %v6324 = vld [vmem:[%s70 + $0x288] sm:$0xff]
    %v6325 = vld [vmem:[%s70 + $0x290] sm:$0xff]
    %v6326 = vld [vmem:[%s70 + $0x2a8] sm:$0xff]
    %v6327 = vld [vmem:[%s70 + $0x2b0] sm:$0xff]
    %v6328 = vld [vmem:[%s70 + $0x2c8] sm:$0xff]
    %v6329 = vld [vmem:[%s70 + $0x2d0] sm:$0xff]
    %v6330 = vld [vmem:[%s70 + $0x2e8] sm:$0xff]
    %v6331 = vld [vmem:[%s70 + $0x2f0] sm:$0xff]
    %v6332 = vld [vmem:[%s70 + $0x308] sm:$0xff]
    %v6333 = vld [vmem:[%s70 + $0x310] sm:$0xff]
    %v6334 = vld [vmem:[%s70 + $0x328] sm:$0xff]
    %v6335 = vld [vmem:[%s70 + $0x330] sm:$0xff]
    %v6336 = vld [vmem:[%s70 + $0x348] sm:$0xff]
    %v6337 = vld [vmem:[%s70 + $0x350] sm:$0xff]
    %v6338 = vld [vmem:[%s70 + $0x368] sm:$0xff]
    %v6339 = vld [vmem:[%s70 + $0x370] sm:$0xff]
    %v6340 = vld [vmem:[%s70 + $0x388] sm:$0xff]
    %v6341 = vld [vmem:[%s70 + $0x390] sm:$0xff]
    %v6342 = vld [vmem:[%s70 + $0x3a8] sm:$0xff]
    %v6343 = vld [vmem:[%s70 + $0x3b0] sm:$0xff]
    %v6344 = vld [vmem:[%s70 + $0x3c8] sm:$0xff]
    %v6345 = vld [vmem:[%s70 + $0x3d0] sm:$0xff]
    %v6346 = vld [vmem:[%s70 + $0x3e8] sm:$0xff]
    %v6347 = vld [vmem:[%s70 + $0x3f0] sm:$0xff]
    %v6348 = vld [vmem:[%s70 + $0x408] sm:$0xff]
    %v6349 = vld [vmem:[%s70 + $0x410] sm:$0xff]
    %v6350 = vld [vmem:[%s70 + $0x428] sm:$0xff]
    %v6351 = vld [vmem:[%s70 + $0x430] sm:$0xff]
    %v6352 = vpack.c.bf16 %v6289, %v6288
    %v6353 = vpack.c.bf16 %v6291, %v6290
    %v6354 = vpack.c.bf16 %v6293, %v6292
    %v6355 = vpack.c.bf16 %v6295, %v6294
    %v6356 = vpack.c.bf16 %v6297, %v6296
    %v6357 = vpack.c.bf16 %v6299, %v6298
    %v6358 = vpack.c.bf16 %v6301, %v6300
    %v6359 = vpack.c.bf16 %v6303, %v6302
    %v6360 = vpack.c.bf16 %v6305, %v6304
    %v6361 = vpack.c.bf16 %v6307, %v6306
    %v6362 = vpack.c.bf16 %v6309, %v6308
    %v6363 = vpack.c.bf16 %v6311, %v6310
    %v6364 = vpack.c.bf16 %v6313, %v6312
    %v6365 = vpack.c.bf16 %v6315, %v6314
    %v6366 = vpack.c.bf16 %v6317, %v6316
    %v6367 = vpack.c.bf16 %v6319, %v6318
    %v6368 = vpack.c.bf16 %v6321, %v6320
    %v6369 = vpack.c.bf16 %v6323, %v6322
    %v6370 = vpack.c.bf16 %v6325, %v6324
    %v6371 = vpack.c.bf16 %v6327, %v6326
    %v6372 = vpack.c.bf16 %v6329, %v6328
    %v6373 = vpack.c.bf16 %v6331, %v6330
    %v6374 = vpack.c.bf16 %v6333, %v6332
    %v6375 = vpack.c.bf16 %v6335, %v6334
    %v6376 = vpack.c.bf16 %v6337, %v6336
    %v6377 = vpack.c.bf16 %v6339, %v6338
    %v6378 = vpack.c.bf16 %v6341, %v6340
    %v6379 = vpack.c.bf16 %v6343, %v6342
    %v6380 = vpack.c.bf16 %v6345, %v6344
    %v6381 = vpack.c.bf16 %v6347, %v6346
    %v6382 = vpack.c.bf16 %v6349, %v6348
    %v6383 = vpack.c.bf16 %v6351, %v6350
    %v6384 = vld [vmem:[%s70 + $0x9] sm:$0xff]
    %v6385 = vld [vmem:[%s70 + $0x11] sm:$0xff]
    %v6386 = vld [vmem:[%s70 + $0x29] sm:$0xff]
    %v6387 = vld [vmem:[%s70 + $0x31] sm:$0xff]
    %v6388 = vld [vmem:[%s70 + $0x49] sm:$0xff]
    %v6389 = vld [vmem:[%s70 + $0x51] sm:$0xff]
    %v6390 = vld [vmem:[%s70 + $0x69] sm:$0xff]
    %v6391 = vld [vmem:[%s70 + $0x71] sm:$0xff]
    %v6392 = vld [vmem:[%s70 + $0x89] sm:$0xff]
    %v6393 = vld [vmem:[%s70 + $0x91] sm:$0xff]
    %v6394 = vld [vmem:[%s70 + $0xa9] sm:$0xff]
    %v6395 = vld [vmem:[%s70 + $0xb1] sm:$0xff]
    %v6396 = vld [vmem:[%s70 + $0xc9] sm:$0xff]
    %v6397 = vld [vmem:[%s70 + $0xd1] sm:$0xff]
    %v6398 = vld [vmem:[%s70 + $0xe9] sm:$0xff]
    %v6399 = vld [vmem:[%s70 + $0xf1] sm:$0xff]
    %v6400 = vld [vmem:[%s70 + $0x109] sm:$0xff]
    %v6401 = vld [vmem:[%s70 + $0x111] sm:$0xff]
    %v6402 = vld [vmem:[%s70 + $0x129] sm:$0xff]
    %v6403 = vld [vmem:[%s70 + $0x131] sm:$0xff]
    %v6404 = vld [vmem:[%s70 + $0x149] sm:$0xff]
    %v6405 = vld [vmem:[%s70 + $0x151] sm:$0xff]
    %v6406 = vld [vmem:[%s70 + $0x169] sm:$0xff]
    %v6407 = vld [vmem:[%s70 + $0x171] sm:$0xff]
    %v6408 = vld [vmem:[%s70 + $0x189] sm:$0xff]
    %v6409 = vld [vmem:[%s70 + $0x191] sm:$0xff]
    %v6410 = vld [vmem:[%s70 + $0x1a9] sm:$0xff]
    %v6411 = vld [vmem:[%s70 + $0x1b1] sm:$0xff]
    %v6412 = vld [vmem:[%s70 + $0x1c9] sm:$0xff]
    %v6413 = vld [vmem:[%s70 + $0x1d1] sm:$0xff]
    %v6414 = vld [vmem:[%s70 + $0x1e9] sm:$0xff]
    %v6415 = vld [vmem:[%s70 + $0x1f1] sm:$0xff]
    %v6416 = vld [vmem:[%s70 + $0x249] sm:$0xff]
    %v6417 = vld [vmem:[%s70 + $0x251] sm:$0xff]
    %v6418 = vld [vmem:[%s70 + $0x269] sm:$0xff]
    %v6419 = vld [vmem:[%s70 + $0x271] sm:$0xff]
    %v6420 = vld [vmem:[%s70 + $0x289] sm:$0xff]
    %v6421 = vld [vmem:[%s70 + $0x291] sm:$0xff]
    %v6422 = vld [vmem:[%s70 + $0x2a9] sm:$0xff]
    %v6423 = vld [vmem:[%s70 + $0x2b1] sm:$0xff]
    %v6424 = vld [vmem:[%s70 + $0x2c9] sm:$0xff]
    %v6425 = vld [vmem:[%s70 + $0x2d1] sm:$0xff]
    %v6426 = vld [vmem:[%s70 + $0x2e9] sm:$0xff]
    %v6427 = vld [vmem:[%s70 + $0x2f1] sm:$0xff]
    %v6428 = vld [vmem:[%s70 + $0x309] sm:$0xff]
    %v6429 = vld [vmem:[%s70 + $0x311] sm:$0xff]
    %v6430 = vld [vmem:[%s70 + $0x329] sm:$0xff]
    %v6431 = vld [vmem:[%s70 + $0x331] sm:$0xff]
    %v6432 = vld [vmem:[%s70 + $0x349] sm:$0xff]
    %v6433 = vld [vmem:[%s70 + $0x351] sm:$0xff]
    %v6434 = vld [vmem:[%s70 + $0x369] sm:$0xff]
    %v6435 = vld [vmem:[%s70 + $0x371] sm:$0xff]
    %v6436 = vld [vmem:[%s70 + $0x389] sm:$0xff]
    %v6437 = vld [vmem:[%s70 + $0x391] sm:$0xff]
    %v6438 = vld [vmem:[%s70 + $0x3a9] sm:$0xff]
    %v6439 = vld [vmem:[%s70 + $0x3b1] sm:$0xff]
    %v6440 = vld [vmem:[%s70 + $0x3c9] sm:$0xff]
    %v6441 = vld [vmem:[%s70 + $0x3d1] sm:$0xff]
    %v6442 = vld [vmem:[%s70 + $0x3e9] sm:$0xff]
    %v6443 = vld [vmem:[%s70 + $0x3f1] sm:$0xff]
    %v6444 = vld [vmem:[%s70 + $0x409] sm:$0xff]
    %v6445 = vld [vmem:[%s70 + $0x411] sm:$0xff]
    %v6446 = vld [vmem:[%s70 + $0x429] sm:$0xff]
    %v6447 = vld [vmem:[%s70 + $0x431] sm:$0xff]
    %v6448 = vpack.c.bf16 %v6385, %v6384
    %v6449 = vpack.c.bf16 %v6387, %v6386
    %v6450 = vpack.c.bf16 %v6389, %v6388
    %v6451 = vpack.c.bf16 %v6391, %v6390
    %v6452 = vpack.c.bf16 %v6393, %v6392
    %v6453 = vpack.c.bf16 %v6395, %v6394
    %v6454 = vpack.c.bf16 %v6397, %v6396
    %v6455 = vpack.c.bf16 %v6399, %v6398
    %v6456 = vpack.c.bf16 %v6401, %v6400
    %v6457 = vpack.c.bf16 %v6403, %v6402
    %v6458 = vpack.c.bf16 %v6405, %v6404
    %v6459 = vpack.c.bf16 %v6407, %v6406
    %v6460 = vpack.c.bf16 %v6409, %v6408
    %v6461 = vpack.c.bf16 %v6411, %v6410
    %v6462 = vpack.c.bf16 %v6413, %v6412
    %v6463 = vpack.c.bf16 %v6415, %v6414
    %v6464 = vpack.c.bf16 %v6417, %v6416
    %v6465 = vpack.c.bf16 %v6419, %v6418
    %v6466 = vpack.c.bf16 %v6421, %v6420
    %v6467 = vpack.c.bf16 %v6423, %v6422
    %v6468 = vpack.c.bf16 %v6425, %v6424
    %v6469 = vpack.c.bf16 %v6427, %v6426
    %v6470 = vpack.c.bf16 %v6429, %v6428
    %v6471 = vpack.c.bf16 %v6431, %v6430
    %v6472 = vpack.c.bf16 %v6433, %v6432
    %v6473 = vpack.c.bf16 %v6435, %v6434
    %v6474 = vpack.c.bf16 %v6437, %v6436
    %v6475 = vpack.c.bf16 %v6439, %v6438
    %v6476 = vpack.c.bf16 %v6441, %v6440
    %v6477 = vpack.c.bf16 %v6443, %v6442
    %v6478 = vpack.c.bf16 %v6445, %v6444
    %v6479 = vpack.c.bf16 %v6447, %v6446
    %s6480 = scalar_lea.vmem [#allocation3], 64
    %v6481 = vld [vmem:[%s6480 + $0x7] sm:$0xff]
    %v6482 = vld [vmem:[%s6480 + $0xf] sm:$0xff]
    %v6483 = vld [vmem:[%s6480 + $0x27] sm:$0xff]
    %v6484 = vld [vmem:[%s6480 + $0x2f] sm:$0xff]
    %v6485 = vld [vmem:[%s6480 + $0x47] sm:$0xff]
    %v6486 = vld [vmem:[%s6480 + $0x4f] sm:$0xff]
    %v6487 = vld [vmem:[%s6480 + $0x67] sm:$0xff]
    %v6488 = vld [vmem:[%s6480 + $0x6f] sm:$0xff]
    %v6489 = vld [vmem:[%s6480 + $0x87] sm:$0xff]
    %v6490 = vld [vmem:[%s6480 + $0x8f] sm:$0xff]
    %v6491 = vld [vmem:[%s6480 + $0xa7] sm:$0xff]
    %v6492 = vld [vmem:[%s6480 + $0xaf] sm:$0xff]
    %v6493 = vld [vmem:[%s6480 + $0xc7] sm:$0xff]
    %v6494 = vld [vmem:[%s6480 + $0xcf] sm:$0xff]
    %v6495 = vld [vmem:[%s6480 + $0xe7] sm:$0xff]
    %v6496 = vld [vmem:[%s6480 + $0xef] sm:$0xff]
    %v6497 = vld [vmem:[%s6480 + $0x107] sm:$0xff]
    %v6498 = vld [vmem:[%s6480 + $0x10f] sm:$0xff]
    %v6499 = vld [vmem:[%s6480 + $0x127] sm:$0xff]
    %v6500 = vld [vmem:[%s6480 + $0x12f] sm:$0xff]
    %v6501 = vld [vmem:[%s6480 + $0x147] sm:$0xff]
    %v6502 = vld [vmem:[%s6480 + $0x14f] sm:$0xff]
    %v6503 = vld [vmem:[%s6480 + $0x167] sm:$0xff]
    %v6504 = vld [vmem:[%s6480 + $0x16f] sm:$0xff]
    %v6505 = vld [vmem:[%s6480 + $0x187] sm:$0xff]
    %v6506 = vld [vmem:[%s6480 + $0x18f] sm:$0xff]
    %v6507 = vld [vmem:[%s6480 + $0x1a7] sm:$0xff]
    %v6508 = vld [vmem:[%s6480 + $0x1af] sm:$0xff]
    %v6509 = vld [vmem:[%s6480 + $0x1c7] sm:$0xff]
    %v6510 = vld [vmem:[%s6480 + $0x1cf] sm:$0xff]
    %v6511 = vld [vmem:[%s6480 + $0x1e7] sm:$0xff]
    %v6512 = vld [vmem:[%s6480 + $0x1ef] sm:$0xff]
    %v6513 = vld [vmem:[%s6480 + $0x247] sm:$0xff]
    %v6514 = vld [vmem:[%s6480 + $0x24f] sm:$0xff]
    %v6515 = vld [vmem:[%s6480 + $0x267] sm:$0xff]
    %v6516 = vld [vmem:[%s6480 + $0x26f] sm:$0xff]
    %v6517 = vld [vmem:[%s6480 + $0x287] sm:$0xff]
    %v6518 = vld [vmem:[%s6480 + $0x28f] sm:$0xff]
    %v6519 = vld [vmem:[%s6480 + $0x2a7] sm:$0xff]
    %v6520 = vld [vmem:[%s6480 + $0x2af] sm:$0xff]
    %v6521 = vld [vmem:[%s6480 + $0x2c7] sm:$0xff]
    %v6522 = vld [vmem:[%s6480 + $0x2cf] sm:$0xff]
    %v6523 = vld [vmem:[%s6480 + $0x2e7] sm:$0xff]
    %v6524 = vld [vmem:[%s6480 + $0x2ef] sm:$0xff]
    %v6525 = vld [vmem:[%s6480 + $0x307] sm:$0xff]
    %v6526 = vld [vmem:[%s6480 + $0x30f] sm:$0xff]
    %v6527 = vld [vmem:[%s6480 + $0x327] sm:$0xff]
    %v6528 = vld [vmem:[%s6480 + $0x32f] sm:$0xff]
    %v6529 = vld [vmem:[%s6480 + $0x347] sm:$0xff]
    %v6530 = vld [vmem:[%s6480 + $0x34f] sm:$0xff]
    %v6531 = vld [vmem:[%s6480 + $0x367] sm:$0xff]
    %v6532 = vld [vmem:[%s6480 + $0x36f] sm:$0xff]
    %v6533 = vld [vmem:[%s6480 + $0x387] sm:$0xff]
    %v6534 = vld [vmem:[%s6480 + $0x38f] sm:$0xff]
    %v6535 = vld [vmem:[%s6480 + $0x3a7] sm:$0xff]
    %v6536 = vld [vmem:[%s6480 + $0x3af] sm:$0xff]
    %v6537 = vld [vmem:[%s6480 + $0x3c7] sm:$0xff]
    %v6538 = vld [vmem:[%s6480 + $0x3cf] sm:$0xff]
    %v6539 = vld [vmem:[%s6480 + $0x3e7] sm:$0xff]
    %v6540 = vld [vmem:[%s6480 + $0x3ef] sm:$0xff]
    %v6541 = vld [vmem:[%s6480 + $0x407] sm:$0xff]
    %v6542 = vld [vmem:[%s6480 + $0x40f] sm:$0xff]
    %v6543 = vld [vmem:[%s6480 + $0x427] sm:$0xff]
    %v6544 = vld [vmem:[%s6480 + $0x42f] sm:$0xff]
    %v6545 = vpack.c.bf16 %v6482, %v6481
    %v6546 = vpack.c.bf16 %v6484, %v6483
    %v6547 = vpack.c.bf16 %v6486, %v6485
    %v6548 = vpack.c.bf16 %v6488, %v6487
    %v6549 = vpack.c.bf16 %v6490, %v6489
    %v6550 = vpack.c.bf16 %v6492, %v6491
    %v6551 = vpack.c.bf16 %v6494, %v6493
    %v6552 = vpack.c.bf16 %v6496, %v6495
    %v6553 = vpack.c.bf16 %v6498, %v6497
    %v6554 = vpack.c.bf16 %v6500, %v6499
    %v6555 = vpack.c.bf16 %v6502, %v6501
    %v6556 = vpack.c.bf16 %v6504, %v6503
    %v6557 = vpack.c.bf16 %v6506, %v6505
    %v6558 = vpack.c.bf16 %v6508, %v6507
    %v6559 = vpack.c.bf16 %v6510, %v6509
    %v6560 = vpack.c.bf16 %v6512, %v6511
    %v6561 = vpack.c.bf16 %v6514, %v6513
    %v6562 = vpack.c.bf16 %v6516, %v6515
    %v6563 = vpack.c.bf16 %v6518, %v6517
    %v6564 = vpack.c.bf16 %v6520, %v6519
    %v6565 = vpack.c.bf16 %v6522, %v6521
    %v6566 = vpack.c.bf16 %v6524, %v6523
    %v6567 = vpack.c.bf16 %v6526, %v6525
    %v6568 = vpack.c.bf16 %v6528, %v6527
    %v6569 = vpack.c.bf16 %v6530, %v6529
    %v6570 = vpack.c.bf16 %v6532, %v6531
    %v6571 = vpack.c.bf16 %v6534, %v6533
    %v6572 = vpack.c.bf16 %v6536, %v6535
    %v6573 = vpack.c.bf16 %v6538, %v6537
    %v6574 = vpack.c.bf16 %v6540, %v6539
    %v6575 = vpack.c.bf16 %v6542, %v6541
    %v6576 = vpack.c.bf16 %v6544, %v6543
    %v6577 = vld [vmem:[%s6480 + $0x8] sm:$0xff]
    %v6578 = vld [vmem:[%s6480 + $0x10] sm:$0xff]
    %v6579 = vld [vmem:[%s6480 + $0x28] sm:$0xff]
    %v6580 = vld [vmem:[%s6480 + $0x30] sm:$0xff]
    %v6581 = vld [vmem:[%s6480 + $0x48] sm:$0xff]
    %v6582 = vld [vmem:[%s6480 + $0x50] sm:$0xff]
    %v6583 = vld [vmem:[%s6480 + $0x68] sm:$0xff]
    %v6584 = vld [vmem:[%s6480 + $0x70] sm:$0xff]
    %v6585 = vld [vmem:[%s6480 + $0x88] sm:$0xff]
    %v6586 = vld [vmem:[%s6480 + $0x90] sm:$0xff]
    %v6587 = vld [vmem:[%s6480 + $0xa8] sm:$0xff]
    %v6588 = vld [vmem:[%s6480 + $0xb0] sm:$0xff]
    %v6589 = vld [vmem:[%s6480 + $0xc8] sm:$0xff]
    %v6590 = vld [vmem:[%s6480 + $0xd0] sm:$0xff]
    %v6591 = vld [vmem:[%s6480 + $0xe8] sm:$0xff]
    %v6592 = vld [vmem:[%s6480 + $0xf0] sm:$0xff]
    %v6593 = vld [vmem:[%s6480 + $0x108] sm:$0xff]
    %v6594 = vld [vmem:[%s6480 + $0x110] sm:$0xff]
    %v6595 = vld [vmem:[%s6480 + $0x128] sm:$0xff]
    %v6596 = vld [vmem:[%s6480 + $0x130] sm:$0xff]
    %v6597 = vld [vmem:[%s6480 + $0x148] sm:$0xff]
    %v6598 = vld [vmem:[%s6480 + $0x150] sm:$0xff]
    %v6599 = vld [vmem:[%s6480 + $0x168] sm:$0xff]
    %v6600 = vld [vmem:[%s6480 + $0x170] sm:$0xff]
    %v6601 = vld [vmem:[%s6480 + $0x188] sm:$0xff]
    %v6602 = vld [vmem:[%s6480 + $0x190] sm:$0xff]
    %v6603 = vld [vmem:[%s6480 + $0x1a8] sm:$0xff]
    %v6604 = vld [vmem:[%s6480 + $0x1b0] sm:$0xff]
    %v6605 = vld [vmem:[%s6480 + $0x1c8] sm:$0xff]
    %v6606 = vld [vmem:[%s6480 + $0x1d0] sm:$0xff]
    %v6607 = vld [vmem:[%s6480 + $0x1e8] sm:$0xff]
    %v6608 = vld [vmem:[%s6480 + $0x1f0] sm:$0xff]
    %v6609 = vld [vmem:[%s6480 + $0x248] sm:$0xff]
    %v6610 = vld [vmem:[%s6480 + $0x250] sm:$0xff]
    %v6611 = vld [vmem:[%s6480 + $0x268] sm:$0xff]
    %v6612 = vld [vmem:[%s6480 + $0x270] sm:$0xff]
    %v6613 = vld [vmem:[%s6480 + $0x288] sm:$0xff]
    %v6614 = vld [vmem:[%s6480 + $0x290] sm:$0xff]
    %v6615 = vld [vmem:[%s6480 + $0x2a8] sm:$0xff]
    %v6616 = vld [vmem:[%s6480 + $0x2b0] sm:$0xff]
    %v6617 = vld [vmem:[%s6480 + $0x2c8] sm:$0xff]
    %v6618 = vld [vmem:[%s6480 + $0x2d0] sm:$0xff]
    %v6619 = vld [vmem:[%s6480 + $0x2e8] sm:$0xff]
    %v6620 = vld [vmem:[%s6480 + $0x2f0] sm:$0xff]
    %v6621 = vld [vmem:[%s6480 + $0x308] sm:$0xff]
    %v6622 = vld [vmem:[%s6480 + $0x310] sm:$0xff]
    %v6623 = vld [vmem:[%s6480 + $0x328] sm:$0xff]
    %v6624 = vld [vmem:[%s6480 + $0x330] sm:$0xff]
    %v6625 = vld [vmem:[%s6480 + $0x348] sm:$0xff]
    %v6626 = vld [vmem:[%s6480 + $0x350] sm:$0xff]
    %v6627 = vld [vmem:[%s6480 + $0x368] sm:$0xff]
    %v6628 = vld [vmem:[%s6480 + $0x370] sm:$0xff]
    %v6629 = vld [vmem:[%s6480 + $0x388] sm:$0xff]
    %v6630 = vld [vmem:[%s6480 + $0x390] sm:$0xff]
    %v6631 = vld [vmem:[%s6480 + $0x3a8] sm:$0xff]
    %v6632 = vld [vmem:[%s6480 + $0x3b0] sm:$0xff]
    %v6633 = vld [vmem:[%s6480 + $0x3c8] sm:$0xff]
    %v6634 = vld [vmem:[%s6480 + $0x3d0] sm:$0xff]
    %v6635 = vld [vmem:[%s6480 + $0x3e8] sm:$0xff]
    %v6636 = vld [vmem:[%s6480 + $0x3f0] sm:$0xff]
    %v6637 = vld [vmem:[%s6480 + $0x408] sm:$0xff]
    %v6638 = vld [vmem:[%s6480 + $0x410] sm:$0xff]
    %v6639 = vld [vmem:[%s6480 + $0x428] sm:$0xff]
    %v6640 = vld [vmem:[%s6480 + $0x430] sm:$0xff]
    %v6641 = vpack.c.bf16 %v6578, %v6577
    %v6642 = vpack.c.bf16 %v6580, %v6579
    %v6643 = vpack.c.bf16 %v6582, %v6581
    %v6644 = vpack.c.bf16 %v6584, %v6583
    %v6645 = vpack.c.bf16 %v6586, %v6585
    %v6646 = vpack.c.bf16 %v6588, %v6587
    %v6647 = vpack.c.bf16 %v6590, %v6589
    %v6648 = vpack.c.bf16 %v6592, %v6591
    %v6649 = vpack.c.bf16 %v6594, %v6593
    %v6650 = vpack.c.bf16 %v6596, %v6595
    %v6651 = vpack.c.bf16 %v6598, %v6597
    %v6652 = vpack.c.bf16 %v6600, %v6599
    %v6653 = vpack.c.bf16 %v6602, %v6601
    %v6654 = vpack.c.bf16 %v6604, %v6603
    %v6655 = vpack.c.bf16 %v6606, %v6605
    %v6656 = vpack.c.bf16 %v6608, %v6607
    %v6657 = vpack.c.bf16 %v6610, %v6609
    %v6658 = vpack.c.bf16 %v6612, %v6611
    %v6659 = vpack.c.bf16 %v6614, %v6613
    %v6660 = vpack.c.bf16 %v6616, %v6615
    %v6661 = vpack.c.bf16 %v6618, %v6617
    %v6662 = vpack.c.bf16 %v6620, %v6619
    %v6663 = vpack.c.bf16 %v6622, %v6621
    %v6664 = vpack.c.bf16 %v6624, %v6623
    %v6665 = vpack.c.bf16 %v6626, %v6625
    %v6666 = vpack.c.bf16 %v6628, %v6627
    %v6667 = vpack.c.bf16 %v6630, %v6629
    %v6668 = vpack.c.bf16 %v6632, %v6631
    %v6669 = vpack.c.bf16 %v6634, %v6633
    %v6670 = vpack.c.bf16 %v6636, %v6635
    %v6671 = vpack.c.bf16 %v6638, %v6637
    %v6672 = vpack.c.bf16 %v6640, %v6639
    %v6673 = vld [vmem:[%s6480 + $0x9] sm:$0xff]
    %v6674 = vld [vmem:[%s6480 + $0x11] sm:$0xff]
    %v6675 = vld [vmem:[%s6480 + $0x29] sm:$0xff]
    %v6676 = vld [vmem:[%s6480 + $0x31] sm:$0xff]
    %v6677 = vld [vmem:[%s6480 + $0x49] sm:$0xff]
    %v6678 = vld [vmem:[%s6480 + $0x51] sm:$0xff]
    %v6679 = vld [vmem:[%s6480 + $0x69] sm:$0xff]
    %v6680 = vld [vmem:[%s6480 + $0x71] sm:$0xff]
    %v6681 = vld [vmem:[%s6480 + $0x89] sm:$0xff]
    %v6682 = vld [vmem:[%s6480 + $0x91] sm:$0xff]
    %v6683 = vld [vmem:[%s6480 + $0xa9] sm:$0xff]
    %v6684 = vld [vmem:[%s6480 + $0xb1] sm:$0xff]
    %v6685 = vld [vmem:[%s6480 + $0xc9] sm:$0xff]
    %v6686 = vld [vmem:[%s6480 + $0xd1] sm:$0xff]
    %v6687 = vld [vmem:[%s6480 + $0xe9] sm:$0xff]
    %v6688 = vld [vmem:[%s6480 + $0xf1] sm:$0xff]
    %v6689 = vld [vmem:[%s6480 + $0x109] sm:$0xff]
    %v6690 = vld [vmem:[%s6480 + $0x111] sm:$0xff]
    %v6691 = vld [vmem:[%s6480 + $0x129] sm:$0xff]
    %v6692 = vld [vmem:[%s6480 + $0x131] sm:$0xff]
    %v6693 = vld [vmem:[%s6480 + $0x149] sm:$0xff]
    %v6694 = vld [vmem:[%s6480 + $0x151] sm:$0xff]
    %v6695 = vld [vmem:[%s6480 + $0x169] sm:$0xff]
    %v6696 = vld [vmem:[%s6480 + $0x171] sm:$0xff]
    %v6697 = vld [vmem:[%s6480 + $0x189] sm:$0xff]
    %v6698 = vld [vmem:[%s6480 + $0x191] sm:$0xff]
    %v6699 = vld [vmem:[%s6480 + $0x1a9] sm:$0xff]
    %v6700 = vld [vmem:[%s6480 + $0x1b1] sm:$0xff]
    %v6701 = vld [vmem:[%s6480 + $0x1c9] sm:$0xff]
    %v6702 = vld [vmem:[%s6480 + $0x1d1] sm:$0xff]
    %v6703 = vld [vmem:[%s6480 + $0x1e9] sm:$0xff]
    %v6704 = vld [vmem:[%s6480 + $0x1f1] sm:$0xff]
    %v6705 = vld [vmem:[%s6480 + $0x249] sm:$0xff]
    %v6706 = vld [vmem:[%s6480 + $0x251] sm:$0xff]
    %v6707 = vld [vmem:[%s6480 + $0x269] sm:$0xff]
    %v6708 = vld [vmem:[%s6480 + $0x271] sm:$0xff]
    %v6709 = vld [vmem:[%s6480 + $0x289] sm:$0xff]
    %v6710 = vld [vmem:[%s6480 + $0x291] sm:$0xff]
    %v6711 = vld [vmem:[%s6480 + $0x2a9] sm:$0xff]
    %v6712 = vld [vmem:[%s6480 + $0x2b1] sm:$0xff]
    %v6713 = vld [vmem:[%s6480 + $0x2c9] sm:$0xff]
    %v6714 = vld [vmem:[%s6480 + $0x2d1] sm:$0xff]
    %v6715 = vld [vmem:[%s6480 + $0x2e9] sm:$0xff]
    %v6716 = vld [vmem:[%s6480 + $0x2f1] sm:$0xff]
    %v6717 = vld [vmem:[%s6480 + $0x309] sm:$0xff]
    %v6718 = vld [vmem:[%s6480 + $0x311] sm:$0xff]
    %v6719 = vld [vmem:[%s6480 + $0x329] sm:$0xff]
    %v6720 = vld [vmem:[%s6480 + $0x331] sm:$0xff]
    %v6721 = vld [vmem:[%s6480 + $0x349] sm:$0xff]
    %v6722 = vld [vmem:[%s6480 + $0x351] sm:$0xff]
    %v6723 = vld [vmem:[%s6480 + $0x369] sm:$0xff]
    %v6724 = vld [vmem:[%s6480 + $0x371] sm:$0xff]
    %v6725 = vld [vmem:[%s6480 + $0x389] sm:$0xff]
    %v6726 = vld [vmem:[%s6480 + $0x391] sm:$0xff]
    %v6727 = vld [vmem:[%s6480 + $0x3a9] sm:$0xff]
    %v6728 = vld [vmem:[%s6480 + $0x3b1] sm:$0xff]
    %v6729 = vld [vmem:[%s6480 + $0x3c9] sm:$0xff]
    %v6730 = vld [vmem:[%s6480 + $0x3d1] sm:$0xff]
    %v6731 = vld [vmem:[%s6480 + $0x3e9] sm:$0xff]
    %v6732 = vld [vmem:[%s6480 + $0x3f1] sm:$0xff]
    %v6733 = vld [vmem:[%s6480 + $0x409] sm:$0xff]
    %v6734 = vld [vmem:[%s6480 + $0x411] sm:$0xff]
    %v6735 = vld [vmem:[%s6480 + $0x429] sm:$0xff]
    %v6736 = vld [vmem:[%s6480 + $0x431] sm:$0xff]
    %v6737 = vpack.c.bf16 %v6674, %v6673
    %v6738 = vpack.c.bf16 %v6676, %v6675
    %v6739 = vpack.c.bf16 %v6678, %v6677
    %v6740 = vpack.c.bf16 %v6680, %v6679
    %v6741 = vpack.c.bf16 %v6682, %v6681
    %v6742 = vpack.c.bf16 %v6684, %v6683
    %v6743 = vpack.c.bf16 %v6686, %v6685
    %v6744 = vpack.c.bf16 %v6688, %v6687
    %v6745 = vpack.c.bf16 %v6690, %v6689
    %v6746 = vpack.c.bf16 %v6692, %v6691
    %v6747 = vpack.c.bf16 %v6694, %v6693
    %v6748 = vpack.c.bf16 %v6696, %v6695
    %v6749 = vpack.c.bf16 %v6698, %v6697
    %v6750 = vpack.c.bf16 %v6700, %v6699
    %v6751 = vpack.c.bf16 %v6702, %v6701
    %v6752 = vpack.c.bf16 %v6704, %v6703
    %v6753 = vpack.c.bf16 %v6706, %v6705
    %v6754 = vpack.c.bf16 %v6708, %v6707
    %v6755 = vpack.c.bf16 %v6710, %v6709
    %v6756 = vpack.c.bf16 %v6712, %v6711
    %v6757 = vpack.c.bf16 %v6714, %v6713
    %v6758 = vpack.c.bf16 %v6716, %v6715
    %v6759 = vpack.c.bf16 %v6718, %v6717
    %v6760 = vpack.c.bf16 %v6720, %v6719
    %v6761 = vpack.c.bf16 %v6722, %v6721
    %v6762 = vpack.c.bf16 %v6724, %v6723
    %v6763 = vpack.c.bf16 %v6726, %v6725
    %v6764 = vpack.c.bf16 %v6728, %v6727
    %v6765 = vpack.c.bf16 %v6730, %v6729
    %v6766 = vpack.c.bf16 %v6732, %v6731
    %v6767 = vpack.c.bf16 %v6734, %v6733
    %v6768 = vpack.c.bf16 %v6736, %v6735
    %6801 = vrot.lane.b32.xlu0 %v6064, 32
    %v6802 = vpop.permute.xlu0 %6801
    %6803 = vrot.lane.b32.xlu0 %v6065, 32
    %v6804 = vpop.permute.xlu0 %6803
    %6805 = vrot.lane.b32.xlu0 %v6066, 32
    %v6806 = vpop.permute.xlu0 %6805
    %6807 = vrot.lane.b32.xlu0 %v6067, 32
    %v6808 = vpop.permute.xlu0 %6807
    %6809 = vrot.lane.b32.xlu0 %v6068, 32
    %v6810 = vpop.permute.xlu0 %6809
    %6811 = vrot.lane.b32.xlu0 %v6069, 32
    %v6812 = vpop.permute.xlu0 %6811
    %6813 = vrot.lane.b32.xlu0 %v6070, 32
    %v6814 = vpop.permute.xlu0 %6813
    %6815 = vrot.lane.b32.xlu0 %v6071, 32
    %v6816 = vpop.permute.xlu0 %6815
    %6817 = vrot.lane.b32.xlu0 %v6072, 32
    %v6818 = vpop.permute.xlu0 %6817
    %6819 = vrot.lane.b32.xlu0 %v6073, 32
    %v6820 = vpop.permute.xlu0 %6819
    %6821 = vrot.lane.b32.xlu0 %v6074, 32
    %v6822 = vpop.permute.xlu0 %6821
    %6823 = vrot.lane.b32.xlu0 %v6075, 32
    %v6824 = vpop.permute.xlu0 %6823
    %6825 = vrot.lane.b32.xlu0 %v6076, 32
    %v6826 = vpop.permute.xlu0 %6825
    %6827 = vrot.lane.b32.xlu0 %v6077, 32
    %v6828 = vpop.permute.xlu0 %6827
    %6829 = vrot.lane.b32.xlu0 %v6078, 32
    %v6830 = vpop.permute.xlu0 %6829
    %6831 = vrot.lane.b32.xlu0 %v6079, 32
    %v6832 = vpop.permute.xlu0 %6831
    %6833 = vrot.lane.b32.xlu0 %v6080, 32
    %v6834 = vpop.permute.xlu0 %6833
    %6835 = vrot.lane.b32.xlu0 %v6081, 32
    %v6836 = vpop.permute.xlu0 %6835
    %6837 = vrot.lane.b32.xlu0 %v6082, 32
    %v6838 = vpop.permute.xlu0 %6837
    %6839 = vrot.lane.b32.xlu0 %v6083, 32
    %v6840 = vpop.permute.xlu0 %6839
    %6841 = vrot.lane.b32.xlu0 %v6084, 32
    %v6842 = vpop.permute.xlu0 %6841
    %6843 = vrot.lane.b32.xlu0 %v6085, 32
    %v6844 = vpop.permute.xlu0 %6843
    %6845 = vrot.lane.b32.xlu0 %v6086, 32
    %v6846 = vpop.permute.xlu0 %6845
    %6847 = vrot.lane.b32.xlu0 %v6087, 32
    %v6848 = vpop.permute.xlu0 %6847
    %6849 = vrot.lane.b32.xlu0 %v6088, 32
    %v6850 = vpop.permute.xlu0 %6849
    %6851 = vrot.lane.b32.xlu0 %v6089, 32
    %v6852 = vpop.permute.xlu0 %6851
    %6853 = vrot.lane.b32.xlu0 %v6090, 32
    %v6854 = vpop.permute.xlu0 %6853
    %6855 = vrot.lane.b32.xlu0 %v6091, 32
    %v6856 = vpop.permute.xlu0 %6855
    %6857 = vrot.lane.b32.xlu0 %v6092, 32
    %v6858 = vpop.permute.xlu0 %6857
    %6859 = vrot.lane.b32.xlu0 %v6093, 32
    %v6860 = vpop.permute.xlu0 %6859
    %6861 = vrot.lane.b32.xlu0 %v6094, 32
    %v6862 = vpop.permute.xlu0 %6861
    %6863 = vrot.lane.b32.xlu0 %v6095, 32
    %v6864 = vpop.permute.xlu0 %6863
    %6897 = vrot.lane.b32.xlu0 %v6160, 64
    %v6898 = vpop.permute.xlu0 %6897
    %6899 = vrot.lane.b32.xlu0 %v6161, 64
    %v6900 = vpop.permute.xlu0 %6899
    %6901 = vrot.lane.b32.xlu0 %v6162, 64
    %v6902 = vpop.permute.xlu0 %6901
    %6903 = vrot.lane.b32.xlu0 %v6163, 64
    %v6904 = vpop.permute.xlu0 %6903
    %6905 = vrot.lane.b32.xlu0 %v6164, 64
    %v6906 = vpop.permute.xlu0 %6905
    %6907 = vrot.lane.b32.xlu0 %v6165, 64
    %v6908 = vpop.permute.xlu0 %6907
    %6909 = vrot.lane.b32.xlu0 %v6166, 64
    %v6910 = vpop.permute.xlu0 %6909
    %6911 = vrot.lane.b32.xlu0 %v6167, 64
    %v6912 = vpop.permute.xlu0 %6911
    %6913 = vrot.lane.b32.xlu0 %v6168, 64
    %v6914 = vpop.permute.xlu0 %6913
    %6915 = vrot.lane.b32.xlu0 %v6169, 64
    %v6916 = vpop.permute.xlu0 %6915
    %6917 = vrot.lane.b32.xlu0 %v6170, 64
    %v6918 = vpop.permute.xlu0 %6917
    %6919 = vrot.lane.b32.xlu0 %v6171, 64
    %v6920 = vpop.permute.xlu0 %6919
    %6921 = vrot.lane.b32.xlu0 %v6172, 64
    %v6922 = vpop.permute.xlu0 %6921
    %6923 = vrot.lane.b32.xlu0 %v6173, 64
    %v6924 = vpop.permute.xlu0 %6923
    %6925 = vrot.lane.b32.xlu0 %v6174, 64
    %v6926 = vpop.permute.xlu0 %6925
    %6927 = vrot.lane.b32.xlu0 %v6175, 64
    %v6928 = vpop.permute.xlu0 %6927
    %6929 = vrot.lane.b32.xlu0 %v6176, 64
    %v6930 = vpop.permute.xlu0 %6929
    %6931 = vrot.lane.b32.xlu0 %v6177, 64
    %v6932 = vpop.permute.xlu0 %6931
    %6933 = vrot.lane.b32.xlu0 %v6178, 64
    %v6934 = vpop.permute.xlu0 %6933
    %6935 = vrot.lane.b32.xlu0 %v6179, 64
    %v6936 = vpop.permute.xlu0 %6935
    %6937 = vrot.lane.b32.xlu0 %v6180, 64
    %v6938 = vpop.permute.xlu0 %6937
    %6939 = vrot.lane.b32.xlu0 %v6181, 64
    %v6940 = vpop.permute.xlu0 %6939
    %6941 = vrot.lane.b32.xlu0 %v6182, 64
    %v6942 = vpop.permute.xlu0 %6941
    %6943 = vrot.lane.b32.xlu0 %v6183, 64
    %v6944 = vpop.permute.xlu0 %6943
    %6945 = vrot.lane.b32.xlu0 %v6184, 64
    %v6946 = vpop.permute.xlu0 %6945
    %6947 = vrot.lane.b32.xlu0 %v6185, 64
    %v6948 = vpop.permute.xlu0 %6947
    %6949 = vrot.lane.b32.xlu0 %v6186, 64
    %v6950 = vpop.permute.xlu0 %6949
    %6951 = vrot.lane.b32.xlu0 %v6187, 64
    %v6952 = vpop.permute.xlu0 %6951
    %6953 = vrot.lane.b32.xlu0 %v6188, 64
    %v6954 = vpop.permute.xlu0 %6953
    %6955 = vrot.lane.b32.xlu0 %v6189, 64
    %v6956 = vpop.permute.xlu0 %6955
    %6957 = vrot.lane.b32.xlu0 %v6190, 64
    %v6958 = vpop.permute.xlu0 %6957
    %6959 = vrot.lane.b32.xlu0 %v6191, 64
    %v6960 = vpop.permute.xlu0 %6959
    %6993 = vrot.lane.b32.xlu0 %v6256, 96
    %v6994 = vpop.permute.xlu0 %6993
    %6995 = vrot.lane.b32.xlu0 %v6257, 96
    %v6996 = vpop.permute.xlu0 %6995
    %6997 = vrot.lane.b32.xlu0 %v6258, 96
    %v6998 = vpop.permute.xlu0 %6997
    %6999 = vrot.lane.b32.xlu0 %v6259, 96
    %v7000 = vpop.permute.xlu0 %6999
    %7001 = vrot.lane.b32.xlu0 %v6260, 96
    %v7002 = vpop.permute.xlu0 %7001
    %7003 = vrot.lane.b32.xlu0 %v6261, 96
    %v7004 = vpop.permute.xlu0 %7003
    %7005 = vrot.lane.b32.xlu0 %v6262, 96
    %v7006 = vpop.permute.xlu0 %7005
    %7007 = vrot.lane.b32.xlu0 %v6263, 96
    %v7008 = vpop.permute.xlu0 %7007
    %7009 = vrot.lane.b32.xlu0 %v6264, 96
    %v7010 = vpop.permute.xlu0 %7009
    %7011 = vrot.lane.b32.xlu0 %v6265, 96
    %v7012 = vpop.permute.xlu0 %7011
    %7013 = vrot.lane.b32.xlu0 %v6266, 96
    %v7014 = vpop.permute.xlu0 %7013
    %7015 = vrot.lane.b32.xlu0 %v6267, 96
    %v7016 = vpop.permute.xlu0 %7015
    %7017 = vrot.lane.b32.xlu0 %v6268, 96
    %v7018 = vpop.permute.xlu0 %7017
    %7019 = vrot.lane.b32.xlu0 %v6269, 96
    %v7020 = vpop.permute.xlu0 %7019
    %7021 = vrot.lane.b32.xlu0 %v6270, 96
    %v7022 = vpop.permute.xlu0 %7021
    %7023 = vrot.lane.b32.xlu0 %v6271, 96
    %v7024 = vpop.permute.xlu0 %7023
    %7025 = vrot.lane.b32.xlu0 %v6272, 96
    %v7026 = vpop.permute.xlu0 %7025
    %7027 = vrot.lane.b32.xlu0 %v6273, 96
    %v7028 = vpop.permute.xlu0 %7027
    %7029 = vrot.lane.b32.xlu0 %v6274, 96
    %v7030 = vpop.permute.xlu0 %7029
    %7031 = vrot.lane.b32.xlu0 %v6275, 96
    %v7032 = vpop.permute.xlu0 %7031
    %7033 = vrot.lane.b32.xlu0 %v6276, 96
    %v7034 = vpop.permute.xlu0 %7033
    %7035 = vrot.lane.b32.xlu0 %v6277, 96
    %v7036 = vpop.permute.xlu0 %7035
    %7037 = vrot.lane.b32.xlu0 %v6278, 96
    %v7038 = vpop.permute.xlu0 %7037
    %7039 = vrot.lane.b32.xlu0 %v6279, 96
    %v7040 = vpop.permute.xlu0 %7039
    %7041 = vrot.lane.b32.xlu0 %v6280, 96
    %v7042 = vpop.permute.xlu0 %7041
    %7043 = vrot.lane.b32.xlu0 %v6281, 96
    %v7044 = vpop.permute.xlu0 %7043
    %7045 = vrot.lane.b32.xlu0 %v6282, 96
    %v7046 = vpop.permute.xlu0 %7045
    %7047 = vrot.lane.b32.xlu0 %v6283, 96
    %v7048 = vpop.permute.xlu0 %7047
    %7049 = vrot.lane.b32.xlu0 %v6284, 96
    %v7050 = vpop.permute.xlu0 %7049
    %7051 = vrot.lane.b32.xlu0 %v6285, 96
    %v7052 = vpop.permute.xlu0 %7051
    %7053 = vrot.lane.b32.xlu0 %v6286, 96
    %v7054 = vpop.permute.xlu0 %7053
    %7055 = vrot.lane.b32.xlu0 %v6287, 96
    %v7056 = vpop.permute.xlu0 %7055
    %7089 = vrot.lane.b32.xlu0 %v6448, 32
    %v7090 = vpop.permute.xlu0 %7089
    %7091 = vrot.lane.b32.xlu0 %v6449, 32
    %v7092 = vpop.permute.xlu0 %7091
    %7093 = vrot.lane.b32.xlu0 %v6450, 32
    %v7094 = vpop.permute.xlu0 %7093
    %7095 = vrot.lane.b32.xlu0 %v6451, 32
    %v7096 = vpop.permute.xlu0 %7095
    %7097 = vrot.lane.b32.xlu0 %v6452, 32
    %v7098 = vpop.permute.xlu0 %7097
    %7099 = vrot.lane.b32.xlu0 %v6453, 32
    %v7100 = vpop.permute.xlu0 %7099
    %7101 = vrot.lane.b32.xlu0 %v6454, 32
    %v7102 = vpop.permute.xlu0 %7101
    %7103 = vrot.lane.b32.xlu0 %v6455, 32
    %v7104 = vpop.permute.xlu0 %7103
    %7105 = vrot.lane.b32.xlu0 %v6456, 32
    %v7106 = vpop.permute.xlu0 %7105
    %7107 = vrot.lane.b32.xlu0 %v6457, 32
    %v7108 = vpop.permute.xlu0 %7107
    %7109 = vrot.lane.b32.xlu0 %v6458, 32
    %v7110 = vpop.permute.xlu0 %7109
    %7111 = vrot.lane.b32.xlu0 %v6459, 32
    %v7112 = vpop.permute.xlu0 %7111
    %7113 = vrot.lane.b32.xlu0 %v6460, 32
    %v7114 = vpop.permute.xlu0 %7113
    %7115 = vrot.lane.b32.xlu0 %v6461, 32
    %v7116 = vpop.permute.xlu0 %7115
    %7117 = vrot.lane.b32.xlu0 %v6462, 32
    %v7118 = vpop.permute.xlu0 %7117
    %7119 = vrot.lane.b32.xlu0 %v6463, 32
    %v7120 = vpop.permute.xlu0 %7119
    %7121 = vrot.lane.b32.xlu0 %v6464, 32
    %v7122 = vpop.permute.xlu0 %7121
    %7123 = vrot.lane.b32.xlu0 %v6465, 32
    %v7124 = vpop.permute.xlu0 %7123
    %7125 = vrot.lane.b32.xlu0 %v6466, 32
    %v7126 = vpop.permute.xlu0 %7125
    %7127 = vrot.lane.b32.xlu0 %v6467, 32
    %v7128 = vpop.permute.xlu0 %7127
    %7129 = vrot.lane.b32.xlu0 %v6468, 32
    %v7130 = vpop.permute.xlu0 %7129
    %7131 = vrot.lane.b32.xlu0 %v6469, 32
    %v7132 = vpop.permute.xlu0 %7131
    %7133 = vrot.lane.b32.xlu0 %v6470, 32
    %v7134 = vpop.permute.xlu0 %7133
    %7135 = vrot.lane.b32.xlu0 %v6471, 32
    %v7136 = vpop.permute.xlu0 %7135
    %7137 = vrot.lane.b32.xlu0 %v6472, 32
    %v7138 = vpop.permute.xlu0 %7137
    %7139 = vrot.lane.b32.xlu0 %v6473, 32
    %v7140 = vpop.permute.xlu0 %7139
    %7141 = vrot.lane.b32.xlu0 %v6474, 32
    %v7142 = vpop.permute.xlu0 %7141
    %7143 = vrot.lane.b32.xlu0 %v6475, 32
    %v7144 = vpop.permute.xlu0 %7143
    %7145 = vrot.lane.b32.xlu0 %v6476, 32
    %v7146 = vpop.permute.xlu0 %7145
    %7147 = vrot.lane.b32.xlu0 %v6477, 32
    %v7148 = vpop.permute.xlu0 %7147
    %7149 = vrot.lane.b32.xlu0 %v6478, 32
    %v7150 = vpop.permute.xlu0 %7149
    %7151 = vrot.lane.b32.xlu0 %v6479, 32
    %v7152 = vpop.permute.xlu0 %7151
    %7185 = vrot.lane.b32.xlu0 %v6545, 64
    %v7186 = vpop.permute.xlu0 %7185
    %7187 = vrot.lane.b32.xlu0 %v6546, 64
    %v7188 = vpop.permute.xlu0 %7187
    %7189 = vrot.lane.b32.xlu0 %v6547, 64
    %v7190 = vpop.permute.xlu0 %7189
    %7191 = vrot.lane.b32.xlu0 %v6548, 64
    %v7192 = vpop.permute.xlu0 %7191
    %7193 = vrot.lane.b32.xlu0 %v6549, 64
    %v7194 = vpop.permute.xlu0 %7193
    %7195 = vrot.lane.b32.xlu0 %v6550, 64
    %v7196 = vpop.permute.xlu0 %7195
    %7197 = vrot.lane.b32.xlu0 %v6551, 64
    %v7198 = vpop.permute.xlu0 %7197
    %7199 = vrot.lane.b32.xlu0 %v6552, 64
    %v7200 = vpop.permute.xlu0 %7199
    %7201 = vrot.lane.b32.xlu0 %v6553, 64
    %v7202 = vpop.permute.xlu0 %7201
    %7203 = vrot.lane.b32.xlu0 %v6554, 64
    %v7204 = vpop.permute.xlu0 %7203
    %7205 = vrot.lane.b32.xlu0 %v6555, 64
    %v7206 = vpop.permute.xlu0 %7205
    %7207 = vrot.lane.b32.xlu0 %v6556, 64
    %v7208 = vpop.permute.xlu0 %7207
    %7209 = vrot.lane.b32.xlu0 %v6557, 64
    %v7210 = vpop.permute.xlu0 %7209
    %7211 = vrot.lane.b32.xlu0 %v6558, 64
    %v7212 = vpop.permute.xlu0 %7211
    %7213 = vrot.lane.b32.xlu0 %v6559, 64
    %v7214 = vpop.permute.xlu0 %7213
    %7215 = vrot.lane.b32.xlu0 %v6560, 64
    %v7216 = vpop.permute.xlu0 %7215
    %7217 = vrot.lane.b32.xlu0 %v6561, 64
    %v7218 = vpop.permute.xlu0 %7217
    %7219 = vrot.lane.b32.xlu0 %v6562, 64
    %v7220 = vpop.permute.xlu0 %7219
    %7221 = vrot.lane.b32.xlu0 %v6563, 64
    %v7222 = vpop.permute.xlu0 %7221
    %7223 = vrot.lane.b32.xlu0 %v6564, 64
    %v7224 = vpop.permute.xlu0 %7223
    %7225 = vrot.lane.b32.xlu0 %v6565, 64
    %v7226 = vpop.permute.xlu0 %7225
    %7227 = vrot.lane.b32.xlu0 %v6566, 64
    %v7228 = vpop.permute.xlu0 %7227
    %7229 = vrot.lane.b32.xlu0 %v6567, 64
    %v7230 = vpop.permute.xlu0 %7229
    %7231 = vrot.lane.b32.xlu0 %v6568, 64
    %v7232 = vpop.permute.xlu0 %7231
    %7233 = vrot.lane.b32.xlu0 %v6569, 64
    %v7234 = vpop.permute.xlu0 %7233
    %7235 = vrot.lane.b32.xlu0 %v6570, 64
    %v7236 = vpop.permute.xlu0 %7235
    %7237 = vrot.lane.b32.xlu0 %v6571, 64
    %v7238 = vpop.permute.xlu0 %7237
    %7239 = vrot.lane.b32.xlu0 %v6572, 64
    %v7240 = vpop.permute.xlu0 %7239
    %7241 = vrot.lane.b32.xlu0 %v6573, 64
    %v7242 = vpop.permute.xlu0 %7241
    %7243 = vrot.lane.b32.xlu0 %v6574, 64
    %v7244 = vpop.permute.xlu0 %7243
    %7245 = vrot.lane.b32.xlu0 %v6575, 64
    %v7246 = vpop.permute.xlu0 %7245
    %7247 = vrot.lane.b32.xlu0 %v6576, 64
    %v7248 = vpop.permute.xlu0 %7247
    %7281 = vrot.lane.b32.xlu0 %v6641, 96
    %v7282 = vpop.permute.xlu0 %7281
    %7283 = vrot.lane.b32.xlu0 %v6642, 96
    %v7284 = vpop.permute.xlu0 %7283
    %7285 = vrot.lane.b32.xlu0 %v6643, 96
    %v7286 = vpop.permute.xlu0 %7285
    %7287 = vrot.lane.b32.xlu0 %v6644, 96
    %v7288 = vpop.permute.xlu0 %7287
    %7289 = vrot.lane.b32.xlu0 %v6645, 96
    %v7290 = vpop.permute.xlu0 %7289
    %7291 = vrot.lane.b32.xlu0 %v6646, 96
    %v7292 = vpop.permute.xlu0 %7291
    %7293 = vrot.lane.b32.xlu0 %v6647, 96
    %v7294 = vpop.permute.xlu0 %7293
    %7295 = vrot.lane.b32.xlu0 %v6648, 96
    %v7296 = vpop.permute.xlu0 %7295
    %7297 = vrot.lane.b32.xlu0 %v6649, 96
    %v7298 = vpop.permute.xlu0 %7297
    %7299 = vrot.lane.b32.xlu0 %v6650, 96
    %v7300 = vpop.permute.xlu0 %7299
    %7301 = vrot.lane.b32.xlu0 %v6651, 96
    %v7302 = vpop.permute.xlu0 %7301
    %7303 = vrot.lane.b32.xlu0 %v6652, 96
    %v7304 = vpop.permute.xlu0 %7303
    %7305 = vrot.lane.b32.xlu0 %v6653, 96
    %v7306 = vpop.permute.xlu0 %7305
    %7307 = vrot.lane.b32.xlu0 %v6654, 96
    %v7308 = vpop.permute.xlu0 %7307
    %7309 = vrot.lane.b32.xlu0 %v6655, 96
    %v7310 = vpop.permute.xlu0 %7309
    %7311 = vrot.lane.b32.xlu0 %v6656, 96
    %v7312 = vpop.permute.xlu0 %7311
    %7313 = vrot.lane.b32.xlu0 %v6657, 96
    %v7314 = vpop.permute.xlu0 %7313
    %7315 = vrot.lane.b32.xlu0 %v6658, 96
    %v7316 = vpop.permute.xlu0 %7315
    %7317 = vrot.lane.b32.xlu0 %v6659, 96
    %v7318 = vpop.permute.xlu0 %7317
    %7319 = vrot.lane.b32.xlu0 %v6660, 96
    %v7320 = vpop.permute.xlu0 %7319
    %7321 = vrot.lane.b32.xlu0 %v6661, 96
    %v7322 = vpop.permute.xlu0 %7321
    %7323 = vrot.lane.b32.xlu0 %v6662, 96
    %v7324 = vpop.permute.xlu0 %7323
    %7325 = vrot.lane.b32.xlu0 %v6663, 96
    %v7326 = vpop.permute.xlu0 %7325
    %7327 = vrot.lane.b32.xlu0 %v6664, 96
    %v7328 = vpop.permute.xlu0 %7327
    %7329 = vrot.lane.b32.xlu0 %v6665, 96
    %v7330 = vpop.permute.xlu0 %7329
    %7331 = vrot.lane.b32.xlu0 %v6666, 96
    %v7332 = vpop.permute.xlu0 %7331
    %7333 = vrot.lane.b32.xlu0 %v6667, 96
    %v7334 = vpop.permute.xlu0 %7333
    %7335 = vrot.lane.b32.xlu0 %v6668, 96
    %v7336 = vpop.permute.xlu0 %7335
    %7337 = vrot.lane.b32.xlu0 %v6669, 96
    %v7338 = vpop.permute.xlu0 %7337
    %7339 = vrot.lane.b32.xlu0 %v6670, 96
    %v7340 = vpop.permute.xlu0 %7339
    %7341 = vrot.lane.b32.xlu0 %v6671, 96
    %v7342 = vpop.permute.xlu0 %7341
    %7343 = vrot.lane.b32.xlu0 %v6672, 96
    %v7344 = vpop.permute.xlu0 %7343
    %v7347 = vsel %vm52, %v5968, %v6802
    %v7350 = vsel %vm52, %v5969, %v6804
    %v7353 = vsel %vm52, %v5970, %v6806
    %v7356 = vsel %vm52, %v5971, %v6808
    %v7359 = vsel %vm52, %v5972, %v6810
    %v7362 = vsel %vm52, %v5973, %v6812
    %v7365 = vsel %vm52, %v5974, %v6814
    %v7368 = vsel %vm52, %v5975, %v6816
    %v7371 = vsel %vm52, %v5976, %v6818
    %v7374 = vsel %vm52, %v5977, %v6820
    %v7377 = vsel %vm52, %v5978, %v6822
    %v7380 = vsel %vm52, %v5979, %v6824
    %v7383 = vsel %vm52, %v5980, %v6826
    %v7386 = vsel %vm52, %v5981, %v6828
    %v7389 = vsel %vm52, %v5982, %v6830
    %v7392 = vsel %vm52, %v5983, %v6832
    %v7395 = vsel %vm52, %v5984, %v6834
    %v7398 = vsel %vm52, %v5985, %v6836
    %v7401 = vsel %vm52, %v5986, %v6838
    %v7404 = vsel %vm52, %v5987, %v6840
    %v7407 = vsel %vm52, %v5988, %v6842
    %v7410 = vsel %vm52, %v5989, %v6844
    %v7413 = vsel %vm52, %v5990, %v6846
    %v7416 = vsel %vm52, %v5991, %v6848
    %v7419 = vsel %vm52, %v5992, %v6850
    %v7422 = vsel %vm52, %v5993, %v6852
    %v7425 = vsel %vm52, %v5994, %v6854
    %v7428 = vsel %vm52, %v5995, %v6856
    %v7431 = vsel %vm52, %v5996, %v6858
    %v7434 = vsel %vm52, %v5997, %v6860
    %v7437 = vsel %vm52, %v5998, %v6862
    %v7440 = vsel %vm52, %v5999, %v6864
    %vm7441 = vcmask 523264
    %v7443 = vsel %vm7441, %v7347, %v6898
    %v7445 = vsel %vm7441, %v7350, %v6900
    %v7447 = vsel %vm7441, %v7353, %v6902
    %v7449 = vsel %vm7441, %v7356, %v6904
    %v7451 = vsel %vm7441, %v7359, %v6906
    %v7453 = vsel %vm7441, %v7362, %v6908
    %v7455 = vsel %vm7441, %v7365, %v6910
    %v7457 = vsel %vm7441, %v7368, %v6912
    %v7459 = vsel %vm7441, %v7371, %v6914
    %v7461 = vsel %vm7441, %v7374, %v6916
    %v7463 = vsel %vm7441, %v7377, %v6918
    %v7465 = vsel %vm7441, %v7380, %v6920
    %v7467 = vsel %vm7441, %v7383, %v6922
    %v7469 = vsel %vm7441, %v7386, %v6924
    %v7471 = vsel %vm7441, %v7389, %v6926
    %v7473 = vsel %vm7441, %v7392, %v6928
    %v7475 = vsel %vm7441, %v7395, %v6930
    %v7477 = vsel %vm7441, %v7398, %v6932
    %v7479 = vsel %vm7441, %v7401, %v6934
    %v7481 = vsel %vm7441, %v7404, %v6936
    %v7483 = vsel %vm7441, %v7407, %v6938
    %v7485 = vsel %vm7441, %v7410, %v6940
    %v7487 = vsel %vm7441, %v7413, %v6942
    %v7489 = vsel %vm7441, %v7416, %v6944
    %v7491 = vsel %vm7441, %v7419, %v6946
    %v7493 = vsel %vm7441, %v7422, %v6948
    %v7495 = vsel %vm7441, %v7425, %v6950
    %v7497 = vsel %vm7441, %v7428, %v6952
    %v7499 = vsel %vm7441, %v7431, %v6954
    %v7501 = vsel %vm7441, %v7434, %v6956
    %v7503 = vsel %vm7441, %v7437, %v6958
    %v7505 = vsel %vm7441, %v7440, %v6960
    %vm7506 = vcmask 785408
    %v7508 = vsel %vm7506, %v7443, %v6994
    %v7511 = vsel %vm7506, %v7445, %v6996
    %v7514 = vsel %vm7506, %v7447, %v6998
    %v7517 = vsel %vm7506, %v7449, %v7000
    %v7520 = vsel %vm7506, %v7451, %v7002
    %v7523 = vsel %vm7506, %v7453, %v7004
    %v7526 = vsel %vm7506, %v7455, %v7006
    %v7529 = vsel %vm7506, %v7457, %v7008
    %v7532 = vsel %vm7506, %v7459, %v7010
    %v7535 = vsel %vm7506, %v7461, %v7012
    %v7538 = vsel %vm7506, %v7463, %v7014
    %v7541 = vsel %vm7506, %v7465, %v7016
    %v7544 = vsel %vm7506, %v7467, %v7018
    %v7547 = vsel %vm7506, %v7469, %v7020
    %v7550 = vsel %vm7506, %v7471, %v7022
    %v7553 = vsel %vm7506, %v7473, %v7024
    %v7556 = vsel %vm7506, %v7475, %v7026
    %v7559 = vsel %vm7506, %v7477, %v7028
    %v7562 = vsel %vm7506, %v7479, %v7030
    %v7565 = vsel %vm7506, %v7481, %v7032
    %v7568 = vsel %vm7506, %v7483, %v7034
    %v7571 = vsel %vm7506, %v7485, %v7036
    %v7574 = vsel %vm7506, %v7487, %v7038
    %v7577 = vsel %vm7506, %v7489, %v7040
    %v7580 = vsel %vm7506, %v7491, %v7042
    %v7583 = vsel %vm7506, %v7493, %v7044
    %v7586 = vsel %vm7506, %v7495, %v7046
    %v7589 = vsel %vm7506, %v7497, %v7048
    %v7592 = vsel %vm7506, %v7499, %v7050
    %v7595 = vsel %vm7506, %v7501, %v7052
    %v7598 = vsel %vm7506, %v7503, %v7054
    %v7601 = vsel %vm7506, %v7505, %v7056
    %v7605 = vsel %vm52, %v6352, %v7090
    %v7608 = vsel %vm52, %v6353, %v7092
    %v7611 = vsel %vm52, %v6354, %v7094
    %v7614 = vsel %vm52, %v6355, %v7096
    %v7617 = vsel %vm52, %v6356, %v7098
    %v7620 = vsel %vm52, %v6357, %v7100
    %v7623 = vsel %vm52, %v6358, %v7102
    %v7626 = vsel %vm52, %v6359, %v7104
    %v7629 = vsel %vm52, %v6360, %v7106
    %v7632 = vsel %vm52, %v6361, %v7108
    %v7635 = vsel %vm52, %v6362, %v7110
    %v7638 = vsel %vm52, %v6363, %v7112
    %v7641 = vsel %vm52, %v6364, %v7114
    %v7644 = vsel %vm52, %v6365, %v7116
    %v7647 = vsel %vm52, %v6366, %v7118
    %v7650 = vsel %vm52, %v6367, %v7120
    %v7653 = vsel %vm52, %v6368, %v7122
    %v7656 = vsel %vm52, %v6369, %v7124
    %v7659 = vsel %vm52, %v6370, %v7126
    %v7662 = vsel %vm52, %v6371, %v7128
    %v7665 = vsel %vm52, %v6372, %v7130
    %v7668 = vsel %vm52, %v6373, %v7132
    %v7671 = vsel %vm52, %v6374, %v7134
    %v7674 = vsel %vm52, %v6375, %v7136
    %v7677 = vsel %vm52, %v6376, %v7138
    %v7680 = vsel %vm52, %v6377, %v7140
    %v7683 = vsel %vm52, %v6378, %v7142
    %v7686 = vsel %vm52, %v6379, %v7144
    %v7689 = vsel %vm52, %v6380, %v7146
    %v7692 = vsel %vm52, %v6381, %v7148
    %v7695 = vsel %vm52, %v6382, %v7150
    %v7698 = vsel %vm52, %v6383, %v7152
    %v7700 = vsel %vm7441, %v7605, %v7186
    %v7702 = vsel %vm7441, %v7608, %v7188
    %v7704 = vsel %vm7441, %v7611, %v7190
    %v7706 = vsel %vm7441, %v7614, %v7192
    %v7708 = vsel %vm7441, %v7617, %v7194
    %v7710 = vsel %vm7441, %v7620, %v7196
    %v7712 = vsel %vm7441, %v7623, %v7198
    %v7714 = vsel %vm7441, %v7626, %v7200
    %v7716 = vsel %vm7441, %v7629, %v7202
    %v7718 = vsel %vm7441, %v7632, %v7204
    %v7720 = vsel %vm7441, %v7635, %v7206
    %v7722 = vsel %vm7441, %v7638, %v7208
    %v7724 = vsel %vm7441, %v7641, %v7210
    %v7726 = vsel %vm7441, %v7644, %v7212
    %v7728 = vsel %vm7441, %v7647, %v7214
    %v7730 = vsel %vm7441, %v7650, %v7216
    %v7732 = vsel %vm7441, %v7653, %v7218
    %v7734 = vsel %vm7441, %v7656, %v7220
    %v7736 = vsel %vm7441, %v7659, %v7222
    %v7738 = vsel %vm7441, %v7662, %v7224
    %v7740 = vsel %vm7441, %v7665, %v7226
    %v7742 = vsel %vm7441, %v7668, %v7228
    %v7744 = vsel %vm7441, %v7671, %v7230
    %v7746 = vsel %vm7441, %v7674, %v7232
    %v7748 = vsel %vm7441, %v7677, %v7234
    %v7750 = vsel %vm7441, %v7680, %v7236
    %v7752 = vsel %vm7441, %v7683, %v7238
    %v7754 = vsel %vm7441, %v7686, %v7240
    %v7756 = vsel %vm7441, %v7689, %v7242
    %v7758 = vsel %vm7441, %v7692, %v7244
    %v7760 = vsel %vm7441, %v7695, %v7246
    %v7762 = vsel %vm7441, %v7698, %v7248
    %v7764 = vsel %vm7506, %v7700, %v7282
    %v7767 = vsel %vm7506, %v7702, %v7284
    %v7770 = vsel %vm7506, %v7704, %v7286
    %v7773 = vsel %vm7506, %v7706, %v7288
    %v7776 = vsel %vm7506, %v7708, %v7290
    %v7779 = vsel %vm7506, %v7710, %v7292
    %v7782 = vsel %vm7506, %v7712, %v7294
    %v7785 = vsel %vm7506, %v7714, %v7296
    %v7788 = vsel %vm7506, %v7716, %v7298
    %v7791 = vsel %vm7506, %v7718, %v7300
    %v7794 = vsel %vm7506, %v7720, %v7302
    %v7797 = vsel %vm7506, %v7722, %v7304
    %v7800 = vsel %vm7506, %v7724, %v7306
    %v7803 = vsel %vm7506, %v7726, %v7308
    %v7806 = vsel %vm7506, %v7728, %v7310
    %v7809 = vsel %vm7506, %v7730, %v7312
    %v7812 = vsel %vm7506, %v7732, %v7314
    %v7815 = vsel %vm7506, %v7734, %v7316
    %v7818 = vsel %vm7506, %v7736, %v7318
    %v7821 = vsel %vm7506, %v7738, %v7320
    %v7824 = vsel %vm7506, %v7740, %v7322
    %v7827 = vsel %vm7506, %v7742, %v7324
    %v7830 = vsel %vm7506, %v7744, %v7326
    %v7833 = vsel %vm7506, %v7746, %v7328
    %v7836 = vsel %vm7506, %v7748, %v7330
    %v7839 = vsel %vm7506, %v7750, %v7332
    %v7842 = vsel %vm7506, %v7752, %v7334
    %v7845 = vsel %vm7506, %v7754, %v7336
    %v7848 = vsel %vm7506, %v7756, %v7338
    %v7851 = vsel %vm7506, %v7758, %v7340
    %v7854 = vsel %vm7506, %v7760, %v7342
    %v7857 = vsel %vm7506, %v7762, %v7344
    %v7859 = vld [vmem:[%s5] sm:$0xf]
    %v7860 = vld [vmem:[%s5 + $0x4] sm:$0xf]
    %v7861 = vld [vmem:[%s5 + $0x8] sm:$0xf]
    %v7862 = vld [vmem:[%s5 + $0xc] sm:$0xf]
    %v7863 = vld [vmem:[%s5 + $0x10] sm:$0xf]
    %v7864 = vld [vmem:[%s5 + $0x14] sm:$0xf]
    %v7865 = vld [vmem:[%s5 + $0x18] sm:$0xf]
    %v7866 = vld [vmem:[%s5 + $0x1c] sm:$0xf]
    %v7867 = vld [vmem:[%s5 + $0x20] sm:$0xf]
    %v7868 = vld [vmem:[%s5 + $0x24] sm:$0xf]
    %v7869 = vld [vmem:[%s5 + $0x28] sm:$0xf]
    %v7870 = vld [vmem:[%s5 + $0x2c] sm:$0xf]
    %v7871 = vld [vmem:[%s5 + $0x30] sm:$0xf]
    %v7872 = vld [vmem:[%s5 + $0x34] sm:$0xf]
    %v7873 = vld [vmem:[%s5 + $0x38] sm:$0xf]
    %v7874 = vld [vmem:[%s5 + $0x3c] sm:$0xf]
    %v7875 = vld [vmem:[%s5 + $0x40] sm:$0xf]
    %v7876 = vld [vmem:[%s5 + $0x44] sm:$0xf]
    %v7877 = vld [vmem:[%s5 + $0x48] sm:$0xf]
    %v7878 = vld [vmem:[%s5 + $0x4c] sm:$0xf]
    %v7879 = vld [vmem:[%s5 + $0x50] sm:$0xf]
    %v7880 = vld [vmem:[%s5 + $0x54] sm:$0xf]
    %v7881 = vld [vmem:[%s5 + $0x58] sm:$0xf]
    %v7882 = vld [vmem:[%s5 + $0x5c] sm:$0xf]
    %v7883 = vld [vmem:[%s5 + $0x60] sm:$0xf]
    %v7884 = vld [vmem:[%s5 + $0x64] sm:$0xf]
    %v7885 = vld [vmem:[%s5 + $0x68] sm:$0xf]
    %v7886 = vld [vmem:[%s5 + $0x6c] sm:$0xf]
    %v7887 = vld [vmem:[%s5 + $0x70] sm:$0xf]
    %v7888 = vld [vmem:[%s5 + $0x74] sm:$0xf]
    %v7889 = vld [vmem:[%s5 + $0x78] sm:$0xf]
    %v7890 = vld [vmem:[%s5 + $0x7c] sm:$0xf]
    %v7891 = vld [vmem:[%s5 + $0x80] sm:$0xf]
    %v7892 = vld [vmem:[%s5 + $0x84] sm:$0xf]
    %v7893 = vld [vmem:[%s5 + $0x88] sm:$0xf]
    %v7894 = vld [vmem:[%s5 + $0x8c] sm:$0xf]
    %v7895 = vld [vmem:[%s6] sm:$0x1]
    %v7897 = vlaneseq
    %v7898 = vshrl.u32 %v7897, 7
    %v7899 = vsub.s32 0, %v7898
    %v7900 = vrot.slane %v7895, %v7899
    %v7938 = vunpack.c.l.b16 %v7859
    %v7939 = vunpack.c.l.b16 %v7860
    %v7940 = vunpack.c.l.b16 %v7861
    %v7941 = vunpack.c.l.b16 %v7862
    %v7942 = vunpack.c.l.b16 %v7863
    %v7943 = vunpack.c.l.b16 %v7864
    %v7944 = vunpack.c.l.b16 %v7865
    %v7945 = vunpack.c.l.b16 %v7866
    %v7946 = vunpack.c.l.b16 %v7867
    %v7947 = vunpack.c.l.b16 %v7868
    %v7948 = vunpack.c.l.b16 %v7869
    %v7949 = vunpack.c.l.b16 %v7870
    %v7950 = vunpack.c.l.b16 %v7871
    %v7951 = vunpack.c.l.b16 %v7872
    %v7952 = vunpack.c.l.b16 %v7873
    %v7953 = vunpack.c.l.b16 %v7874
    %v7954 = vunpack.c.l.b16 %v7875
    %v7955 = vunpack.c.l.b16 %v7876
    %v7956 = vunpack.c.l.b16 %v7877
    %v7957 = vunpack.c.l.b16 %v7878
    %v7958 = vunpack.c.l.b16 %v7879
    %v7959 = vunpack.c.l.b16 %v7880
    %v7960 = vunpack.c.l.b16 %v7881
    %v7961 = vunpack.c.l.b16 %v7882
    %v7962 = vunpack.c.l.b16 %v7883
    %v7963 = vunpack.c.l.b16 %v7884
    %v7964 = vunpack.c.l.b16 %v7885
    %v7965 = vunpack.c.l.b16 %v7886
    %v7966 = vunpack.c.l.b16 %v7887
    %v7967 = vunpack.c.l.b16 %v7888
    %v7968 = vunpack.c.l.b16 %v7889
    %v7969 = vunpack.c.l.b16 %v7890
    %v7970 = vunpack.c.l.b16 %v7891
    %v7971 = vunpack.c.l.b16 %v7892
    %v7972 = vunpack.c.l.b16 %v7893
    %v7973 = vunpack.c.l.b16 %v7894
    %v7974 = vpack.c.b16 %v7939, %v7938
    %v7975 = vpack.c.b16 %v7941, %v7940
    %v7976 = vpack.c.b16 %v7943, %v7942
    %v7977 = vpack.c.b16 %v7945, %v7944
    %v7978 = vpack.c.b16 %v7947, %v7946
    %v7979 = vpack.c.b16 %v7949, %v7948
    %v7980 = vpack.c.b16 %v7951, %v7950
    %v7981 = vpack.c.b16 %v7953, %v7952
    %v7982 = vpack.c.b16 %v7955, %v7954
    %v7983 = vpack.c.b16 %v7957, %v7956
    %v7984 = vpack.c.b16 %v7959, %v7958
    %v7985 = vpack.c.b16 %v7961, %v7960
    %v7986 = vpack.c.b16 %v7963, %v7962
    %v7987 = vpack.c.b16 %v7965, %v7964
    %v7988 = vpack.c.b16 %v7967, %v7966
    %v7989 = vpack.c.b16 %v7969, %v7968
    %v7990 = vpack.c.b16 %v7971, %v7970
    %v7991 = vpack.c.b16 %v7973, %v7972
    %v8011 = vsel %vm52, %v6737, 0
    %v8014 = vsel %vm52, %v6738, 0
    %v8017 = vsel %vm52, %v6739, 0
    %v8020 = vsel %vm52, %v6740, 0
    %v8023 = vsel %vm52, %v6741, 0
    %v8026 = vsel %vm52, %v6742, 0
    %v8029 = vsel %vm52, %v6743, 0
    %v8032 = vsel %vm52, %v6744, 0
    %v8035 = vsel %vm52, %v6745, 0
    %v8038 = vsel %vm52, %v6746, 0
    %v8041 = vsel %vm52, %v6747, 0
    %v8044 = vsel %vm52, %v6748, 0
    %v8047 = vsel %vm52, %v6749, 0
    %v8050 = vsel %vm52, %v6750, 0
    %v8053 = vsel %vm52, %v6751, 0
    %v8056 = vsel %vm52, %v6752, 0
    %v8059 = vsel %vm52, %v6753, 0
    %v8062 = vsel %vm52, %v6754, 0
    %v8065 = vsel %vm52, %v6755, 0
    %v8068 = vsel %vm52, %v6756, 0
    %v8071 = vsel %vm52, %v6757, 0
    %v8074 = vsel %vm52, %v6758, 0
    %v8077 = vsel %vm52, %v6759, 0
    %v8080 = vsel %vm52, %v6760, 0
    %v8083 = vsel %vm52, %v6761, 0
    %v8086 = vsel %vm52, %v6762, 0
    %v8089 = vsel %vm52, %v6763, 0
    %v8092 = vsel %vm52, %v6764, 0
    %v8095 = vsel %vm52, %v6765, 0
    %v8098 = vsel %vm52, %v6766, 0
    %v8101 = vsel %vm52, %v6767, 0
    %v8104 = vsel %vm52, %v6768, 0
    %8106 = vmatprep.subr.bf16.mxu0 0
    %8107 = vmatpush1.bf16.msra.mxu0 %v7974
    %8108 = vmatprep.subr.bf16.mxu0 0
    %8109 = vmatpush1.bf16.msra.mxu0 %v7975
    %8110 = vmatprep.subr.bf16.mxu0 0
    %8111 = vmatpush1.bf16.msra.mxu0 %v7976
    %8112 = vmatprep.subr.bf16.mxu0 0
    %8113 = vmatpush1.bf16.msra.mxu0 %v7977
    %8114 = vmatprep.subr.bf16.mxu0 0
    %8115 = vmatpush1.bf16.msra.mxu0 %v7978
    %8116 = vmatprep.subr.bf16.mxu0 0
    %8117 = vmatpush1.bf16.msra.mxu0 %v7979
    %8118 = vmatprep.subr.bf16.mxu0 0
    %8119 = vmatpush1.bf16.msra.mxu0 %v7980
    %8120 = vmatprep.subr.bf16.mxu0 0
    %8121 = vmatpush1.bf16.msra.mxu0 %v7981
    %8122 = vmatprep.subr.bf16.mxu0 0
    %8123 = vmatpush1.bf16.msra.mxu0 %v7982
    %8124 = vmatprep.subr.bf16.mxu0 0
    %8125 = vmatpush1.bf16.msra.mxu0 %v7983
    %8126 = vmatprep.subr.bf16.mxu0 0
    %8127 = vmatpush1.bf16.msra.mxu0 %v7984
    %8128 = vmatprep.subr.bf16.mxu0 0
    %8129 = vmatpush1.bf16.msra.mxu0 %v7985
    %8130 = vmatprep.subr.bf16.mxu0 0
    %8131 = vmatpush1.bf16.msra.mxu0 %v7986
    %8132 = vmatprep.subr.bf16.mxu0 0
    %8133 = vmatpush1.bf16.msra.mxu0 %v7987
    %8134 = vmatprep.subr.bf16.mxu0 0
    %8135 = vmatpush1.bf16.msra.mxu0 %v7988
    %8136 = vmatprep.subr.bf16.mxu0 0
    %8137 = vmatpush1.bf16.msra.mxu0 %v7989
    %8138 = vmatprep.mubr.bf16.mxu0 %v7764
    %8139 = vmatmul.mubr.bf16.gmra.mrb[0].mxu0 %v7508
    %v8140 = vpop.f32.mrb[0].mxu0
    %v8141 = vadd.f32 %v7900, %v8140
    %v8142 = vpop.f32.mrb[0].mxu0
    %v8143 = vpop.f32.mrb[0].mxu0
    %v8144 = vadd.f32 %v7900, %v8143
    %v8145 = vpop.f32.mrb[0].mxu0
    %8146 = vmatprep.mubr.bf16.mxu0 %v7767
    %8147 = vmatmul.mubr.bf16.gmra.mrb[0].mxu0 %v7511
    %v8148 = vpop.f32.mrb[0].mxu0
    %v8149 = vadd.f32 %v7900, %v8148
    %v8150 = vpop.f32.mrb[0].mxu0
    %v8151 = vpop.f32.mrb[0].mxu0
    %v8152 = vadd.f32 %v7900, %v8151
    %v8153 = vpop.f32.mrb[0].mxu0
    %8154 = vmatprep.mubr.bf16.mxu0 %v7770
    %8155 = vmatmul.mubr.bf16.gmra.mrb[0].mxu0 %v7514
    %v8156 = vpop.f32.mrb[0].mxu0
    %v8157 = vadd.f32 %v7900, %v8156
    %v8158 = vpop.f32.mrb[0].mxu0
    %v8159 = vpop.f32.mrb[0].mxu0
    %v8160 = vadd.f32 %v7900, %v8159
    %v8161 = vpop.f32.mrb[0].mxu0
    %8162 = vmatprep.mubr.bf16.mxu0 %v7773
    %8163 = vmatmul.mubr.bf16.gmra.mrb[0].mxu0 %v7517
    %v8164 = vpop.f32.mrb[0].mxu0
    %v8165 = vadd.f32 %v7900, %v8164
    %v8166 = vpop.f32.mrb[0].mxu0
    %v8167 = vpop.f32.mrb[0].mxu0
    %v8168 = vadd.f32 %v7900, %v8167
    %v8169 = vpop.f32.mrb[0].mxu0
    %8170 = vmatprep.mubr.bf16.mxu0 %v7776
    %8171 = vmatmul.mubr.bf16.gmra.mrb[0].mxu0 %v7520
    %v8172 = vpop.f32.mrb[0].mxu0
    %v8173 = vadd.f32 %v7900, %v8172
    %v8174 = vpop.f32.mrb[0].mxu0
    %v8175 = vpop.f32.mrb[0].mxu0
    %v8176 = vadd.f32 %v7900, %v8175
    %v8177 = vpop.f32.mrb[0].mxu0
    %8178 = vmatprep.mubr.bf16.mxu0 %v7779
    %8179 = vmatmul.mubr.bf16.gmra.mrb[0].mxu0 %v7523
    %v8180 = vpop.f32.mrb[0].mxu0
    %v8181 = vadd.f32 %v7900, %v8180
    %v8182 = vpop.f32.mrb[0].mxu0
    %v8183 = vpop.f32.mrb[0].mxu0
    %v8184 = vadd.f32 %v7900, %v8183
    %v8185 = vpop.f32.mrb[0].mxu0
    %8186 = vmatprep.mubr.bf16.mxu0 %v7782
    %8187 = vmatmul.mubr.bf16.gmra.mrb[0].mxu0 %v7526
    %v8188 = vpop.f32.mrb[0].mxu0
    %v8189 = vadd.f32 %v7900, %v8188
    %v8190 = vpop.f32.mrb[0].mxu0
    %v8191 = vpop.f32.mrb[0].mxu0
    %v8192 = vadd.f32 %v7900, %v8191
    %v8193 = vpop.f32.mrb[0].mxu0
    %8194 = vmatprep.mubr.bf16.mxu0 %v7785
    %8195 = vmatmul.mubr.bf16.gmra.mrb[0].mxu0 %v7529
    %v8196 = vpop.f32.mrb[0].mxu0
    %v8197 = vadd.f32 %v7900, %v8196
    %v8198 = vpop.f32.mrb[0].mxu0
    %v8199 = vpop.f32.mrb[0].mxu0
    %v8200 = vadd.f32 %v7900, %v8199
    %v8201 = vpop.f32.mrb[0].mxu0
    %8202 = vmatprep.mubr.bf16.mxu0 %v7788
    %8203 = vmatmul.mubr.bf16.gmra.mrb[0].mxu0 %v7532
    %v8204 = vpop.f32.mrb[0].mxu0
    %v8205 = vadd.f32 %v7900, %v8204
    %v8206 = vpop.f32.mrb[0].mxu0
    %v8207 = vpop.f32.mrb[0].mxu0
    %v8208 = vadd.f32 %v7900, %v8207
    %v8209 = vpop.f32.mrb[0].mxu0
    %8210 = vmatprep.mubr.bf16.mxu0 %v7791
    %8211 = vmatmul.mubr.bf16.gmra.mrb[0].mxu0 %v7535
    %v8212 = vpop.f32.mrb[0].mxu0
    %v8213 = vadd.f32 %v7900, %v8212
    %v8214 = vpop.f32.mrb[0].mxu0
    %v8215 = vpop.f32.mrb[0].mxu0
    %v8216 = vadd.f32 %v7900, %v8215
    %v8217 = vpop.f32.mrb[0].mxu0
    %8218 = vmatprep.mubr.bf16.mxu0 %v7794
    %8219 = vmatmul.mubr.bf16.gmra.mrb[0].mxu0 %v7538
    %v8220 = vpop.f32.mrb[0].mxu0
    %v8221 = vadd.f32 %v7900, %v8220
    %v8222 = vpop.f32.mrb[0].mxu0
    %v8223 = vpop.f32.mrb[0].mxu0
    %v8224 = vadd.f32 %v7900, %v8223
    %v8225 = vpop.f32.mrb[0].mxu0
    %8226 = vmatprep.mubr.bf16.mxu0 %v7797
    %8227 = vmatmul.mubr.bf16.gmra.mrb[0].mxu0 %v7541
    %v8228 = vpop.f32.mrb[0].mxu0
    %v8229 = vadd.f32 %v7900, %v8228
    %v8230 = vpop.f32.mrb[0].mxu0
    %v8231 = vpop.f32.mrb[0].mxu0
    %v8232 = vadd.f32 %v7900, %v8231
    %v8233 = vpop.f32.mrb[0].mxu0
    %8234 = vmatprep.mubr.bf16.mxu0 %v7800
    %8235 = vmatmul.mubr.bf16.gmra.mrb[0].mxu0 %v7544
    %v8236 = vpop.f32.mrb[0].mxu0
    %v8237 = vadd.f32 %v7900, %v8236
    %v8238 = vpop.f32.mrb[0].mxu0
    %v8239 = vpop.f32.mrb[0].mxu0
    %v8240 = vadd.f32 %v7900, %v8239
    %v8241 = vpop.f32.mrb[0].mxu0
    %8242 = vmatprep.mubr.bf16.mxu0 %v7803
    %8243 = vmatmul.mubr.bf16.gmra.mrb[0].mxu0 %v7547
    %v8244 = vpop.f32.mrb[0].mxu0
    %v8245 = vadd.f32 %v7900, %v8244
    %v8246 = vpop.f32.mrb[0].mxu0
    %v8247 = vpop.f32.mrb[0].mxu0
    %v8248 = vadd.f32 %v7900, %v8247
    %v8249 = vpop.f32.mrb[0].mxu0
    %8250 = vmatprep.mubr.bf16.mxu0 %v7806
    %8251 = vmatmul.mubr.bf16.gmra.mrb[0].mxu0 %v7550
    %v8252 = vpop.f32.mrb[0].mxu0
    %v8253 = vadd.f32 %v7900, %v8252
    %v8254 = vpop.f32.mrb[0].mxu0
    %v8255 = vpop.f32.mrb[0].mxu0
    %v8256 = vadd.f32 %v7900, %v8255
    %v8257 = vpop.f32.mrb[0].mxu0
    %8258 = vmatprep.mubr.bf16.mxu0 %v7809
    %8259 = vmatmul.mubr.bf16.gmra.mrb[0].mxu0 %v7553
    %v8260 = vpop.f32.mrb[0].mxu0
    %v8261 = vadd.f32 %v7900, %v8260
    %v8262 = vpop.f32.mrb[0].mxu0
    %v8263 = vpop.f32.mrb[0].mxu0
    %v8264 = vadd.f32 %v7900, %v8263
    %v8265 = vpop.f32.mrb[0].mxu0
    %8266 = vmatprep.mubr.bf16.mxu0 %v7812
    %8267 = vmatmul.mubr.bf16.gmra.mrb[0].mxu0 %v7556
    %v8268 = vpop.f32.mrb[0].mxu0
    %v8269 = vadd.f32 %v7900, %v8268
    %v8270 = vpop.f32.mrb[0].mxu0
    %v8271 = vpop.f32.mrb[0].mxu0
    %v8272 = vadd.f32 %v7900, %v8271
    %v8273 = vpop.f32.mrb[0].mxu0
    %8274 = vmatprep.mubr.bf16.mxu0 %v7815
    %8275 = vmatmul.mubr.bf16.gmra.mrb[0].mxu0 %v7559
    %v8276 = vpop.f32.mrb[0].mxu0
    %v8277 = vadd.f32 %v7900, %v8276
    %v8278 = vpop.f32.mrb[0].mxu0
    %v8279 = vpop.f32.mrb[0].mxu0
    %v8280 = vadd.f32 %v7900, %v8279
    %v8281 = vpop.f32.mrb[0].mxu0
    %8282 = vmatprep.mubr.bf16.mxu0 %v7818
    %8283 = vmatmul.mubr.bf16.gmra.mrb[0].mxu0 %v7562
    %v8284 = vpop.f32.mrb[0].mxu0
    %v8285 = vadd.f32 %v7900, %v8284
    %v8286 = vpop.f32.mrb[0].mxu0
    %v8287 = vpop.f32.mrb[0].mxu0
    %v8288 = vadd.f32 %v7900, %v8287
    %v8289 = vpop.f32.mrb[0].mxu0
    %8290 = vmatprep.mubr.bf16.mxu0 %v7821
    %8291 = vmatmul.mubr.bf16.gmra.mrb[0].mxu0 %v7565
    %v8292 = vpop.f32.mrb[0].mxu0
    %v8293 = vadd.f32 %v7900, %v8292
    %v8294 = vpop.f32.mrb[0].mxu0
    %v8295 = vpop.f32.mrb[0].mxu0
    %v8296 = vadd.f32 %v7900, %v8295
    %v8297 = vpop.f32.mrb[0].mxu0
    %8298 = vmatprep.mubr.bf16.mxu0 %v7824
    %8299 = vmatmul.mubr.bf16.gmra.mrb[0].mxu0 %v7568
    %v8300 = vpop.f32.mrb[0].mxu0
    %v8301 = vadd.f32 %v7900, %v8300
    %v8302 = vpop.f32.mrb[0].mxu0
    %v8303 = vpop.f32.mrb[0].mxu0
    %v8304 = vadd.f32 %v7900, %v8303
    %v8305 = vpop.f32.mrb[0].mxu0
    %8306 = vmatprep.mubr.bf16.mxu0 %v7827
    %8307 = vmatmul.mubr.bf16.gmra.mrb[0].mxu0 %v7571
    %v8308 = vpop.f32.mrb[0].mxu0
    %v8309 = vadd.f32 %v7900, %v8308
    %v8310 = vpop.f32.mrb[0].mxu0
    %v8311 = vpop.f32.mrb[0].mxu0
    %v8312 = vadd.f32 %v7900, %v8311
    %v8313 = vpop.f32.mrb[0].mxu0
    %8314 = vmatprep.mubr.bf16.mxu0 %v7830
    %8315 = vmatmul.mubr.bf16.gmra.mrb[0].mxu0 %v7574
    %v8316 = vpop.f32.mrb[0].mxu0
    %v8317 = vadd.f32 %v7900, %v8316
    %v8318 = vpop.f32.mrb[0].mxu0
    %v8319 = vpop.f32.mrb[0].mxu0
    %v8320 = vadd.f32 %v7900, %v8319
    %v8321 = vpop.f32.mrb[0].mxu0
    %8322 = vmatprep.mubr.bf16.mxu0 %v7833
    %8323 = vmatmul.mubr.bf16.gmra.mrb[0].mxu0 %v7577
    %v8324 = vpop.f32.mrb[0].mxu0
    %v8325 = vadd.f32 %v7900, %v8324
    %v8326 = vpop.f32.mrb[0].mxu0
    %v8327 = vpop.f32.mrb[0].mxu0
    %v8328 = vadd.f32 %v7900, %v8327
    %v8329 = vpop.f32.mrb[0].mxu0
    %8330 = vmatprep.mubr.bf16.mxu0 %v7836
    %8331 = vmatmul.mubr.bf16.gmra.mrb[0].mxu0 %v7580
    %v8332 = vpop.f32.mrb[0].mxu0
    %v8333 = vadd.f32 %v7900, %v8332
    %v8334 = vpop.f32.mrb[0].mxu0
    %v8335 = vpop.f32.mrb[0].mxu0
    %v8336 = vadd.f32 %v7900, %v8335
    %v8337 = vpop.f32.mrb[0].mxu0
    %8338 = vmatprep.mubr.bf16.mxu0 %v7839
    %8339 = vmatmul.mubr.bf16.gmra.mrb[0].mxu0 %v7583
    %v8340 = vpop.f32.mrb[0].mxu0
    %v8341 = vadd.f32 %v7900, %v8340
    %v8342 = vpop.f32.mrb[0].mxu0
    %v8343 = vpop.f32.mrb[0].mxu0
    %v8344 = vadd.f32 %v7900, %v8343
    %v8345 = vpop.f32.mrb[0].mxu0
    %8346 = vmatprep.mubr.bf16.mxu0 %v7842
    %8347 = vmatmul.mubr.bf16.gmra.mrb[0].mxu0 %v7586
    %v8348 = vpop.f32.mrb[0].mxu0
    %v8349 = vadd.f32 %v7900, %v8348
    %v8350 = vpop.f32.mrb[0].mxu0
    %v8351 = vpop.f32.mrb[0].mxu0
    %v8352 = vadd.f32 %v7900, %v8351
    %v8353 = vpop.f32.mrb[0].mxu0
    %8354 = vmatprep.mubr.bf16.mxu0 %v7845
    %8355 = vmatmul.mubr.bf16.gmra.mrb[0].mxu0 %v7589
    %v8356 = vpop.f32.mrb[0].mxu0
    %v8357 = vadd.f32 %v7900, %v8356
    %v8358 = vpop.f32.mrb[0].mxu0
    %v8359 = vpop.f32.mrb[0].mxu0
    %v8360 = vadd.f32 %v7900, %v8359
    %v8361 = vpop.f32.mrb[0].mxu0
    %8362 = vmatprep.mubr.bf16.mxu0 %v7848
    %8363 = vmatmul.mubr.bf16.gmra.mrb[0].mxu0 %v7592
    %v8364 = vpop.f32.mrb[0].mxu0
    %v8365 = vadd.f32 %v7900, %v8364
    %v8366 = vpop.f32.mrb[0].mxu0
    %v8367 = vpop.f32.mrb[0].mxu0
    %v8368 = vadd.f32 %v7900, %v8367
    %v8369 = vpop.f32.mrb[0].mxu0
    %8370 = vmatprep.mubr.bf16.mxu0 %v7851
    %8371 = vmatmul.mubr.bf16.gmra.mrb[0].mxu0 %v7595
    %v8372 = vpop.f32.mrb[0].mxu0
    %v8373 = vadd.f32 %v7900, %v8372
    %v8374 = vpop.f32.mrb[0].mxu0
    %v8375 = vpop.f32.mrb[0].mxu0
    %v8376 = vadd.f32 %v7900, %v8375
    %v8377 = vpop.f32.mrb[0].mxu0
    %8378 = vmatprep.mubr.bf16.mxu0 %v7854
    %8379 = vmatmul.mubr.bf16.gmra.mrb[0].mxu0 %v7598
    %v8380 = vpop.f32.mrb[0].mxu0
    %v8381 = vadd.f32 %v7900, %v8380
    %v8382 = vpop.f32.mrb[0].mxu0
    %v8383 = vpop.f32.mrb[0].mxu0
    %v8384 = vadd.f32 %v7900, %v8383
    %v8385 = vpop.f32.mrb[0].mxu0
    %8386 = vmatprep.mubr.bf16.mxu0 %v7857
    %8387 = vmatmul.mubr.bf16.gmra.mrb[0].mxu0 %v7601
    %v8388 = vpop.f32.mrb[0].mxu0
    %v8389 = vadd.f32 %v7900, %v8388
    %v8390 = vpop.f32.mrb[0].mxu0
    %v8391 = vpop.f32.mrb[0].mxu0
    %v8392 = vadd.f32 %v7900, %v8391
    %v8393 = vpop.f32.mrb[0].mxu0
    %8394 = vdwg.mxu0
    %8395 = vmatprep.subr.bf16.mxu0 0
    %8396 = vmatpush1.bf16.msra.mxu0 %v7990
    %8397 = vmatprep.subr.bf16.mxu0 0
    %8398 = vmatpush1.bf16.msra.mxu0 %v7991
    %8399 = vmatprep.subr.bf16.mxu0 0
    %8400 = vmatpush1.bf16.msra.mxu0 0
    %8401 = vmatprep.subr.bf16.mxu0 0
    %8402 = vmatpush1.bf16.msra.mxu0 0
    %8403 = vmatprep.subr.bf16.mxu0 0
    %8404 = vmatpush1.bf16.msra.mxu0 0
    %8405 = vmatprep.subr.bf16.mxu0 0
    %8406 = vmatpush1.bf16.msra.mxu0 0
    %8407 = vmatprep.subr.bf16.mxu0 0
    %8408 = vmatpush1.bf16.msra.mxu0 0
    %8409 = vmatprep.subr.bf16.mxu0 0
    %8410 = vmatpush1.bf16.msra.mxu0 0
    %8411 = vmatprep.subr.bf16.mxu0 0
    %8412 = vmatpush1.bf16.msra.mxu0 0
    %8413 = vmatprep.subr.bf16.mxu0 0
    %8414 = vmatpush1.bf16.msra.mxu0 0
    %8415 = vmatprep.subr.bf16.mxu0 0
    %8416 = vmatpush1.bf16.msra.mxu0 0
    %8417 = vmatprep.subr.bf16.mxu0 0
    %8418 = vmatpush1.bf16.msra.mxu0 0
    %8419 = vmatprep.subr.bf16.mxu0 0
    %8420 = vmatpush1.bf16.msra.mxu0 0
    %8421 = vmatprep.subr.bf16.mxu0 0
    %8422 = vmatpush1.bf16.msra.mxu0 0
    %8423 = vmatprep.subr.bf16.mxu0 0
    %8424 = vmatpush1.bf16.msra.mxu0 0
    %8425 = vmatprep.subr.bf16.mxu0 0
    %8426 = vmatpush1.bf16.msra.mxu0 0
    %8427 = vmatprep.mubr.bf16.mxu0 0
    %8428 = vmatmul.mubr.bf16.gmra.mrb[0].mxu0 %v8011
    %v8429 = vpop.f32.mrb[0].mxu0
    %v8430 = vadd.f32 %v8141, %v8429
    %v8431 = vpop.f32.mrb[0].mxu0
    %v8432 = vpop.f32.mrb[0].mxu0
    %v8433 = vadd.f32 %v8144, %v8432
    %v8434 = vpop.f32.mrb[0].mxu0
    %8435 = vmatprep.mubr.bf16.mxu0 0
    %8436 = vmatmul.mubr.bf16.gmra.mrb[0].mxu0 %v8014
    %v8437 = vpop.f32.mrb[0].mxu0
    %v8438 = vadd.f32 %v8149, %v8437
    %v8439 = vpop.f32.mrb[0].mxu0
    %v8440 = vpop.f32.mrb[0].mxu0
    %v8441 = vadd.f32 %v8152, %v8440
    %v8442 = vpop.f32.mrb[0].mxu0
    %8443 = vmatprep.mubr.bf16.mxu0 0
    %8444 = vmatmul.mubr.bf16.gmra.mrb[0].mxu0 %v8017
    %v8445 = vpop.f32.mrb[0].mxu0
    %v8446 = vadd.f32 %v8157, %v8445
    %v8447 = vpop.f32.mrb[0].mxu0
    %v8448 = vpop.f32.mrb[0].mxu0
    %v8449 = vadd.f32 %v8160, %v8448
    %v8450 = vpop.f32.mrb[0].mxu0
    %8451 = vmatprep.mubr.bf16.mxu0 0
    %8452 = vmatmul.mubr.bf16.gmra.mrb[0].mxu0 %v8020
    %v8453 = vpop.f32.mrb[0].mxu0
    %v8454 = vadd.f32 %v8165, %v8453
    %v8455 = vpop.f32.mrb[0].mxu0
    %v8456 = vpop.f32.mrb[0].mxu0
    %v8457 = vadd.f32 %v8168, %v8456
    %v8458 = vpop.f32.mrb[0].mxu0
    %8459 = vmatprep.mubr.bf16.mxu0 0
    %8460 = vmatmul.mubr.bf16.gmra.mrb[0].mxu0 %v8023
    %v8461 = vpop.f32.mrb[0].mxu0
    %v8462 = vadd.f32 %v8173, %v8461
    %v8463 = vpop.f32.mrb[0].mxu0
    %v8464 = vpop.f32.mrb[0].mxu0
    %v8465 = vadd.f32 %v8176, %v8464
    %v8466 = vpop.f32.mrb[0].mxu0
    %8467 = vmatprep.mubr.bf16.mxu0 0
    %8468 = vmatmul.mubr.bf16.gmra.mrb[0].mxu0 %v8026
    %v8469 = vpop.f32.mrb[0].mxu0
    %v8470 = vadd.f32 %v8181, %v8469
    %v8471 = vpop.f32.mrb[0].mxu0
    %v8472 = vpop.f32.mrb[0].mxu0
    %v8473 = vadd.f32 %v8184, %v8472
    %v8474 = vpop.f32.mrb[0].mxu0
    %8475 = vmatprep.mubr.bf16.mxu0 0
    %8476 = vmatmul.mubr.bf16.gmra.mrb[0].mxu0 %v8029
    %v8477 = vpop.f32.mrb[0].mxu0
    %v8478 = vadd.f32 %v8189, %v8477
    %v8479 = vpop.f32.mrb[0].mxu0
    %v8480 = vpop.f32.mrb[0].mxu0
    %v8481 = vadd.f32 %v8192, %v8480
    %v8482 = vpop.f32.mrb[0].mxu0
    %8483 = vmatprep.mubr.bf16.mxu0 0
    %8484 = vmatmul.mubr.bf16.gmra.mrb[0].mxu0 %v8032
    %v8485 = vpop.f32.mrb[0].mxu0
    %v8486 = vadd.f32 %v8197, %v8485
    %v8487 = vpop.f32.mrb[0].mxu0
    %v8488 = vpop.f32.mrb[0].mxu0
    %v8489 = vadd.f32 %v8200, %v8488
    %v8490 = vpop.f32.mrb[0].mxu0
    %8491 = vmatprep.mubr.bf16.mxu0 0
    %8492 = vmatmul.mubr.bf16.gmra.mrb[0].mxu0 %v8035
    %v8493 = vpop.f32.mrb[0].mxu0
    %v8494 = vadd.f32 %v8205, %v8493
    %v8495 = vpop.f32.mrb[0].mxu0
    %v8496 = vpop.f32.mrb[0].mxu0
    %v8497 = vadd.f32 %v8208, %v8496
    %v8498 = vpop.f32.mrb[0].mxu0
    %8499 = vmatprep.mubr.bf16.mxu0 0
    %8500 = vmatmul.mubr.bf16.gmra.mrb[0].mxu0 %v8038
    %v8501 = vpop.f32.mrb[0].mxu0
    %v8502 = vadd.f32 %v8213, %v8501
    %v8503 = vpop.f32.mrb[0].mxu0
    %v8504 = vpop.f32.mrb[0].mxu0
    %v8505 = vadd.f32 %v8216, %v8504
    %v8506 = vpop.f32.mrb[0].mxu0
    %8507 = vmatprep.mubr.bf16.mxu0 0
    %8508 = vmatmul.mubr.bf16.gmra.mrb[0].mxu0 %v8041
    %v8509 = vpop.f32.mrb[0].mxu0
    %v8510 = vadd.f32 %v8221, %v8509
    %v8511 = vpop.f32.mrb[0].mxu0
    %v8512 = vpop.f32.mrb[0].mxu0
    %v8513 = vadd.f32 %v8224, %v8512
    %v8514 = vpop.f32.mrb[0].mxu0
    %8515 = vmatprep.mubr.bf16.mxu0 0
    %8516 = vmatmul.mubr.bf16.gmra.mrb[0].mxu0 %v8044
    %v8517 = vpop.f32.mrb[0].mxu0
    %v8518 = vadd.f32 %v8229, %v8517
    %v8519 = vpop.f32.mrb[0].mxu0
    %v8520 = vpop.f32.mrb[0].mxu0
    %v8521 = vadd.f32 %v8232, %v8520
    %v8522 = vpop.f32.mrb[0].mxu0
    %8523 = vmatprep.mubr.bf16.mxu0 0
    %8524 = vmatmul.mubr.bf16.gmra.mrb[0].mxu0 %v8047
    %v8525 = vpop.f32.mrb[0].mxu0
    %v8526 = vadd.f32 %v8237, %v8525
    %v8527 = vpop.f32.mrb[0].mxu0
    %v8528 = vpop.f32.mrb[0].mxu0
    %v8529 = vadd.f32 %v8240, %v8528
    %v8530 = vpop.f32.mrb[0].mxu0
    %8531 = vmatprep.mubr.bf16.mxu0 0
    %8532 = vmatmul.mubr.bf16.gmra.mrb[0].mxu0 %v8050
    %v8533 = vpop.f32.mrb[0].mxu0
    %v8534 = vadd.f32 %v8245, %v8533
    %v8535 = vpop.f32.mrb[0].mxu0
    %v8536 = vpop.f32.mrb[0].mxu0
    %v8537 = vadd.f32 %v8248, %v8536
    %v8538 = vpop.f32.mrb[0].mxu0
    %8539 = vmatprep.mubr.bf16.mxu0 0
    %8540 = vmatmul.mubr.bf16.gmra.mrb[0].mxu0 %v8053
    %v8541 = vpop.f32.mrb[0].mxu0
    %v8542 = vadd.f32 %v8253, %v8541
    %v8543 = vpop.f32.mrb[0].mxu0
    %v8544 = vpop.f32.mrb[0].mxu0
    %v8545 = vadd.f32 %v8256, %v8544
    %v8546 = vpop.f32.mrb[0].mxu0
    %8547 = vmatprep.mubr.bf16.mxu0 0
    %8548 = vmatmul.mubr.bf16.gmra.mrb[0].mxu0 %v8056
    %v8549 = vpop.f32.mrb[0].mxu0
    %v8550 = vadd.f32 %v8261, %v8549
    %v8551 = vpop.f32.mrb[0].mxu0
    %v8552 = vpop.f32.mrb[0].mxu0
    %v8553 = vadd.f32 %v8264, %v8552
    %v8554 = vpop.f32.mrb[0].mxu0
    %8555 = vmatprep.mubr.bf16.mxu0 0
    %8556 = vmatmul.mubr.bf16.gmra.mrb[0].mxu0 %v8059
    %v8557 = vpop.f32.mrb[0].mxu0
    %v8558 = vadd.f32 %v8269, %v8557
    %v8559 = vpop.f32.mrb[0].mxu0
    %v8560 = vpop.f32.mrb[0].mxu0
    %v8561 = vadd.f32 %v8272, %v8560
    %v8562 = vpop.f32.mrb[0].mxu0
    %8563 = vmatprep.mubr.bf16.mxu0 0
    %8564 = vmatmul.mubr.bf16.gmra.mrb[0].mxu0 %v8062
    %v8565 = vpop.f32.mrb[0].mxu0
    %v8566 = vadd.f32 %v8277, %v8565
    %v8567 = vpop.f32.mrb[0].mxu0
    %v8568 = vpop.f32.mrb[0].mxu0
    %v8569 = vadd.f32 %v8280, %v8568
    %v8570 = vpop.f32.mrb[0].mxu0
    %8571 = vmatprep.mubr.bf16.mxu0 0
    %8572 = vmatmul.mubr.bf16.gmra.mrb[0].mxu0 %v8065
    %v8573 = vpop.f32.mrb[0].mxu0
    %v8574 = vadd.f32 %v8285, %v8573
    %v8575 = vpop.f32.mrb[0].mxu0
    %v8576 = vpop.f32.mrb[0].mxu0
    %v8577 = vadd.f32 %v8288, %v8576
    %v8578 = vpop.f32.mrb[0].mxu0
    %8579 = vmatprep.mubr.bf16.mxu0 0
    %8580 = vmatmul.mubr.bf16.gmra.mrb[0].mxu0 %v8068
    %v8581 = vpop.f32.mrb[0].mxu0
    %v8582 = vadd.f32 %v8293, %v8581
    %v8583 = vpop.f32.mrb[0].mxu0
    %v8584 = vpop.f32.mrb[0].mxu0
    %v8585 = vadd.f32 %v8296, %v8584
    %v8586 = vpop.f32.mrb[0].mxu0
    %8587 = vmatprep.mubr.bf16.mxu0 0
    %8588 = vmatmul.mubr.bf16.gmra.mrb[0].mxu0 %v8071
    %v8589 = vpop.f32.mrb[0].mxu0
    %v8590 = vadd.f32 %v8301, %v8589
    %v8591 = vpop.f32.mrb[0].mxu0
    %v8592 = vpop.f32.mrb[0].mxu0
    %v8593 = vadd.f32 %v8304, %v8592
    %v8594 = vpop.f32.mrb[0].mxu0
    %8595 = vmatprep.mubr.bf16.mxu0 0
    %8596 = vmatmul.mubr.bf16.gmra.mrb[0].mxu0 %v8074
    %v8597 = vpop.f32.mrb[0].mxu0
    %v8598 = vadd.f32 %v8309, %v8597
    %v8599 = vpop.f32.mrb[0].mxu0
    %v8600 = vpop.f32.mrb[0].mxu0
    %v8601 = vadd.f32 %v8312, %v8600
    %v8602 = vpop.f32.mrb[0].mxu0
    %8603 = vmatprep.mubr.bf16.mxu0 0
    %8604 = vmatmul.mubr.bf16.gmra.mrb[0].mxu0 %v8077
    %v8605 = vpop.f32.mrb[0].mxu0
    %v8606 = vadd.f32 %v8317, %v8605
    %v8607 = vpop.f32.mrb[0].mxu0
    %v8608 = vpop.f32.mrb[0].mxu0
    %v8609 = vadd.f32 %v8320, %v8608
    %v8610 = vpop.f32.mrb[0].mxu0
    %8611 = vmatprep.mubr.bf16.mxu0 0
    %8612 = vmatmul.mubr.bf16.gmra.mrb[0].mxu0 %v8080
    %v8613 = vpop.f32.mrb[0].mxu0
    %v8614 = vadd.f32 %v8325, %v8613
    %v8615 = vpop.f32.mrb[0].mxu0
    %v8616 = vpop.f32.mrb[0].mxu0
    %v8617 = vadd.f32 %v8328, %v8616
    %v8618 = vpop.f32.mrb[0].mxu0
    %8619 = vmatprep.mubr.bf16.mxu0 0
    %8620 = vmatmul.mubr.bf16.gmra.mrb[0].mxu0 %v8083
    %v8621 = vpop.f32.mrb[0].mxu0
    %v8622 = vadd.f32 %v8333, %v8621
    %v8623 = vpop.f32.mrb[0].mxu0
    %v8624 = vpop.f32.mrb[0].mxu0
    %v8625 = vadd.f32 %v8336, %v8624
    %v8626 = vpop.f32.mrb[0].mxu0
    %8627 = vmatprep.mubr.bf16.mxu0 0
    %8628 = vmatmul.mubr.bf16.gmra.mrb[0].mxu0 %v8086
    %v8629 = vpop.f32.mrb[0].mxu0
    %v8630 = vadd.f32 %v8341, %v8629
    %v8631 = vpop.f32.mrb[0].mxu0
    %v8632 = vpop.f32.mrb[0].mxu0
    %v8633 = vadd.f32 %v8344, %v8632
    %v8634 = vpop.f32.mrb[0].mxu0
    %8635 = vmatprep.mubr.bf16.mxu0 0
    %8636 = vmatmul.mubr.bf16.gmra.mrb[0].mxu0 %v8089
    %v8637 = vpop.f32.mrb[0].mxu0
    %v8638 = vadd.f32 %v8349, %v8637
    %v8639 = vpop.f32.mrb[0].mxu0
    %v8640 = vpop.f32.mrb[0].mxu0
    %v8641 = vadd.f32 %v8352, %v8640
    %v8642 = vpop.f32.mrb[0].mxu0
    %8643 = vmatprep.mubr.bf16.mxu0 0
    %8644 = vmatmul.mubr.bf16.gmra.mrb[0].mxu0 %v8092
    %v8645 = vpop.f32.mrb[0].mxu0
    %v8646 = vadd.f32 %v8357, %v8645
    %v8647 = vpop.f32.mrb[0].mxu0
    %v8648 = vpop.f32.mrb[0].mxu0
    %v8649 = vadd.f32 %v8360, %v8648
    %v8650 = vpop.f32.mrb[0].mxu0
    %8651 = vmatprep.mubr.bf16.mxu0 0
    %8652 = vmatmul.mubr.bf16.gmra.mrb[0].mxu0 %v8095
    %v8653 = vpop.f32.mrb[0].mxu0
    %v8654 = vadd.f32 %v8365, %v8653
    %v8655 = vpop.f32.mrb[0].mxu0
    %v8656 = vpop.f32.mrb[0].mxu0
    %v8657 = vadd.f32 %v8368, %v8656
    %v8658 = vpop.f32.mrb[0].mxu0
    %8659 = vmatprep.mubr.bf16.mxu0 0
    %8660 = vmatmul.mubr.bf16.gmra.mrb[0].mxu0 %v8098
    %v8661 = vpop.f32.mrb[0].mxu0
    %v8662 = vadd.f32 %v8373, %v8661
    %v8663 = vpop.f32.mrb[0].mxu0
    %v8664 = vpop.f32.mrb[0].mxu0
    %v8665 = vadd.f32 %v8376, %v8664
    %v8666 = vpop.f32.mrb[0].mxu0
    %8667 = vmatprep.mubr.bf16.mxu0 0
    %8668 = vmatmul.mubr.bf16.gmra.mrb[0].mxu0 %v8101
    %v8669 = vpop.f32.mrb[0].mxu0
    %v8670 = vadd.f32 %v8381, %v8669
    %v8671 = vpop.f32.mrb[0].mxu0
    %v8672 = vpop.f32.mrb[0].mxu0
    %v8673 = vadd.f32 %v8384, %v8672
    %v8674 = vpop.f32.mrb[0].mxu0
    %8675 = vmatprep.mubr.bf16.mxu0 0
    %8676 = vmatmul.mubr.bf16.gmra.mrb[0].mxu0 %v8104
    %v8677 = vpop.f32.mrb[0].mxu0
    %v8678 = vadd.f32 %v8389, %v8677
    %v8679 = vpop.f32.mrb[0].mxu0
    %v8680 = vpop.f32.mrb[0].mxu0
    %v8681 = vadd.f32 %v8392, %v8680
    %v8682 = vpop.f32.mrb[0].mxu0
    %8683 = vdwg.mxu0
    %v8684 = vsel %vm52, %v8430, 0.0
    %v8685 = vsel %vm52, %v8433, 0.0
    %v8686 = vadd.f32 %v8684, %v8685
    %v8687 = vsel %vm52, %v8438, 0.0
    %v8688 = vadd.f32 %v8686, %v8687
    %v8689 = vsel %vm52, %v8441, 0.0
    %v8690 = vadd.f32 %v8688, %v8689
    %v8691 = vsel %vm52, %v8446, 0.0
    %v8692 = vadd.f32 %v8690, %v8691
    %v8693 = vsel %vm52, %v8449, 0.0
    %v8694 = vadd.f32 %v8692, %v8693
    %v8695 = vsel %vm52, %v8454, 0.0
    %v8696 = vadd.f32 %v8694, %v8695
    %v8697 = vsel %vm52, %v8457, 0.0
    %v8698 = vadd.f32 %v8696, %v8697
    %v8699 = vsel %vm52, %v8462, 0.0
    %v8700 = vadd.f32 %v8698, %v8699
    %v8701 = vsel %vm52, %v8465, 0.0
    %v8702 = vadd.f32 %v8700, %v8701
    %v8703 = vsel %vm52, %v8470, 0.0
    %v8704 = vadd.f32 %v8702, %v8703
    %v8705 = vsel %vm52, %v8473, 0.0
    %v8706 = vadd.f32 %v8704, %v8705
    %v8707 = vsel %vm52, %v8478, 0.0
    %v8708 = vadd.f32 %v8706, %v8707
    %v8709 = vsel %vm52, %v8481, 0.0
    %v8710 = vadd.f32 %v8708, %v8709
    %v8711 = vsel %vm52, %v8486, 0.0
    %v8712 = vadd.f32 %v8710, %v8711
    %v8713 = vsel %vm52, %v8489, 0.0
    %v8714 = vadd.f32 %v8712, %v8713
    %v8715 = vsel %vm52, %v8494, 0.0
    %v8716 = vadd.f32 %v8714, %v8715
    %v8717 = vsel %vm52, %v8497, 0.0
    %v8718 = vadd.f32 %v8716, %v8717
    %v8719 = vsel %vm52, %v8502, 0.0
    %v8720 = vadd.f32 %v8718, %v8719
    %v8721 = vsel %vm52, %v8505, 0.0
    %v8722 = vadd.f32 %v8720, %v8721
    %v8723 = vsel %vm52, %v8510, 0.0
    %v8724 = vadd.f32 %v8722, %v8723
    %v8725 = vsel %vm52, %v8513, 0.0
    %v8726 = vadd.f32 %v8724, %v8725
    %v8727 = vsel %vm52, %v8518, 0.0
    %v8728 = vadd.f32 %v8726, %v8727
    %v8729 = vsel %vm52, %v8521, 0.0
    %v8730 = vadd.f32 %v8728, %v8729
    %v8731 = vsel %vm52, %v8526, 0.0
    %v8732 = vadd.f32 %v8730, %v8731
    %v8733 = vsel %vm52, %v8529, 0.0
    %v8734 = vadd.f32 %v8732, %v8733
    %v8735 = vsel %vm52, %v8534, 0.0
    %v8736 = vadd.f32 %v8734, %v8735
    %v8737 = vsel %vm52, %v8537, 0.0
    %v8738 = vadd.f32 %v8736, %v8737
    %v8739 = vsel %vm52, %v8542, 0.0
    %v8740 = vadd.f32 %v8738, %v8739
    %v8741 = vsel %vm52, %v8545, 0.0
    %v8742 = vadd.f32 %v8740, %v8741
    %v8743 = vsel %vm52, %v8550, 0.0
    %v8744 = vadd.f32 %v8742, %v8743
    %v8745 = vsel %vm52, %v8553, 0.0
    %v8746 = vadd.f32 %v8744, %v8745
    %v8747 = vsel %vm52, %v8558, 0.0
    %v8748 = vadd.f32 %v8746, %v8747
    %v8749 = vsel %vm52, %v8561, 0.0
    %v8750 = vadd.f32 %v8748, %v8749
    %v8751 = vsel %vm52, %v8566, 0.0
    %v8752 = vadd.f32 %v8750, %v8751
    %v8753 = vsel %vm52, %v8569, 0.0
    %v8754 = vadd.f32 %v8752, %v8753
    %v8755 = vsel %vm52, %v8574, 0.0
    %v8756 = vadd.f32 %v8754, %v8755
    %v8757 = vsel %vm52, %v8577, 0.0
    %v8758 = vadd.f32 %v8756, %v8757
    %v8759 = vsel %vm52, %v8582, 0.0
    %v8760 = vadd.f32 %v8758, %v8759
    %v8761 = vsel %vm52, %v8585, 0.0
    %v8762 = vadd.f32 %v8760, %v8761
    %v8763 = vsel %vm52, %v8590, 0.0
    %v8764 = vadd.f32 %v8762, %v8763
    %v8765 = vsel %vm52, %v8593, 0.0
    %v8766 = vadd.f32 %v8764, %v8765
    %v8767 = vsel %vm52, %v8598, 0.0
    %v8768 = vadd.f32 %v8766, %v8767
    %v8769 = vsel %vm52, %v8601, 0.0
    %v8770 = vadd.f32 %v8768, %v8769
    %v8771 = vsel %vm52, %v8606, 0.0
    %v8772 = vadd.f32 %v8770, %v8771
    %v8773 = vsel %vm52, %v8609, 0.0
    %v8774 = vadd.f32 %v8772, %v8773
    %v8775 = vsel %vm52, %v8614, 0.0
    %v8776 = vadd.f32 %v8774, %v8775
    %v8777 = vsel %vm52, %v8617, 0.0
    %v8778 = vadd.f32 %v8776, %v8777
    %v8779 = vsel %vm52, %v8622, 0.0
    %v8780 = vadd.f32 %v8778, %v8779
    %v8781 = vsel %vm52, %v8625, 0.0
    %v8782 = vadd.f32 %v8780, %v8781
    %v8783 = vsel %vm52, %v8630, 0.0
    %v8784 = vadd.f32 %v8782, %v8783
    %v8785 = vsel %vm52, %v8633, 0.0
    %v8786 = vadd.f32 %v8784, %v8785
    %v8787 = vsel %vm52, %v8638, 0.0
    %v8788 = vadd.f32 %v8786, %v8787
    %v8789 = vsel %vm52, %v8641, 0.0
    %v8790 = vadd.f32 %v8788, %v8789
    %v8791 = vsel %vm52, %v8646, 0.0
    %v8792 = vadd.f32 %v8790, %v8791
    %v8793 = vsel %vm52, %v8649, 0.0
    %v8794 = vadd.f32 %v8792, %v8793
    %v8795 = vsel %vm52, %v8654, 0.0
    %v8796 = vadd.f32 %v8794, %v8795
    %v8797 = vsel %vm52, %v8657, 0.0
    %v8798 = vadd.f32 %v8796, %v8797
    %v8799 = vsel %vm52, %v8662, 0.0
    %v8800 = vadd.f32 %v8798, %v8799
    %v8801 = vsel %vm52, %v8665, 0.0
    %v8802 = vadd.f32 %v8800, %v8801
    %v8803 = vsel %vm52, %v8670, 0.0
    %v8804 = vadd.f32 %v8802, %v8803
    %v8805 = vsel %vm52, %v8673, 0.0
    %v8806 = vadd.f32 %v8804, %v8805
    %v8807 = vsel %vm52, %v8678, 0.0
    %v8808 = vadd.f32 %v8806, %v8807
    %v8809 = vsel %vm52, %v8681, 0.0
    %v8810 = vadd.f32 %v8808, %v8809
    %v8811 = vrot.slane %v8810, 4
    %v8812 = vadd.f32 %v8810, %v8811
    %v8813 = vrot.slane %v8812, 2
    %v8814 = vadd.f32 %v8812, %v8813
    %v8815 = vrot.slane %v8814, 1
    %v8816 = vadd.f32 %v8814, %v8815
    %v8817 = vmul.f32 %v8816, 0.001953125
    %v8818 = vmul.f32 %v8430, %v8430
    %v8819 = vmul.f32 %v8433, %v8433
    %v8820 = vmul.f32 %v8438, %v8438
    %v8821 = vmul.f32 %v8441, %v8441
    %v8822 = vmul.f32 %v8446, %v8446
    %v8823 = vmul.f32 %v8449, %v8449
    %v8824 = vmul.f32 %v8454, %v8454
    %v8825 = vmul.f32 %v8457, %v8457
    %v8826 = vmul.f32 %v8462, %v8462
    %v8827 = vmul.f32 %v8465, %v8465
    %v8828 = vmul.f32 %v8470, %v8470
    %v8829 = vmul.f32 %v8473, %v8473
    %v8830 = vmul.f32 %v8478, %v8478
    %v8831 = vmul.f32 %v8481, %v8481
    %v8832 = vmul.f32 %v8486, %v8486
    %v8833 = vmul.f32 %v8489, %v8489
    %v8834 = vmul.f32 %v8494, %v8494
    %v8835 = vmul.f32 %v8497, %v8497
    %v8836 = vmul.f32 %v8502, %v8502
    %v8837 = vmul.f32 %v8505, %v8505
    %v8838 = vmul.f32 %v8510, %v8510
    %v8839 = vmul.f32 %v8513, %v8513
    %v8840 = vmul.f32 %v8518, %v8518
    %v8841 = vmul.f32 %v8521, %v8521
    %v8842 = vmul.f32 %v8526, %v8526
    %v8843 = vmul.f32 %v8529, %v8529
    %v8844 = vmul.f32 %v8534, %v8534
    %v8845 = vmul.f32 %v8537, %v8537
    %v8846 = vmul.f32 %v8542, %v8542
    %v8847 = vmul.f32 %v8545, %v8545
    %v8848 = vmul.f32 %v8550, %v8550
    %v8849 = vmul.f32 %v8553, %v8553
    %v8850 = vmul.f32 %v8558, %v8558
    %v8851 = vmul.f32 %v8561, %v8561
    %v8852 = vmul.f32 %v8566, %v8566
    %v8853 = vmul.f32 %v8569, %v8569
    %v8854 = vmul.f32 %v8574, %v8574
    %v8855 = vmul.f32 %v8577, %v8577
    %v8856 = vmul.f32 %v8582, %v8582
    %v8857 = vmul.f32 %v8585, %v8585
    %v8858 = vmul.f32 %v8590, %v8590
    %v8859 = vmul.f32 %v8593, %v8593
    %v8860 = vmul.f32 %v8598, %v8598
    %v8861 = vmul.f32 %v8601, %v8601
    %v8862 = vmul.f32 %v8606, %v8606
    %v8863 = vmul.f32 %v8609, %v8609
    %v8864 = vmul.f32 %v8614, %v8614
    %v8865 = vmul.f32 %v8617, %v8617
    %v8866 = vmul.f32 %v8622, %v8622
    %v8867 = vmul.f32 %v8625, %v8625
    %v8868 = vmul.f32 %v8630, %v8630
    %v8869 = vmul.f32 %v8633, %v8633
    %v8870 = vmul.f32 %v8638, %v8638
    %v8871 = vmul.f32 %v8641, %v8641
    %v8872 = vmul.f32 %v8646, %v8646
    %v8873 = vmul.f32 %v8649, %v8649
    %v8874 = vmul.f32 %v8654, %v8654
    %v8875 = vmul.f32 %v8657, %v8657
    %v8876 = vmul.f32 %v8662, %v8662
    %v8877 = vmul.f32 %v8665, %v8665
    %v8878 = vmul.f32 %v8670, %v8670
    %v8879 = vmul.f32 %v8673, %v8673
    %v8880 = vmul.f32 %v8678, %v8678
    %v8881 = vmul.f32 %v8681, %v8681
    %v8882 = vsel %vm52, %v8818, 0.0
    %v8883 = vsel %vm52, %v8819, 0.0
    %v8884 = vadd.f32 %v8882, %v8883
    %v8885 = vsel %vm52, %v8820, 0.0
    %v8886 = vadd.f32 %v8884, %v8885
    %v8887 = vsel %vm52, %v8821, 0.0
    %v8888 = vadd.f32 %v8886, %v8887
    %v8889 = vsel %vm52, %v8822, 0.0
    %v8890 = vadd.f32 %v8888, %v8889
    %v8891 = vsel %vm52, %v8823, 0.0
    %v8892 = vadd.f32 %v8890, %v8891
    %v8893 = vsel %vm52, %v8824, 0.0
    %v8894 = vadd.f32 %v8892, %v8893
    %v8895 = vsel %vm52, %v8825, 0.0
    %v8896 = vadd.f32 %v8894, %v8895
    %v8897 = vsel %vm52, %v8826, 0.0
    %v8898 = vadd.f32 %v8896, %v8897
    %v8899 = vsel %vm52, %v8827, 0.0
    %v8900 = vadd.f32 %v8898, %v8899
    %v8901 = vsel %vm52, %v8828, 0.0
    %v8902 = vadd.f32 %v8900, %v8901
    %v8903 = vsel %vm52, %v8829, 0.0
    %v8904 = vadd.f32 %v8902, %v8903
    %v8905 = vsel %vm52, %v8830, 0.0
    %v8906 = vadd.f32 %v8904, %v8905
    %v8907 = vsel %vm52, %v8831, 0.0
    %v8908 = vadd.f32 %v8906, %v8907
    %v8909 = vsel %vm52, %v8832, 0.0
    %v8910 = vadd.f32 %v8908, %v8909
    %v8911 = vsel %vm52, %v8833, 0.0
    %v8912 = vadd.f32 %v8910, %v8911
    %v8913 = vsel %vm52, %v8834, 0.0
    %v8914 = vadd.f32 %v8912, %v8913
    %v8915 = vsel %vm52, %v8835, 0.0
    %v8916 = vadd.f32 %v8914, %v8915
    %v8917 = vsel %vm52, %v8836, 0.0
    %v8918 = vadd.f32 %v8916, %v8917
    %v8919 = vsel %vm52, %v8837, 0.0
    %v8920 = vadd.f32 %v8918, %v8919
    %v8921 = vsel %vm52, %v8838, 0.0
    %v8922 = vadd.f32 %v8920, %v8921
    %v8923 = vsel %vm52, %v8839, 0.0
    %v8924 = vadd.f32 %v8922, %v8923
    %v8925 = vsel %vm52, %v8840, 0.0
    %v8926 = vadd.f32 %v8924, %v8925
    %v8927 = vsel %vm52, %v8841, 0.0
    %v8928 = vadd.f32 %v8926, %v8927
    %v8929 = vsel %vm52, %v8842, 0.0
    %v8930 = vadd.f32 %v8928, %v8929
    %v8931 = vsel %vm52, %v8843, 0.0
    %v8932 = vadd.f32 %v8930, %v8931
    %v8933 = vsel %vm52, %v8844, 0.0
    %v8934 = vadd.f32 %v8932, %v8933
    %v8935 = vsel %vm52, %v8845, 0.0
    %v8936 = vadd.f32 %v8934, %v8935
    %v8937 = vsel %vm52, %v8846, 0.0
    %v8938 = vadd.f32 %v8936, %v8937
    %v8939 = vsel %vm52, %v8847, 0.0
    %v8940 = vadd.f32 %v8938, %v8939
    %v8941 = vsel %vm52, %v8848, 0.0
    %v8942 = vadd.f32 %v8940, %v8941
    %v8943 = vsel %vm52, %v8849, 0.0
    %v8944 = vadd.f32 %v8942, %v8943
    %v8945 = vsel %vm52, %v8850, 0.0
    %v8946 = vadd.f32 %v8944, %v8945
    %v8947 = vsel %vm52, %v8851, 0.0
    %v8948 = vadd.f32 %v8946, %v8947
    %v8949 = vsel %vm52, %v8852, 0.0
    %v8950 = vadd.f32 %v8948, %v8949
    %v8951 = vsel %vm52, %v8853, 0.0
    %v8952 = vadd.f32 %v8950, %v8951
    %v8953 = vsel %vm52, %v8854, 0.0
    %v8954 = vadd.f32 %v8952, %v8953
    %v8955 = vsel %vm52, %v8855, 0.0
    %v8956 = vadd.f32 %v8954, %v8955
    %v8957 = vsel %vm52, %v8856, 0.0
    %v8958 = vadd.f32 %v8956, %v8957
    %v8959 = vsel %vm52, %v8857, 0.0
    %v8960 = vadd.f32 %v8958, %v8959
    %v8961 = vsel %vm52, %v8858, 0.0
    %v8962 = vadd.f32 %v8960, %v8961
    %v8963 = vsel %vm52, %v8859, 0.0
    %v8964 = vadd.f32 %v8962, %v8963
    %v8965 = vsel %vm52, %v8860, 0.0
    %v8966 = vadd.f32 %v8964, %v8965
    %v8967 = vsel %vm52, %v8861, 0.0
    %v8968 = vadd.f32 %v8966, %v8967
    %v8969 = vsel %vm52, %v8862, 0.0
    %v8970 = vadd.f32 %v8968, %v8969
    %v8971 = vsel %vm52, %v8863, 0.0
    %v8972 = vadd.f32 %v8970, %v8971
    %v8973 = vsel %vm52, %v8864, 0.0
    %v8974 = vadd.f32 %v8972, %v8973
    %v8975 = vsel %vm52, %v8865, 0.0
    %v8976 = vadd.f32 %v8974, %v8975
    %v8977 = vsel %vm52, %v8866, 0.0
    %v8978 = vadd.f32 %v8976, %v8977
    %v8979 = vsel %vm52, %v8867, 0.0
    %v8980 = vadd.f32 %v8978, %v8979
    %v8981 = vsel %vm52, %v8868, 0.0
    %v8982 = vadd.f32 %v8980, %v8981
    %v8983 = vsel %vm52, %v8869, 0.0
    %v8984 = vadd.f32 %v8982, %v8983
    %v8985 = vsel %vm52, %v8870, 0.0
    %v8986 = vadd.f32 %v8984, %v8985
    %v8987 = vsel %vm52, %v8871, 0.0
    %v8988 = vadd.f32 %v8986, %v8987
    %v8989 = vsel %vm52, %v8872, 0.0
    %v8990 = vadd.f32 %v8988, %v8989
    %v8991 = vsel %vm52, %v8873, 0.0
    %v8992 = vadd.f32 %v8990, %v8991
    %v8993 = vsel %vm52, %v8874, 0.0
    %v8994 = vadd.f32 %v8992, %v8993
    %v8995 = vsel %vm52, %v8875, 0.0
    %v8996 = vadd.f32 %v8994, %v8995
    %v8997 = vsel %vm52, %v8876, 0.0
    %v8998 = vadd.f32 %v8996, %v8997
    %v8999 = vsel %vm52, %v8877, 0.0
    %v9000 = vadd.f32 %v8998, %v8999
    %v9001 = vsel %vm52, %v8878, 0.0
    %v9002 = vadd.f32 %v9000, %v9001
    %v9003 = vsel %vm52, %v8879, 0.0
    %v9004 = vadd.f32 %v9002, %v9003
    %v9005 = vsel %vm52, %v8880, 0.0
    %v9006 = vadd.f32 %v9004, %v9005
    %v9007 = vsel %vm52, %v8881, 0.0
    %v9008 = vadd.f32 %v9006, %v9007
    %v9009 = vrot.slane %v9008, 4
    %v9010 = vadd.f32 %v9008, %v9009
    %v9011 = vrot.slane %v9010, 2
    %v9012 = vadd.f32 %v9010, %v9011
    %v9013 = vrot.slane %v9012, 1
    %v9014 = vadd.f32 %v9012, %v9013
    %v9015 = vmul.f32 %v9014, 0.001953125
    %v9016 = vmul.f32 %v8817, %v8817
    %v9017 = vsub.f32 %v9015, %v9016
    %v9018 = vadd.f32 %v9017, 1e-05
    %v9019 = vrsqrt.pop %v9018
    %v9020 = vld [vmem:[%s7] sm:$0x1]
    %v9021 = vmul.f32 %v9019, %v9020
    %v9022 = vsub.f32 %v8430, %v8817
    %v9023 = vsub.f32 %v8433, %v8817
    %v9024 = vsub.f32 %v8438, %v8817
    %v9025 = vsub.f32 %v8441, %v8817
    %v9026 = vsub.f32 %v8446, %v8817
    %v9027 = vsub.f32 %v8449, %v8817
    %v9028 = vsub.f32 %v8454, %v8817
    %v9029 = vsub.f32 %v8457, %v8817
    %v9030 = vsub.f32 %v8462, %v8817
    %v9031 = vsub.f32 %v8465, %v8817
    %v9032 = vsub.f32 %v8470, %v8817
    %v9033 = vsub.f32 %v8473, %v8817
    %v9034 = vsub.f32 %v8478, %v8817
    %v9035 = vsub.f32 %v8481, %v8817
    %v9036 = vsub.f32 %v8486, %v8817
    %v9037 = vsub.f32 %v8489, %v8817
    %v9038 = vsub.f32 %v8494, %v8817
    %v9039 = vsub.f32 %v8497, %v8817
    %v9040 = vsub.f32 %v8502, %v8817
    %v9041 = vsub.f32 %v8505, %v8817
    %v9042 = vsub.f32 %v8510, %v8817
    %v9043 = vsub.f32 %v8513, %v8817
    %v9044 = vsub.f32 %v8518, %v8817
    %v9045 = vsub.f32 %v8521, %v8817
    %v9046 = vsub.f32 %v8526, %v8817
    %v9047 = vsub.f32 %v8529, %v8817
    %v9048 = vsub.f32 %v8534, %v8817
    %v9049 = vsub.f32 %v8537, %v8817
    %v9050 = vsub.f32 %v8542, %v8817
    %v9051 = vsub.f32 %v8545, %v8817
    %v9052 = vsub.f32 %v8550, %v8817
    %v9053 = vsub.f32 %v8553, %v8817
    %v9054 = vsub.f32 %v8558, %v8817
    %v9055 = vsub.f32 %v8561, %v8817
    %v9056 = vsub.f32 %v8566, %v8817
    %v9057 = vsub.f32 %v8569, %v8817
    %v9058 = vsub.f32 %v8574, %v8817
    %v9059 = vsub.f32 %v8577, %v8817
    %v9060 = vsub.f32 %v8582, %v8817
    %v9061 = vsub.f32 %v8585, %v8817
    %v9062 = vsub.f32 %v8590, %v8817
    %v9063 = vsub.f32 %v8593, %v8817
    %v9064 = vsub.f32 %v8598, %v8817
    %v9065 = vsub.f32 %v8601, %v8817
    %v9066 = vsub.f32 %v8606, %v8817
    %v9067 = vsub.f32 %v8609, %v8817
    %v9068 = vsub.f32 %v8614, %v8817
    %v9069 = vsub.f32 %v8617, %v8817
    %v9070 = vsub.f32 %v8622, %v8817
    %v9071 = vsub.f32 %v8625, %v8817
    %v9072 = vsub.f32 %v8630, %v8817
    %v9073 = vsub.f32 %v8633, %v8817
    %v9074 = vsub.f32 %v8638, %v8817
    %v9075 = vsub.f32 %v8641, %v8817
    %v9076 = vsub.f32 %v8646, %v8817
    %v9077 = vsub.f32 %v8649, %v8817
    %v9078 = vsub.f32 %v8654, %v8817
    %v9079 = vsub.f32 %v8657, %v8817
    %v9080 = vsub.f32 %v8662, %v8817
    %v9081 = vsub.f32 %v8665, %v8817
    %v9082 = vsub.f32 %v8670, %v8817
    %v9083 = vsub.f32 %v8673, %v8817
    %v9084 = vsub.f32 %v8678, %v8817
    %v9085 = vsub.f32 %v8681, %v8817
    %v9086 = vlaneseq
    %v9087 = vshrl.u32 %v9086, 7
    %v9088 = vsub.s32 0, %v9087
    %v9089 = vrot.slane %v9021, %v9088
    %v9090 = vmul.f32 %v9022, %v9089
    %v9091 = vmul.f32 %v9023, %v9089
    %v9092 = vmul.f32 %v9024, %v9089
    %v9093 = vmul.f32 %v9025, %v9089
    %v9094 = vmul.f32 %v9026, %v9089
    %v9095 = vmul.f32 %v9027, %v9089
    %v9096 = vmul.f32 %v9028, %v9089
    %v9097 = vmul.f32 %v9029, %v9089
    %v9098 = vmul.f32 %v9030, %v9089
    %v9099 = vmul.f32 %v9031, %v9089
    %v9100 = vmul.f32 %v9032, %v9089
    %v9101 = vmul.f32 %v9033, %v9089
    %v9102 = vmul.f32 %v9034, %v9089
    %v9103 = vmul.f32 %v9035, %v9089
    %v9104 = vmul.f32 %v9036, %v9089
    %v9105 = vmul.f32 %v9037, %v9089
    %v9106 = vmul.f32 %v9038, %v9089
    %v9107 = vmul.f32 %v9039, %v9089
    %v9108 = vmul.f32 %v9040, %v9089
    %v9109 = vmul.f32 %v9041, %v9089
    %v9110 = vmul.f32 %v9042, %v9089
    %v9111 = vmul.f32 %v9043, %v9089
    %v9112 = vmul.f32 %v9044, %v9089
    %v9113 = vmul.f32 %v9045, %v9089
    %v9114 = vmul.f32 %v9046, %v9089
    %v9115 = vmul.f32 %v9047, %v9089
    %v9116 = vmul.f32 %v9048, %v9089
    %v9117 = vmul.f32 %v9049, %v9089
    %v9118 = vmul.f32 %v9050, %v9089
    %v9119 = vmul.f32 %v9051, %v9089
    %v9120 = vmul.f32 %v9052, %v9089
    %v9121 = vmul.f32 %v9053, %v9089
    %v9122 = vmul.f32 %v9054, %v9089
    %v9123 = vmul.f32 %v9055, %v9089
    %v9124 = vmul.f32 %v9056, %v9089
    %v9125 = vmul.f32 %v9057, %v9089
    %v9126 = vmul.f32 %v9058, %v9089
    %v9127 = vmul.f32 %v9059, %v9089
    %v9128 = vmul.f32 %v9060, %v9089
    %v9129 = vmul.f32 %v9061, %v9089
    %v9130 = vmul.f32 %v9062, %v9089
    %v9131 = vmul.f32 %v9063, %v9089
    %v9132 = vmul.f32 %v9064, %v9089
    %v9133 = vmul.f32 %v9065, %v9089
    %v9134 = vmul.f32 %v9066, %v9089
    %v9135 = vmul.f32 %v9067, %v9089
    %v9136 = vmul.f32 %v9068, %v9089
    %v9137 = vmul.f32 %v9069, %v9089
    %v9138 = vmul.f32 %v9070, %v9089
    %v9139 = vmul.f32 %v9071, %v9089
    %v9140 = vmul.f32 %v9072, %v9089
    %v9141 = vmul.f32 %v9073, %v9089
    %v9142 = vmul.f32 %v9074, %v9089
    %v9143 = vmul.f32 %v9075, %v9089
    %v9144 = vmul.f32 %v9076, %v9089
    %v9145 = vmul.f32 %v9077, %v9089
    %v9146 = vmul.f32 %v9078, %v9089
    %v9147 = vmul.f32 %v9079, %v9089
    %v9148 = vmul.f32 %v9080, %v9089
    %v9149 = vmul.f32 %v9081, %v9089
    %v9150 = vmul.f32 %v9082, %v9089
    %v9151 = vmul.f32 %v9083, %v9089
    %v9152 = vmul.f32 %v9084, %v9089
    %v9153 = vmul.f32 %v9085, %v9089
    %v9154 = vld [vmem:[%s8] sm:$0x1]
    %v9156 = vlaneseq
    %v9157 = vshrl.u32 %v9156, 7
    %v9158 = vsub.s32 0, %v9157
    %v9159 = vrot.slane %v9154, %v9158
    %v9161 = vadd.f32 %v9090, %v9159
    %v9162 = vadd.f32 %v9091, %v9159
    %v9163 = vadd.f32 %v9092, %v9159
    %v9164 = vadd.f32 %v9093, %v9159
    %v9165 = vadd.f32 %v9094, %v9159
    %v9166 = vadd.f32 %v9095, %v9159
    %v9167 = vadd.f32 %v9096, %v9159
    %v9168 = vadd.f32 %v9097, %v9159
    %v9169 = vadd.f32 %v9098, %v9159
    %v9170 = vadd.f32 %v9099, %v9159
    %v9171 = vadd.f32 %v9100, %v9159
    %v9172 = vadd.f32 %v9101, %v9159
    %v9173 = vadd.f32 %v9102, %v9159
    %v9174 = vadd.f32 %v9103, %v9159
    %v9175 = vadd.f32 %v9104, %v9159
    %v9176 = vadd.f32 %v9105, %v9159
    %v9177 = vadd.f32 %v9106, %v9159
    %v9178 = vadd.f32 %v9107, %v9159
    %v9179 = vadd.f32 %v9108, %v9159
    %v9180 = vadd.f32 %v9109, %v9159
    %v9181 = vadd.f32 %v9110, %v9159
    %v9182 = vadd.f32 %v9111, %v9159
    %v9183 = vadd.f32 %v9112, %v9159
    %v9184 = vadd.f32 %v9113, %v9159
    %v9185 = vadd.f32 %v9114, %v9159
    %v9186 = vadd.f32 %v9115, %v9159
    %v9187 = vadd.f32 %v9116, %v9159
    %v9188 = vadd.f32 %v9117, %v9159
    %v9189 = vadd.f32 %v9118, %v9159
    %v9190 = vadd.f32 %v9119, %v9159
    %v9191 = vadd.f32 %v9120, %v9159
    %v9192 = vadd.f32 %v9121, %v9159
    %v9193 = vadd.f32 %v9122, %v9159
    %v9194 = vadd.f32 %v9123, %v9159
    %v9195 = vadd.f32 %v9124, %v9159
    %v9196 = vadd.f32 %v9125, %v9159
    %v9197 = vadd.f32 %v9126, %v9159
    %v9198 = vadd.f32 %v9127, %v9159
    %v9199 = vadd.f32 %v9128, %v9159
    %v9200 = vadd.f32 %v9129, %v9159
    %v9201 = vadd.f32 %v9130, %v9159
    %v9202 = vadd.f32 %v9131, %v9159
    %v9203 = vadd.f32 %v9132, %v9159
    %v9204 = vadd.f32 %v9133, %v9159
    %v9205 = vadd.f32 %v9134, %v9159
    %v9206 = vadd.f32 %v9135, %v9159
    %v9207 = vadd.f32 %v9136, %v9159
    %v9208 = vadd.f32 %v9137, %v9159
    %v9209 = vadd.f32 %v9138, %v9159
    %v9210 = vadd.f32 %v9139, %v9159
    %v9211 = vadd.f32 %v9140, %v9159
    %v9212 = vadd.f32 %v9141, %v9159
    %v9213 = vadd.f32 %v9142, %v9159
    %v9214 = vadd.f32 %v9143, %v9159
    %v9215 = vadd.f32 %v9144, %v9159
    %v9216 = vadd.f32 %v9145, %v9159
    %v9217 = vadd.f32 %v9146, %v9159
    %v9218 = vadd.f32 %v9147, %v9159
    %v9219 = vadd.f32 %v9148, %v9159
    %v9220 = vadd.f32 %v9149, %v9159
    %v9221 = vadd.f32 %v9150, %v9159
    %v9222 = vadd.f32 %v9151, %v9159
    %v9223 = vadd.f32 %v9152, %v9159
    %v9224 = vadd.f32 %v9153, %v9159
    %v9225 = vmax.f32 %v9161, 0.0
    %v9226 = vmax.f32 %v9162, 0.0
    %v9227 = vmax.f32 %v9163, 0.0
    %v9228 = vmax.f32 %v9164, 0.0
    %v9229 = vmax.f32 %v9165, 0.0
    %v9230 = vmax.f32 %v9166, 0.0
    %v9231 = vmax.f32 %v9167, 0.0
    %v9232 = vmax.f32 %v9168, 0.0
    %v9233 = vmax.f32 %v9169, 0.0
    %v9234 = vmax.f32 %v9170, 0.0
    %v9235 = vmax.f32 %v9171, 0.0
    %v9236 = vmax.f32 %v9172, 0.0
    %v9237 = vmax.f32 %v9173, 0.0
    %v9238 = vmax.f32 %v9174, 0.0
    %v9239 = vmax.f32 %v9175, 0.0
    %v9240 = vmax.f32 %v9176, 0.0
    %v9241 = vmax.f32 %v9177, 0.0
    %v9242 = vmax.f32 %v9178, 0.0
    %v9243 = vmax.f32 %v9179, 0.0
    %v9244 = vmax.f32 %v9180, 0.0
    %v9245 = vmax.f32 %v9181, 0.0
    %v9246 = vmax.f32 %v9182, 0.0
    %v9247 = vmax.f32 %v9183, 0.0
    %v9248 = vmax.f32 %v9184, 0.0
    %v9249 = vmax.f32 %v9185, 0.0
    %v9250 = vmax.f32 %v9186, 0.0
    %v9251 = vmax.f32 %v9187, 0.0
    %v9252 = vmax.f32 %v9188, 0.0
    %v9253 = vmax.f32 %v9189, 0.0
    %v9254 = vmax.f32 %v9190, 0.0
    %v9255 = vmax.f32 %v9191, 0.0
    %v9256 = vmax.f32 %v9192, 0.0
    %v9257 = vmax.f32 %v9193, 0.0
    %v9258 = vmax.f32 %v9194, 0.0
    %v9259 = vmax.f32 %v9195, 0.0
    %v9260 = vmax.f32 %v9196, 0.0
    %v9261 = vmax.f32 %v9197, 0.0
    %v9262 = vmax.f32 %v9198, 0.0
    %v9263 = vmax.f32 %v9199, 0.0
    %v9264 = vmax.f32 %v9200, 0.0
    %v9265 = vmax.f32 %v9201, 0.0
    %v9266 = vmax.f32 %v9202, 0.0
    %v9267 = vmax.f32 %v9203, 0.0
    %v9268 = vmax.f32 %v9204, 0.0
    %v9269 = vmax.f32 %v9205, 0.0
    %v9270 = vmax.f32 %v9206, 0.0
    %v9271 = vmax.f32 %v9207, 0.0
    %v9272 = vmax.f32 %v9208, 0.0
    %v9273 = vmax.f32 %v9209, 0.0
    %v9274 = vmax.f32 %v9210, 0.0
    %v9275 = vmax.f32 %v9211, 0.0
    %v9276 = vmax.f32 %v9212, 0.0
    %v9277 = vmax.f32 %v9213, 0.0
    %v9278 = vmax.f32 %v9214, 0.0
    %v9279 = vmax.f32 %v9215, 0.0
    %v9280 = vmax.f32 %v9216, 0.0
    %v9281 = vmax.f32 %v9217, 0.0
    %v9282 = vmax.f32 %v9218, 0.0
    %v9283 = vmax.f32 %v9219, 0.0
    %v9284 = vmax.f32 %v9220, 0.0
    %v9285 = vmax.f32 %v9221, 0.0
    %v9286 = vmax.f32 %v9222, 0.0
    %v9287 = vmax.f32 %v9223, 0.0
    %v9288 = vmax.f32 %v9224, 0.0
    %9289 = vst.msk [vmem:[#allocation4] sm:$0xff] %vm52, %v9225
    %9290 = vst.msk [vmem:[#allocation4 + $0x8] sm:$0xff] %vm52, %v9226
    %9291 = vst.msk [vmem:[#allocation4 + $0x10] sm:$0xff] %vm52, %v9227
    %9292 = vst.msk [vmem:[#allocation4 + $0x18] sm:$0xff] %vm52, %v9228
    %9293 = vst.msk [vmem:[#allocation4 + $0x20] sm:$0xff] %vm52, %v9229
    %9294 = vst.msk [vmem:[#allocation4 + $0x28] sm:$0xff] %vm52, %v9230
    %9295 = vst.msk [vmem:[#allocation4 + $0x30] sm:$0xff] %vm52, %v9231
    %9296 = vst.msk [vmem:[#allocation4 + $0x38] sm:$0xff] %vm52, %v9232
    %9297 = vst.msk [vmem:[#allocation4 + $0x40] sm:$0xff] %vm52, %v9233
    %9298 = vst.msk [vmem:[#allocation4 + $0x48] sm:$0xff] %vm52, %v9234
    %9299 = vst.msk [vmem:[#allocation4 + $0x50] sm:$0xff] %vm52, %v9235
    %9300 = vst.msk [vmem:[#allocation4 + $0x58] sm:$0xff] %vm52, %v9236
    %9301 = vst.msk [vmem:[#allocation4 + $0x60] sm:$0xff] %vm52, %v9237
    %9302 = vst.msk [vmem:[#allocation4 + $0x68] sm:$0xff] %vm52, %v9238
    %9303 = vst.msk [vmem:[#allocation4 + $0x70] sm:$0xff] %vm52, %v9239
    %9304 = vst.msk [vmem:[#allocation4 + $0x78] sm:$0xff] %vm52, %v9240
    %9305 = vst.msk [vmem:[#allocation4 + $0x80] sm:$0xff] %vm52, %v9241
    %9306 = vst.msk [vmem:[#allocation4 + $0x88] sm:$0xff] %vm52, %v9242
    %9307 = vst.msk [vmem:[#allocation4 + $0x90] sm:$0xff] %vm52, %v9243
    %9308 = vst.msk [vmem:[#allocation4 + $0x98] sm:$0xff] %vm52, %v9244
    %9309 = vst.msk [vmem:[#allocation4 + $0xa0] sm:$0xff] %vm52, %v9245
    %9310 = vst.msk [vmem:[#allocation4 + $0xa8] sm:$0xff] %vm52, %v9246
    %9311 = vst.msk [vmem:[#allocation4 + $0xb0] sm:$0xff] %vm52, %v9247
    %9312 = vst.msk [vmem:[#allocation4 + $0xb8] sm:$0xff] %vm52, %v9248
    %9313 = vst.msk [vmem:[#allocation4 + $0xc0] sm:$0xff] %vm52, %v9249
    %9314 = vst.msk [vmem:[#allocation4 + $0xc8] sm:$0xff] %vm52, %v9250
    %9315 = vst.msk [vmem:[#allocation4 + $0xd0] sm:$0xff] %vm52, %v9251
    %9316 = vst.msk [vmem:[#allocation4 + $0xd8] sm:$0xff] %vm52, %v9252
    %9317 = vst.msk [vmem:[#allocation4 + $0xe0] sm:$0xff] %vm52, %v9253
    %9318 = vst.msk [vmem:[#allocation4 + $0xe8] sm:$0xff] %vm52, %v9254
    %9319 = vst.msk [vmem:[#allocation4 + $0xf0] sm:$0xff] %vm52, %v9255
    %9320 = vst.msk [vmem:[#allocation4 + $0xf8] sm:$0xff] %vm52, %v9256
    %9321 = vst.msk [vmem:[#allocation4 + $0x100] sm:$0xff] %vm52, %v9257
    %9322 = vst.msk [vmem:[#allocation4 + $0x108] sm:$0xff] %vm52, %v9258
    %9323 = vst.msk [vmem:[#allocation4 + $0x110] sm:$0xff] %vm52, %v9259
    %9324 = vst.msk [vmem:[#allocation4 + $0x118] sm:$0xff] %vm52, %v9260
    %9325 = vst.msk [vmem:[#allocation4 + $0x120] sm:$0xff] %vm52, %v9261
    %9326 = vst.msk [vmem:[#allocation4 + $0x128] sm:$0xff] %vm52, %v9262
    %9327 = vst.msk [vmem:[#allocation4 + $0x130] sm:$0xff] %vm52, %v9263
    %9328 = vst.msk [vmem:[#allocation4 + $0x138] sm:$0xff] %vm52, %v9264
    %9329 = vst.msk [vmem:[#allocation4 + $0x140] sm:$0xff] %vm52, %v9265
    %9330 = vst.msk [vmem:[#allocation4 + $0x148] sm:$0xff] %vm52, %v9266
    %9331 = vst.msk [vmem:[#allocation4 + $0x150] sm:$0xff] %vm52, %v9267
    %9332 = vst.msk [vmem:[#allocation4 + $0x158] sm:$0xff] %vm52, %v9268
    %9333 = vst.msk [vmem:[#allocation4 + $0x160] sm:$0xff] %vm52, %v9269
    %9334 = vst.msk [vmem:[#allocation4 + $0x168] sm:$0xff] %vm52, %v9270
    %9335 = vst.msk [vmem:[#allocation4 + $0x170] sm:$0xff] %vm52, %v9271
    %9336 = vst.msk [vmem:[#allocation4 + $0x178] sm:$0xff] %vm52, %v9272
    %9337 = vst.msk [vmem:[#allocation4 + $0x180] sm:$0xff] %vm52, %v9273
    %9338 = vst.msk [vmem:[#allocation4 + $0x188] sm:$0xff] %vm52, %v9274
    %9339 = vst.msk [vmem:[#allocation4 + $0x190] sm:$0xff] %vm52, %v9275
    %9340 = vst.msk [vmem:[#allocation4 + $0x198] sm:$0xff] %vm52, %v9276
    %9341 = vst.msk [vmem:[#allocation4 + $0x1a0] sm:$0xff] %vm52, %v9277
    %9342 = vst.msk [vmem:[#allocation4 + $0x1a8] sm:$0xff] %vm52, %v9278
    %9343 = vst.msk [vmem:[#allocation4 + $0x1b0] sm:$0xff] %vm52, %v9279
    %9344 = vst.msk [vmem:[#allocation4 + $0x1b8] sm:$0xff] %vm52, %v9280
    %9345 = vst.msk [vmem:[#allocation4 + $0x1c0] sm:$0xff] %vm52, %v9281
    %9346 = vst.msk [vmem:[#allocation4 + $0x1c8] sm:$0xff] %vm52, %v9282
    %9347 = vst.msk [vmem:[#allocation4 + $0x1d0] sm:$0xff] %vm52, %v9283
    %9348 = vst.msk [vmem:[#allocation4 + $0x1d8] sm:$0xff] %vm52, %v9284
    %9349 = vst.msk [vmem:[#allocation4 + $0x1e0] sm:$0xff] %vm52, %v9285
    %9350 = vst.msk [vmem:[#allocation4 + $0x1e8] sm:$0xff] %vm52, %v9286
    %9351 = vst.msk [vmem:[#allocation4 + $0x1f0] sm:$0xff] %vm52, %v9287
    %9352 = vst.msk [vmem:[#allocation4 + $0x1f8] sm:$0xff] %vm52, %v9288
    %v9353 = vld [vmem:[#allocation4] ss:$2 sm:$0xff]
    %s9354 = scalar_lea.vmem [#allocation4], 32
    %v9355 = vld [vmem:[%s9354] ss:$2 sm:$0xff]
    %s9356 = scalar_lea.vmem [#allocation4], 64
    %v9357 = vld [vmem:[%s9356] ss:$2 sm:$0xff]
    %s9358 = scalar_lea.vmem [#allocation4], 96
    %v9359 = vld [vmem:[%s9358] ss:$2 sm:$0xff]
    %s9360 = scalar_lea.vmem [#allocation4], 128
    %v9361 = vld [vmem:[%s9360] ss:$2 sm:$0xff]
    %s9362 = scalar_lea.vmem [#allocation4], 160
    %v9363 = vld [vmem:[%s9362] ss:$2 sm:$0xff]
    %s9364 = scalar_lea.vmem [#allocation4], 192
    %v9365 = vld [vmem:[%s9364] ss:$2 sm:$0xff]
    %s9366 = scalar_lea.vmem [#allocation4], 224
    %v9367 = vld [vmem:[%s9366] ss:$2 sm:$0xff]
    %s9368 = scalar_lea.vmem [#allocation4], 256
    %v9369 = vld [vmem:[%s9368] ss:$2 sm:$0xff]
    %s9370 = scalar_lea.vmem [#allocation4], 288
    %v9371 = vld [vmem:[%s9370] ss:$2 sm:$0xff]
    %s9372 = scalar_lea.vmem [#allocation4], 320
    %v9373 = vld [vmem:[%s9372] ss:$2 sm:$0xff]
    %s9374 = scalar_lea.vmem [#allocation4], 352
    %v9375 = vld [vmem:[%s9374] ss:$2 sm:$0xff]
    %s9376 = scalar_lea.vmem [#allocation4], 384
    %v9377 = vld [vmem:[%s9376] ss:$2 sm:$0xff]
    %s9378 = scalar_lea.vmem [#allocation4], 416
    %v9379 = vld [vmem:[%s9378] ss:$2 sm:$0xff]
    %s9380 = scalar_lea.vmem [#allocation4], 448
    %v9381 = vld [vmem:[%s9380] ss:$2 sm:$0xff]
    %s9382 = scalar_lea.vmem [#allocation4], 480
    %v9383 = vld [vmem:[%s9382] ss:$2 sm:$0xff]
    %s9384 = scalar_lea.vmem [#allocation4], 1
    %v9385 = vld [vmem:[%s9384] ss:$2 sm:$0xff]
    %s9386 = scalar_lea.vmem [#allocation4], 33
    %v9387 = vld [vmem:[%s9386] ss:$2 sm:$0xff]
    %s9388 = scalar_lea.vmem [#allocation4], 65
    %v9389 = vld [vmem:[%s9388] ss:$2 sm:$0xff]
    %s9390 = scalar_lea.vmem [#allocation4], 97
    %v9391 = vld [vmem:[%s9390] ss:$2 sm:$0xff]
    %s9392 = scalar_lea.vmem [#allocation4], 129
    %v9393 = vld [vmem:[%s9392] ss:$2 sm:$0xff]
    %s9394 = scalar_lea.vmem [#allocation4], 161
    %v9395 = vld [vmem:[%s9394] ss:$2 sm:$0xff]
    %s9396 = scalar_lea.vmem [#allocation4], 193
    %v9397 = vld [vmem:[%s9396] ss:$2 sm:$0xff]
    %s9398 = scalar_lea.vmem [#allocation4], 225
    %v9399 = vld [vmem:[%s9398] ss:$2 sm:$0xff]
    %s9400 = scalar_lea.vmem [#allocation4], 257
    %v9401 = vld [vmem:[%s9400] ss:$2 sm:$0xff]
    %s9402 = scalar_lea.vmem [#allocation4], 289
    %v9403 = vld [vmem:[%s9402] ss:$2 sm:$0xff]
    %s9404 = scalar_lea.vmem [#allocation4], 321
    %v9405 = vld [vmem:[%s9404] ss:$2 sm:$0xff]
    %s9406 = scalar_lea.vmem [#allocation4], 353
    %v9407 = vld [vmem:[%s9406] ss:$2 sm:$0xff]
    %s9408 = scalar_lea.vmem [#allocation4], 385
    %v9409 = vld [vmem:[%s9408] ss:$2 sm:$0xff]
    %s9410 = scalar_lea.vmem [#allocation4], 417
    %v9411 = vld [vmem:[%s9410] ss:$2 sm:$0xff]
    %s9412 = scalar_lea.vmem [#allocation4], 449
    %v9413 = vld [vmem:[%s9412] ss:$2 sm:$0xff]
    %s9414 = scalar_lea.vmem [#allocation4], 481
    %v9415 = vld [vmem:[%s9414] ss:$2 sm:$0xff]
    %v9416 = vmax.f32 %v9353, %v9385
    %v9417 = vmax.f32 %v9355, %v9387
    %v9418 = vmax.f32 %v9357, %v9389
    %v9419 = vmax.f32 %v9359, %v9391
    %v9420 = vmax.f32 %v9361, %v9393
    %v9421 = vmax.f32 %v9363, %v9395
    %v9422 = vmax.f32 %v9365, %v9397
    %v9423 = vmax.f32 %v9367, %v9399
    %v9424 = vmax.f32 %v9369, %v9401
    %v9425 = vmax.f32 %v9371, %v9403
    %v9426 = vmax.f32 %v9373, %v9405
    %v9427 = vmax.f32 %v9375, %v9407
    %v9428 = vmax.f32 %v9377, %v9409
    %v9429 = vmax.f32 %v9379, %v9411
    %v9430 = vmax.f32 %v9381, %v9413
    %v9431 = vmax.f32 %v9383, %v9415
    %s9432 = scalar_lea.vmem [#allocation4], 16
    %v9433 = vld [vmem:[%s9432] ss:$2 sm:$0xff]
    %s9434 = scalar_lea.vmem %s9432, 32 [#allocation4]
    %v9435 = vld [vmem:[%s9434] ss:$2 sm:$0xff]
    %s9436 = scalar_lea.vmem %s9432, 64 [#allocation4]
    %v9437 = vld [vmem:[%s9436] ss:$2 sm:$0xff]
    %s9438 = scalar_lea.vmem %s9432, 96 [#allocation4]
    %v9439 = vld [vmem:[%s9438] ss:$2 sm:$0xff]
    %s9440 = scalar_lea.vmem %s9432, 128 [#allocation4]
    %v9441 = vld [vmem:[%s9440] ss:$2 sm:$0xff]
    %s9442 = scalar_lea.vmem %s9432, 160 [#allocation4]
    %v9443 = vld [vmem:[%s9442] ss:$2 sm:$0xff]
    %s9444 = scalar_lea.vmem %s9432, 192 [#allocation4]
    %v9445 = vld [vmem:[%s9444] ss:$2 sm:$0xff]
    %s9446 = scalar_lea.vmem %s9432, 224 [#allocation4]
    %v9447 = vld [vmem:[%s9446] ss:$2 sm:$0xff]
    %s9448 = scalar_lea.vmem %s9432, 256 [#allocation4]
    %v9449 = vld [vmem:[%s9448] ss:$2 sm:$0xff]
    %s9450 = scalar_lea.vmem %s9432, 288 [#allocation4]
    %v9451 = vld [vmem:[%s9450] ss:$2 sm:$0xff]
    %s9452 = scalar_lea.vmem %s9432, 320 [#allocation4]
    %v9453 = vld [vmem:[%s9452] ss:$2 sm:$0xff]
    %s9454 = scalar_lea.vmem %s9432, 352 [#allocation4]
    %v9455 = vld [vmem:[%s9454] ss:$2 sm:$0xff]
    %s9456 = scalar_lea.vmem %s9432, 384 [#allocation4]
    %v9457 = vld [vmem:[%s9456] ss:$2 sm:$0xff]
    %s9458 = scalar_lea.vmem %s9432, 416 [#allocation4]
    %v9459 = vld [vmem:[%s9458] ss:$2 sm:$0xff]
    %s9460 = scalar_lea.vmem %s9432, 448 [#allocation4]
    %v9461 = vld [vmem:[%s9460] ss:$2 sm:$0xff]
    %s9462 = scalar_lea.vmem %s9432, 480 [#allocation4]
    %v9463 = vld [vmem:[%s9462] ss:$2 sm:$0xff]
    %v9464 = vmax.f32 %v9416, %v9433
    %v9465 = vmax.f32 %v9417, %v9435
    %v9466 = vmax.f32 %v9418, %v9437
    %v9467 = vmax.f32 %v9419, %v9439
    %v9468 = vmax.f32 %v9420, %v9441
    %v9469 = vmax.f32 %v9421, %v9443
    %v9470 = vmax.f32 %v9422, %v9445
    %v9471 = vmax.f32 %v9423, %v9447
    %v9472 = vmax.f32 %v9424, %v9449
    %v9473 = vmax.f32 %v9425, %v9451
    %v9474 = vmax.f32 %v9426, %v9453
    %v9475 = vmax.f32 %v9427, %v9455
    %v9476 = vmax.f32 %v9428, %v9457
    %v9477 = vmax.f32 %v9429, %v9459
    %v9478 = vmax.f32 %v9430, %v9461
    %v9479 = vmax.f32 %v9431, %v9463
    %s9480 = scalar_lea.vmem %s9432, 1 [#allocation4]
    %v9481 = vld [vmem:[%s9480] ss:$2 sm:$0xff]
    %s9482 = scalar_lea.vmem %s9432, 33 [#allocation4]
    %v9483 = vld [vmem:[%s9482] ss:$2 sm:$0xff]
    %s9484 = scalar_lea.vmem %s9432, 65 [#allocation4]
    %v9485 = vld [vmem:[%s9484] ss:$2 sm:$0xff]
    %s9486 = scalar_lea.vmem %s9432, 97 [#allocation4]
    %v9487 = vld [vmem:[%s9486] ss:$2 sm:$0xff]
    %s9488 = scalar_lea.vmem %s9432, 129 [#allocation4]
    %v9489 = vld [vmem:[%s9488] ss:$2 sm:$0xff]
    %s9490 = scalar_lea.vmem %s9432, 161 [#allocation4]
    %v9491 = vld [vmem:[%s9490] ss:$2 sm:$0xff]
    %s9492 = scalar_lea.vmem %s9432, 193 [#allocation4]
    %v9493 = vld [vmem:[%s9492] ss:$2 sm:$0xff]
    %s9494 = scalar_lea.vmem %s9432, 225 [#allocation4]
    %v9495 = vld [vmem:[%s9494] ss:$2 sm:$0xff]
    %s9496 = scalar_lea.vmem %s9432, 257 [#allocation4]
    %v9497 = vld [vmem:[%s9496] ss:$2 sm:$0xff]
    %s9498 = scalar_lea.vmem %s9432, 289 [#allocation4]
    %v9499 = vld [vmem:[%s9498] ss:$2 sm:$0xff]
    %s9500 = scalar_lea.vmem %s9432, 321 [#allocation4]
    %v9501 = vld [vmem:[%s9500] ss:$2 sm:$0xff]
    %s9502 = scalar_lea.vmem %s9432, 353 [#allocation4]
    %v9503 = vld [vmem:[%s9502] ss:$2 sm:$0xff]
    %s9504 = scalar_lea.vmem %s9432, 385 [#allocation4]
    %v9505 = vld [vmem:[%s9504] ss:$2 sm:$0xff]
    %s9506 = scalar_lea.vmem %s9432, 417 [#allocation4]
    %v9507 = vld [vmem:[%s9506] ss:$2 sm:$0xff]
    %s9508 = scalar_lea.vmem %s9432, 449 [#allocation4]
    %v9509 = vld [vmem:[%s9508] ss:$2 sm:$0xff]
    %s9510 = scalar_lea.vmem %s9432, 481 [#allocation4]
    %v9511 = vld [vmem:[%s9510] ss:$2 sm:$0xff]
    %v9512 = vmax.f32 %v9464, %v9481
    %v9513 = vmax.f32 %v9465, %v9483
    %v9514 = vmax.f32 %v9466, %v9485
    %v9515 = vmax.f32 %v9467, %v9487
    %v9516 = vmax.f32 %v9468, %v9489
    %v9517 = vmax.f32 %v9469, %v9491
    %v9518 = vmax.f32 %v9470, %v9493
    %v9519 = vmax.f32 %v9471, %v9495
    %v9520 = vmax.f32 %v9472, %v9497
    %v9521 = vmax.f32 %v9473, %v9499
    %v9522 = vmax.f32 %v9474, %v9501
    %v9523 = vmax.f32 %v9475, %v9503
    %v9524 = vmax.f32 %v9476, %v9505
    %v9525 = vmax.f32 %v9477, %v9507
    %v9526 = vmax.f32 %v9478, %v9509
    %v9527 = vmax.f32 %v9479, %v9511
    %9528 = vst.msk [vmem:[%s148 + $0x8] sm:$0xff] %vm52, %v9512
    %9529 = vst.msk [vmem:[%s148 + $0x20] sm:$0xff] %vm52, %v9513
    %9530 = vst.msk [vmem:[%s148 + $0x38] sm:$0xff] %vm52, %v9514
    %9531 = vst.msk [vmem:[%s148 + $0x50] sm:$0xff] %vm52, %v9515
    %9532 = vst.msk [vmem:[%s148 + $0x68] sm:$0xff] %vm52, %v9516
    %9533 = vst.msk [vmem:[%s148 + $0x80] sm:$0xff] %vm52, %v9517
    %9534 = vst.msk [vmem:[%s148 + $0x98] sm:$0xff] %vm52, %v9518
    %9535 = vst.msk [vmem:[%s148 + $0xb0] sm:$0xff] %vm52, %v9519
    %9536 = vst.msk [vmem:[%s148 + $0xf8] sm:$0xff] %vm52, %v9520
    %9537 = vst.msk [vmem:[%s148 + $0x110] sm:$0xff] %vm52, %v9521
    %9538 = vst.msk [vmem:[%s148 + $0x128] sm:$0xff] %vm52, %v9522
    %9539 = vst.msk [vmem:[%s148 + $0x140] sm:$0xff] %vm52, %v9523
    %9540 = vst.msk [vmem:[%s148 + $0x158] sm:$0xff] %vm52, %v9524
    %9541 = vst.msk [vmem:[%s148 + $0x170] sm:$0xff] %vm52, %v9525
    %9542 = vst.msk [vmem:[%s148 + $0x188] sm:$0xff] %vm52, %v9526
    %9543 = vst.msk [vmem:[%s148 + $0x1a0] sm:$0xff] %vm52, %v9527
    %v9544 = vld [vmem:[#allocation5 + $0x7] sm:$0xff]
    %v9545 = vld [vmem:[#allocation5 + $0x1f] sm:$0xff]
    %v9546 = vld [vmem:[#allocation5 + $0x37] sm:$0xff]
    %v9547 = vld [vmem:[#allocation5 + $0x4f] sm:$0xff]
    %v9548 = vld [vmem:[#allocation5 + $0x67] sm:$0xff]
    %v9549 = vld [vmem:[#allocation5 + $0x7f] sm:$0xff]
    %v9550 = vld [vmem:[#allocation5 + $0x97] sm:$0xff]
    %v9551 = vld [vmem:[#allocation5 + $0xaf] sm:$0xff]
    %v9552 = vld [vmem:[#allocation5 + $0xf7] sm:$0xff]
    %v9553 = vld [vmem:[#allocation5 + $0x10f] sm:$0xff]
    %v9554 = vld [vmem:[#allocation5 + $0x127] sm:$0xff]
    %v9555 = vld [vmem:[#allocation5 + $0x13f] sm:$0xff]
    %v9556 = vld [vmem:[#allocation5 + $0x157] sm:$0xff]
    %v9557 = vld [vmem:[#allocation5 + $0x16f] sm:$0xff]
    %v9558 = vld [vmem:[#allocation5 + $0x187] sm:$0xff]
    %v9559 = vld [vmem:[#allocation5 + $0x19f] sm:$0xff]
    %v9560 = vpack.c.bf16 %v9545, %v9544
    %v9561 = vpack.c.bf16 %v9547, %v9546
    %v9562 = vpack.c.bf16 %v9549, %v9548
    %v9563 = vpack.c.bf16 %v9551, %v9550
    %v9564 = vpack.c.bf16 %v9553, %v9552
    %v9565 = vpack.c.bf16 %v9555, %v9554
    %v9566 = vpack.c.bf16 %v9557, %v9556
    %v9567 = vpack.c.bf16 %v9559, %v9558
    %v9568 = vld [vmem:[#allocation5 + $0x8] sm:$0xff]
    %v9569 = vld [vmem:[#allocation5 + $0x20] sm:$0xff]
    %v9570 = vld [vmem:[#allocation5 + $0x38] sm:$0xff]
    %v9571 = vld [vmem:[#allocation5 + $0x50] sm:$0xff]
    %v9572 = vld [vmem:[#allocation5 + $0x68] sm:$0xff]
    %v9573 = vld [vmem:[#allocation5 + $0x80] sm:$0xff]
    %v9574 = vld [vmem:[#allocation5 + $0x98] sm:$0xff]
    %v9575 = vld [vmem:[#allocation5 + $0xb0] sm:$0xff]
    %v9576 = vld [vmem:[#allocation5 + $0xf8] sm:$0xff]
    %v9577 = vld [vmem:[#allocation5 + $0x110] sm:$0xff]
    %v9578 = vld [vmem:[#allocation5 + $0x128] sm:$0xff]
    %v9579 = vld [vmem:[#allocation5 + $0x140] sm:$0xff]
    %v9580 = vld [vmem:[#allocation5 + $0x158] sm:$0xff]
    %v9581 = vld [vmem:[#allocation5 + $0x170] sm:$0xff]
    %v9582 = vld [vmem:[#allocation5 + $0x188] sm:$0xff]
    %v9583 = vld [vmem:[#allocation5 + $0x1a0] sm:$0xff]
    %v9584 = vpack.c.bf16 %v9569, %v9568
    %v9585 = vpack.c.bf16 %v9571, %v9570
    %v9586 = vpack.c.bf16 %v9573, %v9572
    %v9587 = vpack.c.bf16 %v9575, %v9574
    %v9588 = vpack.c.bf16 %v9577, %v9576
    %v9589 = vpack.c.bf16 %v9579, %v9578
    %v9590 = vpack.c.bf16 %v9581, %v9580
    %v9591 = vpack.c.bf16 %v9583, %v9582
    %v9592 = vld [vmem:[#allocation5 + $0x9] sm:$0xff]
    %v9593 = vld [vmem:[#allocation5 + $0x21] sm:$0xff]
    %v9594 = vld [vmem:[#allocation5 + $0x39] sm:$0xff]
    %v9595 = vld [vmem:[#allocation5 + $0x51] sm:$0xff]
    %v9596 = vld [vmem:[#allocation5 + $0x69] sm:$0xff]
    %v9597 = vld [vmem:[#allocation5 + $0x81] sm:$0xff]
    %v9598 = vld [vmem:[#allocation5 + $0x99] sm:$0xff]
    %v9599 = vld [vmem:[#allocation5 + $0xb1] sm:$0xff]
    %v9600 = vld [vmem:[#allocation5 + $0xf9] sm:$0xff]
    %v9601 = vld [vmem:[#allocation5 + $0x111] sm:$0xff]
    %v9602 = vld [vmem:[#allocation5 + $0x129] sm:$0xff]
    %v9603 = vld [vmem:[#allocation5 + $0x141] sm:$0xff]
    %v9604 = vld [vmem:[#allocation5 + $0x159] sm:$0xff]
    %v9605 = vld [vmem:[#allocation5 + $0x171] sm:$0xff]
    %v9606 = vld [vmem:[#allocation5 + $0x189] sm:$0xff]
    %v9607 = vld [vmem:[#allocation5 + $0x1a1] sm:$0xff]
    %v9608 = vpack.c.bf16 %v9593, %v9592
    %v9609 = vpack.c.bf16 %v9595, %v9594
    %v9610 = vpack.c.bf16 %v9597, %v9596
    %v9611 = vpack.c.bf16 %v9599, %v9598
    %v9612 = vpack.c.bf16 %v9601, %v9600
    %v9613 = vpack.c.bf16 %v9603, %v9602
    %v9614 = vpack.c.bf16 %v9605, %v9604
    %v9615 = vpack.c.bf16 %v9607, %v9606
    %v9616 = vld [vmem:[%s148 + $0x7] sm:$0xff]
    %v9617 = vld [vmem:[%s148 + $0x1f] sm:$0xff]
    %v9618 = vld [vmem:[%s148 + $0x37] sm:$0xff]
    %v9619 = vld [vmem:[%s148 + $0x4f] sm:$0xff]
    %v9620 = vld [vmem:[%s148 + $0x67] sm:$0xff]
    %v9621 = vld [vmem:[%s148 + $0x7f] sm:$0xff]
    %v9622 = vld [vmem:[%s148 + $0x97] sm:$0xff]
    %v9623 = vld [vmem:[%s148 + $0xaf] sm:$0xff]
    %v9624 = vld [vmem:[%s148 + $0xf7] sm:$0xff]
    %v9625 = vld [vmem:[%s148 + $0x10f] sm:$0xff]
    %v9626 = vld [vmem:[%s148 + $0x127] sm:$0xff]
    %v9627 = vld [vmem:[%s148 + $0x13f] sm:$0xff]
    %v9628 = vld [vmem:[%s148 + $0x157] sm:$0xff]
    %v9629 = vld [vmem:[%s148 + $0x16f] sm:$0xff]
    %v9630 = vld [vmem:[%s148 + $0x187] sm:$0xff]
    %v9631 = vld [vmem:[%s148 + $0x19f] sm:$0xff]
    %v9632 = vpack.c.bf16 %v9617, %v9616
    %v9633 = vpack.c.bf16 %v9619, %v9618
    %v9634 = vpack.c.bf16 %v9621, %v9620
    %v9635 = vpack.c.bf16 %v9623, %v9622
    %v9636 = vpack.c.bf16 %v9625, %v9624
    %v9637 = vpack.c.bf16 %v9627, %v9626
    %v9638 = vpack.c.bf16 %v9629, %v9628
    %v9639 = vpack.c.bf16 %v9631, %v9630
    %v9640 = vld [vmem:[%s148 + $0x8] sm:$0xff]
    %v9641 = vld [vmem:[%s148 + $0x20] sm:$0xff]
    %v9642 = vld [vmem:[%s148 + $0x38] sm:$0xff]
    %v9643 = vld [vmem:[%s148 + $0x50] sm:$0xff]
    %v9644 = vld [vmem:[%s148 + $0x68] sm:$0xff]
    %v9645 = vld [vmem:[%s148 + $0x80] sm:$0xff]
    %v9646 = vld [vmem:[%s148 + $0x98] sm:$0xff]
    %v9647 = vld [vmem:[%s148 + $0xb0] sm:$0xff]
    %v9648 = vld [vmem:[%s148 + $0xf8] sm:$0xff]
    %v9649 = vld [vmem:[%s148 + $0x110] sm:$0xff]
    %v9650 = vld [vmem:[%s148 + $0x128] sm:$0xff]
    %v9651 = vld [vmem:[%s148 + $0x140] sm:$0xff]
    %v9652 = vld [vmem:[%s148 + $0x158] sm:$0xff]
    %v9653 = vld [vmem:[%s148 + $0x170] sm:$0xff]
    %v9654 = vld [vmem:[%s148 + $0x188] sm:$0xff]
    %v9655 = vld [vmem:[%s148 + $0x1a0] sm:$0xff]
    %v9656 = vpack.c.bf16 %v9641, %v9640
    %v9657 = vpack.c.bf16 %v9643, %v9642
    %v9658 = vpack.c.bf16 %v9645, %v9644
    %v9659 = vpack.c.bf16 %v9647, %v9646
    %v9660 = vpack.c.bf16 %v9649, %v9648
    %v9661 = vpack.c.bf16 %v9651, %v9650
    %v9662 = vpack.c.bf16 %v9653, %v9652
    %v9663 = vpack.c.bf16 %v9655, %v9654
    %v9664 = vld [vmem:[%s148 + $0x9] sm:$0xff]
    %v9665 = vld [vmem:[%s148 + $0x21] sm:$0xff]
    %v9666 = vld [vmem:[%s148 + $0x39] sm:$0xff]
    %v9667 = vld [vmem:[%s148 + $0x51] sm:$0xff]
    %v9668 = vld [vmem:[%s148 + $0x69] sm:$0xff]
    %v9669 = vld [vmem:[%s148 + $0x81] sm:$0xff]
    %v9670 = vld [vmem:[%s148 + $0x99] sm:$0xff]
    %v9671 = vld [vmem:[%s148 + $0xb1] sm:$0xff]
    %v9672 = vld [vmem:[%s148 + $0xf9] sm:$0xff]
    %v9673 = vld [vmem:[%s148 + $0x111] sm:$0xff]
    %v9674 = vld [vmem:[%s148 + $0x129] sm:$0xff]
    %v9675 = vld [vmem:[%s148 + $0x141] sm:$0xff]
    %v9676 = vld [vmem:[%s148 + $0x159] sm:$0xff]
    %v9677 = vld [vmem:[%s148 + $0x171] sm:$0xff]
    %v9678 = vld [vmem:[%s148 + $0x189] sm:$0xff]
    %v9679 = vld [vmem:[%s148 + $0x1a1] sm:$0xff]
    %v9680 = vpack.c.bf16 %v9665, %v9664
    %v9681 = vpack.c.bf16 %v9667, %v9666
    %v9682 = vpack.c.bf16 %v9669, %v9668
    %v9683 = vpack.c.bf16 %v9671, %v9670
    %v9684 = vpack.c.bf16 %v9673, %v9672
    %v9685 = vpack.c.bf16 %v9675, %v9674
    %v9686 = vpack.c.bf16 %v9677, %v9676
    %v9687 = vpack.c.bf16 %v9679, %v9678
    %s9688 = scalar_lea.vmem [#allocation5], 48
    %v9689 = vld [vmem:[%s9688 + $0x7] sm:$0xff]
    %v9690 = vld [vmem:[%s9688 + $0x1f] sm:$0xff]
    %v9691 = vld [vmem:[%s9688 + $0x37] sm:$0xff]
    %v9692 = vld [vmem:[%s9688 + $0x4f] sm:$0xff]
    %v9693 = vld [vmem:[%s9688 + $0x67] sm:$0xff]
    %v9694 = vld [vmem:[%s9688 + $0x7f] sm:$0xff]
    %v9695 = vld [vmem:[%s9688 + $0x97] sm:$0xff]
    %v9696 = vld [vmem:[%s9688 + $0xaf] sm:$0xff]
    %v9697 = vld [vmem:[%s9688 + $0xf7] sm:$0xff]
    %v9698 = vld [vmem:[%s9688 + $0x10f] sm:$0xff]
    %v9699 = vld [vmem:[%s9688 + $0x127] sm:$0xff]
    %v9700 = vld [vmem:[%s9688 + $0x13f] sm:$0xff]
    %v9701 = vld [vmem:[%s9688 + $0x157] sm:$0xff]
    %v9702 = vld [vmem:[%s9688 + $0x16f] sm:$0xff]
    %v9703 = vld [vmem:[%s9688 + $0x187] sm:$0xff]
    %v9704 = vld [vmem:[%s9688 + $0x19f] sm:$0xff]
    %v9705 = vpack.c.bf16 %v9690, %v9689
    %v9706 = vpack.c.bf16 %v9692, %v9691
    %v9707 = vpack.c.bf16 %v9694, %v9693
    %v9708 = vpack.c.bf16 %v9696, %v9695
    %v9709 = vpack.c.bf16 %v9698, %v9697
    %v9710 = vpack.c.bf16 %v9700, %v9699
    %v9711 = vpack.c.bf16 %v9702, %v9701
    %v9712 = vpack.c.bf16 %v9704, %v9703
    %v9713 = vld [vmem:[%s9688 + $0x8] sm:$0xff]
    %v9714 = vld [vmem:[%s9688 + $0x20] sm:$0xff]
    %v9715 = vld [vmem:[%s9688 + $0x38] sm:$0xff]
    %v9716 = vld [vmem:[%s9688 + $0x50] sm:$0xff]
    %v9717 = vld [vmem:[%s9688 + $0x68] sm:$0xff]
    %v9718 = vld [vmem:[%s9688 + $0x80] sm:$0xff]
    %v9719 = vld [vmem:[%s9688 + $0x98] sm:$0xff]
    %v9720 = vld [vmem:[%s9688 + $0xb0] sm:$0xff]
    %v9721 = vld [vmem:[%s9688 + $0xf8] sm:$0xff]
    %v9722 = vld [vmem:[%s9688 + $0x110] sm:$0xff]
    %v9723 = vld [vmem:[%s9688 + $0x128] sm:$0xff]
    %v9724 = vld [vmem:[%s9688 + $0x140] sm:$0xff]
    %v9725 = vld [vmem:[%s9688 + $0x158] sm:$0xff]
    %v9726 = vld [vmem:[%s9688 + $0x170] sm:$0xff]
    %v9727 = vld [vmem:[%s9688 + $0x188] sm:$0xff]
    %v9728 = vld [vmem:[%s9688 + $0x1a0] sm:$0xff]
    %v9729 = vpack.c.bf16 %v9714, %v9713
    %v9730 = vpack.c.bf16 %v9716, %v9715
    %v9731 = vpack.c.bf16 %v9718, %v9717
    %v9732 = vpack.c.bf16 %v9720, %v9719
    %v9733 = vpack.c.bf16 %v9722, %v9721
    %v9734 = vpack.c.bf16 %v9724, %v9723
    %v9735 = vpack.c.bf16 %v9726, %v9725
    %v9736 = vpack.c.bf16 %v9728, %v9727
    %v9737 = vld [vmem:[%s9688 + $0x9] sm:$0xff]
    %v9738 = vld [vmem:[%s9688 + $0x21] sm:$0xff]
    %v9739 = vld [vmem:[%s9688 + $0x39] sm:$0xff]
    %v9740 = vld [vmem:[%s9688 + $0x51] sm:$0xff]
    %v9741 = vld [vmem:[%s9688 + $0x69] sm:$0xff]
    %v9742 = vld [vmem:[%s9688 + $0x81] sm:$0xff]
    %v9743 = vld [vmem:[%s9688 + $0x99] sm:$0xff]
    %v9744 = vld [vmem:[%s9688 + $0xb1] sm:$0xff]
    %v9745 = vld [vmem:[%s9688 + $0xf9] sm:$0xff]
    %v9746 = vld [vmem:[%s9688 + $0x111] sm:$0xff]
    %v9747 = vld [vmem:[%s9688 + $0x129] sm:$0xff]
    %v9748 = vld [vmem:[%s9688 + $0x141] sm:$0xff]
    %v9749 = vld [vmem:[%s9688 + $0x159] sm:$0xff]
    %v9750 = vld [vmem:[%s9688 + $0x171] sm:$0xff]
    %v9751 = vld [vmem:[%s9688 + $0x189] sm:$0xff]
    %v9752 = vld [vmem:[%s9688 + $0x1a1] sm:$0xff]
    %v9753 = vpack.c.bf16 %v9738, %v9737
    %v9754 = vpack.c.bf16 %v9740, %v9739
    %v9755 = vpack.c.bf16 %v9742, %v9741
    %v9756 = vpack.c.bf16 %v9744, %v9743
    %v9757 = vpack.c.bf16 %v9746, %v9745
    %v9758 = vpack.c.bf16 %v9748, %v9747
    %v9759 = vpack.c.bf16 %v9750, %v9749
    %v9760 = vpack.c.bf16 %v9752, %v9751
    %9769 = vrot.lane.b32.xlu0 %v9584, 32
    %v9770 = vpop.permute.xlu0 %9769
    %9771 = vrot.lane.b32.xlu0 %v9585, 32
    %v9772 = vpop.permute.xlu0 %9771
    %9773 = vrot.lane.b32.xlu0 %v9586, 32
    %v9774 = vpop.permute.xlu0 %9773
    %9775 = vrot.lane.b32.xlu0 %v9587, 32
    %v9776 = vpop.permute.xlu0 %9775
    %9777 = vrot.lane.b32.xlu0 %v9588, 32
    %v9778 = vpop.permute.xlu0 %9777
    %9779 = vrot.lane.b32.xlu0 %v9589, 32
    %v9780 = vpop.permute.xlu0 %9779
    %9781 = vrot.lane.b32.xlu0 %v9590, 32
    %v9782 = vpop.permute.xlu0 %9781
    %9783 = vrot.lane.b32.xlu0 %v9591, 32
    %v9784 = vpop.permute.xlu0 %9783
    %9793 = vrot.lane.b32.xlu0 %v9608, 64
    %v9794 = vpop.permute.xlu0 %9793
    %9795 = vrot.lane.b32.xlu0 %v9609, 64
    %v9796 = vpop.permute.xlu0 %9795
    %9797 = vrot.lane.b32.xlu0 %v9610, 64
    %v9798 = vpop.permute.xlu0 %9797
    %9799 = vrot.lane.b32.xlu0 %v9611, 64
    %v9800 = vpop.permute.xlu0 %9799
    %9801 = vrot.lane.b32.xlu0 %v9612, 64
    %v9802 = vpop.permute.xlu0 %9801
    %9803 = vrot.lane.b32.xlu0 %v9613, 64
    %v9804 = vpop.permute.xlu0 %9803
    %9805 = vrot.lane.b32.xlu0 %v9614, 64
    %v9806 = vpop.permute.xlu0 %9805
    %9807 = vrot.lane.b32.xlu0 %v9615, 64
    %v9808 = vpop.permute.xlu0 %9807
    %9817 = vrot.lane.b32.xlu0 %v9632, 96
    %v9818 = vpop.permute.xlu0 %9817
    %9819 = vrot.lane.b32.xlu0 %v9633, 96
    %v9820 = vpop.permute.xlu0 %9819
    %9821 = vrot.lane.b32.xlu0 %v9634, 96
    %v9822 = vpop.permute.xlu0 %9821
    %9823 = vrot.lane.b32.xlu0 %v9635, 96
    %v9824 = vpop.permute.xlu0 %9823
    %9825 = vrot.lane.b32.xlu0 %v9636, 96
    %v9826 = vpop.permute.xlu0 %9825
    %9827 = vrot.lane.b32.xlu0 %v9637, 96
    %v9828 = vpop.permute.xlu0 %9827
    %9829 = vrot.lane.b32.xlu0 %v9638, 96
    %v9830 = vpop.permute.xlu0 %9829
    %9831 = vrot.lane.b32.xlu0 %v9639, 96
    %v9832 = vpop.permute.xlu0 %9831
    %9841 = vrot.lane.b32.xlu0 %v9680, 32
    %v9842 = vpop.permute.xlu0 %9841
    %9843 = vrot.lane.b32.xlu0 %v9681, 32
    %v9844 = vpop.permute.xlu0 %9843
    %9845 = vrot.lane.b32.xlu0 %v9682, 32
    %v9846 = vpop.permute.xlu0 %9845
    %9847 = vrot.lane.b32.xlu0 %v9683, 32
    %v9848 = vpop.permute.xlu0 %9847
    %9849 = vrot.lane.b32.xlu0 %v9684, 32
    %v9850 = vpop.permute.xlu0 %9849
    %9851 = vrot.lane.b32.xlu0 %v9685, 32
    %v9852 = vpop.permute.xlu0 %9851
    %9853 = vrot.lane.b32.xlu0 %v9686, 32
    %v9854 = vpop.permute.xlu0 %9853
    %9855 = vrot.lane.b32.xlu0 %v9687, 32
    %v9856 = vpop.permute.xlu0 %9855
    %9865 = vrot.lane.b32.xlu0 %v9705, 64
    %v9866 = vpop.permute.xlu0 %9865
    %9867 = vrot.lane.b32.xlu0 %v9706, 64
    %v9868 = vpop.permute.xlu0 %9867
    %9869 = vrot.lane.b32.xlu0 %v9707, 64
    %v9870 = vpop.permute.xlu0 %9869
    %9871 = vrot.lane.b32.xlu0 %v9708, 64
    %v9872 = vpop.permute.xlu0 %9871
    %9873 = vrot.lane.b32.xlu0 %v9709, 64
    %v9874 = vpop.permute.xlu0 %9873
    %9875 = vrot.lane.b32.xlu0 %v9710, 64
    %v9876 = vpop.permute.xlu0 %9875
    %9877 = vrot.lane.b32.xlu0 %v9711, 64
    %v9878 = vpop.permute.xlu0 %9877
    %9879 = vrot.lane.b32.xlu0 %v9712, 64
    %v9880 = vpop.permute.xlu0 %9879
    %9889 = vrot.lane.b32.xlu0 %v9729, 96
    %v9890 = vpop.permute.xlu0 %9889
    %9891 = vrot.lane.b32.xlu0 %v9730, 96
    %v9892 = vpop.permute.xlu0 %9891
    %9893 = vrot.lane.b32.xlu0 %v9731, 96
    %v9894 = vpop.permute.xlu0 %9893
    %9895 = vrot.lane.b32.xlu0 %v9732, 96
    %v9896 = vpop.permute.xlu0 %9895
    %9897 = vrot.lane.b32.xlu0 %v9733, 96
    %v9898 = vpop.permute.xlu0 %9897
    %9899 = vrot.lane.b32.xlu0 %v9734, 96
    %v9900 = vpop.permute.xlu0 %9899
    %9901 = vrot.lane.b32.xlu0 %v9735, 96
    %v9902 = vpop.permute.xlu0 %9901
    %9903 = vrot.lane.b32.xlu0 %v9736, 96
    %v9904 = vpop.permute.xlu0 %9903
    %v9907 = vsel %vm52, %v9560, %v9770
    %v9910 = vsel %vm52, %v9561, %v9772
    %v9913 = vsel %vm52, %v9562, %v9774
    %v9916 = vsel %vm52, %v9563, %v9776
    %v9919 = vsel %vm52, %v9564, %v9778
    %v9922 = vsel %vm52, %v9565, %v9780
    %v9925 = vsel %vm52, %v9566, %v9782
    %v9928 = vsel %vm52, %v9567, %v9784
    %v9930 = vsel %vm7441, %v9907, %v9794
    %v9932 = vsel %vm7441, %v9910, %v9796
    %v9934 = vsel %vm7441, %v9913, %v9798
    %v9936 = vsel %vm7441, %v9916, %v9800
    %v9938 = vsel %vm7441, %v9919, %v9802
    %v9940 = vsel %vm7441, %v9922, %v9804
    %v9942 = vsel %vm7441, %v9925, %v9806
    %v9944 = vsel %vm7441, %v9928, %v9808
    %v9946 = vsel %vm7506, %v9930, %v9818
    %v9949 = vsel %vm7506, %v9932, %v9820
    %v9952 = vsel %vm7506, %v9934, %v9822
    %v9955 = vsel %vm7506, %v9936, %v9824
    %v9958 = vsel %vm7506, %v9938, %v9826
    %v9961 = vsel %vm7506, %v9940, %v9828
    %v9964 = vsel %vm7506, %v9942, %v9830
    %v9967 = vsel %vm7506, %v9944, %v9832
    %v9971 = vsel %vm52, %v9656, %v9842
    %v9974 = vsel %vm52, %v9657, %v9844
    %v9977 = vsel %vm52, %v9658, %v9846
    %v9980 = vsel %vm52, %v9659, %v9848
    %v9983 = vsel %vm52, %v9660, %v9850
    %v9986 = vsel %vm52, %v9661, %v9852
    %v9989 = vsel %vm52, %v9662, %v9854
    %v9992 = vsel %vm52, %v9663, %v9856
    %v9994 = vsel %vm7441, %v9971, %v9866
    %v9996 = vsel %vm7441, %v9974, %v9868
    %v9998 = vsel %vm7441, %v9977, %v9870
    %v10000 = vsel %vm7441, %v9980, %v9872
    %v10002 = vsel %vm7441, %v9983, %v9874
    %v10004 = vsel %vm7441, %v9986, %v9876
    %v10006 = vsel %vm7441, %v9989, %v9878
    %v10008 = vsel %vm7441, %v9992, %v9880
    %v10010 = vsel %vm7506, %v9994, %v9890
    %v10013 = vsel %vm7506, %v9996, %v9892
    %v10016 = vsel %vm7506, %v9998, %v9894
    %v10019 = vsel %vm7506, %v10000, %v9896
    %v10022 = vsel %vm7506, %v10002, %v9898
    %v10025 = vsel %vm7506, %v10004, %v9900
    %v10028 = vsel %vm7506, %v10006, %v9902
    %v10031 = vsel %vm7506, %v10008, %v9904
    %v10033 = vld [vmem:[%s9] sm:$0xf]
    %v10034 = vld [vmem:[%s9 + $0x4] sm:$0xf]
    %v10035 = vld [vmem:[%s9 + $0x8] sm:$0xf]
    %v10036 = vld [vmem:[%s9 + $0xc] sm:$0xf]
    %v10037 = vld [vmem:[%s9 + $0x10] sm:$0xf]
    %v10038 = vld [vmem:[%s9 + $0x14] sm:$0xf]
    %v10039 = vld [vmem:[%s9 + $0x18] sm:$0xf]
    %v10040 = vld [vmem:[%s9 + $0x1c] sm:$0xf]
    %v10041 = vld [vmem:[%s9 + $0x20] sm:$0xf]
    %v10042 = vld [vmem:[%s9 + $0x24] sm:$0xf]
    %v10043 = vld [vmem:[%s9 + $0x28] sm:$0xf]
    %v10044 = vld [vmem:[%s9 + $0x2c] sm:$0xf]
    %v10045 = vld [vmem:[%s9 + $0x30] sm:$0xf]
    %v10046 = vld [vmem:[%s9 + $0x34] sm:$0xf]
    %v10047 = vld [vmem:[%s9 + $0x38] sm:$0xf]
    %v10048 = vld [vmem:[%s9 + $0x3c] sm:$0xf]
    %v10049 = vld [vmem:[%s9 + $0x40] sm:$0xf]
    %v10050 = vld [vmem:[%s9 + $0x44] sm:$0xf]
    %v10051 = vld [vmem:[%s9 + $0x48] sm:$0xf]
    %v10052 = vld [vmem:[%s9 + $0x4c] sm:$0xf]
    %v10053 = vld [vmem:[%s9 + $0x50] sm:$0xf]
    %v10054 = vld [vmem:[%s9 + $0x54] sm:$0xf]
    %v10055 = vld [vmem:[%s9 + $0x58] sm:$0xf]
    %v10056 = vld [vmem:[%s9 + $0x5c] sm:$0xf]
    %v10057 = vld [vmem:[%s9 + $0x60] sm:$0xf]
    %v10058 = vld [vmem:[%s9 + $0x64] sm:$0xf]
    %v10059 = vld [vmem:[%s9 + $0x68] sm:$0xf]
    %v10060 = vld [vmem:[%s9 + $0x6c] sm:$0xf]
    %v10061 = vld [vmem:[%s9 + $0x70] sm:$0xf]
    %v10062 = vld [vmem:[%s9 + $0x74] sm:$0xf]
    %v10063 = vld [vmem:[%s9 + $0x78] sm:$0xf]
    %v10064 = vld [vmem:[%s9 + $0x7c] sm:$0xf]
    %v10065 = vld [vmem:[%s9 + $0x80] sm:$0xf]
    %v10066 = vld [vmem:[%s9 + $0x84] sm:$0xf]
    %v10067 = vld [vmem:[%s9 + $0x88] sm:$0xf]
    %v10068 = vld [vmem:[%s9 + $0x8c] sm:$0xf]
    %v10069 = vld [vmem:[%s10] sm:$0x1]
    %v10071 = vlaneseq
    %v10072 = vshrl.u32 %v10071, 7
    %v10073 = vsub.s32 0, %v10072
    %v10074 = vrot.slane %v10069, %v10073
    %v10112 = vunpack.c.l.b16 %v10033
    %v10113 = vunpack.c.l.b16 %v10034
    %v10114 = vunpack.c.l.b16 %v10035
    %v10115 = vunpack.c.l.b16 %v10036
    %v10116 = vunpack.c.l.b16 %v10037
    %v10117 = vunpack.c.l.b16 %v10038
    %v10118 = vunpack.c.l.b16 %v10039
    %v10119 = vunpack.c.l.b16 %v10040
    %v10120 = vunpack.c.l.b16 %v10041
    %v10121 = vunpack.c.l.b16 %v10042
    %v10122 = vunpack.c.l.b16 %v10043
    %v10123 = vunpack.c.l.b16 %v10044
    %v10124 = vunpack.c.l.b16 %v10045
    %v10125 = vunpack.c.l.b16 %v10046
    %v10126 = vunpack.c.l.b16 %v10047
    %v10127 = vunpack.c.l.b16 %v10048
    %v10128 = vunpack.c.l.b16 %v10049
    %v10129 = vunpack.c.l.b16 %v10050
    %v10130 = vunpack.c.l.b16 %v10051
    %v10131 = vunpack.c.l.b16 %v10052
    %v10132 = vunpack.c.l.b16 %v10053
    %v10133 = vunpack.c.l.b16 %v10054
    %v10134 = vunpack.c.l.b16 %v10055
    %v10135 = vunpack.c.l.b16 %v10056
    %v10136 = vunpack.c.l.b16 %v10057
    %v10137 = vunpack.c.l.b16 %v10058
    %v10138 = vunpack.c.l.b16 %v10059
    %v10139 = vunpack.c.l.b16 %v10060
    %v10140 = vunpack.c.l.b16 %v10061
    %v10141 = vunpack.c.l.b16 %v10062
    %v10142 = vunpack.c.l.b16 %v10063
    %v10143 = vunpack.c.l.b16 %v10064
    %v10144 = vunpack.c.l.b16 %v10065
    %v10145 = vunpack.c.l.b16 %v10066
    %v10146 = vunpack.c.l.b16 %v10067
    %v10147 = vunpack.c.l.b16 %v10068
    %v10148 = vpack.c.b16 %v10113, %v10112
    %v10149 = vpack.c.b16 %v10115, %v10114
    %v10150 = vpack.c.b16 %v10117, %v10116
    %v10151 = vpack.c.b16 %v10119, %v10118
    %v10152 = vpack.c.b16 %v10121, %v10120
    %v10153 = vpack.c.b16 %v10123, %v10122
    %v10154 = vpack.c.b16 %v10125, %v10124
    %v10155 = vpack.c.b16 %v10127, %v10126
    %v10156 = vpack.c.b16 %v10129, %v10128
    %v10157 = vpack.c.b16 %v10131, %v10130
    %v10158 = vpack.c.b16 %v10133, %v10132
    %v10159 = vpack.c.b16 %v10135, %v10134
    %v10160 = vpack.c.b16 %v10137, %v10136
    %v10161 = vpack.c.b16 %v10139, %v10138
    %v10162 = vpack.c.b16 %v10141, %v10140
    %v10163 = vpack.c.b16 %v10143, %v10142
    %v10164 = vpack.c.b16 %v10145, %v10144
    %v10165 = vpack.c.b16 %v10147, %v10146
    %v10185 = vsel %vm52, %v9753, 0
    %v10188 = vsel %vm52, %v9754, 0
    %v10191 = vsel %vm52, %v9755, 0
    %v10194 = vsel %vm52, %v9756, 0
    %v10197 = vsel %vm52, %v9757, 0
    %v10200 = vsel %vm52, %v9758, 0
    %v10203 = vsel %vm52, %v9759, 0
    %v10206 = vsel %vm52, %v9760, 0
    %10208 = vmatprep.subr.bf16.mxu0 0
    %10209 = vmatpush1.bf16.msra.mxu0 %v10148
    %10210 = vmatprep.subr.bf16.mxu0 0
    %10211 = vmatpush1.bf16.msra.mxu0 %v10149
    %10212 = vmatprep.subr.bf16.mxu0 0
    %10213 = vmatpush1.bf16.msra.mxu0 %v10150
    %10214 = vmatprep.subr.bf16.mxu0 0
    %10215 = vmatpush1.bf16.msra.mxu0 %v10151
    %10216 = vmatprep.subr.bf16.mxu0 0
    %10217 = vmatpush1.bf16.msra.mxu0 %v10152
    %10218 = vmatprep.subr.bf16.mxu0 0
    %10219 = vmatpush1.bf16.msra.mxu0 %v10153
    %10220 = vmatprep.subr.bf16.mxu0 0
    %10221 = vmatpush1.bf16.msra.mxu0 %v10154
    %10222 = vmatprep.subr.bf16.mxu0 0
    %10223 = vmatpush1.bf16.msra.mxu0 %v10155
    %10224 = vmatprep.subr.bf16.mxu0 0
    %10225 = vmatpush1.bf16.msra.mxu0 %v10156
    %10226 = vmatprep.subr.bf16.mxu0 0
    %10227 = vmatpush1.bf16.msra.mxu0 %v10157
    %10228 = vmatprep.subr.bf16.mxu0 0
    %10229 = vmatpush1.bf16.msra.mxu0 %v10158
    %10230 = vmatprep.subr.bf16.mxu0 0
    %10231 = vmatpush1.bf16.msra.mxu0 %v10159
    %10232 = vmatprep.subr.bf16.mxu0 0
    %10233 = vmatpush1.bf16.msra.mxu0 %v10160
    %10234 = vmatprep.subr.bf16.mxu0 0
    %10235 = vmatpush1.bf16.msra.mxu0 %v10161
    %10236 = vmatprep.subr.bf16.mxu0 0
    %10237 = vmatpush1.bf16.msra.mxu0 %v10162
    %10238 = vmatprep.subr.bf16.mxu0 0
    %10239 = vmatpush1.bf16.msra.mxu0 %v10163
    %10240 = vmatprep.mubr.bf16.mxu0 %v10010
    %10241 = vmatmul.mubr.bf16.gmra.mrb[0].mxu0 %v9946
    %v10242 = vpop.f32.mrb[0].mxu0
    %v10243 = vadd.f32 %v10074, %v10242
    %v10244 = vpop.f32.mrb[0].mxu0
    %v10245 = vpop.f32.mrb[0].mxu0
    %v10246 = vadd.f32 %v10074, %v10245
    %v10247 = vpop.f32.mrb[0].mxu0
    %10248 = vmatprep.mubr.bf16.mxu0 %v10013
    %10249 = vmatmul.mubr.bf16.gmra.mrb[0].mxu0 %v9949
    %v10250 = vpop.f32.mrb[0].mxu0
    %v10251 = vadd.f32 %v10074, %v10250
    %v10252 = vpop.f32.mrb[0].mxu0
    %v10253 = vpop.f32.mrb[0].mxu0
    %v10254 = vadd.f32 %v10074, %v10253
    %v10255 = vpop.f32.mrb[0].mxu0
    %10256 = vmatprep.mubr.bf16.mxu0 %v10016
    %10257 = vmatmul.mubr.bf16.gmra.mrb[0].mxu0 %v9952
    %v10258 = vpop.f32.mrb[0].mxu0
    %v10259 = vadd.f32 %v10074, %v10258
    %v10260 = vpop.f32.mrb[0].mxu0
    %v10261 = vpop.f32.mrb[0].mxu0
    %v10262 = vadd.f32 %v10074, %v10261
    %v10263 = vpop.f32.mrb[0].mxu0
    %10264 = vmatprep.mubr.bf16.mxu0 %v10019
    %10265 = vmatmul.mubr.bf16.gmra.mrb[0].mxu0 %v9955
    %v10266 = vpop.f32.mrb[0].mxu0
    %v10267 = vadd.f32 %v10074, %v10266
    %v10268 = vpop.f32.mrb[0].mxu0
    %v10269 = vpop.f32.mrb[0].mxu0
    %v10270 = vadd.f32 %v10074, %v10269
    %v10271 = vpop.f32.mrb[0].mxu0
    %10272 = vmatprep.mubr.bf16.mxu0 %v10022
    %10273 = vmatmul.mubr.bf16.gmra.mrb[0].mxu0 %v9958
    %v10274 = vpop.f32.mrb[0].mxu0
    %v10275 = vadd.f32 %v10074, %v10274
    %v10276 = vpop.f32.mrb[0].mxu0
    %v10277 = vpop.f32.mrb[0].mxu0
    %v10278 = vadd.f32 %v10074, %v10277
    %v10279 = vpop.f32.mrb[0].mxu0
    %10280 = vmatprep.mubr.bf16.mxu0 %v10025
    %10281 = vmatmul.mubr.bf16.gmra.mrb[0].mxu0 %v9961
    %v10282 = vpop.f32.mrb[0].mxu0
    %v10283 = vadd.f32 %v10074, %v10282
    %v10284 = vpop.f32.mrb[0].mxu0
    %v10285 = vpop.f32.mrb[0].mxu0
    %v10286 = vadd.f32 %v10074, %v10285
    %v10287 = vpop.f32.mrb[0].mxu0
    %10288 = vmatprep.mubr.bf16.mxu0 %v10028
    %10289 = vmatmul.mubr.bf16.gmra.mrb[0].mxu0 %v9964
    %v10290 = vpop.f32.mrb[0].mxu0
    %v10291 = vadd.f32 %v10074, %v10290
    %v10292 = vpop.f32.mrb[0].mxu0
    %v10293 = vpop.f32.mrb[0].mxu0
    %v10294 = vadd.f32 %v10074, %v10293
    %v10295 = vpop.f32.mrb[0].mxu0
    %10296 = vmatprep.mubr.bf16.mxu0 %v10031
    %10297 = vmatmul.mubr.bf16.gmra.mrb[0].mxu0 %v9967
    %v10298 = vpop.f32.mrb[0].mxu0
    %v10299 = vadd.f32 %v10074, %v10298
    %v10300 = vpop.f32.mrb[0].mxu0
    %v10301 = vpop.f32.mrb[0].mxu0
    %v10302 = vadd.f32 %v10074, %v10301
    %v10303 = vpop.f32.mrb[0].mxu0
    %10304 = vdwg.mxu0
    %10305 = vmatprep.subr.bf16.mxu0 0
    %10306 = vmatpush1.bf16.msra.mxu0 %v10164
    %10307 = vmatprep.subr.bf16.mxu0 0
    %10308 = vmatpush1.bf16.msra.mxu0 %v10165
    %10309 = vmatprep.subr.bf16.mxu0 0
    %10310 = vmatpush1.bf16.msra.mxu0 0
    %10311 = vmatprep.subr.bf16.mxu0 0
    %10312 = vmatpush1.bf16.msra.mxu0 0
    %10313 = vmatprep.subr.bf16.mxu0 0
    %10314 = vmatpush1.bf16.msra.mxu0 0
    %10315 = vmatprep.subr.bf16.mxu0 0
    %10316 = vmatpush1.bf16.msra.mxu0 0
    %10317 = vmatprep.subr.bf16.mxu0 0
    %10318 = vmatpush1.bf16.msra.mxu0 0
    %10319 = vmatprep.subr.bf16.mxu0 0
    %10320 = vmatpush1.bf16.msra.mxu0 0
    %10321 = vmatprep.subr.bf16.mxu0 0
    %10322 = vmatpush1.bf16.msra.mxu0 0
    %10323 = vmatprep.subr.bf16.mxu0 0
    %10324 = vmatpush1.bf16.msra.mxu0 0
    %10325 = vmatprep.subr.bf16.mxu0 0
    %10326 = vmatpush1.bf16.msra.mxu0 0
    %10327 = vmatprep.subr.bf16.mxu0 0
    %10328 = vmatpush1.bf16.msra.mxu0 0
    %10329 = vmatprep.subr.bf16.mxu0 0
    %10330 = vmatpush1.bf16.msra.mxu0 0
    %10331 = vmatprep.subr.bf16.mxu0 0
    %10332 = vmatpush1.bf16.msra.mxu0 0
    %10333 = vmatprep.subr.bf16.mxu0 0
    %10334 = vmatpush1.bf16.msra.mxu0 0
    %10335 = vmatprep.subr.bf16.mxu0 0
    %10336 = vmatpush1.bf16.msra.mxu0 0
    %10337 = vmatprep.mubr.bf16.mxu0 0
    %10338 = vmatmul.mubr.bf16.gmra.mrb[0].mxu0 %v10185
    %v10339 = vpop.f32.mrb[0].mxu0
    %v10340 = vadd.f32 %v10243, %v10339
    %v10341 = vpop.f32.mrb[0].mxu0
    %v10342 = vpop.f32.mrb[0].mxu0
    %v10343 = vadd.f32 %v10246, %v10342
    %v10344 = vpop.f32.mrb[0].mxu0
    %10345 = vmatprep.mubr.bf16.mxu0 0
    %10346 = vmatmul.mubr.bf16.gmra.mrb[0].mxu0 %v10188
    %v10347 = vpop.f32.mrb[0].mxu0
    %v10348 = vadd.f32 %v10251, %v10347
    %v10349 = vpop.f32.mrb[0].mxu0
    %v10350 = vpop.f32.mrb[0].mxu0
    %v10351 = vadd.f32 %v10254, %v10350
    %v10352 = vpop.f32.mrb[0].mxu0
    %10353 = vmatprep.mubr.bf16.mxu0 0
    %10354 = vmatmul.mubr.bf16.gmra.mrb[0].mxu0 %v10191
    %v10355 = vpop.f32.mrb[0].mxu0
    %v10356 = vadd.f32 %v10259, %v10355
    %v10357 = vpop.f32.mrb[0].mxu0
    %v10358 = vpop.f32.mrb[0].mxu0
    %v10359 = vadd.f32 %v10262, %v10358
    %v10360 = vpop.f32.mrb[0].mxu0
    %10361 = vmatprep.mubr.bf16.mxu0 0
    %10362 = vmatmul.mubr.bf16.gmra.mrb[0].mxu0 %v10194
    %v10363 = vpop.f32.mrb[0].mxu0
    %v10364 = vadd.f32 %v10267, %v10363
    %v10365 = vpop.f32.mrb[0].mxu0
    %v10366 = vpop.f32.mrb[0].mxu0
    %v10367 = vadd.f32 %v10270, %v10366
    %v10368 = vpop.f32.mrb[0].mxu0
    %10369 = vmatprep.mubr.bf16.mxu0 0
    %10370 = vmatmul.mubr.bf16.gmra.mrb[0].mxu0 %v10197
    %v10371 = vpop.f32.mrb[0].mxu0
    %v10372 = vadd.f32 %v10275, %v10371
    %v10373 = vpop.f32.mrb[0].mxu0
    %v10374 = vpop.f32.mrb[0].mxu0
    %v10375 = vadd.f32 %v10278, %v10374
    %v10376 = vpop.f32.mrb[0].mxu0
    %10377 = vmatprep.mubr.bf16.mxu0 0
    %10378 = vmatmul.mubr.bf16.gmra.mrb[0].mxu0 %v10200
    %v10379 = vpop.f32.mrb[0].mxu0
    %v10380 = vadd.f32 %v10283, %v10379
    %v10381 = vpop.f32.mrb[0].mxu0
    %v10382 = vpop.f32.mrb[0].mxu0
    %v10383 = vadd.f32 %v10286, %v10382
    %v10384 = vpop.f32.mrb[0].mxu0
    %10385 = vmatprep.mubr.bf16.mxu0 0
    %10386 = vmatmul.mubr.bf16.gmra.mrb[0].mxu0 %v10203
    %v10387 = vpop.f32.mrb[0].mxu0
    %v10388 = vadd.f32 %v10291, %v10387
    %v10389 = vpop.f32.mrb[0].mxu0
    %v10390 = vpop.f32.mrb[0].mxu0
    %v10391 = vadd.f32 %v10294, %v10390
    %v10392 = vpop.f32.mrb[0].mxu0
    %10393 = vmatprep.mubr.bf16.mxu0 0
    %10394 = vmatmul.mubr.bf16.gmra.mrb[0].mxu0 %v10206
    %v10395 = vpop.f32.mrb[0].mxu0
    %v10396 = vadd.f32 %v10299, %v10395
    %v10397 = vpop.f32.mrb[0].mxu0
    %v10398 = vpop.f32.mrb[0].mxu0
    %v10399 = vadd.f32 %v10302, %v10398
    %v10400 = vpop.f32.mrb[0].mxu0
    %10401 = vdwg.mxu0
    %v10402 = vsel %vm7441, %v10340, 0.0
    %v10403 = vsel %vm7441, %v10343, 0.0
    %v10404 = vadd.f32 %v10402, %v10403
    %v10405 = vsel %vm7441, %v10348, 0.0
    %v10406 = vadd.f32 %v10404, %v10405
    %v10407 = vsel %vm7441, %v10351, 0.0
    %v10408 = vadd.f32 %v10406, %v10407
    %v10409 = vsel %vm7441, %v10356, 0.0
    %v10410 = vadd.f32 %v10408, %v10409
    %v10411 = vsel %vm7441, %v10359, 0.0
    %v10412 = vadd.f32 %v10410, %v10411
    %v10413 = vsel %vm7441, %v10364, 0.0
    %v10414 = vadd.f32 %v10412, %v10413
    %v10415 = vsel %vm7441, %v10367, 0.0
    %v10416 = vadd.f32 %v10414, %v10415
    %v10417 = vsel %vm7441, %v10372, 0.0
    %v10418 = vadd.f32 %v10416, %v10417
    %v10419 = vsel %vm7441, %v10375, 0.0
    %v10420 = vadd.f32 %v10418, %v10419
    %v10421 = vsel %vm7441, %v10380, 0.0
    %v10422 = vadd.f32 %v10420, %v10421
    %v10423 = vsel %vm7441, %v10383, 0.0
    %v10424 = vadd.f32 %v10422, %v10423
    %v10425 = vsel %vm7441, %v10388, 0.0
    %v10426 = vadd.f32 %v10424, %v10425
    %v10427 = vsel %vm7441, %v10391, 0.0
    %v10428 = vadd.f32 %v10426, %v10427
    %v10429 = vsel %vm7441, %v10396, 0.0
    %v10430 = vadd.f32 %v10428, %v10429
    %v10431 = vsel %vm7441, %v10399, 0.0
    %v10432 = vadd.f32 %v10430, %v10431
    %v10433 = vrot.slane %v10432, 4
    %v10434 = vadd.f32 %v10432, %v10433
    %v10435 = vrot.slane %v10434, 2
    %v10436 = vadd.f32 %v10434, %v10435
    %v10437 = vrot.slane %v10436, 1
    %v10438 = vadd.f32 %v10436, %v10437
    %v10439 = vmul.f32 %v10438, 0.0078125
    %v10440 = vmul.f32 %v10340, %v10340
    %v10441 = vmul.f32 %v10343, %v10343
    %v10442 = vmul.f32 %v10348, %v10348
    %v10443 = vmul.f32 %v10351, %v10351
    %v10444 = vmul.f32 %v10356, %v10356
    %v10445 = vmul.f32 %v10359, %v10359
    %v10446 = vmul.f32 %v10364, %v10364
    %v10447 = vmul.f32 %v10367, %v10367
    %v10448 = vmul.f32 %v10372, %v10372
    %v10449 = vmul.f32 %v10375, %v10375
    %v10450 = vmul.f32 %v10380, %v10380
    %v10451 = vmul.f32 %v10383, %v10383
    %v10452 = vmul.f32 %v10388, %v10388
    %v10453 = vmul.f32 %v10391, %v10391
    %v10454 = vmul.f32 %v10396, %v10396
    %v10455 = vmul.f32 %v10399, %v10399
    %v10456 = vsel %vm7441, %v10440, 0.0
    %v10457 = vsel %vm7441, %v10441, 0.0
    %v10458 = vadd.f32 %v10456, %v10457
    %v10459 = vsel %vm7441, %v10442, 0.0
    %v10460 = vadd.f32 %v10458, %v10459
    %v10461 = vsel %vm7441, %v10443, 0.0
    %v10462 = vadd.f32 %v10460, %v10461
    %v10463 = vsel %vm7441, %v10444, 0.0
    %v10464 = vadd.f32 %v10462, %v10463
    %v10465 = vsel %vm7441, %v10445, 0.0
    %v10466 = vadd.f32 %v10464, %v10465
    %v10467 = vsel %vm7441, %v10446, 0.0
    %v10468 = vadd.f32 %v10466, %v10467
    %v10469 = vsel %vm7441, %v10447, 0.0
    %v10470 = vadd.f32 %v10468, %v10469
    %v10471 = vsel %vm7441, %v10448, 0.0
    %v10472 = vadd.f32 %v10470, %v10471
    %v10473 = vsel %vm7441, %v10449, 0.0
    %v10474 = vadd.f32 %v10472, %v10473
    %v10475 = vsel %vm7441, %v10450, 0.0
    %v10476 = vadd.f32 %v10474, %v10475
    %v10477 = vsel %vm7441, %v10451, 0.0
    %v10478 = vadd.f32 %v10476, %v10477
    %v10479 = vsel %vm7441, %v10452, 0.0
    %v10480 = vadd.f32 %v10478, %v10479
    %v10481 = vsel %vm7441, %v10453, 0.0
    %v10482 = vadd.f32 %v10480, %v10481
    %v10483 = vsel %vm7441, %v10454, 0.0
    %v10484 = vadd.f32 %v10482, %v10483
    %v10485 = vsel %vm7441, %v10455, 0.0
    %v10486 = vadd.f32 %v10484, %v10485
    %v10487 = vrot.slane %v10486, 4
    %v10488 = vadd.f32 %v10486, %v10487
    %v10489 = vrot.slane %v10488, 2
    %v10490 = vadd.f32 %v10488, %v10489
    %v10491 = vrot.slane %v10490, 1
    %v10492 = vadd.f32 %v10490, %v10491
    %v10493 = vmul.f32 %v10492, 0.0078125
    %v10494 = vmul.f32 %v10439, %v10439
    %v10495 = vsub.f32 %v10493, %v10494
    %v10496 = vadd.f32 %v10495, 1e-05
    %v10497 = vrsqrt.pop %v10496
    %v10498 = vld [vmem:[%s11] sm:$0x1]
    %v10499 = vmul.f32 %v10497, %v10498
    %v10500 = vsub.f32 %v10340, %v10439
    %v10501 = vsub.f32 %v10343, %v10439
    %v10502 = vsub.f32 %v10348, %v10439
    %v10503 = vsub.f32 %v10351, %v10439
    %v10504 = vsub.f32 %v10356, %v10439
    %v10505 = vsub.f32 %v10359, %v10439
    %v10506 = vsub.f32 %v10364, %v10439
    %v10507 = vsub.f32 %v10367, %v10439
    %v10508 = vsub.f32 %v10372, %v10439
    %v10509 = vsub.f32 %v10375, %v10439
    %v10510 = vsub.f32 %v10380, %v10439
    %v10511 = vsub.f32 %v10383, %v10439
    %v10512 = vsub.f32 %v10388, %v10439
    %v10513 = vsub.f32 %v10391, %v10439
    %v10514 = vsub.f32 %v10396, %v10439
    %v10515 = vsub.f32 %v10399, %v10439
    %v10516 = vlaneseq
    %v10517 = vshrl.u32 %v10516, 7
    %v10518 = vsub.s32 0, %v10517
    %v10519 = vrot.slane %v10499, %v10518
    %v10520 = vmul.f32 %v10500, %v10519
    %v10521 = vmul.f32 %v10501, %v10519
    %v10522 = vmul.f32 %v10502, %v10519
    %v10523 = vmul.f32 %v10503, %v10519
    %v10524 = vmul.f32 %v10504, %v10519
    %v10525 = vmul.f32 %v10505, %v10519
    %v10526 = vmul.f32 %v10506, %v10519
    %v10527 = vmul.f32 %v10507, %v10519
    %v10528 = vmul.f32 %v10508, %v10519
    %v10529 = vmul.f32 %v10509, %v10519
    %v10530 = vmul.f32 %v10510, %v10519
    %v10531 = vmul.f32 %v10511, %v10519
    %v10532 = vmul.f32 %v10512, %v10519
    %v10533 = vmul.f32 %v10513, %v10519
    %v10534 = vmul.f32 %v10514, %v10519
    %v10535 = vmul.f32 %v10515, %v10519
    %v10536 = vld [vmem:[%s12] sm:$0x1]
    %v10538 = vlaneseq
    %v10539 = vshrl.u32 %v10538, 7
    %v10540 = vsub.s32 0, %v10539
    %v10541 = vrot.slane %v10536, %v10540
    %v10543 = vadd.f32 %v10520, %v10541
    %v10544 = vadd.f32 %v10521, %v10541
    %v10545 = vadd.f32 %v10522, %v10541
    %v10546 = vadd.f32 %v10523, %v10541
    %v10547 = vadd.f32 %v10524, %v10541
    %v10548 = vadd.f32 %v10525, %v10541
    %v10549 = vadd.f32 %v10526, %v10541
    %v10550 = vadd.f32 %v10527, %v10541
    %v10551 = vadd.f32 %v10528, %v10541
    %v10552 = vadd.f32 %v10529, %v10541
    %v10553 = vadd.f32 %v10530, %v10541
    %v10554 = vadd.f32 %v10531, %v10541
    %v10555 = vadd.f32 %v10532, %v10541
    %v10556 = vadd.f32 %v10533, %v10541
    %v10557 = vadd.f32 %v10534, %v10541
    %v10558 = vadd.f32 %v10535, %v10541
    %v10559 = vmax.f32 %v10543, 0.0
    %v10560 = vmax.f32 %v10544, 0.0
    %v10561 = vmax.f32 %v10545, 0.0
    %v10562 = vmax.f32 %v10546, 0.0
    %v10563 = vmax.f32 %v10547, 0.0
    %v10564 = vmax.f32 %v10548, 0.0
    %v10565 = vmax.f32 %v10549, 0.0
    %v10566 = vmax.f32 %v10550, 0.0
    %v10567 = vmax.f32 %v10551, 0.0
    %v10568 = vmax.f32 %v10552, 0.0
    %v10569 = vmax.f32 %v10553, 0.0
    %v10570 = vmax.f32 %v10554, 0.0
    %v10571 = vmax.f32 %v10555, 0.0
    %v10572 = vmax.f32 %v10556, 0.0
    %v10573 = vmax.f32 %v10557, 0.0
    %v10574 = vmax.f32 %v10558, 0.0
    %10575 = vst.msk [vmem:[#allocation6] sm:$0xff] %vm7441, %v10559
    %10576 = vst.msk [vmem:[#allocation6 + $0x8] sm:$0xff] %vm7441, %v10560
    %10577 = vst.msk [vmem:[#allocation6 + $0x10] sm:$0xff] %vm7441, %v10561
    %10578 = vst.msk [vmem:[#allocation6 + $0x18] sm:$0xff] %vm7441, %v10562
    %10579 = vst.msk [vmem:[#allocation6 + $0x20] sm:$0xff] %vm7441, %v10563
    %10580 = vst.msk [vmem:[#allocation6 + $0x28] sm:$0xff] %vm7441, %v10564
    %10581 = vst.msk [vmem:[#allocation6 + $0x30] sm:$0xff] %vm7441, %v10565
    %10582 = vst.msk [vmem:[#allocation6 + $0x38] sm:$0xff] %vm7441, %v10566
    %10583 = vst.msk [vmem:[#allocation6 + $0x40] sm:$0xff] %vm7441, %v10567
    %10584 = vst.msk [vmem:[#allocation6 + $0x48] sm:$0xff] %vm7441, %v10568
    %10585 = vst.msk [vmem:[#allocation6 + $0x50] sm:$0xff] %vm7441, %v10569
    %10586 = vst.msk [vmem:[#allocation6 + $0x58] sm:$0xff] %vm7441, %v10570
    %10587 = vst.msk [vmem:[#allocation6 + $0x60] sm:$0xff] %vm7441, %v10571
    %10588 = vst.msk [vmem:[#allocation6 + $0x68] sm:$0xff] %vm7441, %v10572
    %10589 = vst.msk [vmem:[#allocation6 + $0x70] sm:$0xff] %vm7441, %v10573
    %10590 = vst.msk [vmem:[#allocation6 + $0x78] sm:$0xff] %vm7441, %v10574
    %v10591 = vld [vmem:[#allocation6] sm:$0x1]
    %v10592 = vld [vmem:[#allocation6 + $0x40] sm:$0x1]
    %v10593 = vld [vmem:[#allocation6 + $0x1] sm:$0x1]
    %v10594 = vld [vmem:[#allocation6 + $0x41] sm:$0x1]
    %s10595 = scalar_lea.vmem [#allocation6], 8
    %v10596 = vld [vmem:[%s10595] sm:$0x1]
    %v10597 = vld [vmem:[%s10595 + $0x40] sm:$0x1]
    %v10598 = vld [vmem:[%s10595 + $0x1] sm:$0x1]
    %v10599 = vld [vmem:[%s10595 + $0x41] sm:$0x1]
    %v10600 = vmax.f32 %v10591, %v10593
    %v10601 = vmax.f32 %v10592, %v10594
    %v10602 = vmax.f32 %v10596, %v10598
    %v10603 = vmax.f32 %v10597, %v10599
    %v10604 = vmax.f32 %v10600, %v10602
    %v10605 = vmax.f32 %v10601, %v10603
    %v10606 = vld [vmem:[#allocation6 + $0x2] sm:$0x1]
    %v10607 = vld [vmem:[#allocation6 + $0x42] sm:$0x1]
    %v10608 = vld [vmem:[#allocation6 + $0x3] sm:$0x1]
    %v10609 = vld [vmem:[#allocation6 + $0x43] sm:$0x1]
    %v10610 = vld [vmem:[%s10595 + $0x2] sm:$0x1]
    %v10611 = vld [vmem:[%s10595 + $0x42] sm:$0x1]
    %v10612 = vld [vmem:[%s10595 + $0x3] sm:$0x1]
    %v10613 = vld [vmem:[%s10595 + $0x43] sm:$0x1]
    %v10614 = vmax.f32 %v10606, %v10608
    %v10615 = vmax.f32 %v10607, %v10609
    %v10616 = vmax.f32 %v10610, %v10612
    %v10617 = vmax.f32 %v10611, %v10613
    %v10618 = vmax.f32 %v10614, %v10616
    %v10619 = vmax.f32 %v10615, %v10617
    %v10620 = vld [vmem:[#allocation6 + $0x4] sm:$0x1]
    %v10621 = vld [vmem:[#allocation6 + $0x44] sm:$0x1]
    %v10622 = vld [vmem:[#allocation6 + $0x5] sm:$0x1]
    %v10623 = vld [vmem:[#allocation6 + $0x45] sm:$0x1]
    %v10624 = vld [vmem:[%s10595 + $0x4] sm:$0x1]
    %v10625 = vld [vmem:[%s10595 + $0x44] sm:$0x1]
    %v10626 = vld [vmem:[%s10595 + $0x5] sm:$0x1]
    %v10627 = vld [vmem:[%s10595 + $0x45] sm:$0x1]
    %v10628 = vmax.f32 %v10620, %v10622
    %v10629 = vmax.f32 %v10621, %v10623
    %v10630 = vmax.f32 %v10624, %v10626
    %v10631 = vmax.f32 %v10625, %v10627
    %v10632 = vmax.f32 %v10628, %v10630
    %v10633 = vmax.f32 %v10629, %v10631
    %v10634 = vld [vmem:[#allocation6 + $0x6] sm:$0x1]
    %v10635 = vld [vmem:[#allocation6 + $0x46] sm:$0x1]
    %v10636 = vld [vmem:[#allocation6 + $0x7] sm:$0x1]
    %v10637 = vld [vmem:[#allocation6 + $0x47] sm:$0x1]
    %v10638 = vld [vmem:[%s10595 + $0x6] sm:$0x1]
    %v10639 = vld [vmem:[%s10595 + $0x46] sm:$0x1]
    %v10640 = vld [vmem:[%s10595 + $0x7] sm:$0x1]
    %v10641 = vld [vmem:[%s10595 + $0x47] sm:$0x1]
    %v10642 = vmax.f32 %v10634, %v10636
    %v10643 = vmax.f32 %v10635, %v10637
    %v10644 = vmax.f32 %v10638, %v10640
    %v10645 = vmax.f32 %v10639, %v10641
    %v10646 = vmax.f32 %v10642, %v10644
    %v10647 = vmax.f32 %v10643, %v10645
    %s10648 = scalar_lea.vmem [#allocation6], 16
    %v10649 = vld [vmem:[%s10648] sm:$0x1]
    %v10650 = vld [vmem:[%s10648 + $0x40] sm:$0x1]
    %v10651 = vld [vmem:[%s10648 + $0x1] sm:$0x1]
    %v10652 = vld [vmem:[%s10648 + $0x41] sm:$0x1]
    %s10653 = scalar_lea.vmem [#allocation6], 24
    %v10654 = vld [vmem:[%s10653] sm:$0x1]
    %v10655 = vld [vmem:[%s10653 + $0x40] sm:$0x1]
    %v10656 = vld [vmem:[%s10653 + $0x1] sm:$0x1]
    %v10657 = vld [vmem:[%s10653 + $0x41] sm:$0x1]
    %v10658 = vmax.f32 %v10649, %v10651
    %v10659 = vmax.f32 %v10650, %v10652
    %v10660 = vmax.f32 %v10654, %v10656
    %v10661 = vmax.f32 %v10655, %v10657
    %v10662 = vmax.f32 %v10658, %v10660
    %v10663 = vmax.f32 %v10659, %v10661
    %v10664 = vld [vmem:[%s10648 + $0x2] sm:$0x1]
    %v10665 = vld [vmem:[%s10648 + $0x42] sm:$0x1]
    %v10666 = vld [vmem:[%s10648 + $0x3] sm:$0x1]
    %v10667 = vld [vmem:[%s10648 + $0x43] sm:$0x1]
    %v10668 = vld [vmem:[%s10653 + $0x2] sm:$0x1]
    %v10669 = vld [vmem:[%s10653 + $0x42] sm:$0x1]
    %v10670 = vld [vmem:[%s10653 + $0x3] sm:$0x1]
    %v10671 = vld [vmem:[%s10653 + $0x43] sm:$0x1]
    %v10672 = vmax.f32 %v10664, %v10666
    %v10673 = vmax.f32 %v10665, %v10667
    %v10674 = vmax.f32 %v10668, %v10670
    %v10675 = vmax.f32 %v10669, %v10671
    %v10676 = vmax.f32 %v10672, %v10674
    %v10677 = vmax.f32 %v10673, %v10675
    %v10678 = vld [vmem:[%s10648 + $0x4] sm:$0x1]
    %v10679 = vld [vmem:[%s10648 + $0x44] sm:$0x1]
    %v10680 = vld [vmem:[%s10648 + $0x5] sm:$0x1]
    %v10681 = vld [vmem:[%s10648 + $0x45] sm:$0x1]
    %v10682 = vld [vmem:[%s10653 + $0x4] sm:$0x1]
    %v10683 = vld [vmem:[%s10653 + $0x44] sm:$0x1]
    %v10684 = vld [vmem:[%s10653 + $0x5] sm:$0x1]
    %v10685 = vld [vmem:[%s10653 + $0x45] sm:$0x1]
    %v10686 = vmax.f32 %v10678, %v10680
    %v10687 = vmax.f32 %v10679, %v10681
    %v10688 = vmax.f32 %v10682, %v10684
    %v10689 = vmax.f32 %v10683, %v10685
    %v10690 = vmax.f32 %v10686, %v10688
    %v10691 = vmax.f32 %v10687, %v10689
    %v10692 = vld [vmem:[%s10648 + $0x6] sm:$0x1]
    %v10693 = vld [vmem:[%s10648 + $0x46] sm:$0x1]
    %v10694 = vld [vmem:[%s10648 + $0x7] sm:$0x1]
    %v10695 = vld [vmem:[%s10648 + $0x47] sm:$0x1]
    %v10696 = vld [vmem:[%s10653 + $0x6] sm:$0x1]
    %v10697 = vld [vmem:[%s10653 + $0x46] sm:$0x1]
    %v10698 = vld [vmem:[%s10653 + $0x7] sm:$0x1]
    %v10699 = vld [vmem:[%s10653 + $0x47] sm:$0x1]
    %v10700 = vmax.f32 %v10692, %v10694
    %v10701 = vmax.f32 %v10693, %v10695
    %v10702 = vmax.f32 %v10696, %v10698
    %v10703 = vmax.f32 %v10697, %v10699
    %v10704 = vmax.f32 %v10700, %v10702
    %v10705 = vmax.f32 %v10701, %v10703
    %s10706 = scalar_lea.vmem [#allocation6], 32
    %v10707 = vld [vmem:[%s10706] sm:$0x1]
    %v10708 = vld [vmem:[%s10706 + $0x40] sm:$0x1]
    %v10709 = vld [vmem:[%s10706 + $0x1] sm:$0x1]
    %v10710 = vld [vmem:[%s10706 + $0x41] sm:$0x1]
    %s10711 = scalar_lea.vmem [#allocation6], 40
    %v10712 = vld [vmem:[%s10711] sm:$0x1]
    %v10713 = vld [vmem:[%s10711 + $0x40] sm:$0x1]
    %v10714 = vld [vmem:[%s10711 + $0x1] sm:$0x1]
    %v10715 = vld [vmem:[%s10711 + $0x41] sm:$0x1]
    %v10716 = vmax.f32 %v10707, %v10709
    %v10717 = vmax.f32 %v10708, %v10710
    %v10718 = vmax.f32 %v10712, %v10714
    %v10719 = vmax.f32 %v10713, %v10715
    %v10720 = vmax.f32 %v10716, %v10718
    %v10721 = vmax.f32 %v10717, %v10719
    %v10722 = vld [vmem:[%s10706 + $0x2] sm:$0x1]
    %v10723 = vld [vmem:[%s10706 + $0x42] sm:$0x1]
    %v10724 = vld [vmem:[%s10706 + $0x3] sm:$0x1]
    %v10725 = vld [vmem:[%s10706 + $0x43] sm:$0x1]
    %v10726 = vld [vmem:[%s10711 + $0x2] sm:$0x1]
    %v10727 = vld [vmem:[%s10711 + $0x42] sm:$0x1]
    %v10728 = vld [vmem:[%s10711 + $0x3] sm:$0x1]
    %v10729 = vld [vmem:[%s10711 + $0x43] sm:$0x1]
    %v10730 = vmax.f32 %v10722, %v10724
    %v10731 = vmax.f32 %v10723, %v10725
    %v10732 = vmax.f32 %v10726, %v10728
    %v10733 = vmax.f32 %v10727, %v10729
    %v10734 = vmax.f32 %v10730, %v10732
    %v10735 = vmax.f32 %v10731, %v10733
    %v10736 = vld [vmem:[%s10706 + $0x4] sm:$0x1]
    %v10737 = vld [vmem:[%s10706 + $0x44] sm:$0x1]
    %v10738 = vld [vmem:[%s10706 + $0x5] sm:$0x1]
    %v10739 = vld [vmem:[%s10706 + $0x45] sm:$0x1]
    %v10740 = vld [vmem:[%s10711 + $0x4] sm:$0x1]
    %v10741 = vld [vmem:[%s10711 + $0x44] sm:$0x1]
    %v10742 = vld [vmem:[%s10711 + $0x5] sm:$0x1]
    %v10743 = vld [vmem:[%s10711 + $0x45] sm:$0x1]
    %v10744 = vmax.f32 %v10736, %v10738
    %v10745 = vmax.f32 %v10737, %v10739
    %v10746 = vmax.f32 %v10740, %v10742
    %v10747 = vmax.f32 %v10741, %v10743
    %v10748 = vmax.f32 %v10744, %v10746
    %v10749 = vmax.f32 %v10745, %v10747
    %v10750 = vld [vmem:[%s10706 + $0x6] sm:$0x1]
    %v10751 = vld [vmem:[%s10706 + $0x46] sm:$0x1]
    %v10752 = vld [vmem:[%s10706 + $0x7] sm:$0x1]
    %v10753 = vld [vmem:[%s10706 + $0x47] sm:$0x1]
    %v10754 = vld [vmem:[%s10711 + $0x6] sm:$0x1]
    %v10755 = vld [vmem:[%s10711 + $0x46] sm:$0x1]
    %v10756 = vld [vmem:[%s10711 + $0x7] sm:$0x1]
    %v10757 = vld [vmem:[%s10711 + $0x47] sm:$0x1]
    %v10758 = vmax.f32 %v10750, %v10752
    %v10759 = vmax.f32 %v10751, %v10753
    %v10760 = vmax.f32 %v10754, %v10756
    %v10761 = vmax.f32 %v10755, %v10757
    %v10762 = vmax.f32 %v10758, %v10760
    %v10763 = vmax.f32 %v10759, %v10761
    %s10764 = scalar_lea.vmem [#allocation6], 48
    %v10765 = vld [vmem:[%s10764] sm:$0x1]
    %v10766 = vld [vmem:[%s10764 + $0x40] sm:$0x1]
    %v10767 = vld [vmem:[%s10764 + $0x1] sm:$0x1]
    %v10768 = vld [vmem:[%s10764 + $0x41] sm:$0x1]
    %s10769 = scalar_lea.vmem [#allocation6], 56
    %v10770 = vld [vmem:[%s10769] sm:$0x1]
    %v10771 = vld [vmem:[%s10769 + $0x40] sm:$0x1]
    %v10772 = vld [vmem:[%s10769 + $0x1] sm:$0x1]
    %v10773 = vld [vmem:[%s10769 + $0x41] sm:$0x1]
    %v10774 = vmax.f32 %v10765, %v10767
    %v10775 = vmax.f32 %v10766, %v10768
    %v10776 = vmax.f32 %v10770, %v10772
    %v10777 = vmax.f32 %v10771, %v10773
    %v10778 = vmax.f32 %v10774, %v10776
    %v10779 = vmax.f32 %v10775, %v10777
    %v10780 = vld [vmem:[%s10764 + $0x2] sm:$0x1]
    %v10781 = vld [vmem:[%s10764 + $0x42] sm:$0x1]
    %v10782 = vld [vmem:[%s10764 + $0x3] sm:$0x1]
    %v10783 = vld [vmem:[%s10764 + $0x43] sm:$0x1]
    %v10784 = vld [vmem:[%s10769 + $0x2] sm:$0x1]
    %v10785 = vld [vmem:[%s10769 + $0x42] sm:$0x1]
    %v10786 = vld [vmem:[%s10769 + $0x3] sm:$0x1]
    %v10787 = vld [vmem:[%s10769 + $0x43] sm:$0x1]
    %v10788 = vmax.f32 %v10780, %v10782
    %v10789 = vmax.f32 %v10781, %v10783
    %v10790 = vmax.f32 %v10784, %v10786
    %v10791 = vmax.f32 %v10785, %v10787
    %v10792 = vmax.f32 %v10788, %v10790
    %v10793 = vmax.f32 %v10789, %v10791
    %v10794 = vld [vmem:[%s10764 + $0x4] sm:$0x1]
    %v10795 = vld [vmem:[%s10764 + $0x44] sm:$0x1]
    %v10796 = vld [vmem:[%s10764 + $0x5] sm:$0x1]
    %v10797 = vld [vmem:[%s10764 + $0x45] sm:$0x1]
    %v10798 = vld [vmem:[%s10769 + $0x4] sm:$0x1]
    %v10799 = vld [vmem:[%s10769 + $0x44] sm:$0x1]
    %v10800 = vld [vmem:[%s10769 + $0x5] sm:$0x1]
    %v10801 = vld [vmem:[%s10769 + $0x45] sm:$0x1]
    %v10802 = vmax.f32 %v10794, %v10796
    %v10803 = vmax.f32 %v10795, %v10797
    %v10804 = vmax.f32 %v10798, %v10800
    %v10805 = vmax.f32 %v10799, %v10801
    %v10806 = vmax.f32 %v10802, %v10804
    %v10807 = vmax.f32 %v10803, %v10805
    %v10808 = vld [vmem:[%s10764 + $0x6] sm:$0x1]
    %v10809 = vld [vmem:[%s10764 + $0x46] sm:$0x1]
    %v10810 = vld [vmem:[%s10764 + $0x7] sm:$0x1]
    %v10811 = vld [vmem:[%s10764 + $0x47] sm:$0x1]
    %v10812 = vld [vmem:[%s10769 + $0x6] sm:$0x1]
    %v10813 = vld [vmem:[%s10769 + $0x46] sm:$0x1]
    %v10814 = vld [vmem:[%s10769 + $0x7] sm:$0x1]
    %v10815 = vld [vmem:[%s10769 + $0x47] sm:$0x1]
    %v10816 = vmax.f32 %v10808, %v10810
    %v10817 = vmax.f32 %v10809, %v10811
    %v10818 = vmax.f32 %v10812, %v10814
    %v10819 = vmax.f32 %v10813, %v10815
    %v10820 = vmax.f32 %v10816, %v10818
    %v10821 = vmax.f32 %v10817, %v10819
    %v10824 = vrot.slane %v10605, 7
    %vm10825 = vcmask 1041409
    %v10826 = vsel %vm10825, %v10824, %v10604
    %v10830 = vrot.slane %v10619, 7
    %v10831 = vsel %vm10825, %v10830, %v10618
    %10832 = vrot.lane.b32.xlu0 %v10831, 64
    %v10833 = vpop.permute.xlu0 %10832
    %v10837 = vrot.slane %v10633, 7
    %v10838 = vsel %vm10825, %v10837, %v10632
    %v10842 = vrot.slane %v10647, 7
    %v10843 = vsel %vm10825, %v10842, %v10646
    %10844 = vrot.lane.b32.xlu0 %v10843, 64
    %v10845 = vpop.permute.xlu0 %10844
    %v10849 = vrot.slane %v10663, 7
    %v10850 = vsel %vm10825, %v10849, %v10662
    %v10854 = vrot.slane %v10677, 7
    %v10855 = vsel %vm10825, %v10854, %v10676
    %10856 = vrot.lane.b32.xlu0 %v10855, 64
    %v10857 = vpop.permute.xlu0 %10856
    %v10861 = vrot.slane %v10691, 7
    %v10862 = vsel %vm10825, %v10861, %v10690
    %v10866 = vrot.slane %v10705, 7
    %v10867 = vsel %vm10825, %v10866, %v10704
    %10868 = vrot.lane.b32.xlu0 %v10867, 64
    %v10869 = vpop.permute.xlu0 %10868
    %v10873 = vrot.slane %v10721, 7
    %v10874 = vsel %vm10825, %v10873, %v10720
    %v10878 = vrot.slane %v10735, 7
    %v10879 = vsel %vm10825, %v10878, %v10734
    %10880 = vrot.lane.b32.xlu0 %v10879, 64
    %v10881 = vpop.permute.xlu0 %10880
    %v10885 = vrot.slane %v10749, 7
    %v10886 = vsel %vm10825, %v10885, %v10748
    %v10890 = vrot.slane %v10763, 7
    %v10891 = vsel %vm10825, %v10890, %v10762
    %10892 = vrot.lane.b32.xlu0 %v10891, 64
    %v10893 = vpop.permute.xlu0 %10892
    %v10897 = vrot.slane %v10779, 7
    %v10898 = vsel %vm10825, %v10897, %v10778
    %v10902 = vrot.slane %v10793, 7
    %v10903 = vsel %vm10825, %v10902, %v10792
    %10904 = vrot.lane.b32.xlu0 %v10903, 64
    %v10905 = vpop.permute.xlu0 %10904
    %v10909 = vrot.slane %v10807, 7
    %v10910 = vsel %vm10825, %v10909, %v10806
    %v10914 = vrot.slane %v10821, 7
    %v10915 = vsel %vm10825, %v10914, %v10820
    %10916 = vrot.lane.b32.xlu0 %v10915, 64
    %v10917 = vpop.permute.xlu0 %10916
    %v10919 = vsel %vm7441, %v10826, %v10833
    %v10920 = vsel %vm7441, %v10838, %v10845
    %v10921 = vsel %vm7441, %v10850, %v10857
    %v10922 = vsel %vm7441, %v10862, %v10869
    %v10923 = vsel %vm7441, %v10874, %v10881
    %v10924 = vsel %vm7441, %v10886, %v10893
    %v10925 = vsel %vm7441, %v10898, %v10905
    %v10926 = vsel %vm7441, %v10910, %v10917
    %v10927 = vpack.c.bf16 %v10919, %v10919
    %v10928 = vpack.c.bf16 %v10920, %v10920
    %v10929 = vpack.c.bf16 %v10921, %v10921
    %v10930 = vpack.c.bf16 %v10922, %v10922
    %v10931 = vpack.c.bf16 %v10923, %v10923
    %v10932 = vpack.c.bf16 %v10924, %v10924
    %v10933 = vpack.c.bf16 %v10925, %v10925
    %v10934 = vpack.c.bf16 %v10926, %v10926
    %v10935 = vld [vmem:[%s13] sm:$0xff]
    %v10936 = vld [vmem:[%s14] sm:$0x1]
    %v10938 = vlaneseq
    %v10939 = vshrl.u32 %v10938, 7
    %v10940 = vsub.s32 0, %v10939
    %v10941 = vrot.slane %v10936, %v10940
    %v10944 = vcombine.high %v10935, %v10935
    %v10946 = vunpack.c.l.s4 1966171168
    %v10947 = vunpack.c.0.s8 %v10946
    %v10948 = vlaneseq
    %v10949 = vshrl.u32 %v10948, 7
    %v10950 = vsub.s32 %v10947, %v10949
    %v10951 = vrot.slane %v10935, %v10950
    %v10953 = vunpack.c.l.s4 1966171168
    %v10954 = vunpack.c.0.s8 %v10953
    %v10955 = vlaneseq
    %v10956 = vshrl.u32 %v10955, 7
    %v10957 = vsub.s32 %v10954, %v10956
    %v10958 = vrot.slane %v10944, %v10957
    %v10959 = vcombine.high %v10951, %v10951
    %v10960 = vcombine.high %v10958, %v10958
    %v10962 = vunpack.c.l.s4 1966171168
    %v10963 = vunpack.c.0.s8 %v10962
    %v10964 = vlaneseq
    %v10965 = vshrl.u32 %v10964, 7
    %v10966 = vsub.s32 %v10963, %v10965
    %v10967 = vrot.slane %v10951, %v10966
    %v10969 = vunpack.c.l.s4 1966171168
    %v10970 = vunpack.c.0.s8 %v10969
    %v10971 = vlaneseq
    %v10972 = vshrl.u32 %v10971, 7
    %v10973 = vsub.s32 %v10970, %v10972
    %v10974 = vrot.slane %v10958, %v10973
    %v10976 = vunpack.c.l.s4 1966171168
    %v10977 = vunpack.c.0.s8 %v10976
    %v10978 = vlaneseq
    %v10979 = vshrl.u32 %v10978, 7
    %v10980 = vsub.s32 %v10977, %v10979
    %v10981 = vrot.slane %v10959, %v10980
    %v10983 = vunpack.c.l.s4 1966171168
    %v10984 = vunpack.c.0.s8 %v10983
    %v10985 = vlaneseq
    %v10986 = vshrl.u32 %v10985, 7
    %v10987 = vsub.s32 %v10984, %v10986
    %v10988 = vrot.slane %v10960, %v10987
    %v10989 = vcombine.high %v10967, %v10967
    %v10990 = vcombine.high %v10974, %v10974
    %v10991 = vcombine.high %v10981, %v10981
    %v10992 = vcombine.high %v10988, %v10988
    %11001 = vmatprep.subr.bf16.mxu0 %v10981
    %11002 = vmatpush1.bf16.xpose.msra.mxu0 %v10967
    %11003 = vmatprep.subr.bf16.mxu0 0
    %11004 = vmatpush1.bf16.xpose.msra.mxu0 0
    %11005 = vmatprep.subr.bf16.mxu0 0
    %11006 = vmatpush1.bf16.xpose.msra.mxu0 0
    %11007 = vmatprep.subr.bf16.mxu0 0
    %11008 = vmatpush1.bf16.xpose.msra.mxu0 0
    %11009 = vmatprep.subr.bf16.mxu0 0
    %11010 = vmatpush1.bf16.xpose.msra.mxu0 0
    %11011 = vmatprep.subr.bf16.mxu0 0
    %11012 = vmatpush1.bf16.xpose.msra.mxu0 0
    %11013 = vmatprep.subr.bf16.mxu0 0
    %11014 = vmatpush1.bf16.xpose.msra.mxu0 0
    %11015 = vmatprep.subr.bf16.mxu0 0
    %11016 = vmatpush1.bf16.xpose.msra.mxu0 0
    %11017 = vmatprep.subr.bf16.mxu0 0
    %11018 = vmatpush1.bf16.xpose.msra.mxu0 0
    %11019 = vmatprep.subr.bf16.mxu0 0
    %11020 = vmatpush1.bf16.xpose.msra.mxu0 0
    %11021 = vmatprep.subr.bf16.mxu0 0
    %11022 = vmatpush1.bf16.xpose.msra.mxu0 0
    %11023 = vmatprep.subr.bf16.mxu0 0
    %11024 = vmatpush1.bf16.xpose.msra.mxu0 0
    %11025 = vmatprep.subr.bf16.mxu0 0
    %11026 = vmatpush1.bf16.xpose.msra.mxu0 0
    %11027 = vmatprep.subr.bf16.mxu0 0
    %11028 = vmatpush1.bf16.xpose.msra.mxu0 0
    %11029 = vmatprep.subr.bf16.mxu0 0
    %11030 = vmatpush1.bf16.xpose.msra.mxu0 0
    %11031 = vmatprep.subr.bf16.mxu0 0
    %11032 = vmatpush1.bf16.xpose.msra.mxu0 0
    %11033 = vmatprep.mubr.bf16.mxu0 %v10928
    %11034 = vmatmul.mubr.bf16.gmra.mrb[0].mxu0 %v10927
    %v11035 = vpop.f32.mrb[0].mxu0
    %v11036 = vadd.f32 %v10941, %v11035
    %v11037 = vpop.f32.mrb[0].mxu0
    %v11038 = vpop.f32.mrb[0].mxu0
    %v11039 = vpop.f32.mrb[0].mxu0
    %11040 = vdwg.mxu0
    %11041 = vmatprep.subr.bf16.mxu0 %v10991
    %11042 = vmatpush1.bf16.xpose.msra.mxu0 %v10989
    %11043 = vmatprep.subr.bf16.mxu0 0
    %11044 = vmatpush1.bf16.xpose.msra.mxu0 0
    %11045 = vmatprep.subr.bf16.mxu0 0
    %11046 = vmatpush1.bf16.xpose.msra.mxu0 0
    %11047 = vmatprep.subr.bf16.mxu0 0
    %11048 = vmatpush1.bf16.xpose.msra.mxu0 0
    %11049 = vmatprep.subr.bf16.mxu0 0
    %11050 = vmatpush1.bf16.xpose.msra.mxu0 0
    %11051 = vmatprep.subr.bf16.mxu0 0
    %11052 = vmatpush1.bf16.xpose.msra.mxu0 0
    %11053 = vmatprep.subr.bf16.mxu0 0
    %11054 = vmatpush1.bf16.xpose.msra.mxu0 0
    %11055 = vmatprep.subr.bf16.mxu0 0
    %11056 = vmatpush1.bf16.xpose.msra.mxu0 0
    %11057 = vmatprep.subr.bf16.mxu0 0
    %11058 = vmatpush1.bf16.xpose.msra.mxu0 0
    %11059 = vmatprep.subr.bf16.mxu0 0
    %11060 = vmatpush1.bf16.xpose.msra.mxu0 0
    %11061 = vmatprep.subr.bf16.mxu0 0
    %11062 = vmatpush1.bf16.xpose.msra.mxu0 0
    %11063 = vmatprep.subr.bf16.mxu0 0
    %11064 = vmatpush1.bf16.xpose.msra.mxu0 0
    %11065 = vmatprep.subr.bf16.mxu0 0
    %11066 = vmatpush1.bf16.xpose.msra.mxu0 0
    %11067 = vmatprep.subr.bf16.mxu0 0
    %11068 = vmatpush1.bf16.xpose.msra.mxu0 0
    %11069 = vmatprep.subr.bf16.mxu0 0
    %11070 = vmatpush1.bf16.xpose.msra.mxu0 0
    %11071 = vmatprep.subr.bf16.mxu0 0
    %11072 = vmatpush1.bf16.xpose.msra.mxu0 0
    %11073 = vmatprep.mubr.bf16.mxu0 %v10930
    %11074 = vmatmul.mubr.bf16.gmra.mrb[0].mxu0 %v10929
    %v11075 = vpop.f32.mrb[0].mxu0
    %v11076 = vadd.f32 %v11036, %v11075
    %v11077 = vpop.f32.mrb[0].mxu0
    %v11078 = vpop.f32.mrb[0].mxu0
    %v11079 = vpop.f32.mrb[0].mxu0
    %11080 = vdwg.mxu0
    %11081 = vmatprep.subr.bf16.mxu0 %v10988
    %11082 = vmatpush1.bf16.xpose.msra.mxu0 %v10974
    %11083 = vmatprep.subr.bf16.mxu0 0
    %11084 = vmatpush1.bf16.xpose.msra.mxu0 0
    %11085 = vmatprep.subr.bf16.mxu0 0
    %11086 = vmatpush1.bf16.xpose.msra.mxu0 0
    %11087 = vmatprep.subr.bf16.mxu0 0
    %11088 = vmatpush1.bf16.xpose.msra.mxu0 0
    %11089 = vmatprep.subr.bf16.mxu0 0
    %11090 = vmatpush1.bf16.xpose.msra.mxu0 0
    %11091 = vmatprep.subr.bf16.mxu0 0
    %11092 = vmatpush1.bf16.xpose.msra.mxu0 0
    %11093 = vmatprep.subr.bf16.mxu0 0
    %11094 = vmatpush1.bf16.xpose.msra.mxu0 0
    %11095 = vmatprep.subr.bf16.mxu0 0
    %11096 = vmatpush1.bf16.xpose.msra.mxu0 0
    %11097 = vmatprep.subr.bf16.mxu0 0
    %11098 = vmatpush1.bf16.xpose.msra.mxu0 0
    %11099 = vmatprep.subr.bf16.mxu0 0
    %11100 = vmatpush1.bf16.xpose.msra.mxu0 0
    %11101 = vmatprep.subr.bf16.mxu0 0
    %11102 = vmatpush1.bf16.xpose.msra.mxu0 0
    %11103 = vmatprep.subr.bf16.mxu0 0
    %11104 = vmatpush1.bf16.xpose.msra.mxu0 0
    %11105 = vmatprep.subr.bf16.mxu0 0
    %11106 = vmatpush1.bf16.xpose.msra.mxu0 0
    %11107 = vmatprep.subr.bf16.mxu0 0
    %11108 = vmatpush1.bf16.xpose.msra.mxu0 0
    %11109 = vmatprep.subr.bf16.mxu0 0
    %11110 = vmatpush1.bf16.xpose.msra.mxu0 0
    %11111 = vmatprep.subr.bf16.mxu0 0
    %11112 = vmatpush1.bf16.xpose.msra.mxu0 0
    %11113 = vmatprep.mubr.bf16.mxu0 %v10932
    %11114 = vmatmul.mubr.bf16.gmra.mrb[0].mxu0 %v10931
    %v11115 = vpop.f32.mrb[0].mxu0
    %v11116 = vadd.f32 %v11076, %v11115
    %v11117 = vpop.f32.mrb[0].mxu0
    %v11118 = vpop.f32.mrb[0].mxu0
    %v11119 = vpop.f32.mrb[0].mxu0
    %11120 = vdwg.mxu0
    %11121 = vmatprep.subr.bf16.mxu0 %v10992
    %11122 = vmatpush1.bf16.xpose.msra.mxu0 %v10990
    %11123 = vmatprep.subr.bf16.mxu0 0
    %11124 = vmatpush1.bf16.xpose.msra.mxu0 0
    %11125 = vmatprep.subr.bf16.mxu0 0
    %11126 = vmatpush1.bf16.xpose.msra.mxu0 0
    %11127 = vmatprep.subr.bf16.mxu0 0
    %11128 = vmatpush1.bf16.xpose.msra.mxu0 0
    %11129 = vmatprep.subr.bf16.mxu0 0
    %11130 = vmatpush1.bf16.xpose.msra.mxu0 0
    %11131 = vmatprep.subr.bf16.mxu0 0
    %11132 = vmatpush1.bf16.xpose.msra.mxu0 0
    %11133 = vmatprep.subr.bf16.mxu0 0
    %11134 = vmatpush1.bf16.xpose.msra.mxu0 0
    %11135 = vmatprep.subr.bf16.mxu0 0
    %11136 = vmatpush1.bf16.xpose.msra.mxu0 0
    %11137 = vmatprep.subr.bf16.mxu0 0
    %11138 = vmatpush1.bf16.xpose.msra.mxu0 0
    %11139 = vmatprep.subr.bf16.mxu0 0
    %11140 = vmatpush1.bf16.xpose.msra.mxu0 0
    %11141 = vmatprep.subr.bf16.mxu0 0
    %11142 = vmatpush1.bf16.xpose.msra.mxu0 0
    %11143 = vmatprep.subr.bf16.mxu0 0
    %11144 = vmatpush1.bf16.xpose.msra.mxu0 0
    %11145 = vmatprep.subr.bf16.mxu0 0
    %11146 = vmatpush1.bf16.xpose.msra.mxu0 0
    %11147 = vmatprep.subr.bf16.mxu0 0
    %11148 = vmatpush1.bf16.xpose.msra.mxu0 0
    %11149 = vmatprep.subr.bf16.mxu0 0
    %11150 = vmatpush1.bf16.xpose.msra.mxu0 0
    %11151 = vmatprep.subr.bf16.mxu0 0
    %11152 = vmatpush1.bf16.xpose.msra.mxu0 0
    %11153 = vmatprep.mubr.bf16.mxu0 %v10934
    %11154 = vmatmul.mubr.bf16.gmra.mrb[0].mxu0 %v10933
    %v11155 = vpop.f32.mrb[0].mxu0
    %v11156 = vadd.f32 %v11116, %v11155
    %v11157 = vpop.f32.mrb[0].mxu0
    %v11158 = vpop.f32.mrb[0].mxu0
    %v11159 = vpop.f32.mrb[0].mxu0
    %11160 = vdwg.mxu0
    %vm11161 = vcmask 9216
    %11162 = vst.msk [vmem:[#allocation7] sm:$0x3] %vm11161, %v11156
    // Predicated region
    $region62: #{convnet_forward.1} parent=1 // pred_check
      _
    $region63: #{convnet_forward.1} parent=1 // pred_check_branch
      %11164 = sbr.rel (0) target = $region65
    $region64: #{convnet_forward.1} parent=1 // pred_region
      %s11166 = ssub.s32 32, 32
      %11167 = vsyncadd [#allocation8], %s11166
      %s11169 = sshll.u32 [#allocation7], 4
      %s11170 = int_to_ptr.vmem [resolvable:$true] %s11169
      %11172 = dma.vmem_to_hbm [thread:$0]  %s11170, 32, %s15, [#allocation8]
    $region65: #{convnet_forward.1} parent=1 // pred_fallthru
      _
    // Predicated region
    $region66: #{convnet_forward.1} parent=1 // pred_check
      _
    $region67: #{convnet_forward.1} parent=1 // pred_check_branch
      %11174 = sbr.rel (0) target = $region69
    $region68: #{convnet_forward.1} parent=1 // pred_region
      %11175 = dma.done [#allocation8], 32
    $region69: #{convnet_forward.1} parent=1 // pred_fallthru
      _
    %11176 = vsyncpa [#allocation8], 1

</llo_original>
